<compile_context>
chip_gen: v7x
topology: tpu7x:2x2x1
jax: 0.10.0
libtpu: 0.0.40
codegen_flags: <defaults>
</compile_context>

<pallas_src>
from functools import partial

import jax
import jax.numpy as jnp
import numpy as np
from jax.experimental import pallas as pl
from jax.experimental.pallas import tpu as pltpu


def mhsa_kernel(x_ref, wqkv_ref, bqkv_ref, wout_ref, bout_ref, o_ref,
                *, num_heads, head_dim, mm_dtype, exp_dtype, approx_recip):
    C = num_heads * head_dim
    bb = x_ref.shape[0]            # batches handled by this grid step (static)

    # Statically-unrolled batch loop.  Per-batch layouts stay clean and
    # channel-major; building a (C, bb*HW) slab instead would cost a relayout
    # of all of x through the XLU for a matmul that is depth-starved anyway.
    # TODO(synk): add a KV-tile grid axis with online softmax before scaling
    # H*W (S/P grow as HW^2: v5e default scoped VMEM is 16 MiB, v7x physical
    # VMEM is 64 MiB), and a heads grid axis for v7x when B == 1.
    for b in range(bb):
        x = x_ref[b]                                     # (C, HW) f32, channel-major
        # 1x1 QKV conv == (3C, C) @ (C, HW) on the MXU (q-scale pre-folded).
        qkv = jnp.dot(wqkv_ref[...], x, preferred_element_type=jnp.float32)
        qkv = qkv + bqkv_ref[...]                        # (3C, HW) f32, lane-broadcast bias

        # (C, HW) -> (nh, hd, HW): heads land on tile-aligned 8-sublane slabs (free).
        q = qkv[0 * C:1 * C].reshape(num_heads, head_dim, -1)
        k = qkv[1 * C:2 * C].reshape(num_heads, head_dim, -1)
        v = qkv[2 * C:3 * C].reshape(num_heads, head_dim, -1)

        # QK^T in the natural MXU orientation: transpose only the tiny (hd, HW)
        # q slabs.  K = head_dim = 8 underfills the MXU regardless of dtype, so
        # q/k stay f32 (no cast cost, no sub-tile bf16 packing relayouts).
        q_t = jnp.swapaxes(q, -1, -2)                    # (nh, HW, hd), small XLU relayout
        s = jnp.einsum('hqd,hdk->hqk', q_t, k,
                       preferred_element_type=jnp.float32)       # (nh, HW, HW) f32

        # Unnormalized softmax numerator; max-subtraction stays f32.
        s = s - jnp.max(s, axis=-1, keepdims=True)
        p = jnp.exp(s.astype(exp_dtype))                 # exp_dtype=bf16 only on v6e/v7x
        l = jnp.sum(p, axis=-1, keepdims=True, dtype=jnp.float32)  # (nh, HW, 1) f32 accum

        # P @ V with the big P matrix untouched: transpose the tiny (hd, HW) v
        # slabs instead and matmul in natural orientation (K = HW = 256 is the
        # only matmul where bf16 operands actually raise MXU throughput).
        v_t = jnp.swapaxes(v, -1, -2).astype(mm_dtype)   # (nh, HW, hd)
        o_qd = jnp.einsum('hqk,hkd->hqd', p.astype(mm_dtype), v_t,
                          preferred_element_type=jnp.float32)    # (nh, HW, hd) f32

        # Deferred softmax normalization on the small PV output (EUP reciprocal
        # when approx; broadcast of 1/l along the hd lanes only).
        o_qd = o_qd * pl.reciprocal(l, approx=approx_recip)

        # Back to channel-major: only the small (HW, hd) result slabs relayout.
        attn = jnp.swapaxes(o_qd, -1, -2).reshape(C, -1)          # (C, HW)

        # Output 1x1 conv, channel-major; the store over HW lanes is lane-dense.
        out = jnp.dot(wout_ref[...], attn, preferred_element_type=jnp.float32)
        out = out + bout_ref[...]
        o_ref[b] = out.astype(o_ref.dtype)


def mhsa_pallas(x_nchw, wqkv, bqkv, wout, bout, num_heads, *,
                compute_dtype=jnp.float32, exp_dtype=jnp.float32,
                approx_recip=False, grid_steps=1, out_dtype=None):
    """Forward pass of MultiHeadSelfAttention (NCHW in / NCHW out).

    grid_steps:    number of (parallel) grid steps over the batch.  Use 1 on
                   single-TC v5e/v6e; use 2 (or B) on dual-TC v7x.
    compute_dtype: operand dtype for the PV matmul only (bf16 valid on all gens).
    exp_dtype:     dtype for the softmax exp (bf16 only worthwhile on v6e/v7x).
    out_dtype:     output dtype (default: input dtype).
    """
    B, C, H, W = x_nchw.shape
    HW = H * W
    head_dim = C // num_heads
    assert C % num_heads == 0, "in_channels must be divisible by num_heads"
    assert B % grid_steps == 0, "grid_steps must divide batch"
    bb = B // grid_steps
    out_dtype = x_nchw.dtype if out_dtype is None else out_dtype

    # NCHW -> (B, C, HW) is a pure reshape: no transpose, no extra HBM traffic,
    # and no wrapper-side dtype cast (x enters the kernel in its own dtype).
    x_chw = x_nchw.reshape(B, C, HW)

    # 1x1-conv weights as matrices.  Fold the 1/sqrt(head_dim) attention scale
    # into the q rows of the QKV projection (weights AND bias) at trace time.
    scale = head_dim ** -0.5
    q_scale = jnp.concatenate([jnp.full((C,), scale, jnp.float32),
                               jnp.ones((2 * C,), jnp.float32)])
    wqkv_m = wqkv.reshape(3 * C, C).astype(jnp.float32) * q_scale[:, None]
    bqkv_m = (bqkv.astype(jnp.float32) * q_scale).reshape(3 * C, 1)
    wout_m = wout.reshape(C, C).astype(jnp.float32)
    bout_m = bout.reshape(C, 1).astype(jnp.float32)

    kernel = partial(mhsa_kernel, num_heads=num_heads, head_dim=head_dim,
                     mm_dtype=compute_dtype, exp_dtype=exp_dtype,
                     approx_recip=approx_recip)
    out = pl.pallas_call(
        kernel,
        out_shape=jax.ShapeDtypeStruct((B, C, HW), out_dtype),
        grid=(grid_steps,),
        in_specs=[
            pl.BlockSpec((bb, C, HW), lambda g: (g, 0, 0)),
            pl.BlockSpec((3 * C, C), lambda g: (0, 0)),
            pl.BlockSpec((3 * C, 1), lambda g: (0, 0)),
            pl.BlockSpec((C, C), lambda g: (0, 0)),
            pl.BlockSpec((C, 1), lambda g: (0, 0)),
        ],
        out_specs=pl.BlockSpec((bb, C, HW), lambda g: (g, 0, 0)),
        compiler_params=pltpu.CompilerParams(
            dimension_semantics=("parallel",)),   # v7x: batch blocks split across TCs
    )(x_chw, wqkv_m, bqkv_m, wout_m, bout_m)

    # (B, C, HW) -> NCHW is again a pure reshape.
    return out.reshape(B, C, H, W)


def mhsa_reference(x, wqkv, bqkv, wout, bout, num_heads):
    """Pure-JAX reference following the PyTorch forward exactly."""
    B, C, H, W = x.shape
    hd = C // num_heads
    HW = H * W
    xf = x.reshape(B, C, HW)
    qkv = jnp.einsum('oc,bcs->bos', wqkv.reshape(3 * C, C), xf) + bqkv.reshape(1, 3 * C, 1)
    qkv = qkv.reshape(B, 3, num_heads, hd, HW)
    q, k, v = qkv[:, 0], qkv[:, 1], qkv[:, 2]        # (B, nh, hd, HW)
    q = jnp.swapaxes(q, -2, -1)                      # (B, nh, HW, hd)
    k = jnp.swapaxes(k, -2, -1)
    v = jnp.swapaxes(v, -2, -1)
    attn = jnp.einsum('bhqd,bhkd->bhqk', q, k) * (hd ** -0.5)
    attn = jax.nn.softmax(attn, axis=-1)
    out = jnp.einsum('bhqk,bhkd->bhqd', attn, v)
    out = jnp.swapaxes(out, -2, -1).reshape(B, C, HW)
    out = jnp.einsum('oc,bcs->bos', wout.reshape(C, C), out) + bout.reshape(1, C, 1)
    return out.reshape(B, C, H, W)


if __name__ == "__main__":
    # Shapes consistent with the module: batch=2, channels=32, spatial=16x16, heads=4.
    B, C, H, W = 2, 32, 16, 16
    num_heads = 4

    key = jax.random.PRNGKey(0)
    kx, k1, k2, k3, k4 = jax.random.split(key, 5)

    x = jax.random.normal(kx, (B, C, H, W), dtype=jnp.float32)
    # Parameter shapes match nn.Conv2d(C, 3C, 1) / nn.Conv2d(C, C, 1).
    wqkv = jax.random.normal(k1, (3 * C, C, 1, 1), dtype=jnp.float32) * 0.05
    bqkv = jax.random.normal(k2, (3 * C,), dtype=jnp.float32) * 0.05
    wout = jax.random.normal(k3, (C, C, 1, 1), dtype=jnp.float32) * 0.05
    bout = jax.random.normal(k4, (C,), dtype=jnp.float32) * 0.05

    ref = mhsa_reference(x, wqkv, bqkv, wout, bout, num_heads)

    # 1) Single-TC configuration (v5e/v6e): whole batch in ONE grid step,
    #    strict f32 everywhere, exact reciprocal -- tight tolerance.
    out_f32 = mhsa_pallas(x, wqkv, bqkv, wout, bout, num_heads,
                          compute_dtype=jnp.float32, approx_recip=False,
                          grid_steps=1)
    out_f32 = jax.block_until_ready(out_f32)
    np.testing.assert_allclose(np.asarray(out_f32), np.asarray(ref),
                               rtol=2e-4, atol=2e-4)

    # 2) Dual-TC style configuration (v7x): two parallel grid steps over the
    #    batch, bf16 operands for the K=256 PV matmul + EUP approx reciprocal
    #    (softmax math and all accumulation stay f32) -- looser tolerance.
    #    On v6e/v7x you can additionally pass exp_dtype=jnp.bfloat16 (bf16 EUP)
    #    to halve P's footprint; keep exp in f32 on v5e.
    out_bf16 = mhsa_pallas(x, wqkv, bqkv, wout, bout, num_heads,
                           compute_dtype=jnp.bfloat16, approx_recip=True,
                           grid_steps=2)
    out_bf16 = jax.block_until_ready(out_bf16)
    np.testing.assert_allclose(np.asarray(out_bf16), np.asarray(ref),
                               rtol=2e-2, atol=2e-2)

    print("KERNEL_OK")
</pallas_src>

<mosaic_0001>
module attributes {stable_mosaic.version = 11 : i64} {
  func.func @mhsa_kernel(%arg0: i32, %arg1: memref<2x32x256xf32, #tpu.memory_space<vmem>>, %arg2: memref<96x32xf32, #tpu.memory_space<vmem>>, %arg3: memref<96x1xf32, #tpu.memory_space<vmem>>, %arg4: memref<32x32xf32, #tpu.memory_space<vmem>>, %arg5: memref<32x1xf32, #tpu.memory_space<vmem>>, %arg6: memref<2x32x256xf32, #tpu.memory_space<vmem>>) attributes {dimension_semantics = [#tpu.dimension_semantics<parallel>], iteration_bounds = array<i64: 1>, scalar_prefetch = 0 : i64, scratch_operands = 0 : i64, tpu.core_type = #tpu.core_type<tc>, window_params = [{transform_indices = @transform_0, window_bounds = array<i64: 2, 32, 256>}, {pipeline_mode = #tpu.pipeline_mode<synchronous>, transform_indices = @transform_1, window_bounds = array<i64: 96, 32>}, {pipeline_mode = #tpu.pipeline_mode<synchronous>, transform_indices = @transform_2, window_bounds = array<i64: 96, 1>}, {pipeline_mode = #tpu.pipeline_mode<synchronous>, transform_indices = @transform_3, window_bounds = array<i64: 32, 32>}, {pipeline_mode = #tpu.pipeline_mode<synchronous>, transform_indices = @transform_4, window_bounds = array<i64: 32, 1>}, {transform_indices = @transform_5, window_bounds = array<i64: 2, 32, 256>}]} {
    %c0 = arith.constant 0 : index
    %c0_0 = arith.constant 0 : index
    %c0_1 = arith.constant 0 : index
    %0 = vector.load %arg1[%c0, %c0_0, %c0_1] : memref<2x32x256xf32, #tpu.memory_space<vmem>>, vector<1x32x256xf32>
    %1 = vector.shape_cast %0 : vector<1x32x256xf32> to vector<32x256xf32>
    %c0_2 = arith.constant 0 : index
    %c0_3 = arith.constant 0 : index
    %2 = vector.load %arg2[%c0_2, %c0_3] : memref<96x32xf32, #tpu.memory_space<vmem>>, vector<96x32xf32>
    %cst = arith.constant dense<0.000000e+00> : vector<96x256xf32>
    %3 = tpu.matmul %2, %1, %cst {dimension_numbers = #tpu.dot_dimension_numbers<[1], [0], [0], [1], [0, 0, 1, 1], [], []>} : vector<96x32xf32>, vector<32x256xf32>, vector<96x256xf32> -> vector<96x256xf32>
    %c0_4 = arith.constant 0 : index
    %c0_5 = arith.constant 0 : index
    %4 = vector.load %arg3[%c0_4, %c0_5] : memref<96x1xf32, #tpu.memory_space<vmem>>, vector<96x1xf32>
    %5 = vector.broadcast %4 : vector<96x1xf32> to vector<96x256xf32>
    %6 = arith.addf %3, %5 : vector<96x256xf32>
    %7 = vector.extract_strided_slice %6 {offsets = [0, 0], sizes = [32, 256], strides = [1, 1]} : vector<96x256xf32> to vector<32x256xf32>
    %8 = vector.shape_cast %7 : vector<32x256xf32> to vector<4x8x256xf32>
    %9 = vector.extract_strided_slice %6 {offsets = [32, 0], sizes = [32, 256], strides = [1, 1]} : vector<96x256xf32> to vector<32x256xf32>
    %10 = vector.shape_cast %9 : vector<32x256xf32> to vector<4x8x256xf32>
    %11 = vector.extract_strided_slice %6 {offsets = [64, 0], sizes = [32, 256], strides = [1, 1]} : vector<96x256xf32> to vector<32x256xf32>
    %12 = vector.shape_cast %11 : vector<32x256xf32> to vector<4x8x256xf32>
    %13 = tpu.transpose %8, [0, 2, 1] : vector<4x8x256xf32> -> vector<4x256x8xf32>
    "tpu.trace_start"() <{level = 10 : i32, message = "hqd,hdk->hqk"}> : () -> ()
    %cst_6 = arith.constant dense<0.000000e+00> : vector<4x256x256xf32>
    %14 = tpu.matmul %13, %10, %cst_6 {dimension_numbers = #tpu.dot_dimension_numbers<[2], [1], [1], [2], [0, 0, 0, 1, 1, 2], [0], [0]>} : vector<4x256x8xf32>, vector<4x8x256xf32>, vector<4x256x256xf32> -> vector<4x256x256xf32>
    "tpu.trace_stop"() : () -> ()
    %cst_7 = arith.constant dense<0xFF800000> : vector<4x256xf32>
    %15 = vector.multi_reduction <maximumf>, %14, %cst_7 [2] : vector<4x256x256xf32> to vector<4x256xf32>
    %16 = vector.shape_cast %15 : vector<4x256xf32> to vector<4x256x1xf32>
    %17 = vector.broadcast %16 : vector<4x256x1xf32> to vector<4x256x256xf32>
    %18 = arith.subf %14, %17 : vector<4x256x256xf32>
    %19 = math.exp %18 : vector<4x256x256xf32>
    %cst_8 = arith.constant dense<0.000000e+00> : vector<4x256xf32>
    %20 = vector.multi_reduction <add>, %19, %cst_8 [2] : vector<4x256x256xf32> to vector<4x256xf32>
    %21 = vector.shape_cast %20 : vector<4x256xf32> to vector<4x256x1xf32>
    %22 = tpu.transpose %12, [0, 2, 1] : vector<4x8x256xf32> -> vector<4x256x8xf32>
    "tpu.trace_start"() <{level = 10 : i32, message = "hqk,hkd->hqd"}> : () -> ()
    %cst_9 = arith.constant dense<0.000000e+00> : vector<4x256x8xf32>
    %23 = tpu.matmul %19, %22, %cst_9 {dimension_numbers = #tpu.dot_dimension_numbers<[2], [1], [1], [2], [0, 0, 0, 1, 1, 2], [0], [0]>} : vector<4x256x256xf32>, vector<4x256x8xf32>, vector<4x256x8xf32> -> vector<4x256x8xf32>
    "tpu.trace_stop"() : () -> ()
    %24 = tpu.reciprocal %21 : vector<4x256x1xf32> -> vector<4x256x1xf32>
    %25 = vector.broadcast %24 : vector<4x256x1xf32> to vector<4x256x8xf32>
    %26 = arith.mulf %23, %25 : vector<4x256x8xf32>
    %27 = tpu.transpose %26, [0, 2, 1] : vector<4x256x8xf32> -> vector<4x8x256xf32>
    %28 = vector.shape_cast %27 : vector<4x8x256xf32> to vector<32x256xf32>
    %c0_10 = arith.constant 0 : index
    %c0_11 = arith.constant 0 : index
    %29 = vector.load %arg4[%c0_10, %c0_11] : memref<32x32xf32, #tpu.memory_space<vmem>>, vector<32x32xf32>
    %cst_12 = arith.constant dense<0.000000e+00> : vector<32x256xf32>
    %30 = tpu.matmul %29, %28, %cst_12 {dimension_numbers = #tpu.dot_dimension_numbers<[1], [0], [0], [1], [0, 0, 1, 1], [], []>} : vector<32x32xf32>, vector<32x256xf32>, vector<32x256xf32> -> vector<32x256xf32>
    %c0_13 = arith.constant 0 : index
    %c0_14 = arith.constant 0 : index
    %31 = vector.load %arg5[%c0_13, %c0_14] : memref<32x1xf32, #tpu.memory_space<vmem>>, vector<32x1xf32>
    %32 = vector.broadcast %31 : vector<32x1xf32> to vector<32x256xf32>
    %33 = arith.addf %30, %32 : vector<32x256xf32>
    %c0_15 = arith.constant 0 : index
    %c0_16 = arith.constant 0 : index
    %c0_17 = arith.constant 0 : index
    %34 = vector.load %arg6[%c0_15, %c0_16, %c0_17] : memref<2x32x256xf32, #tpu.memory_space<vmem>>, vector<1x32x256xf32>
    %35 = vector.shape_cast %34 : vector<1x32x256xf32> to vector<32x256xf32>
    %36 = vector.shape_cast %33 : vector<32x256xf32> to vector<1x32x256xf32>
    tpu.vector_store %arg6[%c0_15, %c0_16, %c0_17], %36 {strides = array<i32>} : memref<2x32x256xf32, #tpu.memory_space<vmem>>, vector<1x32x256xf32>,
    %c1 = arith.constant 1 : index
    %c0_18 = arith.constant 0 : index
    %c0_19 = arith.constant 0 : index
    %37 = vector.load %arg1[%c1, %c0_18, %c0_19] : memref<2x32x256xf32, #tpu.memory_space<vmem>>, vector<1x32x256xf32>
    %38 = vector.shape_cast %37 : vector<1x32x256xf32> to vector<32x256xf32>
    %c0_20 = arith.constant 0 : index
    %c0_21 = arith.constant 0 : index
    %39 = vector.load %arg2[%c0_20, %c0_21] : memref<96x32xf32, #tpu.memory_space<vmem>>, vector<96x32xf32>
    %cst_22 = arith.constant dense<0.000000e+00> : vector<96x256xf32>
    %40 = tpu.matmul %39, %38, %cst_22 {dimension_numbers = #tpu.dot_dimension_numbers<[1], [0], [0], [1], [0, 0, 1, 1], [], []>} : vector<96x32xf32>, vector<32x256xf32>, vector<96x256xf32> -> vector<96x256xf32>
    %c0_23 = arith.constant 0 : index
    %c0_24 = arith.constant 0 : index
    %41 = vector.load %arg3[%c0_23, %c0_24] : memref<96x1xf32, #tpu.memory_space<vmem>>, vector<96x1xf32>
    %42 = vector.broadcast %41 : vector<96x1xf32> to vector<96x256xf32>
    %43 = arith.addf %40, %42 : vector<96x256xf32>
    %44 = vector.extract_strided_slice %43 {offsets = [0, 0], sizes = [32, 256], strides = [1, 1]} : vector<96x256xf32> to vector<32x256xf32>
    %45 = vector.shape_cast %44 : vector<32x256xf32> to vector<4x8x256xf32>
    %46 = vector.extract_strided_slice %43 {offsets = [32, 0], sizes = [32, 256], strides = [1, 1]} : vector<96x256xf32> to vector<32x256xf32>
    %47 = vector.shape_cast %46 : vector<32x256xf32> to vector<4x8x256xf32>
    %48 = vector.extract_strided_slice %43 {offsets = [64, 0], sizes = [32, 256], strides = [1, 1]} : vector<96x256xf32> to vector<32x256xf32>
    %49 = vector.shape_cast %48 : vector<32x256xf32> to vector<4x8x256xf32>
    %50 = tpu.transpose %45, [0, 2, 1] : vector<4x8x256xf32> -> vector<4x256x8xf32>
    "tpu.trace_start"() <{level = 10 : i32, message = "hqd,hdk->hqk"}> : () -> ()
    %cst_25 = arith.constant dense<0.000000e+00> : vector<4x256x256xf32>
    %51 = tpu.matmul %50, %47, %cst_25 {dimension_numbers = #tpu.dot_dimension_numbers<[2], [1], [1], [2], [0, 0, 0, 1, 1, 2], [0], [0]>} : vector<4x256x8xf32>, vector<4x8x256xf32>, vector<4x256x256xf32> -> vector<4x256x256xf32>
    "tpu.trace_stop"() : () -> ()
    %cst_26 = arith.constant dense<0xFF800000> : vector<4x256xf32>
    %52 = vector.multi_reduction <maximumf>, %51, %cst_26 [2] : vector<4x256x256xf32> to vector<4x256xf32>
    %53 = vector.shape_cast %52 : vector<4x256xf32> to vector<4x256x1xf32>
    %54 = vector.broadcast %53 : vector<4x256x1xf32> to vector<4x256x256xf32>
    %55 = arith.subf %51, %54 : vector<4x256x256xf32>
    %56 = math.exp %55 : vector<4x256x256xf32>
    %cst_27 = arith.constant dense<0.000000e+00> : vector<4x256xf32>
    %57 = vector.multi_reduction <add>, %56, %cst_27 [2] : vector<4x256x256xf32> to vector<4x256xf32>
    %58 = vector.shape_cast %57 : vector<4x256xf32> to vector<4x256x1xf32>
    %59 = tpu.transpose %49, [0, 2, 1] : vector<4x8x256xf32> -> vector<4x256x8xf32>
    "tpu.trace_start"() <{level = 10 : i32, message = "hqk,hkd->hqd"}> : () -> ()
    %cst_28 = arith.constant dense<0.000000e+00> : vector<4x256x8xf32>
    %60 = tpu.matmul %56, %59, %cst_28 {dimension_numbers = #tpu.dot_dimension_numbers<[2], [1], [1], [2], [0, 0, 0, 1, 1, 2], [0], [0]>} : vector<4x256x256xf32>, vector<4x256x8xf32>, vector<4x256x8xf32> -> vector<4x256x8xf32>
    "tpu.trace_stop"() : () -> ()
    %61 = tpu.reciprocal %58 : vector<4x256x1xf32> -> vector<4x256x1xf32>
    %62 = vector.broadcast %61 : vector<4x256x1xf32> to vector<4x256x8xf32>
    %63 = arith.mulf %60, %62 : vector<4x256x8xf32>
    %64 = tpu.transpose %63, [0, 2, 1] : vector<4x256x8xf32> -> vector<4x8x256xf32>
    %65 = vector.shape_cast %64 : vector<4x8x256xf32> to vector<32x256xf32>
    %c0_29 = arith.constant 0 : index
    %c0_30 = arith.constant 0 : index
    %66 = vector.load %arg4[%c0_29, %c0_30] : memref<32x32xf32, #tpu.memory_space<vmem>>, vector<32x32xf32>
    %cst_31 = arith.constant dense<0.000000e+00> : vector<32x256xf32>
    %67 = tpu.matmul %66, %65, %cst_31 {dimension_numbers = #tpu.dot_dimension_numbers<[1], [0], [0], [1], [0, 0, 1, 1], [], []>} : vector<32x32xf32>, vector<32x256xf32>, vector<32x256xf32> -> vector<32x256xf32>
    %c0_32 = arith.constant 0 : index
    %c0_33 = arith.constant 0 : index
    %68 = vector.load %arg5[%c0_32, %c0_33] : memref<32x1xf32, #tpu.memory_space<vmem>>, vector<32x1xf32>
    %69 = vector.broadcast %68 : vector<32x1xf32> to vector<32x256xf32>
    %70 = arith.addf %67, %69 : vector<32x256xf32>
    %c1_34 = arith.constant 1 : index
    %c0_35 = arith.constant 0 : index
    %c0_36 = arith.constant 0 : index
    %71 = vector.load %arg6[%c1_34, %c0_35, %c0_36] : memref<2x32x256xf32, #tpu.memory_space<vmem>>, vector<1x32x256xf32>
    %72 = vector.shape_cast %71 : vector<1x32x256xf32> to vector<32x256xf32>
    %73 = vector.shape_cast %70 : vector<32x256xf32> to vector<1x32x256xf32>
    tpu.vector_store %arg6[%c1_34, %c0_35, %c0_36], %73 {strides = array<i32>} : memref<2x32x256xf32, #tpu.memory_space<vmem>>, vector<1x32x256xf32>,
    return
  }
  func.func @transform_0(%arg0: i32) -> (i32, i32, i32) {
    %c0_i32 = arith.constant 0 : i32
    %c0_i32_0 = arith.constant 0 : i32
    %c0_i32_1 = arith.constant 0 : i32
    return %arg0, %c0_i32, %c0_i32_0 : i32, i32, i32
  }
  func.func @transform_1(%arg0: i32) -> (i32, i32) {
    %c0_i32 = arith.constant 0 : i32
    %c0_i32_0 = arith.constant 0 : i32
    %c0_i32_1 = arith.constant 0 : i32
    return %c0_i32, %c0_i32_0 : i32, i32
  }
  func.func @transform_2(%arg0: i32) -> (i32, i32) {
    %c0_i32 = arith.constant 0 : i32
    %c0_i32_0 = arith.constant 0 : i32
    %c0_i32_1 = arith.constant 0 : i32
    return %c0_i32, %c0_i32_0 : i32, i32
  }
  func.func @transform_3(%arg0: i32) -> (i32, i32) {
    %c0_i32 = arith.constant 0 : i32
    %c0_i32_0 = arith.constant 0 : i32
    %c0_i32_1 = arith.constant 0 : i32
    return %c0_i32, %c0_i32_0 : i32, i32
  }
  func.func @transform_4(%arg0: i32) -> (i32, i32) {
    %c0_i32 = arith.constant 0 : i32
    %c0_i32_0 = arith.constant 0 : i32
    %c0_i32_1 = arith.constant 0 : i32
    return %c0_i32, %c0_i32_0 : i32, i32
  }
  func.func @transform_5(%arg0: i32) -> (i32, i32, i32) {
    %c0_i32 = arith.constant 0 : i32
    %c0_i32_0 = arith.constant 0 : i32
    %c0_i32_1 = arith.constant 0 : i32
    return %arg0, %c0_i32, %c0_i32_0 : i32, i32, i32
  }
}

</mosaic_0001>

<llo_original>
// kernel: tpu_custom_call.1
$region0: #{tpu_custom_call.1}
  #allocation0 [shape = 'u32[]', space=smem, size = 0x4, offset = 0x4, fixed_abs, tag = 'smem constant byte address 0x4 - core index']
  #allocation1 [shape = 'u32[144,128]{1,0:T(1,128)}', space=vmem, size = 0x12000, scoped, tag = 'internal scratch']
  %s0 = inlined_call_operand.vmem [shape: f32[2,32,256], index: 0, kind: input, shape index: {}]
  %s1 = inlined_call_operand.vmem [shape: f32[96,32], index: 1, kind: input, shape index: {}]
  %s2 = inlined_call_operand.vmem [shape: f32[96,1], index: 2, kind: input, shape index: {}]
  %s3 = inlined_call_operand.vmem [shape: f32[32,32], index: 3, kind: input, shape index: {}]
  %s4 = inlined_call_operand.vmem [shape: f32[32,1], index: 4, kind: input, shape index: {}]
  %s5 = inlined_call_operand.hbm [shape: f32[2,32,256], index: 5, kind: output, shape index: {}]
  %s6 = sld [smem:[#allocation0]]
  $region30: #{tpu_custom_call.1} parent=0
    _
  %s8 = ssub.s32 1, %s6
  %s9 = scalar_select 0, %s8, %s6
  $region1: #{tpu_custom_call.1} parent=0
    #allocation2 [shape = 'u8[65536]{0}', space=vmem, size = 0x10000, scoped, tag = 'output window, operand 0, single buffered']
    #allocation3 [shape = 's32[1]{0}', space=sflag, size = 0x4, scoped, tag = 'scoped memory for tpu_custom_call.1']
    %10 = vsyncpa [#allocation3], 0
    // Predicated region
    $region2: #{tpu_custom_call.1} parent=1 // pred_check
      _
    $region3: #{tpu_custom_call.1} parent=1 // pred_check_branch
      %12 = sbr.rel (0) target = $region5
    $region4: #{tpu_custom_call.1} parent=1 // pred_region
      _
    $region5: #{tpu_custom_call.1} parent=1 // pred_fallthru
      _
    // Predicated region
    $region6: #{tpu_custom_call.1} parent=1 // pred_check
      _
    $region7: #{tpu_custom_call.1} parent=1 // pred_check_branch
      %14 = sbr.rel (0) target = $region9
    $region8: #{tpu_custom_call.1} parent=1 // pred_region
      _
    $region9: #{tpu_custom_call.1} parent=1 // pred_fallthru
      _
    // Predicated region
    $region10: #{tpu_custom_call.1} parent=1 // pred_check
      _
    $region11: #{tpu_custom_call.1} parent=1 // pred_check_branch
      %16 = sbr.rel (0) target = $region13
    $region12: #{tpu_custom_call.1} parent=1 // pred_region
      _
    $region13: #{tpu_custom_call.1} parent=1 // pred_fallthru
      _
    // Predicated region
    $region14: #{tpu_custom_call.1} parent=1 // pred_check
      _
    $region15: #{tpu_custom_call.1} parent=1 // pred_check_branch
      %18 = sbr.rel (0) target = $region17
    $region16: #{tpu_custom_call.1} parent=1 // pred_region
      _
    $region17: #{tpu_custom_call.1} parent=1 // pred_fallthru
      _
    // Predicated region
    $region18: #{tpu_custom_call.1} parent=1 // pred_check
      _
    $region19: #{tpu_custom_call.1} parent=1 // pred_check_branch
      %20 = sbr.rel (0) target = $region21
    $region20: #{tpu_custom_call.1} parent=1 // pred_region
      _
    $region21: #{tpu_custom_call.1} parent=1 // pred_fallthru
      _
    %v21 = vld [vmem:[%s0] sm:$0xff]
    %v22 = vld [vmem:[%s0 + $0x8] sm:$0xff]
    %v23 = vld [vmem:[%s0 + $0x10] sm:$0xff]
    %v24 = vld [vmem:[%s0 + $0x18] sm:$0xff]
    %v25 = vld [vmem:[%s0 + $0x20] sm:$0xff]
    %v26 = vld [vmem:[%s0 + $0x28] sm:$0xff]
    %v27 = vld [vmem:[%s0 + $0x30] sm:$0xff]
    %v28 = vld [vmem:[%s0 + $0x38] sm:$0xff]
    %v29 = vld [vmem:[%s1] sm:$0xff]
    %v30 = vld [vmem:[%s1 + $0x8] sm:$0xff]
    %v31 = vld [vmem:[%s1 + $0x10] sm:$0xff]
    %v32 = vld [vmem:[%s1 + $0x18] sm:$0xff]
    %v33 = vld [vmem:[%s1 + $0x20] sm:$0xff]
    %v34 = vld [vmem:[%s1 + $0x28] sm:$0xff]
    %v35 = vld [vmem:[%s1 + $0x30] sm:$0xff]
    %v36 = vld [vmem:[%s1 + $0x38] sm:$0xff]
    %v37 = vld [vmem:[%s1 + $0x40] sm:$0xff]
    %v38 = vld [vmem:[%s1 + $0x48] sm:$0xff]
    %v39 = vld [vmem:[%s1 + $0x50] sm:$0xff]
    %v40 = vld [vmem:[%s1 + $0x58] sm:$0xff]
    %v41 = vld [vmem:[%s2] sm:$0xff]
    %v42 = vld [vmem:[%s2 + $0x8] sm:$0xff]
    %v43 = vld [vmem:[%s2 + $0x10] sm:$0xff]
    %v44 = vld [vmem:[%s2 + $0x18] sm:$0xff]
    %v45 = vld [vmem:[%s2 + $0x20] sm:$0xff]
    %v46 = vld [vmem:[%s2 + $0x28] sm:$0xff]
    %v47 = vld [vmem:[%s2 + $0x30] sm:$0xff]
    %v48 = vld [vmem:[%s2 + $0x38] sm:$0xff]
    %v49 = vld [vmem:[%s2 + $0x40] sm:$0xff]
    %v50 = vld [vmem:[%s2 + $0x48] sm:$0xff]
    %v51 = vld [vmem:[%s2 + $0x50] sm:$0xff]
    %v52 = vld [vmem:[%s2 + $0x58] sm:$0xff]
    %54 = vset.pattern.permute.xlu0 0
    %55 = vperm.xlu0 %54, %v41
    %v56 = vpop.permute.xlu0 %55
    %59 = vset.pattern.permute.xlu0 0
    %60 = vperm.xlu0 %59, %v42
    %v61 = vpop.permute.xlu0 %60
    %64 = vset.pattern.permute.xlu0 0
    %65 = vperm.xlu0 %64, %v43
    %v66 = vpop.permute.xlu0 %65
    %69 = vset.pattern.permute.xlu0 0
    %70 = vperm.xlu0 %69, %v44
    %v71 = vpop.permute.xlu0 %70
    %74 = vset.pattern.permute.xlu0 0
    %75 = vperm.xlu0 %74, %v45
    %v76 = vpop.permute.xlu0 %75
    %79 = vset.pattern.permute.xlu0 0
    %80 = vperm.xlu0 %79, %v46
    %v81 = vpop.permute.xlu0 %80
    %84 = vset.pattern.permute.xlu0 0
    %85 = vperm.xlu0 %84, %v47
    %v86 = vpop.permute.xlu0 %85
    %89 = vset.pattern.permute.xlu0 0
    %90 = vperm.xlu0 %89, %v48
    %v91 = vpop.permute.xlu0 %90
    %94 = vset.pattern.permute.xlu0 0
    %95 = vperm.xlu0 %94, %v49
    %v96 = vpop.permute.xlu0 %95
    %99 = vset.pattern.permute.xlu0 0
    %100 = vperm.xlu0 %99, %v50
    %v101 = vpop.permute.xlu0 %100
    %104 = vset.pattern.permute.xlu0 0
    %105 = vperm.xlu0 %104, %v51
    %v106 = vpop.permute.xlu0 %105
    %109 = vset.pattern.permute.xlu0 0
    %110 = vperm.xlu0 %109, %v52
    %v111 = vpop.permute.xlu0 %110
    %vm113 = vcmask 261120
    %v115 = vsel %vm113, %v29, 0
    %v118 = vsel %vm113, %v30, 0
    %v121 = vsel %vm113, %v31, 0
    %v124 = vsel %vm113, %v32, 0
    %v127 = vsel %vm113, %v33, 0
    %v130 = vsel %vm113, %v34, 0
    %v133 = vsel %vm113, %v35, 0
    %v136 = vsel %vm113, %v36, 0
    %v139 = vsel %vm113, %v37, 0
    %v142 = vsel %vm113, %v38, 0
    %v145 = vsel %vm113, %v39, 0
    %v148 = vsel %vm113, %v40, 0
    %150 = vmatprep.subr.mxu0 %v22
    %151 = vmatpush1.msra.mxu0 %v21
    %152 = vmatprep.subr.mxu0 %v24
    %153 = vmatpush1.msra.mxu0 %v23
    %154 = vmatprep.subr.mxu0 %v26
    %155 = vmatpush1.msra.mxu0 %v25
    %156 = vmatprep.subr.mxu0 %v28
    %157 = vmatpush1.msra.mxu0 %v27
    %158 = vmatprep.subr.mxu0 0.0
    %159 = vmatpush1.msra.mxu0 0.0
    %160 = vmatprep.subr.mxu0 0.0
    %161 = vmatpush1.msra.mxu0 0.0
    %162 = vmatprep.subr.mxu0 0.0
    %163 = vmatpush1.msra.mxu0 0.0
    %164 = vmatprep.subr.mxu0 0.0
    %165 = vmatpush1.msra.mxu0 0.0
    %166 = vmatprep.subr.mxu0 0.0
    %167 = vmatpush1.msra.mxu0 0.0
    %168 = vmatprep.subr.mxu0 0.0
    %169 = vmatpush1.msra.mxu0 0.0
    %170 = vmatprep.subr.mxu0 0.0
    %171 = vmatpush1.msra.mxu0 0.0
    %172 = vmatprep.subr.mxu0 0.0
    %173 = vmatpush1.msra.mxu0 0.0
    %174 = vmatprep.subr.mxu0 0.0
    %175 = vmatpush1.msra.mxu0 0.0
    %176 = vmatprep.subr.mxu0 0.0
    %177 = vmatpush1.msra.mxu0 0.0
    %178 = vmatprep.subr.mxu0 0.0
    %179 = vmatpush1.msra.mxu0 0.0
    %180 = vmatprep.subr.mxu0 0.0
    %181 = vmatpush1.msra.mxu0 0.0
    %182 = vmatprep.subr.mxu0 0.0
    %183 = vmatpush1.msra.mxu0 0.0
    %184 = vmatprep.subr.mxu0 0.0
    %185 = vmatpush1.msra.mxu0 0.0
    %186 = vmatprep.subr.mxu0 0.0
    %187 = vmatpush1.msra.mxu0 0.0
    %188 = vmatprep.subr.mxu0 0.0
    %189 = vmatpush1.msra.mxu0 0.0
    %190 = vmatprep.subr.mxu0 0.0
    %191 = vmatpush1.msra.mxu0 0.0
    %192 = vmatprep.subr.mxu0 0.0
    %193 = vmatpush1.msra.mxu0 0.0
    %194 = vmatprep.subr.mxu0 0.0
    %195 = vmatpush1.msra.mxu0 0.0
    %196 = vmatprep.subr.mxu0 0.0
    %197 = vmatpush1.msra.mxu0 0.0
    %198 = vmatprep.subr.mxu0 0.0
    %199 = vmatpush1.msra.mxu0 0.0
    %200 = vmatprep.subr.mxu0 0.0
    %201 = vmatpush1.msra.mxu0 0.0
    %202 = vmatprep.subr.mxu0 0.0
    %203 = vmatpush1.msra.mxu0 0.0
    %204 = vmatprep.subr.mxu0 0.0
    %205 = vmatpush1.msra.mxu0 0.0
    %206 = vmatprep.subr.mxu0 0.0
    %207 = vmatpush1.msra.mxu0 0.0
    %208 = vmatprep.subr.mxu0 0.0
    %209 = vmatpush1.msra.mxu0 0.0
    %210 = vmatprep.subr.mxu0 0.0
    %211 = vmatpush1.msra.mxu0 0.0
    %212 = vmatprep.subr.mxu0 0.0
    %213 = vmatpush1.msra.mxu0 0.0
    %214 = vmatprep.mubr.f32.mxu0 0.0
    %215 = vmatmul.mubr.f32.gmra.mrb[0].mxu0 %v115
    %v216 = vpop.f32.mrb[0].mxu0
    %v217 = vadd.f32 %v56, %v216
    %v218 = vpop.f32.mrb[0].mxu0
    %v219 = vadd.f32 %v56, %v218
    %220 = vmatprep.mubr.f32.mxu0 0.0
    %221 = vmatmul.mubr.f32.gmra.mrb[0].mxu0 %v118
    %v222 = vpop.f32.mrb[0].mxu0
    %v223 = vadd.f32 %v61, %v222
    %v224 = vpop.f32.mrb[0].mxu0
    %v225 = vadd.f32 %v61, %v224
    %226 = vmatprep.mubr.f32.mxu0 0.0
    %227 = vmatmul.mubr.f32.gmra.mrb[0].mxu0 %v121
    %v228 = vpop.f32.mrb[0].mxu0
    %v229 = vadd.f32 %v66, %v228
    %v230 = vpop.f32.mrb[0].mxu0
    %v231 = vadd.f32 %v66, %v230
    %232 = vmatprep.mubr.f32.mxu0 0.0
    %233 = vmatmul.mubr.f32.gmra.mrb[0].mxu0 %v124
    %v234 = vpop.f32.mrb[0].mxu0
    %v235 = vadd.f32 %v71, %v234
    %v236 = vpop.f32.mrb[0].mxu0
    %v237 = vadd.f32 %v71, %v236
    %238 = vmatprep.mubr.f32.mxu0 0.0
    %239 = vmatmul.mubr.f32.gmra.mrb[0].mxu0 %v127
    %v240 = vpop.f32.mrb[0].mxu0
    %v241 = vadd.f32 %v76, %v240
    %v242 = vpop.f32.mrb[0].mxu0
    %v243 = vadd.f32 %v76, %v242
    %244 = vmatprep.mubr.f32.mxu0 0.0
    %245 = vmatmul.mubr.f32.gmra.mrb[0].mxu0 %v130
    %v246 = vpop.f32.mrb[0].mxu0
    %v247 = vadd.f32 %v81, %v246
    %v248 = vpop.f32.mrb[0].mxu0
    %v249 = vadd.f32 %v81, %v248
    %250 = vmatprep.mubr.f32.mxu0 0.0
    %251 = vmatmul.mubr.f32.gmra.mrb[0].mxu0 %v133
    %v252 = vpop.f32.mrb[0].mxu0
    %v253 = vadd.f32 %v86, %v252
    %v254 = vpop.f32.mrb[0].mxu0
    %v255 = vadd.f32 %v86, %v254
    %256 = vmatprep.mubr.f32.mxu0 0.0
    %257 = vmatmul.mubr.f32.gmra.mrb[0].mxu0 %v136
    %v258 = vpop.f32.mrb[0].mxu0
    %v259 = vadd.f32 %v91, %v258
    %v260 = vpop.f32.mrb[0].mxu0
    %v261 = vadd.f32 %v91, %v260
    %262 = vmatprep.mubr.f32.mxu0 0.0
    %263 = vmatmul.mubr.f32.gmra.mrb[0].mxu0 %v139
    %v264 = vpop.f32.mrb[0].mxu0
    %v265 = vadd.f32 %v96, %v264
    %v266 = vpop.f32.mrb[0].mxu0
    %v267 = vadd.f32 %v96, %v266
    %268 = vmatprep.mubr.f32.mxu0 0.0
    %269 = vmatmul.mubr.f32.gmra.mrb[0].mxu0 %v142
    %v270 = vpop.f32.mrb[0].mxu0
    %v271 = vadd.f32 %v101, %v270
    %v272 = vpop.f32.mrb[0].mxu0
    %v273 = vadd.f32 %v101, %v272
    %274 = vmatprep.mubr.f32.mxu0 0.0
    %275 = vmatmul.mubr.f32.gmra.mrb[0].mxu0 %v145
    %v276 = vpop.f32.mrb[0].mxu0
    %v277 = vadd.f32 %v106, %v276
    %v278 = vpop.f32.mrb[0].mxu0
    %v279 = vadd.f32 %v106, %v278
    %280 = vmatprep.mubr.f32.mxu0 0.0
    %281 = vmatmul.mubr.f32.gmra.mrb[0].mxu0 %v148
    %v282 = vpop.f32.mrb[0].mxu0
    %v283 = vadd.f32 %v111, %v282
    %v284 = vpop.f32.mrb[0].mxu0
    %v285 = vadd.f32 %v111, %v284
    %286 = vdwg.mxu0
    %287 = vxpose.xlu0.b32.start [1/16] %v217, 128
    %288 = vxpose.xlu0.b32.cont [2/16] 0.0, 128
    %289 = vxpose.xlu0.b32.cont [3/16] 0.0, 128
    %290 = vxpose.xlu0.b32.cont [4/16] 0.0, 128
    %291 = vxpose.xlu0.b32.cont [5/16] 0.0, 128
    %292 = vxpose.xlu0.b32.cont [6/16] 0.0, 128
    %293 = vxpose.xlu0.b32.cont [7/16] 0.0, 128
    %294 = vxpose.xlu0.b32.cont [8/16] 0.0, 128
    %295 = vxpose.xlu0.b32.cont [9/16] 0.0, 128
    %296 = vxpose.xlu0.b32.cont [10/16] 0.0, 128
    %297 = vxpose.xlu0.b32.cont [11/16] 0.0, 128
    %298 = vxpose.xlu0.b32.cont [12/16] 0.0, 128
    %299 = vxpose.xlu0.b32.cont [13/16] 0.0, 128
    %300 = vxpose.xlu0.b32.cont [14/16] 0.0, 128
    %301 = vxpose.xlu0.b32.cont [15/16] 0.0, 128
    %302 = vxpose.xlu0.b32.end [16/16] 0.0, 128
    %v303 = vpop.trf.xlu0
    %v304 = vpop.trf.xlu0
    %v305 = vpop.trf.xlu0
    %v306 = vpop.trf.xlu0
    %v307 = vpop.trf.xlu0
    %v308 = vpop.trf.xlu0
    %v309 = vpop.trf.xlu0
    %v310 = vpop.trf.xlu0
    %v311 = vpop.trf.xlu0
    %v312 = vpop.trf.xlu0
    %v313 = vpop.trf.xlu0
    %v314 = vpop.trf.xlu0
    %v315 = vpop.trf.xlu0
    %v316 = vpop.trf.xlu0
    %v317 = vpop.trf.xlu0
    %v318 = vpop.trf.xlu0
    %319 = vxpose.xlu0.b32.start [1/16] %v219, 128
    %320 = vxpose.xlu0.b32.cont [2/16] 0.0, 128
    %321 = vxpose.xlu0.b32.cont [3/16] 0.0, 128
    %322 = vxpose.xlu0.b32.cont [4/16] 0.0, 128
    %323 = vxpose.xlu0.b32.cont [5/16] 0.0, 128
    %324 = vxpose.xlu0.b32.cont [6/16] 0.0, 128
    %325 = vxpose.xlu0.b32.cont [7/16] 0.0, 128
    %326 = vxpose.xlu0.b32.cont [8/16] 0.0, 128
    %327 = vxpose.xlu0.b32.cont [9/16] 0.0, 128
    %328 = vxpose.xlu0.b32.cont [10/16] 0.0, 128
    %329 = vxpose.xlu0.b32.cont [11/16] 0.0, 128
    %330 = vxpose.xlu0.b32.cont [12/16] 0.0, 128
    %331 = vxpose.xlu0.b32.cont [13/16] 0.0, 128
    %332 = vxpose.xlu0.b32.cont [14/16] 0.0, 128
    %333 = vxpose.xlu0.b32.cont [15/16] 0.0, 128
    %334 = vxpose.xlu0.b32.end [16/16] 0.0, 128
    %v335 = vpop.trf.xlu0
    %v336 = vpop.trf.xlu0
    %v337 = vpop.trf.xlu0
    %v338 = vpop.trf.xlu0
    %v339 = vpop.trf.xlu0
    %v340 = vpop.trf.xlu0
    %v341 = vpop.trf.xlu0
    %v342 = vpop.trf.xlu0
    %v343 = vpop.trf.xlu0
    %v344 = vpop.trf.xlu0
    %v345 = vpop.trf.xlu0
    %v346 = vpop.trf.xlu0
    %v347 = vpop.trf.xlu0
    %v348 = vpop.trf.xlu0
    %v349 = vpop.trf.xlu0
    %v350 = vpop.trf.xlu0
    %351 = vxpose.xlu0.b32.start [1/16] %v223, 128
    %352 = vxpose.xlu0.b32.cont [2/16] 0.0, 128
    %353 = vxpose.xlu0.b32.cont [3/16] 0.0, 128
    %354 = vxpose.xlu0.b32.cont [4/16] 0.0, 128
    %355 = vxpose.xlu0.b32.cont [5/16] 0.0, 128
    %356 = vxpose.xlu0.b32.cont [6/16] 0.0, 128
    %357 = vxpose.xlu0.b32.cont [7/16] 0.0, 128
    %358 = vxpose.xlu0.b32.cont [8/16] 0.0, 128
    %359 = vxpose.xlu0.b32.cont [9/16] 0.0, 128
    %360 = vxpose.xlu0.b32.cont [10/16] 0.0, 128
    %361 = vxpose.xlu0.b32.cont [11/16] 0.0, 128
    %362 = vxpose.xlu0.b32.cont [12/16] 0.0, 128
    %363 = vxpose.xlu0.b32.cont [13/16] 0.0, 128
    %364 = vxpose.xlu0.b32.cont [14/16] 0.0, 128
    %365 = vxpose.xlu0.b32.cont [15/16] 0.0, 128
    %366 = vxpose.xlu0.b32.end [16/16] 0.0, 128
    %v367 = vpop.trf.xlu0
    %v368 = vpop.trf.xlu0
    %v369 = vpop.trf.xlu0
    %v370 = vpop.trf.xlu0
    %v371 = vpop.trf.xlu0
    %v372 = vpop.trf.xlu0
    %v373 = vpop.trf.xlu0
    %v374 = vpop.trf.xlu0
    %v375 = vpop.trf.xlu0
    %v376 = vpop.trf.xlu0
    %v377 = vpop.trf.xlu0
    %v378 = vpop.trf.xlu0
    %v379 = vpop.trf.xlu0
    %v380 = vpop.trf.xlu0
    %v381 = vpop.trf.xlu0
    %v382 = vpop.trf.xlu0
    %383 = vxpose.xlu0.b32.start [1/16] %v225, 128
    %384 = vxpose.xlu0.b32.cont [2/16] 0.0, 128
    %385 = vxpose.xlu0.b32.cont [3/16] 0.0, 128
    %386 = vxpose.xlu0.b32.cont [4/16] 0.0, 128
    %387 = vxpose.xlu0.b32.cont [5/16] 0.0, 128
    %388 = vxpose.xlu0.b32.cont [6/16] 0.0, 128
    %389 = vxpose.xlu0.b32.cont [7/16] 0.0, 128
    %390 = vxpose.xlu0.b32.cont [8/16] 0.0, 128
    %391 = vxpose.xlu0.b32.cont [9/16] 0.0, 128
    %392 = vxpose.xlu0.b32.cont [10/16] 0.0, 128
    %393 = vxpose.xlu0.b32.cont [11/16] 0.0, 128
    %394 = vxpose.xlu0.b32.cont [12/16] 0.0, 128
    %395 = vxpose.xlu0.b32.cont [13/16] 0.0, 128
    %396 = vxpose.xlu0.b32.cont [14/16] 0.0, 128
    %397 = vxpose.xlu0.b32.cont [15/16] 0.0, 128
    %398 = vxpose.xlu0.b32.end [16/16] 0.0, 128
    %v399 = vpop.trf.xlu0
    %v400 = vpop.trf.xlu0
    %v401 = vpop.trf.xlu0
    %v402 = vpop.trf.xlu0
    %v403 = vpop.trf.xlu0
    %v404 = vpop.trf.xlu0
    %v405 = vpop.trf.xlu0
    %v406 = vpop.trf.xlu0
    %v407 = vpop.trf.xlu0
    %v408 = vpop.trf.xlu0
    %v409 = vpop.trf.xlu0
    %v410 = vpop.trf.xlu0
    %v411 = vpop.trf.xlu0
    %v412 = vpop.trf.xlu0
    %v413 = vpop.trf.xlu0
    %v414 = vpop.trf.xlu0
    %415 = vxpose.xlu0.b32.start [1/16] %v229, 128
    %416 = vxpose.xlu0.b32.cont [2/16] 0.0, 128
    %417 = vxpose.xlu0.b32.cont [3/16] 0.0, 128
    %418 = vxpose.xlu0.b32.cont [4/16] 0.0, 128
    %419 = vxpose.xlu0.b32.cont [5/16] 0.0, 128
    %420 = vxpose.xlu0.b32.cont [6/16] 0.0, 128
    %421 = vxpose.xlu0.b32.cont [7/16] 0.0, 128
    %422 = vxpose.xlu0.b32.cont [8/16] 0.0, 128
    %423 = vxpose.xlu0.b32.cont [9/16] 0.0, 128
    %424 = vxpose.xlu0.b32.cont [10/16] 0.0, 128
    %425 = vxpose.xlu0.b32.cont [11/16] 0.0, 128
    %426 = vxpose.xlu0.b32.cont [12/16] 0.0, 128
    %427 = vxpose.xlu0.b32.cont [13/16] 0.0, 128
    %428 = vxpose.xlu0.b32.cont [14/16] 0.0, 128
    %429 = vxpose.xlu0.b32.cont [15/16] 0.0, 128
    %430 = vxpose.xlu0.b32.end [16/16] 0.0, 128
    %v431 = vpop.trf.xlu0
    %v432 = vpop.trf.xlu0
    %v433 = vpop.trf.xlu0
    %v434 = vpop.trf.xlu0
    %v435 = vpop.trf.xlu0
    %v436 = vpop.trf.xlu0
    %v437 = vpop.trf.xlu0
    %v438 = vpop.trf.xlu0
    %v439 = vpop.trf.xlu0
    %v440 = vpop.trf.xlu0
    %v441 = vpop.trf.xlu0
    %v442 = vpop.trf.xlu0
    %v443 = vpop.trf.xlu0
    %v444 = vpop.trf.xlu0
    %v445 = vpop.trf.xlu0
    %v446 = vpop.trf.xlu0
    %447 = vxpose.xlu0.b32.start [1/16] %v231, 128
    %448 = vxpose.xlu0.b32.cont [2/16] 0.0, 128
    %449 = vxpose.xlu0.b32.cont [3/16] 0.0, 128
    %450 = vxpose.xlu0.b32.cont [4/16] 0.0, 128
    %451 = vxpose.xlu0.b32.cont [5/16] 0.0, 128
    %452 = vxpose.xlu0.b32.cont [6/16] 0.0, 128
    %453 = vxpose.xlu0.b32.cont [7/16] 0.0, 128
    %454 = vxpose.xlu0.b32.cont [8/16] 0.0, 128
    %455 = vxpose.xlu0.b32.cont [9/16] 0.0, 128
    %456 = vxpose.xlu0.b32.cont [10/16] 0.0, 128
    %457 = vxpose.xlu0.b32.cont [11/16] 0.0, 128
    %458 = vxpose.xlu0.b32.cont [12/16] 0.0, 128
    %459 = vxpose.xlu0.b32.cont [13/16] 0.0, 128
    %460 = vxpose.xlu0.b32.cont [14/16] 0.0, 128
    %461 = vxpose.xlu0.b32.cont [15/16] 0.0, 128
    %462 = vxpose.xlu0.b32.end [16/16] 0.0, 128
    %v463 = vpop.trf.xlu0
    %v464 = vpop.trf.xlu0
    %v465 = vpop.trf.xlu0
    %v466 = vpop.trf.xlu0
    %v467 = vpop.trf.xlu0
    %v468 = vpop.trf.xlu0
    %v469 = vpop.trf.xlu0
    %v470 = vpop.trf.xlu0
    %v471 = vpop.trf.xlu0
    %v472 = vpop.trf.xlu0
    %v473 = vpop.trf.xlu0
    %v474 = vpop.trf.xlu0
    %v475 = vpop.trf.xlu0
    %v476 = vpop.trf.xlu0
    %v477 = vpop.trf.xlu0
    %v478 = vpop.trf.xlu0
    %479 = vxpose.xlu0.b32.start [1/16] %v235, 128
    %480 = vxpose.xlu0.b32.cont [2/16] 0.0, 128
    %481 = vxpose.xlu0.b32.cont [3/16] 0.0, 128
    %482 = vxpose.xlu0.b32.cont [4/16] 0.0, 128
    %483 = vxpose.xlu0.b32.cont [5/16] 0.0, 128
    %484 = vxpose.xlu0.b32.cont [6/16] 0.0, 128
    %485 = vxpose.xlu0.b32.cont [7/16] 0.0, 128
    %486 = vxpose.xlu0.b32.cont [8/16] 0.0, 128
    %487 = vxpose.xlu0.b32.cont [9/16] 0.0, 128
    %488 = vxpose.xlu0.b32.cont [10/16] 0.0, 128
    %489 = vxpose.xlu0.b32.cont [11/16] 0.0, 128
    %490 = vxpose.xlu0.b32.cont [12/16] 0.0, 128
    %491 = vxpose.xlu0.b32.cont [13/16] 0.0, 128
    %492 = vxpose.xlu0.b32.cont [14/16] 0.0, 128
    %493 = vxpose.xlu0.b32.cont [15/16] 0.0, 128
    %494 = vxpose.xlu0.b32.end [16/16] 0.0, 128
    %v495 = vpop.trf.xlu0
    %v496 = vpop.trf.xlu0
    %v497 = vpop.trf.xlu0
    %v498 = vpop.trf.xlu0
    %v499 = vpop.trf.xlu0
    %v500 = vpop.trf.xlu0
    %v501 = vpop.trf.xlu0
    %v502 = vpop.trf.xlu0
    %v503 = vpop.trf.xlu0
    %v504 = vpop.trf.xlu0
    %v505 = vpop.trf.xlu0
    %v506 = vpop.trf.xlu0
    %v507 = vpop.trf.xlu0
    %v508 = vpop.trf.xlu0
    %v509 = vpop.trf.xlu0
    %v510 = vpop.trf.xlu0
    %511 = vxpose.xlu0.b32.start [1/16] %v237, 128
    %512 = vxpose.xlu0.b32.cont [2/16] 0.0, 128
    %513 = vxpose.xlu0.b32.cont [3/16] 0.0, 128
    %514 = vxpose.xlu0.b32.cont [4/16] 0.0, 128
    %515 = vxpose.xlu0.b32.cont [5/16] 0.0, 128
    %516 = vxpose.xlu0.b32.cont [6/16] 0.0, 128
    %517 = vxpose.xlu0.b32.cont [7/16] 0.0, 128
    %518 = vxpose.xlu0.b32.cont [8/16] 0.0, 128
    %519 = vxpose.xlu0.b32.cont [9/16] 0.0, 128
    %520 = vxpose.xlu0.b32.cont [10/16] 0.0, 128
    %521 = vxpose.xlu0.b32.cont [11/16] 0.0, 128
    %522 = vxpose.xlu0.b32.cont [12/16] 0.0, 128
    %523 = vxpose.xlu0.b32.cont [13/16] 0.0, 128
    %524 = vxpose.xlu0.b32.cont [14/16] 0.0, 128
    %525 = vxpose.xlu0.b32.cont [15/16] 0.0, 128
    %526 = vxpose.xlu0.b32.end [16/16] 0.0, 128
    %v527 = vpop.trf.xlu0
    %v528 = vpop.trf.xlu0
    %v529 = vpop.trf.xlu0
    %v530 = vpop.trf.xlu0
    %v531 = vpop.trf.xlu0
    %v532 = vpop.trf.xlu0
    %v533 = vpop.trf.xlu0
    %v534 = vpop.trf.xlu0
    %v535 = vpop.trf.xlu0
    %v536 = vpop.trf.xlu0
    %v537 = vpop.trf.xlu0
    %v538 = vpop.trf.xlu0
    %v539 = vpop.trf.xlu0
    %v540 = vpop.trf.xlu0
    %v541 = vpop.trf.xlu0
    %v542 = vpop.trf.xlu0
    %vm543 = vcmask 64512
    %v545 = vsel %vm543, %v303, 0
    %v548 = vsel %vm543, %v304, 0
    %v551 = vsel %vm543, %v305, 0
    %v554 = vsel %vm543, %v306, 0
    %v557 = vsel %vm543, %v307, 0
    %v560 = vsel %vm543, %v308, 0
    %v563 = vsel %vm543, %v309, 0
    %v566 = vsel %vm543, %v310, 0
    %v569 = vsel %vm543, %v311, 0
    %v572 = vsel %vm543, %v312, 0
    %v575 = vsel %vm543, %v313, 0
    %v578 = vsel %vm543, %v314, 0
    %v581 = vsel %vm543, %v315, 0
    %v584 = vsel %vm543, %v316, 0
    %v587 = vsel %vm543, %v317, 0
    %v590 = vsel %vm543, %v318, 0
    %v593 = vsel %vm543, %v335, 0
    %v596 = vsel %vm543, %v336, 0
    %v599 = vsel %vm543, %v337, 0
    %v602 = vsel %vm543, %v338, 0
    %v605 = vsel %vm543, %v339, 0
    %v608 = vsel %vm543, %v340, 0
    %v611 = vsel %vm543, %v341, 0
    %v614 = vsel %vm543, %v342, 0
    %v617 = vsel %vm543, %v343, 0
    %v620 = vsel %vm543, %v344, 0
    %v623 = vsel %vm543, %v345, 0
    %v626 = vsel %vm543, %v346, 0
    %v629 = vsel %vm543, %v347, 0
    %v632 = vsel %vm543, %v348, 0
    %v635 = vsel %vm543, %v349, 0
    %v638 = vsel %vm543, %v350, 0
    %640 = vmatprep.subr.mxu0 %v243
    %641 = vmatpush1.msra.mxu0 %v241
    %642 = vmatprep.subr.mxu0 0.0
    %643 = vmatpush1.msra.mxu0 0.0
    %644 = vmatprep.subr.mxu0 0.0
    %645 = vmatpush1.msra.mxu0 0.0
    %646 = vmatprep.subr.mxu0 0.0
    %647 = vmatpush1.msra.mxu0 0.0
    %648 = vmatprep.subr.mxu0 0.0
    %649 = vmatpush1.msra.mxu0 0.0
    %650 = vmatprep.subr.mxu0 0.0
    %651 = vmatpush1.msra.mxu0 0.0
    %652 = vmatprep.subr.mxu0 0.0
    %653 = vmatpush1.msra.mxu0 0.0
    %654 = vmatprep.subr.mxu0 0.0
    %655 = vmatpush1.msra.mxu0 0.0
    %656 = vmatprep.subr.mxu0 0.0
    %657 = vmatpush1.msra.mxu0 0.0
    %658 = vmatprep.subr.mxu0 0.0
    %659 = vmatpush1.msra.mxu0 0.0
    %660 = vmatprep.subr.mxu0 0.0
    %661 = vmatpush1.msra.mxu0 0.0
    %662 = vmatprep.subr.mxu0 0.0
    %663 = vmatpush1.msra.mxu0 0.0
    %664 = vmatprep.subr.mxu0 0.0
    %665 = vmatpush1.msra.mxu0 0.0
    %666 = vmatprep.subr.mxu0 0.0
    %667 = vmatpush1.msra.mxu0 0.0
    %668 = vmatprep.subr.mxu0 0.0
    %669 = vmatpush1.msra.mxu0 0.0
    %670 = vmatprep.subr.mxu0 0.0
    %671 = vmatpush1.msra.mxu0 0.0
    %672 = vmatprep.subr.mxu0 0.0
    %673 = vmatpush1.msra.mxu0 0.0
    %674 = vmatprep.subr.mxu0 0.0
    %675 = vmatpush1.msra.mxu0 0.0
    %676 = vmatprep.subr.mxu0 0.0
    %677 = vmatpush1.msra.mxu0 0.0
    %678 = vmatprep.subr.mxu0 0.0
    %679 = vmatpush1.msra.mxu0 0.0
    %680 = vmatprep.subr.mxu0 0.0
    %681 = vmatpush1.msra.mxu0 0.0
    %682 = vmatprep.subr.mxu0 0.0
    %683 = vmatpush1.msra.mxu0 0.0
    %684 = vmatprep.subr.mxu0 0.0
    %685 = vmatpush1.msra.mxu0 0.0
    %686 = vmatprep.subr.mxu0 0.0
    %687 = vmatpush1.msra.mxu0 0.0
    %688 = vmatprep.subr.mxu0 0.0
    %689 = vmatpush1.msra.mxu0 0.0
    %690 = vmatprep.subr.mxu0 0.0
    %691 = vmatpush1.msra.mxu0 0.0
    %692 = vmatprep.subr.mxu0 0.0
    %693 = vmatpush1.msra.mxu0 0.0
    %694 = vmatprep.subr.mxu0 0.0
    %695 = vmatpush1.msra.mxu0 0.0
    %696 = vmatprep.subr.mxu0 0.0
    %697 = vmatpush1.msra.mxu0 0.0
    %698 = vmatprep.subr.mxu0 0.0
    %699 = vmatpush1.msra.mxu0 0.0
    %700 = vmatprep.subr.mxu0 0.0
    %701 = vmatpush1.msra.mxu0 0.0
    %702 = vmatprep.subr.mxu0 0.0
    %703 = vmatpush1.msra.mxu0 0.0
    %704 = vmatprep.mubr.f32.mxu0 0.0
    %705 = vmatmul.mubr.f32.gmra.mrb[0].mxu0 %v545
    %v706 = vpop.f32.mrb[0].mxu0
    %v707 = vadd.f32 0.0, %v706
    %v708 = vpop.f32.mrb[0].mxu0
    %v709 = vadd.f32 0.0, %v708
    %710 = vmatprep.mubr.f32.mxu0 0.0
    %711 = vmatmul.mubr.f32.gmra.mrb[0].mxu0 %v548
    %v712 = vpop.f32.mrb[0].mxu0
    %v713 = vadd.f32 0.0, %v712
    %v714 = vpop.f32.mrb[0].mxu0
    %v715 = vadd.f32 0.0, %v714
    %716 = vmatprep.mubr.f32.mxu0 0.0
    %717 = vmatmul.mubr.f32.gmra.mrb[0].mxu0 %v551
    %v718 = vpop.f32.mrb[0].mxu0
    %v719 = vadd.f32 0.0, %v718
    %v720 = vpop.f32.mrb[0].mxu0
    %v721 = vadd.f32 0.0, %v720
    %722 = vmatprep.mubr.f32.mxu0 0.0
    %723 = vmatmul.mubr.f32.gmra.mrb[0].mxu0 %v554
    %v724 = vpop.f32.mrb[0].mxu0
    %v725 = vadd.f32 0.0, %v724
    %v726 = vpop.f32.mrb[0].mxu0
    %v727 = vadd.f32 0.0, %v726
    %728 = vmatprep.mubr.f32.mxu0 0.0
    %729 = vmatmul.mubr.f32.gmra.mrb[0].mxu0 %v557
    %v730 = vpop.f32.mrb[0].mxu0
    %v731 = vadd.f32 0.0, %v730
    %v732 = vpop.f32.mrb[0].mxu0
    %v733 = vadd.f32 0.0, %v732
    %734 = vmatprep.mubr.f32.mxu0 0.0
    %735 = vmatmul.mubr.f32.gmra.mrb[0].mxu0 %v560
    %v736 = vpop.f32.mrb[0].mxu0
    %v737 = vadd.f32 0.0, %v736
    %v738 = vpop.f32.mrb[0].mxu0
    %v739 = vadd.f32 0.0, %v738
    %740 = vmatprep.mubr.f32.mxu0 0.0
    %741 = vmatmul.mubr.f32.gmra.mrb[0].mxu0 %v563
    %v742 = vpop.f32.mrb[0].mxu0
    %v743 = vadd.f32 0.0, %v742
    %v744 = vpop.f32.mrb[0].mxu0
    %v745 = vadd.f32 0.0, %v744
    %746 = vmatprep.mubr.f32.mxu0 0.0
    %747 = vmatmul.mubr.f32.gmra.mrb[0].mxu0 %v566
    %v748 = vpop.f32.mrb[0].mxu0
    %v749 = vadd.f32 0.0, %v748
    %v750 = vpop.f32.mrb[0].mxu0
    %v751 = vadd.f32 0.0, %v750
    %752 = vmatprep.mubr.f32.mxu0 0.0
    %753 = vmatmul.mubr.f32.gmra.mrb[0].mxu0 %v569
    %v754 = vpop.f32.mrb[0].mxu0
    %v755 = vadd.f32 0.0, %v754
    %v756 = vpop.f32.mrb[0].mxu0
    %v757 = vadd.f32 0.0, %v756
    %758 = vmatprep.mubr.f32.mxu0 0.0
    %759 = vmatmul.mubr.f32.gmra.mrb[0].mxu0 %v572
    %v760 = vpop.f32.mrb[0].mxu0
    %v761 = vadd.f32 0.0, %v760
    %v762 = vpop.f32.mrb[0].mxu0
    %v763 = vadd.f32 0.0, %v762
    %764 = vmatprep.mubr.f32.mxu0 0.0
    %765 = vmatmul.mubr.f32.gmra.mrb[0].mxu0 %v575
    %v766 = vpop.f32.mrb[0].mxu0
    %v767 = vadd.f32 0.0, %v766
    %v768 = vpop.f32.mrb[0].mxu0
    %v769 = vadd.f32 0.0, %v768
    %770 = vmatprep.mubr.f32.mxu0 0.0
    %771 = vmatmul.mubr.f32.gmra.mrb[0].mxu0 %v578
    %v772 = vpop.f32.mrb[0].mxu0
    %v773 = vadd.f32 0.0, %v772
    %v774 = vpop.f32.mrb[0].mxu0
    %v775 = vadd.f32 0.0, %v774
    %776 = vmatprep.mubr.f32.mxu0 0.0
    %777 = vmatmul.mubr.f32.gmra.mrb[0].mxu0 %v581
    %v778 = vpop.f32.mrb[0].mxu0
    %v779 = vadd.f32 0.0, %v778
    %v780 = vpop.f32.mrb[0].mxu0
    %v781 = vadd.f32 0.0, %v780
    %782 = vmatprep.mubr.f32.mxu0 0.0
    %783 = vmatmul.mubr.f32.gmra.mrb[0].mxu0 %v584
    %v784 = vpop.f32.mrb[0].mxu0
    %v785 = vadd.f32 0.0, %v784
    %v786 = vpop.f32.mrb[0].mxu0
    %v787 = vadd.f32 0.0, %v786
    %788 = vmatprep.mubr.f32.mxu0 0.0
    %789 = vmatmul.mubr.f32.gmra.mrb[0].mxu0 %v587
    %v790 = vpop.f32.mrb[0].mxu0
    %v791 = vadd.f32 0.0, %v790
    %v792 = vpop.f32.mrb[0].mxu0
    %v793 = vadd.f32 0.0, %v792
    %794 = vmatprep.mubr.f32.mxu0 0.0
    %795 = vmatmul.mubr.f32.gmra.mrb[0].mxu0 %v590
    %v796 = vpop.f32.mrb[0].mxu0
    %v797 = vadd.f32 0.0, %v796
    %v798 = vpop.f32.mrb[0].mxu0
    %v799 = vadd.f32 0.0, %v798
    %800 = vmatprep.mubr.f32.mxu0 0.0
    %801 = vmatmul.mubr.f32.gmra.mrb[0].mxu0 %v593
    %v802 = vpop.f32.mrb[0].mxu0
    %v803 = vadd.f32 0.0, %v802
    %v804 = vpop.f32.mrb[0].mxu0
    %v805 = vadd.f32 0.0, %v804
    %806 = vmatprep.mubr.f32.mxu0 0.0
    %807 = vmatmul.mubr.f32.gmra.mrb[0].mxu0 %v596
    %v808 = vpop.f32.mrb[0].mxu0
    %v809 = vadd.f32 0.0, %v808
    %v810 = vpop.f32.mrb[0].mxu0
    %v811 = vadd.f32 0.0, %v810
    %812 = vmatprep.mubr.f32.mxu0 0.0
    %813 = vmatmul.mubr.f32.gmra.mrb[0].mxu0 %v599
    %v814 = vpop.f32.mrb[0].mxu0
    %v815 = vadd.f32 0.0, %v814
    %v816 = vpop.f32.mrb[0].mxu0
    %v817 = vadd.f32 0.0, %v816
    %818 = vmatprep.mubr.f32.mxu0 0.0
    %819 = vmatmul.mubr.f32.gmra.mrb[0].mxu0 %v602
    %v820 = vpop.f32.mrb[0].mxu0
    %v821 = vadd.f32 0.0, %v820
    %v822 = vpop.f32.mrb[0].mxu0
    %v823 = vadd.f32 0.0, %v822
    %824 = vmatprep.mubr.f32.mxu0 0.0
    %825 = vmatmul.mubr.f32.gmra.mrb[0].mxu0 %v605
    %v826 = vpop.f32.mrb[0].mxu0
    %v827 = vadd.f32 0.0, %v826
    %v828 = vpop.f32.mrb[0].mxu0
    %v829 = vadd.f32 0.0, %v828
    %830 = vmatprep.mubr.f32.mxu0 0.0
    %831 = vmatmul.mubr.f32.gmra.mrb[0].mxu0 %v608
    %v832 = vpop.f32.mrb[0].mxu0
    %v833 = vadd.f32 0.0, %v832
    %v834 = vpop.f32.mrb[0].mxu0
    %v835 = vadd.f32 0.0, %v834
    %836 = vmatprep.mubr.f32.mxu0 0.0
    %837 = vmatmul.mubr.f32.gmra.mrb[0].mxu0 %v611
    %v838 = vpop.f32.mrb[0].mxu0
    %v839 = vadd.f32 0.0, %v838
    %v840 = vpop.f32.mrb[0].mxu0
    %v841 = vadd.f32 0.0, %v840
    %842 = vmatprep.mubr.f32.mxu0 0.0
    %843 = vmatmul.mubr.f32.gmra.mrb[0].mxu0 %v614
    %v844 = vpop.f32.mrb[0].mxu0
    %v845 = vadd.f32 0.0, %v844
    %v846 = vpop.f32.mrb[0].mxu0
    %v847 = vadd.f32 0.0, %v846
    %848 = vmatprep.mubr.f32.mxu0 0.0
    %849 = vmatmul.mubr.f32.gmra.mrb[0].mxu0 %v617
    %v850 = vpop.f32.mrb[0].mxu0
    %v851 = vadd.f32 0.0, %v850
    %v852 = vpop.f32.mrb[0].mxu0
    %v853 = vadd.f32 0.0, %v852
    %854 = vmatprep.mubr.f32.mxu0 0.0
    %855 = vmatmul.mubr.f32.gmra.mrb[0].mxu0 %v620
    %v856 = vpop.f32.mrb[0].mxu0
    %v857 = vadd.f32 0.0, %v856
    %v858 = vpop.f32.mrb[0].mxu0
    %v859 = vadd.f32 0.0, %v858
    %860 = vmatprep.mubr.f32.mxu0 0.0
    %861 = vmatmul.mubr.f32.gmra.mrb[0].mxu0 %v623
    %v862 = vpop.f32.mrb[0].mxu0
    %v863 = vadd.f32 0.0, %v862
    %v864 = vpop.f32.mrb[0].mxu0
    %v865 = vadd.f32 0.0, %v864
    %866 = vmatprep.mubr.f32.mxu0 0.0
    %867 = vmatmul.mubr.f32.gmra.mrb[0].mxu0 %v626
    %v868 = vpop.f32.mrb[0].mxu0
    %v869 = vadd.f32 0.0, %v868
    %v870 = vpop.f32.mrb[0].mxu0
    %v871 = vadd.f32 0.0, %v870
    %872 = vmatprep.mubr.f32.mxu0 0.0
    %873 = vmatmul.mubr.f32.gmra.mrb[0].mxu0 %v629
    %v874 = vpop.f32.mrb[0].mxu0
    %v875 = vadd.f32 0.0, %v874
    %v876 = vpop.f32.mrb[0].mxu0
    %v877 = vadd.f32 0.0, %v876
    %878 = vmatprep.mubr.f32.mxu0 0.0
    %879 = vmatmul.mubr.f32.gmra.mrb[0].mxu0 %v632
    %v880 = vpop.f32.mrb[0].mxu0
    %v881 = vadd.f32 0.0, %v880
    %v882 = vpop.f32.mrb[0].mxu0
    %v883 = vadd.f32 0.0, %v882
    %884 = vmatprep.mubr.f32.mxu0 0.0
    %885 = vmatmul.mubr.f32.gmra.mrb[0].mxu0 %v635
    %v886 = vpop.f32.mrb[0].mxu0
    %v887 = vadd.f32 0.0, %v886
    %v888 = vpop.f32.mrb[0].mxu0
    %v889 = vadd.f32 0.0, %v888
    %890 = vmatprep.mubr.f32.mxu0 0.0
    %891 = vmatmul.mubr.f32.gmra.mrb[0].mxu0 %v638
    %v892 = vpop.f32.mrb[0].mxu0
    %v893 = vadd.f32 0.0, %v892
    %v894 = vpop.f32.mrb[0].mxu0
    %v895 = vadd.f32 0.0, %v894
    %896 = vdwg.mxu0
    %v898 = vsel %vm543, %v367, 0
    %v901 = vsel %vm543, %v368, 0
    %v904 = vsel %vm543, %v369, 0
    %v907 = vsel %vm543, %v370, 0
    %v910 = vsel %vm543, %v371, 0
    %v913 = vsel %vm543, %v372, 0
    %v916 = vsel %vm543, %v373, 0
    %v919 = vsel %vm543, %v374, 0
    %v922 = vsel %vm543, %v375, 0
    %v925 = vsel %vm543, %v376, 0
    %v928 = vsel %vm543, %v377, 0
    %v931 = vsel %vm543, %v378, 0
    %v934 = vsel %vm543, %v379, 0
    %v937 = vsel %vm543, %v380, 0
    %v940 = vsel %vm543, %v381, 0
    %v943 = vsel %vm543, %v382, 0
    %v946 = vsel %vm543, %v399, 0
    %v949 = vsel %vm543, %v400, 0
    %v952 = vsel %vm543, %v401, 0
    %v955 = vsel %vm543, %v402, 0
    %v958 = vsel %vm543, %v403, 0
    %v961 = vsel %vm543, %v404, 0
    %v964 = vsel %vm543, %v405, 0
    %v967 = vsel %vm543, %v406, 0
    %v970 = vsel %vm543, %v407, 0
    %v973 = vsel %vm543, %v408, 0
    %v976 = vsel %vm543, %v409, 0
    %v979 = vsel %vm543, %v410, 0
    %v982 = vsel %vm543, %v411, 0
    %v985 = vsel %vm543, %v412, 0
    %v988 = vsel %vm543, %v413, 0
    %v991 = vsel %vm543, %v414, 0
    %993 = vmatprep.subr.mxu0 %v249
    %994 = vmatpush1.msra.mxu0 %v247
    %995 = vmatprep.subr.mxu0 0.0
    %996 = vmatpush1.msra.mxu0 0.0
    %997 = vmatprep.subr.mxu0 0.0
    %998 = vmatpush1.msra.mxu0 0.0
    %999 = vmatprep.subr.mxu0 0.0
    %1000 = vmatpush1.msra.mxu0 0.0
    %1001 = vmatprep.subr.mxu0 0.0
    %1002 = vmatpush1.msra.mxu0 0.0
    %1003 = vmatprep.subr.mxu0 0.0
    %1004 = vmatpush1.msra.mxu0 0.0
    %1005 = vmatprep.subr.mxu0 0.0
    %1006 = vmatpush1.msra.mxu0 0.0
    %1007 = vmatprep.subr.mxu0 0.0
    %1008 = vmatpush1.msra.mxu0 0.0
    %1009 = vmatprep.subr.mxu0 0.0
    %1010 = vmatpush1.msra.mxu0 0.0
    %1011 = vmatprep.subr.mxu0 0.0
    %1012 = vmatpush1.msra.mxu0 0.0
    %1013 = vmatprep.subr.mxu0 0.0
    %1014 = vmatpush1.msra.mxu0 0.0
    %1015 = vmatprep.subr.mxu0 0.0
    %1016 = vmatpush1.msra.mxu0 0.0
    %1017 = vmatprep.subr.mxu0 0.0
    %1018 = vmatpush1.msra.mxu0 0.0
    %1019 = vmatprep.subr.mxu0 0.0
    %1020 = vmatpush1.msra.mxu0 0.0
    %1021 = vmatprep.subr.mxu0 0.0
    %1022 = vmatpush1.msra.mxu0 0.0
    %1023 = vmatprep.subr.mxu0 0.0
    %1024 = vmatpush1.msra.mxu0 0.0
    %1025 = vmatprep.subr.mxu0 0.0
    %1026 = vmatpush1.msra.mxu0 0.0
    %1027 = vmatprep.subr.mxu0 0.0
    %1028 = vmatpush1.msra.mxu0 0.0
    %1029 = vmatprep.subr.mxu0 0.0
    %1030 = vmatpush1.msra.mxu0 0.0
    %1031 = vmatprep.subr.mxu0 0.0
    %1032 = vmatpush1.msra.mxu0 0.0
    %1033 = vmatprep.subr.mxu0 0.0
    %1034 = vmatpush1.msra.mxu0 0.0
    %1035 = vmatprep.subr.mxu0 0.0
    %1036 = vmatpush1.msra.mxu0 0.0
    %1037 = vmatprep.subr.mxu0 0.0
    %1038 = vmatpush1.msra.mxu0 0.0
    %1039 = vmatprep.subr.mxu0 0.0
    %1040 = vmatpush1.msra.mxu0 0.0
    %1041 = vmatprep.subr.mxu0 0.0
    %1042 = vmatpush1.msra.mxu0 0.0
    %1043 = vmatprep.subr.mxu0 0.0
    %1044 = vmatpush1.msra.mxu0 0.0
    %1045 = vmatprep.subr.mxu0 0.0
    %1046 = vmatpush1.msra.mxu0 0.0
    %1047 = vmatprep.subr.mxu0 0.0
    %1048 = vmatpush1.msra.mxu0 0.0
    %1049 = vmatprep.subr.mxu0 0.0
    %1050 = vmatpush1.msra.mxu0 0.0
    %1051 = vmatprep.subr.mxu0 0.0
    %1052 = vmatpush1.msra.mxu0 0.0
    %1053 = vmatprep.subr.mxu0 0.0
    %1054 = vmatpush1.msra.mxu0 0.0
    %1055 = vmatprep.subr.mxu0 0.0
    %1056 = vmatpush1.msra.mxu0 0.0
    %1057 = vmatprep.mubr.f32.mxu0 0.0
    %1058 = vmatmul.mubr.f32.gmra.mrb[0].mxu0 %v898
    %v1059 = vpop.f32.mrb[0].mxu0
    %v1060 = vadd.f32 0.0, %v1059
    %v1061 = vpop.f32.mrb[0].mxu0
    %v1062 = vadd.f32 0.0, %v1061
    %1063 = vmatprep.mubr.f32.mxu0 0.0
    %1064 = vmatmul.mubr.f32.gmra.mrb[0].mxu0 %v901
    %v1065 = vpop.f32.mrb[0].mxu0
    %v1066 = vadd.f32 0.0, %v1065
    %v1067 = vpop.f32.mrb[0].mxu0
    %v1068 = vadd.f32 0.0, %v1067
    %1069 = vmatprep.mubr.f32.mxu0 0.0
    %1070 = vmatmul.mubr.f32.gmra.mrb[0].mxu0 %v904
    %v1071 = vpop.f32.mrb[0].mxu0
    %v1072 = vadd.f32 0.0, %v1071
    %v1073 = vpop.f32.mrb[0].mxu0
    %v1074 = vadd.f32 0.0, %v1073
    %1075 = vmatprep.mubr.f32.mxu0 0.0
    %1076 = vmatmul.mubr.f32.gmra.mrb[0].mxu0 %v907
    %v1077 = vpop.f32.mrb[0].mxu0
    %v1078 = vadd.f32 0.0, %v1077
    %v1079 = vpop.f32.mrb[0].mxu0
    %v1080 = vadd.f32 0.0, %v1079
    %1081 = vmatprep.mubr.f32.mxu0 0.0
    %1082 = vmatmul.mubr.f32.gmra.mrb[0].mxu0 %v910
    %v1083 = vpop.f32.mrb[0].mxu0
    %v1084 = vadd.f32 0.0, %v1083
    %v1085 = vpop.f32.mrb[0].mxu0
    %v1086 = vadd.f32 0.0, %v1085
    %1087 = vmatprep.mubr.f32.mxu0 0.0
    %1088 = vmatmul.mubr.f32.gmra.mrb[0].mxu0 %v913
    %v1089 = vpop.f32.mrb[0].mxu0
    %v1090 = vadd.f32 0.0, %v1089
    %v1091 = vpop.f32.mrb[0].mxu0
    %v1092 = vadd.f32 0.0, %v1091
    %1093 = vmatprep.mubr.f32.mxu0 0.0
    %1094 = vmatmul.mubr.f32.gmra.mrb[0].mxu0 %v916
    %v1095 = vpop.f32.mrb[0].mxu0
    %v1096 = vadd.f32 0.0, %v1095
    %v1097 = vpop.f32.mrb[0].mxu0
    %v1098 = vadd.f32 0.0, %v1097
    %1099 = vmatprep.mubr.f32.mxu0 0.0
    %1100 = vmatmul.mubr.f32.gmra.mrb[0].mxu0 %v919
    %v1101 = vpop.f32.mrb[0].mxu0
    %v1102 = vadd.f32 0.0, %v1101
    %v1103 = vpop.f32.mrb[0].mxu0
    %v1104 = vadd.f32 0.0, %v1103
    %1105 = vmatprep.mubr.f32.mxu0 0.0
    %1106 = vmatmul.mubr.f32.gmra.mrb[0].mxu0 %v922
    %v1107 = vpop.f32.mrb[0].mxu0
    %v1108 = vadd.f32 0.0, %v1107
    %v1109 = vpop.f32.mrb[0].mxu0
    %v1110 = vadd.f32 0.0, %v1109
    %1111 = vmatprep.mubr.f32.mxu0 0.0
    %1112 = vmatmul.mubr.f32.gmra.mrb[0].mxu0 %v925
    %v1113 = vpop.f32.mrb[0].mxu0
    %v1114 = vadd.f32 0.0, %v1113
    %v1115 = vpop.f32.mrb[0].mxu0
    %v1116 = vadd.f32 0.0, %v1115
    %1117 = vmatprep.mubr.f32.mxu0 0.0
    %1118 = vmatmul.mubr.f32.gmra.mrb[0].mxu0 %v928
    %v1119 = vpop.f32.mrb[0].mxu0
    %v1120 = vadd.f32 0.0, %v1119
    %v1121 = vpop.f32.mrb[0].mxu0
    %v1122 = vadd.f32 0.0, %v1121
    %1123 = vmatprep.mubr.f32.mxu0 0.0
    %1124 = vmatmul.mubr.f32.gmra.mrb[0].mxu0 %v931
    %v1125 = vpop.f32.mrb[0].mxu0
    %v1126 = vadd.f32 0.0, %v1125
    %v1127 = vpop.f32.mrb[0].mxu0
    %v1128 = vadd.f32 0.0, %v1127
    %1129 = vmatprep.mubr.f32.mxu0 0.0
    %1130 = vmatmul.mubr.f32.gmra.mrb[0].mxu0 %v934
    %v1131 = vpop.f32.mrb[0].mxu0
    %v1132 = vadd.f32 0.0, %v1131
    %v1133 = vpop.f32.mrb[0].mxu0
    %v1134 = vadd.f32 0.0, %v1133
    %1135 = vmatprep.mubr.f32.mxu0 0.0
    %1136 = vmatmul.mubr.f32.gmra.mrb[0].mxu0 %v937
    %v1137 = vpop.f32.mrb[0].mxu0
    %v1138 = vadd.f32 0.0, %v1137
    %v1139 = vpop.f32.mrb[0].mxu0
    %v1140 = vadd.f32 0.0, %v1139
    %1141 = vmatprep.mubr.f32.mxu0 0.0
    %1142 = vmatmul.mubr.f32.gmra.mrb[0].mxu0 %v940
    %v1143 = vpop.f32.mrb[0].mxu0
    %v1144 = vadd.f32 0.0, %v1143
    %v1145 = vpop.f32.mrb[0].mxu0
    %v1146 = vadd.f32 0.0, %v1145
    %1147 = vmatprep.mubr.f32.mxu0 0.0
    %1148 = vmatmul.mubr.f32.gmra.mrb[0].mxu0 %v943
    %v1149 = vpop.f32.mrb[0].mxu0
    %v1150 = vadd.f32 0.0, %v1149
    %v1151 = vpop.f32.mrb[0].mxu0
    %v1152 = vadd.f32 0.0, %v1151
    %1153 = vmatprep.mubr.f32.mxu0 0.0
    %1154 = vmatmul.mubr.f32.gmra.mrb[0].mxu0 %v946
    %v1155 = vpop.f32.mrb[0].mxu0
    %v1156 = vadd.f32 0.0, %v1155
    %v1157 = vpop.f32.mrb[0].mxu0
    %v1158 = vadd.f32 0.0, %v1157
    %1159 = vmatprep.mubr.f32.mxu0 0.0
    %1160 = vmatmul.mubr.f32.gmra.mrb[0].mxu0 %v949
    %v1161 = vpop.f32.mrb[0].mxu0
    %v1162 = vadd.f32 0.0, %v1161
    %v1163 = vpop.f32.mrb[0].mxu0
    %v1164 = vadd.f32 0.0, %v1163
    %1165 = vmatprep.mubr.f32.mxu0 0.0
    %1166 = vmatmul.mubr.f32.gmra.mrb[0].mxu0 %v952
    %v1167 = vpop.f32.mrb[0].mxu0
    %v1168 = vadd.f32 0.0, %v1167
    %v1169 = vpop.f32.mrb[0].mxu0
    %v1170 = vadd.f32 0.0, %v1169
    %1171 = vmatprep.mubr.f32.mxu0 0.0
    %1172 = vmatmul.mubr.f32.gmra.mrb[0].mxu0 %v955
    %v1173 = vpop.f32.mrb[0].mxu0
    %v1174 = vadd.f32 0.0, %v1173
    %v1175 = vpop.f32.mrb[0].mxu0
    %v1176 = vadd.f32 0.0, %v1175
    %1177 = vmatprep.mubr.f32.mxu0 0.0
    %1178 = vmatmul.mubr.f32.gmra.mrb[0].mxu0 %v958
    %v1179 = vpop.f32.mrb[0].mxu0
    %v1180 = vadd.f32 0.0, %v1179
    %v1181 = vpop.f32.mrb[0].mxu0
    %v1182 = vadd.f32 0.0, %v1181
    %1183 = vmatprep.mubr.f32.mxu0 0.0
    %1184 = vmatmul.mubr.f32.gmra.mrb[0].mxu0 %v961
    %v1185 = vpop.f32.mrb[0].mxu0
    %v1186 = vadd.f32 0.0, %v1185
    %v1187 = vpop.f32.mrb[0].mxu0
    %v1188 = vadd.f32 0.0, %v1187
    %1189 = vmatprep.mubr.f32.mxu0 0.0
    %1190 = vmatmul.mubr.f32.gmra.mrb[0].mxu0 %v964
    %v1191 = vpop.f32.mrb[0].mxu0
    %v1192 = vadd.f32 0.0, %v1191
    %v1193 = vpop.f32.mrb[0].mxu0
    %v1194 = vadd.f32 0.0, %v1193
    %1195 = vmatprep.mubr.f32.mxu0 0.0
    %1196 = vmatmul.mubr.f32.gmra.mrb[0].mxu0 %v967
    %v1197 = vpop.f32.mrb[0].mxu0
    %v1198 = vadd.f32 0.0, %v1197
    %v1199 = vpop.f32.mrb[0].mxu0
    %v1200 = vadd.f32 0.0, %v1199
    %1201 = vmatprep.mubr.f32.mxu0 0.0
    %1202 = vmatmul.mubr.f32.gmra.mrb[0].mxu0 %v970
    %v1203 = vpop.f32.mrb[0].mxu0
    %v1204 = vadd.f32 0.0, %v1203
    %v1205 = vpop.f32.mrb[0].mxu0
    %v1206 = vadd.f32 0.0, %v1205
    %1207 = vmatprep.mubr.f32.mxu0 0.0
    %1208 = vmatmul.mubr.f32.gmra.mrb[0].mxu0 %v973
    %v1209 = vpop.f32.mrb[0].mxu0
    %v1210 = vadd.f32 0.0, %v1209
    %v1211 = vpop.f32.mrb[0].mxu0
    %v1212 = vadd.f32 0.0, %v1211
    %1213 = vmatprep.mubr.f32.mxu0 0.0
    %1214 = vmatmul.mubr.f32.gmra.mrb[0].mxu0 %v976
    %v1215 = vpop.f32.mrb[0].mxu0
    %v1216 = vadd.f32 0.0, %v1215
    %v1217 = vpop.f32.mrb[0].mxu0
    %v1218 = vadd.f32 0.0, %v1217
    %1219 = vmatprep.mubr.f32.mxu0 0.0
    %1220 = vmatmul.mubr.f32.gmra.mrb[0].mxu0 %v979
    %v1221 = vpop.f32.mrb[0].mxu0
    %v1222 = vadd.f32 0.0, %v1221
    %v1223 = vpop.f32.mrb[0].mxu0
    %v1224 = vadd.f32 0.0, %v1223
    %1225 = vmatprep.mubr.f32.mxu0 0.0
    %1226 = vmatmul.mubr.f32.gmra.mrb[0].mxu0 %v982
    %v1227 = vpop.f32.mrb[0].mxu0
    %v1228 = vadd.f32 0.0, %v1227
    %v1229 = vpop.f32.mrb[0].mxu0
    %v1230 = vadd.f32 0.0, %v1229
    %1231 = vmatprep.mubr.f32.mxu0 0.0
    %1232 = vmatmul.mubr.f32.gmra.mrb[0].mxu0 %v985
    %v1233 = vpop.f32.mrb[0].mxu0
    %v1234 = vadd.f32 0.0, %v1233
    %v1235 = vpop.f32.mrb[0].mxu0
    %v1236 = vadd.f32 0.0, %v1235
    %1237 = vmatprep.mubr.f32.mxu0 0.0
    %1238 = vmatmul.mubr.f32.gmra.mrb[0].mxu0 %v988
    %v1239 = vpop.f32.mrb[0].mxu0
    %v1240 = vadd.f32 0.0, %v1239
    %v1241 = vpop.f32.mrb[0].mxu0
    %v1242 = vadd.f32 0.0, %v1241
    %1243 = vmatprep.mubr.f32.mxu0 0.0
    %1244 = vmatmul.mubr.f32.gmra.mrb[0].mxu0 %v991
    %v1245 = vpop.f32.mrb[0].mxu0
    %v1246 = vadd.f32 0.0, %v1245
    %v1247 = vpop.f32.mrb[0].mxu0
    %v1248 = vadd.f32 0.0, %v1247
    %1249 = vdwg.mxu0
    %v1251 = vsel %vm543, %v431, 0
    %v1254 = vsel %vm543, %v432, 0
    %v1257 = vsel %vm543, %v433, 0
    %v1260 = vsel %vm543, %v434, 0
    %v1263 = vsel %vm543, %v435, 0
    %v1266 = vsel %vm543, %v436, 0
    %v1269 = vsel %vm543, %v437, 0
    %v1272 = vsel %vm543, %v438, 0
    %v1275 = vsel %vm543, %v439, 0
    %v1278 = vsel %vm543, %v440, 0
    %v1281 = vsel %vm543, %v441, 0
    %v1284 = vsel %vm543, %v442, 0
    %v1287 = vsel %vm543, %v443, 0
    %v1290 = vsel %vm543, %v444, 0
    %v1293 = vsel %vm543, %v445, 0
    %v1296 = vsel %vm543, %v446, 0
    %v1299 = vsel %vm543, %v463, 0
    %v1302 = vsel %vm543, %v464, 0
    %v1305 = vsel %vm543, %v465, 0
    %v1308 = vsel %vm543, %v466, 0
    %v1311 = vsel %vm543, %v467, 0
    %v1314 = vsel %vm543, %v468, 0
    %v1317 = vsel %vm543, %v469, 0
    %v1320 = vsel %vm543, %v470, 0
    %v1323 = vsel %vm543, %v471, 0
    %v1326 = vsel %vm543, %v472, 0
    %v1329 = vsel %vm543, %v473, 0
    %v1332 = vsel %vm543, %v474, 0
    %v1335 = vsel %vm543, %v475, 0
    %v1338 = vsel %vm543, %v476, 0
    %v1341 = vsel %vm543, %v477, 0
    %v1344 = vsel %vm543, %v478, 0
    %1346 = vmatprep.subr.mxu0 %v255
    %1347 = vmatpush1.msra.mxu0 %v253
    %1348 = vmatprep.subr.mxu0 0.0
    %1349 = vmatpush1.msra.mxu0 0.0
    %1350 = vmatprep.subr.mxu0 0.0
    %1351 = vmatpush1.msra.mxu0 0.0
    %1352 = vmatprep.subr.mxu0 0.0
    %1353 = vmatpush1.msra.mxu0 0.0
    %1354 = vmatprep.subr.mxu0 0.0
    %1355 = vmatpush1.msra.mxu0 0.0
    %1356 = vmatprep.subr.mxu0 0.0
    %1357 = vmatpush1.msra.mxu0 0.0
    %1358 = vmatprep.subr.mxu0 0.0
    %1359 = vmatpush1.msra.mxu0 0.0
    %1360 = vmatprep.subr.mxu0 0.0
    %1361 = vmatpush1.msra.mxu0 0.0
    %1362 = vmatprep.subr.mxu0 0.0
    %1363 = vmatpush1.msra.mxu0 0.0
    %1364 = vmatprep.subr.mxu0 0.0
    %1365 = vmatpush1.msra.mxu0 0.0
    %1366 = vmatprep.subr.mxu0 0.0
    %1367 = vmatpush1.msra.mxu0 0.0
    %1368 = vmatprep.subr.mxu0 0.0
    %1369 = vmatpush1.msra.mxu0 0.0
    %1370 = vmatprep.subr.mxu0 0.0
    %1371 = vmatpush1.msra.mxu0 0.0
    %1372 = vmatprep.subr.mxu0 0.0
    %1373 = vmatpush1.msra.mxu0 0.0
    %1374 = vmatprep.subr.mxu0 0.0
    %1375 = vmatpush1.msra.mxu0 0.0
    %1376 = vmatprep.subr.mxu0 0.0
    %1377 = vmatpush1.msra.mxu0 0.0
    %1378 = vmatprep.subr.mxu0 0.0
    %1379 = vmatpush1.msra.mxu0 0.0
    %1380 = vmatprep.subr.mxu0 0.0
    %1381 = vmatpush1.msra.mxu0 0.0
    %1382 = vmatprep.subr.mxu0 0.0
    %1383 = vmatpush1.msra.mxu0 0.0
    %1384 = vmatprep.subr.mxu0 0.0
    %1385 = vmatpush1.msra.mxu0 0.0
    %1386 = vmatprep.subr.mxu0 0.0
    %1387 = vmatpush1.msra.mxu0 0.0
    %1388 = vmatprep.subr.mxu0 0.0
    %1389 = vmatpush1.msra.mxu0 0.0
    %1390 = vmatprep.subr.mxu0 0.0
    %1391 = vmatpush1.msra.mxu0 0.0
    %1392 = vmatprep.subr.mxu0 0.0
    %1393 = vmatpush1.msra.mxu0 0.0
    %1394 = vmatprep.subr.mxu0 0.0
    %1395 = vmatpush1.msra.mxu0 0.0
    %1396 = vmatprep.subr.mxu0 0.0
    %1397 = vmatpush1.msra.mxu0 0.0
    %1398 = vmatprep.subr.mxu0 0.0
    %1399 = vmatpush1.msra.mxu0 0.0
    %1400 = vmatprep.subr.mxu0 0.0
    %1401 = vmatpush1.msra.mxu0 0.0
    %1402 = vmatprep.subr.mxu0 0.0
    %1403 = vmatpush1.msra.mxu0 0.0
    %1404 = vmatprep.subr.mxu0 0.0
    %1405 = vmatpush1.msra.mxu0 0.0
    %1406 = vmatprep.subr.mxu0 0.0
    %1407 = vmatpush1.msra.mxu0 0.0
    %1408 = vmatprep.subr.mxu0 0.0
    %1409 = vmatpush1.msra.mxu0 0.0
    %1410 = vmatprep.mubr.f32.mxu0 0.0
    %1411 = vmatmul.mubr.f32.gmra.mrb[0].mxu0 %v1251
    %v1412 = vpop.f32.mrb[0].mxu0
    %v1413 = vadd.f32 0.0, %v1412
    %v1414 = vpop.f32.mrb[0].mxu0
    %v1415 = vadd.f32 0.0, %v1414
    %1416 = vmatprep.mubr.f32.mxu0 0.0
    %1417 = vmatmul.mubr.f32.gmra.mrb[0].mxu0 %v1254
    %v1418 = vpop.f32.mrb[0].mxu0
    %v1419 = vadd.f32 0.0, %v1418
    %v1420 = vpop.f32.mrb[0].mxu0
    %v1421 = vadd.f32 0.0, %v1420
    %1422 = vmatprep.mubr.f32.mxu0 0.0
    %1423 = vmatmul.mubr.f32.gmra.mrb[0].mxu0 %v1257
    %v1424 = vpop.f32.mrb[0].mxu0
    %v1425 = vadd.f32 0.0, %v1424
    %v1426 = vpop.f32.mrb[0].mxu0
    %v1427 = vadd.f32 0.0, %v1426
    %1428 = vmatprep.mubr.f32.mxu0 0.0
    %1429 = vmatmul.mubr.f32.gmra.mrb[0].mxu0 %v1260
    %v1430 = vpop.f32.mrb[0].mxu0
    %v1431 = vadd.f32 0.0, %v1430
    %v1432 = vpop.f32.mrb[0].mxu0
    %v1433 = vadd.f32 0.0, %v1432
    %1434 = vmatprep.mubr.f32.mxu0 0.0
    %1435 = vmatmul.mubr.f32.gmra.mrb[0].mxu0 %v1263
    %v1436 = vpop.f32.mrb[0].mxu0
    %v1437 = vadd.f32 0.0, %v1436
    %v1438 = vpop.f32.mrb[0].mxu0
    %v1439 = vadd.f32 0.0, %v1438
    %1440 = vmatprep.mubr.f32.mxu0 0.0
    %1441 = vmatmul.mubr.f32.gmra.mrb[0].mxu0 %v1266
    %v1442 = vpop.f32.mrb[0].mxu0
    %v1443 = vadd.f32 0.0, %v1442
    %v1444 = vpop.f32.mrb[0].mxu0
    %v1445 = vadd.f32 0.0, %v1444
    %1446 = vmatprep.mubr.f32.mxu0 0.0
    %1447 = vmatmul.mubr.f32.gmra.mrb[0].mxu0 %v1269
    %v1448 = vpop.f32.mrb[0].mxu0
    %v1449 = vadd.f32 0.0, %v1448
    %v1450 = vpop.f32.mrb[0].mxu0
    %v1451 = vadd.f32 0.0, %v1450
    %1452 = vmatprep.mubr.f32.mxu0 0.0
    %1453 = vmatmul.mubr.f32.gmra.mrb[0].mxu0 %v1272
    %v1454 = vpop.f32.mrb[0].mxu0
    %v1455 = vadd.f32 0.0, %v1454
    %v1456 = vpop.f32.mrb[0].mxu0
    %v1457 = vadd.f32 0.0, %v1456
    %1458 = vmatprep.mubr.f32.mxu0 0.0
    %1459 = vmatmul.mubr.f32.gmra.mrb[0].mxu0 %v1275
    %v1460 = vpop.f32.mrb[0].mxu0
    %v1461 = vadd.f32 0.0, %v1460
    %v1462 = vpop.f32.mrb[0].mxu0
    %v1463 = vadd.f32 0.0, %v1462
    %1464 = vmatprep.mubr.f32.mxu0 0.0
    %1465 = vmatmul.mubr.f32.gmra.mrb[0].mxu0 %v1278
    %v1466 = vpop.f32.mrb[0].mxu0
    %v1467 = vadd.f32 0.0, %v1466
    %v1468 = vpop.f32.mrb[0].mxu0
    %v1469 = vadd.f32 0.0, %v1468
    %1470 = vmatprep.mubr.f32.mxu0 0.0
    %1471 = vmatmul.mubr.f32.gmra.mrb[0].mxu0 %v1281
    %v1472 = vpop.f32.mrb[0].mxu0
    %v1473 = vadd.f32 0.0, %v1472
    %v1474 = vpop.f32.mrb[0].mxu0
    %v1475 = vadd.f32 0.0, %v1474
    %1476 = vmatprep.mubr.f32.mxu0 0.0
    %1477 = vmatmul.mubr.f32.gmra.mrb[0].mxu0 %v1284
    %v1478 = vpop.f32.mrb[0].mxu0
    %v1479 = vadd.f32 0.0, %v1478
    %v1480 = vpop.f32.mrb[0].mxu0
    %v1481 = vadd.f32 0.0, %v1480
    %1482 = vmatprep.mubr.f32.mxu0 0.0
    %1483 = vmatmul.mubr.f32.gmra.mrb[0].mxu0 %v1287
    %v1484 = vpop.f32.mrb[0].mxu0
    %v1485 = vadd.f32 0.0, %v1484
    %v1486 = vpop.f32.mrb[0].mxu0
    %v1487 = vadd.f32 0.0, %v1486
    %1488 = vmatprep.mubr.f32.mxu0 0.0
    %1489 = vmatmul.mubr.f32.gmra.mrb[0].mxu0 %v1290
    %v1490 = vpop.f32.mrb[0].mxu0
    %v1491 = vadd.f32 0.0, %v1490
    %v1492 = vpop.f32.mrb[0].mxu0
    %v1493 = vadd.f32 0.0, %v1492
    %1494 = vmatprep.mubr.f32.mxu0 0.0
    %1495 = vmatmul.mubr.f32.gmra.mrb[0].mxu0 %v1293
    %v1496 = vpop.f32.mrb[0].mxu0
    %v1497 = vadd.f32 0.0, %v1496
    %v1498 = vpop.f32.mrb[0].mxu0
    %v1499 = vadd.f32 0.0, %v1498
    %1500 = vmatprep.mubr.f32.mxu0 0.0
    %1501 = vmatmul.mubr.f32.gmra.mrb[0].mxu0 %v1296
    %v1502 = vpop.f32.mrb[0].mxu0
    %v1503 = vadd.f32 0.0, %v1502
    %v1504 = vpop.f32.mrb[0].mxu0
    %v1505 = vadd.f32 0.0, %v1504
    %1506 = vmatprep.mubr.f32.mxu0 0.0
    %1507 = vmatmul.mubr.f32.gmra.mrb[0].mxu0 %v1299
    %v1508 = vpop.f32.mrb[0].mxu0
    %v1509 = vadd.f32 0.0, %v1508
    %v1510 = vpop.f32.mrb[0].mxu0
    %v1511 = vadd.f32 0.0, %v1510
    %1512 = vmatprep.mubr.f32.mxu0 0.0
    %1513 = vmatmul.mubr.f32.gmra.mrb[0].mxu0 %v1302
    %v1514 = vpop.f32.mrb[0].mxu0
    %v1515 = vadd.f32 0.0, %v1514
    %v1516 = vpop.f32.mrb[0].mxu0
    %v1517 = vadd.f32 0.0, %v1516
    %1518 = vmatprep.mubr.f32.mxu0 0.0
    %1519 = vmatmul.mubr.f32.gmra.mrb[0].mxu0 %v1305
    %v1520 = vpop.f32.mrb[0].mxu0
    %v1521 = vadd.f32 0.0, %v1520
    %v1522 = vpop.f32.mrb[0].mxu0
    %v1523 = vadd.f32 0.0, %v1522
    %1524 = vmatprep.mubr.f32.mxu0 0.0
    %1525 = vmatmul.mubr.f32.gmra.mrb[0].mxu0 %v1308
    %v1526 = vpop.f32.mrb[0].mxu0
    %v1527 = vadd.f32 0.0, %v1526
    %v1528 = vpop.f32.mrb[0].mxu0
    %v1529 = vadd.f32 0.0, %v1528
    %1530 = vmatprep.mubr.f32.mxu0 0.0
    %1531 = vmatmul.mubr.f32.gmra.mrb[0].mxu0 %v1311
    %v1532 = vpop.f32.mrb[0].mxu0
    %v1533 = vadd.f32 0.0, %v1532
    %v1534 = vpop.f32.mrb[0].mxu0
    %v1535 = vadd.f32 0.0, %v1534
    %1536 = vmatprep.mubr.f32.mxu0 0.0
    %1537 = vmatmul.mubr.f32.gmra.mrb[0].mxu0 %v1314
    %v1538 = vpop.f32.mrb[0].mxu0
    %v1539 = vadd.f32 0.0, %v1538
    %v1540 = vpop.f32.mrb[0].mxu0
    %v1541 = vadd.f32 0.0, %v1540
    %1542 = vmatprep.mubr.f32.mxu0 0.0
    %1543 = vmatmul.mubr.f32.gmra.mrb[0].mxu0 %v1317
    %v1544 = vpop.f32.mrb[0].mxu0
    %v1545 = vadd.f32 0.0, %v1544
    %v1546 = vpop.f32.mrb[0].mxu0
    %v1547 = vadd.f32 0.0, %v1546
    %1548 = vmatprep.mubr.f32.mxu0 0.0
    %1549 = vmatmul.mubr.f32.gmra.mrb[0].mxu0 %v1320
    %v1550 = vpop.f32.mrb[0].mxu0
    %v1551 = vadd.f32 0.0, %v1550
    %v1552 = vpop.f32.mrb[0].mxu0
    %v1553 = vadd.f32 0.0, %v1552
    %1554 = vmatprep.mubr.f32.mxu0 0.0
    %1555 = vmatmul.mubr.f32.gmra.mrb[0].mxu0 %v1323
    %v1556 = vpop.f32.mrb[0].mxu0
    %v1557 = vadd.f32 0.0, %v1556
    %v1558 = vpop.f32.mrb[0].mxu0
    %v1559 = vadd.f32 0.0, %v1558
    %1560 = vmatprep.mubr.f32.mxu0 0.0
    %1561 = vmatmul.mubr.f32.gmra.mrb[0].mxu0 %v1326
    %v1562 = vpop.f32.mrb[0].mxu0
    %v1563 = vadd.f32 0.0, %v1562
    %v1564 = vpop.f32.mrb[0].mxu0
    %v1565 = vadd.f32 0.0, %v1564
    %1566 = vmatprep.mubr.f32.mxu0 0.0
    %1567 = vmatmul.mubr.f32.gmra.mrb[0].mxu0 %v1329
    %v1568 = vpop.f32.mrb[0].mxu0
    %v1569 = vadd.f32 0.0, %v1568
    %v1570 = vpop.f32.mrb[0].mxu0
    %v1571 = vadd.f32 0.0, %v1570
    %1572 = vmatprep.mubr.f32.mxu0 0.0
    %1573 = vmatmul.mubr.f32.gmra.mrb[0].mxu0 %v1332
    %v1574 = vpop.f32.mrb[0].mxu0
    %v1575 = vadd.f32 0.0, %v1574
    %v1576 = vpop.f32.mrb[0].mxu0
    %v1577 = vadd.f32 0.0, %v1576
    %1578 = vmatprep.mubr.f32.mxu0 0.0
    %1579 = vmatmul.mubr.f32.gmra.mrb[0].mxu0 %v1335
    %v1580 = vpop.f32.mrb[0].mxu0
    %v1581 = vadd.f32 0.0, %v1580
    %v1582 = vpop.f32.mrb[0].mxu0
    %v1583 = vadd.f32 0.0, %v1582
    %1584 = vmatprep.mubr.f32.mxu0 0.0
    %1585 = vmatmul.mubr.f32.gmra.mrb[0].mxu0 %v1338
    %v1586 = vpop.f32.mrb[0].mxu0
    %v1587 = vadd.f32 0.0, %v1586
    %v1588 = vpop.f32.mrb[0].mxu0
    %v1589 = vadd.f32 0.0, %v1588
    %1590 = vmatprep.mubr.f32.mxu0 0.0
    %1591 = vmatmul.mubr.f32.gmra.mrb[0].mxu0 %v1341
    %v1592 = vpop.f32.mrb[0].mxu0
    %v1593 = vadd.f32 0.0, %v1592
    %v1594 = vpop.f32.mrb[0].mxu0
    %v1595 = vadd.f32 0.0, %v1594
    %1596 = vmatprep.mubr.f32.mxu0 0.0
    %1597 = vmatmul.mubr.f32.gmra.mrb[0].mxu0 %v1344
    %v1598 = vpop.f32.mrb[0].mxu0
    %v1599 = vadd.f32 0.0, %v1598
    %v1600 = vpop.f32.mrb[0].mxu0
    %v1601 = vadd.f32 0.0, %v1600
    %1602 = vdwg.mxu0
    %v1604 = vsel %vm543, %v495, 0
    %v1607 = vsel %vm543, %v496, 0
    %v1610 = vsel %vm543, %v497, 0
    %v1613 = vsel %vm543, %v498, 0
    %v1616 = vsel %vm543, %v499, 0
    %v1619 = vsel %vm543, %v500, 0
    %v1622 = vsel %vm543, %v501, 0
    %v1625 = vsel %vm543, %v502, 0
    %v1628 = vsel %vm543, %v503, 0
    %v1631 = vsel %vm543, %v504, 0
    %v1634 = vsel %vm543, %v505, 0
    %v1637 = vsel %vm543, %v506, 0
    %v1640 = vsel %vm543, %v507, 0
    %v1643 = vsel %vm543, %v508, 0
    %v1646 = vsel %vm543, %v509, 0
    %v1649 = vsel %vm543, %v510, 0
    %v1652 = vsel %vm543, %v527, 0
    %v1655 = vsel %vm543, %v528, 0
    %v1658 = vsel %vm543, %v529, 0
    %v1661 = vsel %vm543, %v530, 0
    %v1664 = vsel %vm543, %v531, 0
    %v1667 = vsel %vm543, %v532, 0
    %v1670 = vsel %vm543, %v533, 0
    %v1673 = vsel %vm543, %v534, 0
    %v1676 = vsel %vm543, %v535, 0
    %v1679 = vsel %vm543, %v536, 0
    %v1682 = vsel %vm543, %v537, 0
    %v1685 = vsel %vm543, %v538, 0
    %v1688 = vsel %vm543, %v539, 0
    %v1691 = vsel %vm543, %v540, 0
    %v1694 = vsel %vm543, %v541, 0
    %v1697 = vsel %vm543, %v542, 0
    %1699 = vmatprep.subr.mxu0 %v261
    %1700 = vmatpush1.msra.mxu0 %v259
    %1701 = vmatprep.subr.mxu0 0.0
    %1702 = vmatpush1.msra.mxu0 0.0
    %1703 = vmatprep.subr.mxu0 0.0
    %1704 = vmatpush1.msra.mxu0 0.0
    %1705 = vmatprep.subr.mxu0 0.0
    %1706 = vmatpush1.msra.mxu0 0.0
    %1707 = vmatprep.subr.mxu0 0.0
    %1708 = vmatpush1.msra.mxu0 0.0
    %1709 = vmatprep.subr.mxu0 0.0
    %1710 = vmatpush1.msra.mxu0 0.0
    %1711 = vmatprep.subr.mxu0 0.0
    %1712 = vmatpush1.msra.mxu0 0.0
    %1713 = vmatprep.subr.mxu0 0.0
    %1714 = vmatpush1.msra.mxu0 0.0
    %1715 = vmatprep.subr.mxu0 0.0
    %1716 = vmatpush1.msra.mxu0 0.0
    %1717 = vmatprep.subr.mxu0 0.0
    %1718 = vmatpush1.msra.mxu0 0.0
    %1719 = vmatprep.subr.mxu0 0.0
    %1720 = vmatpush1.msra.mxu0 0.0
    %1721 = vmatprep.subr.mxu0 0.0
    %1722 = vmatpush1.msra.mxu0 0.0
    %1723 = vmatprep.subr.mxu0 0.0
    %1724 = vmatpush1.msra.mxu0 0.0
    %1725 = vmatprep.subr.mxu0 0.0
    %1726 = vmatpush1.msra.mxu0 0.0
    %1727 = vmatprep.subr.mxu0 0.0
    %1728 = vmatpush1.msra.mxu0 0.0
    %1729 = vmatprep.subr.mxu0 0.0
    %1730 = vmatpush1.msra.mxu0 0.0
    %1731 = vmatprep.subr.mxu0 0.0
    %1732 = vmatpush1.msra.mxu0 0.0
    %1733 = vmatprep.subr.mxu0 0.0
    %1734 = vmatpush1.msra.mxu0 0.0
    %1735 = vmatprep.subr.mxu0 0.0
    %1736 = vmatpush1.msra.mxu0 0.0
    %1737 = vmatprep.subr.mxu0 0.0
    %1738 = vmatpush1.msra.mxu0 0.0
    %1739 = vmatprep.subr.mxu0 0.0
    %1740 = vmatpush1.msra.mxu0 0.0
    %1741 = vmatprep.subr.mxu0 0.0
    %1742 = vmatpush1.msra.mxu0 0.0
    %1743 = vmatprep.subr.mxu0 0.0
    %1744 = vmatpush1.msra.mxu0 0.0
    %1745 = vmatprep.subr.mxu0 0.0
    %1746 = vmatpush1.msra.mxu0 0.0
    %1747 = vmatprep.subr.mxu0 0.0
    %1748 = vmatpush1.msra.mxu0 0.0
    %1749 = vmatprep.subr.mxu0 0.0
    %1750 = vmatpush1.msra.mxu0 0.0
    %1751 = vmatprep.subr.mxu0 0.0
    %1752 = vmatpush1.msra.mxu0 0.0
    %1753 = vmatprep.subr.mxu0 0.0
    %1754 = vmatpush1.msra.mxu0 0.0
    %1755 = vmatprep.subr.mxu0 0.0
    %1756 = vmatpush1.msra.mxu0 0.0
    %1757 = vmatprep.subr.mxu0 0.0
    %1758 = vmatpush1.msra.mxu0 0.0
    %1759 = vmatprep.subr.mxu0 0.0
    %1760 = vmatpush1.msra.mxu0 0.0
    %1761 = vmatprep.subr.mxu0 0.0
    %1762 = vmatpush1.msra.mxu0 0.0
    %1763 = vmatprep.mubr.f32.mxu0 0.0
    %1764 = vmatmul.mubr.f32.gmra.mrb[0].mxu0 %v1604
    %v1765 = vpop.f32.mrb[0].mxu0
    %v1766 = vadd.f32 0.0, %v1765
    %v1767 = vpop.f32.mrb[0].mxu0
    %v1768 = vadd.f32 0.0, %v1767
    %1769 = vmatprep.mubr.f32.mxu0 0.0
    %1770 = vmatmul.mubr.f32.gmra.mrb[0].mxu0 %v1607
    %v1771 = vpop.f32.mrb[0].mxu0
    %v1772 = vadd.f32 0.0, %v1771
    %v1773 = vpop.f32.mrb[0].mxu0
    %v1774 = vadd.f32 0.0, %v1773
    %1775 = vmatprep.mubr.f32.mxu0 0.0
    %1776 = vmatmul.mubr.f32.gmra.mrb[0].mxu0 %v1610
    %v1777 = vpop.f32.mrb[0].mxu0
    %v1778 = vadd.f32 0.0, %v1777
    %v1779 = vpop.f32.mrb[0].mxu0
    %v1780 = vadd.f32 0.0, %v1779
    %1781 = vmatprep.mubr.f32.mxu0 0.0
    %1782 = vmatmul.mubr.f32.gmra.mrb[0].mxu0 %v1613
    %v1783 = vpop.f32.mrb[0].mxu0
    %v1784 = vadd.f32 0.0, %v1783
    %v1785 = vpop.f32.mrb[0].mxu0
    %v1786 = vadd.f32 0.0, %v1785
    %1787 = vmatprep.mubr.f32.mxu0 0.0
    %1788 = vmatmul.mubr.f32.gmra.mrb[0].mxu0 %v1616
    %v1789 = vpop.f32.mrb[0].mxu0
    %v1790 = vadd.f32 0.0, %v1789
    %v1791 = vpop.f32.mrb[0].mxu0
    %v1792 = vadd.f32 0.0, %v1791
    %1793 = vmatprep.mubr.f32.mxu0 0.0
    %1794 = vmatmul.mubr.f32.gmra.mrb[0].mxu0 %v1619
    %v1795 = vpop.f32.mrb[0].mxu0
    %v1796 = vadd.f32 0.0, %v1795
    %v1797 = vpop.f32.mrb[0].mxu0
    %v1798 = vadd.f32 0.0, %v1797
    %1799 = vmatprep.mubr.f32.mxu0 0.0
    %1800 = vmatmul.mubr.f32.gmra.mrb[0].mxu0 %v1622
    %v1801 = vpop.f32.mrb[0].mxu0
    %v1802 = vadd.f32 0.0, %v1801
    %v1803 = vpop.f32.mrb[0].mxu0
    %v1804 = vadd.f32 0.0, %v1803
    %1805 = vmatprep.mubr.f32.mxu0 0.0
    %1806 = vmatmul.mubr.f32.gmra.mrb[0].mxu0 %v1625
    %v1807 = vpop.f32.mrb[0].mxu0
    %v1808 = vadd.f32 0.0, %v1807
    %v1809 = vpop.f32.mrb[0].mxu0
    %v1810 = vadd.f32 0.0, %v1809
    %1811 = vmatprep.mubr.f32.mxu0 0.0
    %1812 = vmatmul.mubr.f32.gmra.mrb[0].mxu0 %v1628
    %v1813 = vpop.f32.mrb[0].mxu0
    %v1814 = vadd.f32 0.0, %v1813
    %v1815 = vpop.f32.mrb[0].mxu0
    %v1816 = vadd.f32 0.0, %v1815
    %1817 = vmatprep.mubr.f32.mxu0 0.0
    %1818 = vmatmul.mubr.f32.gmra.mrb[0].mxu0 %v1631
    %v1819 = vpop.f32.mrb[0].mxu0
    %v1820 = vadd.f32 0.0, %v1819
    %v1821 = vpop.f32.mrb[0].mxu0
    %v1822 = vadd.f32 0.0, %v1821
    %1823 = vmatprep.mubr.f32.mxu0 0.0
    %1824 = vmatmul.mubr.f32.gmra.mrb[0].mxu0 %v1634
    %v1825 = vpop.f32.mrb[0].mxu0
    %v1826 = vadd.f32 0.0, %v1825
    %v1827 = vpop.f32.mrb[0].mxu0
    %v1828 = vadd.f32 0.0, %v1827
    %1829 = vmatprep.mubr.f32.mxu0 0.0
    %1830 = vmatmul.mubr.f32.gmra.mrb[0].mxu0 %v1637
    %v1831 = vpop.f32.mrb[0].mxu0
    %v1832 = vadd.f32 0.0, %v1831
    %v1833 = vpop.f32.mrb[0].mxu0
    %v1834 = vadd.f32 0.0, %v1833
    %1835 = vmatprep.mubr.f32.mxu0 0.0
    %1836 = vmatmul.mubr.f32.gmra.mrb[0].mxu0 %v1640
    %v1837 = vpop.f32.mrb[0].mxu0
    %v1838 = vadd.f32 0.0, %v1837
    %v1839 = vpop.f32.mrb[0].mxu0
    %v1840 = vadd.f32 0.0, %v1839
    %1841 = vmatprep.mubr.f32.mxu0 0.0
    %1842 = vmatmul.mubr.f32.gmra.mrb[0].mxu0 %v1643
    %v1843 = vpop.f32.mrb[0].mxu0
    %v1844 = vadd.f32 0.0, %v1843
    %v1845 = vpop.f32.mrb[0].mxu0
    %v1846 = vadd.f32 0.0, %v1845
    %1847 = vmatprep.mubr.f32.mxu0 0.0
    %1848 = vmatmul.mubr.f32.gmra.mrb[0].mxu0 %v1646
    %v1849 = vpop.f32.mrb[0].mxu0
    %v1850 = vadd.f32 0.0, %v1849
    %v1851 = vpop.f32.mrb[0].mxu0
    %v1852 = vadd.f32 0.0, %v1851
    %1853 = vmatprep.mubr.f32.mxu0 0.0
    %1854 = vmatmul.mubr.f32.gmra.mrb[0].mxu0 %v1649
    %v1855 = vpop.f32.mrb[0].mxu0
    %v1856 = vadd.f32 0.0, %v1855
    %v1857 = vpop.f32.mrb[0].mxu0
    %v1858 = vadd.f32 0.0, %v1857
    %1859 = vmatprep.mubr.f32.mxu0 0.0
    %1860 = vmatmul.mubr.f32.gmra.mrb[0].mxu0 %v1652
    %v1861 = vpop.f32.mrb[0].mxu0
    %v1862 = vadd.f32 0.0, %v1861
    %v1863 = vpop.f32.mrb[0].mxu0
    %v1864 = vadd.f32 0.0, %v1863
    %1865 = vmatprep.mubr.f32.mxu0 0.0
    %1866 = vmatmul.mubr.f32.gmra.mrb[0].mxu0 %v1655
    %v1867 = vpop.f32.mrb[0].mxu0
    %v1868 = vadd.f32 0.0, %v1867
    %v1869 = vpop.f32.mrb[0].mxu0
    %v1870 = vadd.f32 0.0, %v1869
    %1871 = vmatprep.mubr.f32.mxu0 0.0
    %1872 = vmatmul.mubr.f32.gmra.mrb[0].mxu0 %v1658
    %v1873 = vpop.f32.mrb[0].mxu0
    %v1874 = vadd.f32 0.0, %v1873
    %v1875 = vpop.f32.mrb[0].mxu0
    %v1876 = vadd.f32 0.0, %v1875
    %1877 = vmatprep.mubr.f32.mxu0 0.0
    %1878 = vmatmul.mubr.f32.gmra.mrb[0].mxu0 %v1661
    %v1879 = vpop.f32.mrb[0].mxu0
    %v1880 = vadd.f32 0.0, %v1879
    %v1881 = vpop.f32.mrb[0].mxu0
    %v1882 = vadd.f32 0.0, %v1881
    %1883 = vmatprep.mubr.f32.mxu0 0.0
    %1884 = vmatmul.mubr.f32.gmra.mrb[0].mxu0 %v1664
    %v1885 = vpop.f32.mrb[0].mxu0
    %v1886 = vadd.f32 0.0, %v1885
    %v1887 = vpop.f32.mrb[0].mxu0
    %v1888 = vadd.f32 0.0, %v1887
    %1889 = vmatprep.mubr.f32.mxu0 0.0
    %1890 = vmatmul.mubr.f32.gmra.mrb[0].mxu0 %v1667
    %v1891 = vpop.f32.mrb[0].mxu0
    %v1892 = vadd.f32 0.0, %v1891
    %v1893 = vpop.f32.mrb[0].mxu0
    %v1894 = vadd.f32 0.0, %v1893
    %1895 = vmatprep.mubr.f32.mxu0 0.0
    %1896 = vmatmul.mubr.f32.gmra.mrb[0].mxu0 %v1670
    %v1897 = vpop.f32.mrb[0].mxu0
    %v1898 = vadd.f32 0.0, %v1897
    %v1899 = vpop.f32.mrb[0].mxu0
    %v1900 = vadd.f32 0.0, %v1899
    %1901 = vmatprep.mubr.f32.mxu0 0.0
    %1902 = vmatmul.mubr.f32.gmra.mrb[0].mxu0 %v1673
    %v1903 = vpop.f32.mrb[0].mxu0
    %v1904 = vadd.f32 0.0, %v1903
    %v1905 = vpop.f32.mrb[0].mxu0
    %v1906 = vadd.f32 0.0, %v1905
    %1907 = vmatprep.mubr.f32.mxu0 0.0
    %1908 = vmatmul.mubr.f32.gmra.mrb[0].mxu0 %v1676
    %v1909 = vpop.f32.mrb[0].mxu0
    %v1910 = vadd.f32 0.0, %v1909
    %v1911 = vpop.f32.mrb[0].mxu0
    %v1912 = vadd.f32 0.0, %v1911
    %1913 = vmatprep.mubr.f32.mxu0 0.0
    %1914 = vmatmul.mubr.f32.gmra.mrb[0].mxu0 %v1679
    %v1915 = vpop.f32.mrb[0].mxu0
    %v1916 = vadd.f32 0.0, %v1915
    %v1917 = vpop.f32.mrb[0].mxu0
    %v1918 = vadd.f32 0.0, %v1917
    %1919 = vmatprep.mubr.f32.mxu0 0.0
    %1920 = vmatmul.mubr.f32.gmra.mrb[0].mxu0 %v1682
    %v1921 = vpop.f32.mrb[0].mxu0
    %v1922 = vadd.f32 0.0, %v1921
    %v1923 = vpop.f32.mrb[0].mxu0
    %v1924 = vadd.f32 0.0, %v1923
    %1925 = vmatprep.mubr.f32.mxu0 0.0
    %1926 = vmatmul.mubr.f32.gmra.mrb[0].mxu0 %v1685
    %v1927 = vpop.f32.mrb[0].mxu0
    %v1928 = vadd.f32 0.0, %v1927
    %v1929 = vpop.f32.mrb[0].mxu0
    %v1930 = vadd.f32 0.0, %v1929
    %1931 = vmatprep.mubr.f32.mxu0 0.0
    %1932 = vmatmul.mubr.f32.gmra.mrb[0].mxu0 %v1688
    %v1933 = vpop.f32.mrb[0].mxu0
    %v1934 = vadd.f32 0.0, %v1933
    %v1935 = vpop.f32.mrb[0].mxu0
    %v1936 = vadd.f32 0.0, %v1935
    %1937 = vmatprep.mubr.f32.mxu0 0.0
    %1938 = vmatmul.mubr.f32.gmra.mrb[0].mxu0 %v1691
    %v1939 = vpop.f32.mrb[0].mxu0
    %v1940 = vadd.f32 0.0, %v1939
    %v1941 = vpop.f32.mrb[0].mxu0
    %v1942 = vadd.f32 0.0, %v1941
    %1943 = vmatprep.mubr.f32.mxu0 0.0
    %1944 = vmatmul.mubr.f32.gmra.mrb[0].mxu0 %v1694
    %v1945 = vpop.f32.mrb[0].mxu0
    %v1946 = vadd.f32 0.0, %v1945
    %v1947 = vpop.f32.mrb[0].mxu0
    %v1948 = vadd.f32 0.0, %v1947
    %1949 = vmatprep.mubr.f32.mxu0 0.0
    %1950 = vmatmul.mubr.f32.gmra.mrb[0].mxu0 %v1697
    %v1951 = vpop.f32.mrb[0].mxu0
    %v1952 = vadd.f32 0.0, %v1951
    %v1953 = vpop.f32.mrb[0].mxu0
    %v1954 = vadd.f32 0.0, %v1953
    %1955 = vdwg.mxu0
    %v1956 = vmax.f32 %v707, %v709
    %1957 = vmax.xlane.f32.xlu0 %v1956
    %v1958 = vpop.xlane.xlu0 %1957
    %v1959 = vmax.f32 %v713, %v715
    %1960 = vmax.xlane.f32.xlu0 %v1959
    %v1961 = vpop.xlane.xlu0 %1960
    %v1962 = vmax.f32 %v719, %v721
    %1963 = vmax.xlane.f32.xlu0 %v1962
    %v1964 = vpop.xlane.xlu0 %1963
    %v1965 = vmax.f32 %v725, %v727
    %1966 = vmax.xlane.f32.xlu0 %v1965
    %v1967 = vpop.xlane.xlu0 %1966
    %v1968 = vmax.f32 %v731, %v733
    %1969 = vmax.xlane.f32.xlu0 %v1968
    %v1970 = vpop.xlane.xlu0 %1969
    %v1971 = vmax.f32 %v737, %v739
    %1972 = vmax.xlane.f32.xlu0 %v1971
    %v1973 = vpop.xlane.xlu0 %1972
    %v1974 = vmax.f32 %v743, %v745
    %1975 = vmax.xlane.f32.xlu0 %v1974
    %v1976 = vpop.xlane.xlu0 %1975
    %v1977 = vmax.f32 %v749, %v751
    %1978 = vmax.xlane.f32.xlu0 %v1977
    %v1979 = vpop.xlane.xlu0 %1978
    %v1980 = vmax.f32 %v755, %v757
    %1981 = vmax.xlane.f32.xlu0 %v1980
    %v1982 = vpop.xlane.xlu0 %1981
    %v1983 = vmax.f32 %v761, %v763
    %1984 = vmax.xlane.f32.xlu0 %v1983
    %v1985 = vpop.xlane.xlu0 %1984
    %v1986 = vmax.f32 %v767, %v769
    %1987 = vmax.xlane.f32.xlu0 %v1986
    %v1988 = vpop.xlane.xlu0 %1987
    %v1989 = vmax.f32 %v773, %v775
    %1990 = vmax.xlane.f32.xlu0 %v1989
    %v1991 = vpop.xlane.xlu0 %1990
    %v1992 = vmax.f32 %v779, %v781
    %1993 = vmax.xlane.f32.xlu0 %v1992
    %v1994 = vpop.xlane.xlu0 %1993
    %v1995 = vmax.f32 %v785, %v787
    %1996 = vmax.xlane.f32.xlu0 %v1995
    %v1997 = vpop.xlane.xlu0 %1996
    %v1998 = vmax.f32 %v791, %v793
    %1999 = vmax.xlane.f32.xlu0 %v1998
    %v2000 = vpop.xlane.xlu0 %1999
    %v2001 = vmax.f32 %v797, %v799
    %2002 = vmax.xlane.f32.xlu0 %v2001
    %v2003 = vpop.xlane.xlu0 %2002
    %v2004 = vmax.f32 %v803, %v805
    %2005 = vmax.xlane.f32.xlu0 %v2004
    %v2006 = vpop.xlane.xlu0 %2005
    %v2007 = vmax.f32 %v809, %v811
    %2008 = vmax.xlane.f32.xlu0 %v2007
    %v2009 = vpop.xlane.xlu0 %2008
    %v2010 = vmax.f32 %v815, %v817
    %2011 = vmax.xlane.f32.xlu0 %v2010
    %v2012 = vpop.xlane.xlu0 %2011
    %v2013 = vmax.f32 %v821, %v823
    %2014 = vmax.xlane.f32.xlu0 %v2013
    %v2015 = vpop.xlane.xlu0 %2014
    %v2016 = vmax.f32 %v827, %v829
    %2017 = vmax.xlane.f32.xlu0 %v2016
    %v2018 = vpop.xlane.xlu0 %2017
    %v2019 = vmax.f32 %v833, %v835
    %2020 = vmax.xlane.f32.xlu0 %v2019
    %v2021 = vpop.xlane.xlu0 %2020
    %v2022 = vmax.f32 %v839, %v841
    %2023 = vmax.xlane.f32.xlu0 %v2022
    %v2024 = vpop.xlane.xlu0 %2023
    %v2025 = vmax.f32 %v845, %v847
    %2026 = vmax.xlane.f32.xlu0 %v2025
    %v2027 = vpop.xlane.xlu0 %2026
    %v2028 = vmax.f32 %v851, %v853
    %2029 = vmax.xlane.f32.xlu0 %v2028
    %v2030 = vpop.xlane.xlu0 %2029
    %v2031 = vmax.f32 %v857, %v859
    %2032 = vmax.xlane.f32.xlu0 %v2031
    %v2033 = vpop.xlane.xlu0 %2032
    %v2034 = vmax.f32 %v863, %v865
    %2035 = vmax.xlane.f32.xlu0 %v2034
    %v2036 = vpop.xlane.xlu0 %2035
    %v2037 = vmax.f32 %v869, %v871
    %2038 = vmax.xlane.f32.xlu0 %v2037
    %v2039 = vpop.xlane.xlu0 %2038
    %v2040 = vmax.f32 %v875, %v877
    %2041 = vmax.xlane.f32.xlu0 %v2040
    %v2042 = vpop.xlane.xlu0 %2041
    %v2043 = vmax.f32 %v881, %v883
    %2044 = vmax.xlane.f32.xlu0 %v2043
    %v2045 = vpop.xlane.xlu0 %2044
    %v2046 = vmax.f32 %v887, %v889
    %2047 = vmax.xlane.f32.xlu0 %v2046
    %v2048 = vpop.xlane.xlu0 %2047
    %v2049 = vmax.f32 %v893, %v895
    %2050 = vmax.xlane.f32.xlu0 %v2049
    %v2051 = vpop.xlane.xlu0 %2050
    %v2052 = vmax.f32 %v1060, %v1062
    %2053 = vmax.xlane.f32.xlu0 %v2052
    %v2054 = vpop.xlane.xlu0 %2053
    %v2055 = vmax.f32 %v1066, %v1068
    %2056 = vmax.xlane.f32.xlu0 %v2055
    %v2057 = vpop.xlane.xlu0 %2056
    %v2058 = vmax.f32 %v1072, %v1074
    %2059 = vmax.xlane.f32.xlu0 %v2058
    %v2060 = vpop.xlane.xlu0 %2059
    %v2061 = vmax.f32 %v1078, %v1080
    %2062 = vmax.xlane.f32.xlu0 %v2061
    %v2063 = vpop.xlane.xlu0 %2062
    %v2064 = vmax.f32 %v1084, %v1086
    %2065 = vmax.xlane.f32.xlu0 %v2064
    %v2066 = vpop.xlane.xlu0 %2065
    %v2067 = vmax.f32 %v1090, %v1092
    %2068 = vmax.xlane.f32.xlu0 %v2067
    %v2069 = vpop.xlane.xlu0 %2068
    %v2070 = vmax.f32 %v1096, %v1098
    %2071 = vmax.xlane.f32.xlu0 %v2070
    %v2072 = vpop.xlane.xlu0 %2071
    %v2073 = vmax.f32 %v1102, %v1104
    %2074 = vmax.xlane.f32.xlu0 %v2073
    %v2075 = vpop.xlane.xlu0 %2074
    %v2076 = vmax.f32 %v1108, %v1110
    %2077 = vmax.xlane.f32.xlu0 %v2076
    %v2078 = vpop.xlane.xlu0 %2077
    %v2079 = vmax.f32 %v1114, %v1116
    %2080 = vmax.xlane.f32.xlu0 %v2079
    %v2081 = vpop.xlane.xlu0 %2080
    %v2082 = vmax.f32 %v1120, %v1122
    %2083 = vmax.xlane.f32.xlu0 %v2082
    %v2084 = vpop.xlane.xlu0 %2083
    %v2085 = vmax.f32 %v1126, %v1128
    %2086 = vmax.xlane.f32.xlu0 %v2085
    %v2087 = vpop.xlane.xlu0 %2086
    %v2088 = vmax.f32 %v1132, %v1134
    %2089 = vmax.xlane.f32.xlu0 %v2088
    %v2090 = vpop.xlane.xlu0 %2089
    %v2091 = vmax.f32 %v1138, %v1140
    %2092 = vmax.xlane.f32.xlu0 %v2091
    %v2093 = vpop.xlane.xlu0 %2092
    %v2094 = vmax.f32 %v1144, %v1146
    %2095 = vmax.xlane.f32.xlu0 %v2094
    %v2096 = vpop.xlane.xlu0 %2095
    %v2097 = vmax.f32 %v1150, %v1152
    %2098 = vmax.xlane.f32.xlu0 %v2097
    %v2099 = vpop.xlane.xlu0 %2098
    %v2100 = vmax.f32 %v1156, %v1158
    %2101 = vmax.xlane.f32.xlu0 %v2100
    %v2102 = vpop.xlane.xlu0 %2101
    %v2103 = vmax.f32 %v1162, %v1164
    %2104 = vmax.xlane.f32.xlu0 %v2103
    %v2105 = vpop.xlane.xlu0 %2104
    %v2106 = vmax.f32 %v1168, %v1170
    %2107 = vmax.xlane.f32.xlu0 %v2106
    %v2108 = vpop.xlane.xlu0 %2107
    %v2109 = vmax.f32 %v1174, %v1176
    %2110 = vmax.xlane.f32.xlu0 %v2109
    %v2111 = vpop.xlane.xlu0 %2110
    %v2112 = vmax.f32 %v1180, %v1182
    %2113 = vmax.xlane.f32.xlu0 %v2112
    %v2114 = vpop.xlane.xlu0 %2113
    %v2115 = vmax.f32 %v1186, %v1188
    %2116 = vmax.xlane.f32.xlu0 %v2115
    %v2117 = vpop.xlane.xlu0 %2116
    %v2118 = vmax.f32 %v1192, %v1194
    %2119 = vmax.xlane.f32.xlu0 %v2118
    %v2120 = vpop.xlane.xlu0 %2119
    %v2121 = vmax.f32 %v1198, %v1200
    %2122 = vmax.xlane.f32.xlu0 %v2121
    %v2123 = vpop.xlane.xlu0 %2122
    %v2124 = vmax.f32 %v1204, %v1206
    %2125 = vmax.xlane.f32.xlu0 %v2124
    %v2126 = vpop.xlane.xlu0 %2125
    %v2127 = vmax.f32 %v1210, %v1212
    %2128 = vmax.xlane.f32.xlu0 %v2127
    %v2129 = vpop.xlane.xlu0 %2128
    %v2130 = vmax.f32 %v1216, %v1218
    %2131 = vmax.xlane.f32.xlu0 %v2130
    %v2132 = vpop.xlane.xlu0 %2131
    %v2133 = vmax.f32 %v1222, %v1224
    %2134 = vmax.xlane.f32.xlu0 %v2133
    %v2135 = vpop.xlane.xlu0 %2134
    %v2136 = vmax.f32 %v1228, %v1230
    %2137 = vmax.xlane.f32.xlu0 %v2136
    %v2138 = vpop.xlane.xlu0 %2137
    %v2139 = vmax.f32 %v1234, %v1236
    %2140 = vmax.xlane.f32.xlu0 %v2139
    %v2141 = vpop.xlane.xlu0 %2140
    %v2142 = vmax.f32 %v1240, %v1242
    %2143 = vmax.xlane.f32.xlu0 %v2142
    %v2144 = vpop.xlane.xlu0 %2143
    %v2145 = vmax.f32 %v1246, %v1248
    %2146 = vmax.xlane.f32.xlu0 %v2145
    %v2147 = vpop.xlane.xlu0 %2146
    %v2148 = vmax.f32 %v1413, %v1415
    %2149 = vmax.xlane.f32.xlu0 %v2148
    %v2150 = vpop.xlane.xlu0 %2149
    %v2151 = vmax.f32 %v1419, %v1421
    %2152 = vmax.xlane.f32.xlu0 %v2151
    %v2153 = vpop.xlane.xlu0 %2152
    %v2154 = vmax.f32 %v1425, %v1427
    %2155 = vmax.xlane.f32.xlu0 %v2154
    %v2156 = vpop.xlane.xlu0 %2155
    %v2157 = vmax.f32 %v1431, %v1433
    %2158 = vmax.xlane.f32.xlu0 %v2157
    %v2159 = vpop.xlane.xlu0 %2158
    %v2160 = vmax.f32 %v1437, %v1439
    %2161 = vmax.xlane.f32.xlu0 %v2160
    %v2162 = vpop.xlane.xlu0 %2161
    %v2163 = vmax.f32 %v1443, %v1445
    %2164 = vmax.xlane.f32.xlu0 %v2163
    %v2165 = vpop.xlane.xlu0 %2164
    %v2166 = vmax.f32 %v1449, %v1451
    %2167 = vmax.xlane.f32.xlu0 %v2166
    %v2168 = vpop.xlane.xlu0 %2167
    %v2169 = vmax.f32 %v1455, %v1457
    %2170 = vmax.xlane.f32.xlu0 %v2169
    %v2171 = vpop.xlane.xlu0 %2170
    %v2172 = vmax.f32 %v1461, %v1463
    %2173 = vmax.xlane.f32.xlu0 %v2172
    %v2174 = vpop.xlane.xlu0 %2173
    %v2175 = vmax.f32 %v1467, %v1469
    %2176 = vmax.xlane.f32.xlu0 %v2175
    %v2177 = vpop.xlane.xlu0 %2176
    %v2178 = vmax.f32 %v1473, %v1475
    %2179 = vmax.xlane.f32.xlu0 %v2178
    %v2180 = vpop.xlane.xlu0 %2179
    %v2181 = vmax.f32 %v1479, %v1481
    %2182 = vmax.xlane.f32.xlu0 %v2181
    %v2183 = vpop.xlane.xlu0 %2182
    %v2184 = vmax.f32 %v1485, %v1487
    %2185 = vmax.xlane.f32.xlu0 %v2184
    %v2186 = vpop.xlane.xlu0 %2185
    %v2187 = vmax.f32 %v1491, %v1493
    %2188 = vmax.xlane.f32.xlu0 %v2187
    %v2189 = vpop.xlane.xlu0 %2188
    %v2190 = vmax.f32 %v1497, %v1499
    %2191 = vmax.xlane.f32.xlu0 %v2190
    %v2192 = vpop.xlane.xlu0 %2191
    %v2193 = vmax.f32 %v1503, %v1505
    %2194 = vmax.xlane.f32.xlu0 %v2193
    %v2195 = vpop.xlane.xlu0 %2194
    %v2196 = vmax.f32 %v1509, %v1511
    %2197 = vmax.xlane.f32.xlu0 %v2196
    %v2198 = vpop.xlane.xlu0 %2197
    %v2199 = vmax.f32 %v1515, %v1517
    %2200 = vmax.xlane.f32.xlu0 %v2199
    %v2201 = vpop.xlane.xlu0 %2200
    %v2202 = vmax.f32 %v1521, %v1523
    %2203 = vmax.xlane.f32.xlu0 %v2202
    %v2204 = vpop.xlane.xlu0 %2203
    %v2205 = vmax.f32 %v1527, %v1529
    %2206 = vmax.xlane.f32.xlu0 %v2205
    %v2207 = vpop.xlane.xlu0 %2206
    %v2208 = vmax.f32 %v1533, %v1535
    %2209 = vmax.xlane.f32.xlu0 %v2208
    %v2210 = vpop.xlane.xlu0 %2209
    %v2211 = vmax.f32 %v1539, %v1541
    %2212 = vmax.xlane.f32.xlu0 %v2211
    %v2213 = vpop.xlane.xlu0 %2212
    %v2214 = vmax.f32 %v1545, %v1547
    %2215 = vmax.xlane.f32.xlu0 %v2214
    %v2216 = vpop.xlane.xlu0 %2215
    %v2217 = vmax.f32 %v1551, %v1553
    %2218 = vmax.xlane.f32.xlu0 %v2217
    %v2219 = vpop.xlane.xlu0 %2218
    %v2220 = vmax.f32 %v1557, %v1559
    %2221 = vmax.xlane.f32.xlu0 %v2220
    %v2222 = vpop.xlane.xlu0 %2221
    %v2223 = vmax.f32 %v1563, %v1565
    %2224 = vmax.xlane.f32.xlu0 %v2223
    %v2225 = vpop.xlane.xlu0 %2224
    %v2226 = vmax.f32 %v1569, %v1571
    %2227 = vmax.xlane.f32.xlu0 %v2226
    %v2228 = vpop.xlane.xlu0 %2227
    %v2229 = vmax.f32 %v1575, %v1577
    %2230 = vmax.xlane.f32.xlu0 %v2229
    %v2231 = vpop.xlane.xlu0 %2230
    %v2232 = vmax.f32 %v1581, %v1583
    %2233 = vmax.xlane.f32.xlu0 %v2232
    %v2234 = vpop.xlane.xlu0 %2233
    %v2235 = vmax.f32 %v1587, %v1589
    %2236 = vmax.xlane.f32.xlu0 %v2235
    %v2237 = vpop.xlane.xlu0 %2236
    %v2238 = vmax.f32 %v1593, %v1595
    %2239 = vmax.xlane.f32.xlu0 %v2238
    %v2240 = vpop.xlane.xlu0 %2239
    %v2241 = vmax.f32 %v1599, %v1601
    %2242 = vmax.xlane.f32.xlu0 %v2241
    %v2243 = vpop.xlane.xlu0 %2242
    %v2244 = vmax.f32 %v1766, %v1768
    %2245 = vmax.xlane.f32.xlu0 %v2244
    %v2246 = vpop.xlane.xlu0 %2245
    %v2247 = vmax.f32 %v1772, %v1774
    %2248 = vmax.xlane.f32.xlu0 %v2247
    %v2249 = vpop.xlane.xlu0 %2248
    %v2250 = vmax.f32 %v1778, %v1780
    %2251 = vmax.xlane.f32.xlu0 %v2250
    %v2252 = vpop.xlane.xlu0 %2251
    %v2253 = vmax.f32 %v1784, %v1786
    %2254 = vmax.xlane.f32.xlu0 %v2253
    %v2255 = vpop.xlane.xlu0 %2254
    %v2256 = vmax.f32 %v1790, %v1792
    %2257 = vmax.xlane.f32.xlu0 %v2256
    %v2258 = vpop.xlane.xlu0 %2257
    %v2259 = vmax.f32 %v1796, %v1798
    %2260 = vmax.xlane.f32.xlu0 %v2259
    %v2261 = vpop.xlane.xlu0 %2260
    %v2262 = vmax.f32 %v1802, %v1804
    %2263 = vmax.xlane.f32.xlu0 %v2262
    %v2264 = vpop.xlane.xlu0 %2263
    %v2265 = vmax.f32 %v1808, %v1810
    %2266 = vmax.xlane.f32.xlu0 %v2265
    %v2267 = vpop.xlane.xlu0 %2266
    %v2268 = vmax.f32 %v1814, %v1816
    %2269 = vmax.xlane.f32.xlu0 %v2268
    %v2270 = vpop.xlane.xlu0 %2269
    %v2271 = vmax.f32 %v1820, %v1822
    %2272 = vmax.xlane.f32.xlu0 %v2271
    %v2273 = vpop.xlane.xlu0 %2272
    %v2274 = vmax.f32 %v1826, %v1828
    %2275 = vmax.xlane.f32.xlu0 %v2274
    %v2276 = vpop.xlane.xlu0 %2275
    %v2277 = vmax.f32 %v1832, %v1834
    %2278 = vmax.xlane.f32.xlu0 %v2277
    %v2279 = vpop.xlane.xlu0 %2278
    %v2280 = vmax.f32 %v1838, %v1840
    %2281 = vmax.xlane.f32.xlu0 %v2280
    %v2282 = vpop.xlane.xlu0 %2281
    %v2283 = vmax.f32 %v1844, %v1846
    %2284 = vmax.xlane.f32.xlu0 %v2283
    %v2285 = vpop.xlane.xlu0 %2284
    %v2286 = vmax.f32 %v1850, %v1852
    %2287 = vmax.xlane.f32.xlu0 %v2286
    %v2288 = vpop.xlane.xlu0 %2287
    %v2289 = vmax.f32 %v1856, %v1858
    %2290 = vmax.xlane.f32.xlu0 %v2289
    %v2291 = vpop.xlane.xlu0 %2290
    %v2292 = vmax.f32 %v1862, %v1864
    %2293 = vmax.xlane.f32.xlu0 %v2292
    %v2294 = vpop.xlane.xlu0 %2293
    %v2295 = vmax.f32 %v1868, %v1870
    %2296 = vmax.xlane.f32.xlu0 %v2295
    %v2297 = vpop.xlane.xlu0 %2296
    %v2298 = vmax.f32 %v1874, %v1876
    %2299 = vmax.xlane.f32.xlu0 %v2298
    %v2300 = vpop.xlane.xlu0 %2299
    %v2301 = vmax.f32 %v1880, %v1882
    %2302 = vmax.xlane.f32.xlu0 %v2301
    %v2303 = vpop.xlane.xlu0 %2302
    %v2304 = vmax.f32 %v1886, %v1888
    %2305 = vmax.xlane.f32.xlu0 %v2304
    %v2306 = vpop.xlane.xlu0 %2305
    %v2307 = vmax.f32 %v1892, %v1894
    %2308 = vmax.xlane.f32.xlu0 %v2307
    %v2309 = vpop.xlane.xlu0 %2308
    %v2310 = vmax.f32 %v1898, %v1900
    %2311 = vmax.xlane.f32.xlu0 %v2310
    %v2312 = vpop.xlane.xlu0 %2311
    %v2313 = vmax.f32 %v1904, %v1906
    %2314 = vmax.xlane.f32.xlu0 %v2313
    %v2315 = vpop.xlane.xlu0 %2314
    %v2316 = vmax.f32 %v1910, %v1912
    %2317 = vmax.xlane.f32.xlu0 %v2316
    %v2318 = vpop.xlane.xlu0 %2317
    %v2319 = vmax.f32 %v1916, %v1918
    %2320 = vmax.xlane.f32.xlu0 %v2319
    %v2321 = vpop.xlane.xlu0 %2320
    %v2322 = vmax.f32 %v1922, %v1924
    %2323 = vmax.xlane.f32.xlu0 %v2322
    %v2324 = vpop.xlane.xlu0 %2323
    %v2325 = vmax.f32 %v1928, %v1930
    %2326 = vmax.xlane.f32.xlu0 %v2325
    %v2327 = vpop.xlane.xlu0 %2326
    %v2328 = vmax.f32 %v1934, %v1936
    %2329 = vmax.xlane.f32.xlu0 %v2328
    %v2330 = vpop.xlane.xlu0 %2329
    %v2331 = vmax.f32 %v1940, %v1942
    %2332 = vmax.xlane.f32.xlu0 %v2331
    %v2333 = vpop.xlane.xlu0 %2332
    %v2334 = vmax.f32 %v1946, %v1948
    %2335 = vmax.xlane.f32.xlu0 %v2334
    %v2336 = vpop.xlane.xlu0 %2335
    %v2337 = vmax.f32 %v1952, %v1954
    %2338 = vmax.xlane.f32.xlu0 %v2337
    %v2339 = vpop.xlane.xlu0 %2338
    %v2340 = vsub.f32 %v707, %v1958
    %v2341 = vsub.f32 %v709, %v1958
    %v2342 = vsub.f32 %v713, %v1961
    %v2343 = vsub.f32 %v715, %v1961
    %v2344 = vsub.f32 %v719, %v1964
    %v2345 = vsub.f32 %v721, %v1964
    %v2346 = vsub.f32 %v725, %v1967
    %v2347 = vsub.f32 %v727, %v1967
    %v2348 = vsub.f32 %v731, %v1970
    %v2349 = vsub.f32 %v733, %v1970
    %v2350 = vsub.f32 %v737, %v1973
    %v2351 = vsub.f32 %v739, %v1973
    %v2352 = vsub.f32 %v743, %v1976
    %v2353 = vsub.f32 %v745, %v1976
    %v2354 = vsub.f32 %v749, %v1979
    %v2355 = vsub.f32 %v751, %v1979
    %v2356 = vsub.f32 %v755, %v1982
    %v2357 = vsub.f32 %v757, %v1982
    %v2358 = vsub.f32 %v761, %v1985
    %v2359 = vsub.f32 %v763, %v1985
    %v2360 = vsub.f32 %v767, %v1988
    %v2361 = vsub.f32 %v769, %v1988
    %v2362 = vsub.f32 %v773, %v1991
    %v2363 = vsub.f32 %v775, %v1991
    %v2364 = vsub.f32 %v779, %v1994
    %v2365 = vsub.f32 %v781, %v1994
    %v2366 = vsub.f32 %v785, %v1997
    %v2367 = vsub.f32 %v787, %v1997
    %v2368 = vsub.f32 %v791, %v2000
    %v2369 = vsub.f32 %v793, %v2000
    %v2370 = vsub.f32 %v797, %v2003
    %v2371 = vsub.f32 %v799, %v2003
    %v2372 = vsub.f32 %v803, %v2006
    %v2373 = vsub.f32 %v805, %v2006
    %v2374 = vsub.f32 %v809, %v2009
    %v2375 = vsub.f32 %v811, %v2009
    %v2376 = vsub.f32 %v815, %v2012
    %v2377 = vsub.f32 %v817, %v2012
    %v2378 = vsub.f32 %v821, %v2015
    %v2379 = vsub.f32 %v823, %v2015
    %v2380 = vsub.f32 %v827, %v2018
    %v2381 = vsub.f32 %v829, %v2018
    %v2382 = vsub.f32 %v833, %v2021
    %v2383 = vsub.f32 %v835, %v2021
    %v2384 = vsub.f32 %v839, %v2024
    %v2385 = vsub.f32 %v841, %v2024
    %v2386 = vsub.f32 %v845, %v2027
    %v2387 = vsub.f32 %v847, %v2027
    %v2388 = vsub.f32 %v851, %v2030
    %v2389 = vsub.f32 %v853, %v2030
    %v2390 = vsub.f32 %v857, %v2033
    %v2391 = vsub.f32 %v859, %v2033
    %v2392 = vsub.f32 %v863, %v2036
    %v2393 = vsub.f32 %v865, %v2036
    %v2394 = vsub.f32 %v869, %v2039
    %v2395 = vsub.f32 %v871, %v2039
    %v2396 = vsub.f32 %v875, %v2042
    %v2397 = vsub.f32 %v877, %v2042
    %v2398 = vsub.f32 %v881, %v2045
    %v2399 = vsub.f32 %v883, %v2045
    %v2400 = vsub.f32 %v887, %v2048
    %v2401 = vsub.f32 %v889, %v2048
    %v2402 = vsub.f32 %v893, %v2051
    %v2403 = vsub.f32 %v895, %v2051
    %v2404 = vsub.f32 %v1060, %v2054
    %v2405 = vsub.f32 %v1062, %v2054
    %v2406 = vsub.f32 %v1066, %v2057
    %v2407 = vsub.f32 %v1068, %v2057
    %v2408 = vsub.f32 %v1072, %v2060
    %v2409 = vsub.f32 %v1074, %v2060
    %v2410 = vsub.f32 %v1078, %v2063
    %v2411 = vsub.f32 %v1080, %v2063
    %v2412 = vsub.f32 %v1084, %v2066
    %v2413 = vsub.f32 %v1086, %v2066
    %v2414 = vsub.f32 %v1090, %v2069
    %v2415 = vsub.f32 %v1092, %v2069
    %v2416 = vsub.f32 %v1096, %v2072
    %v2417 = vsub.f32 %v1098, %v2072
    %v2418 = vsub.f32 %v1102, %v2075
    %v2419 = vsub.f32 %v1104, %v2075
    %v2420 = vsub.f32 %v1108, %v2078
    %v2421 = vsub.f32 %v1110, %v2078
    %v2422 = vsub.f32 %v1114, %v2081
    %v2423 = vsub.f32 %v1116, %v2081
    %v2424 = vsub.f32 %v1120, %v2084
    %v2425 = vsub.f32 %v1122, %v2084
    %v2426 = vsub.f32 %v1126, %v2087
    %v2427 = vsub.f32 %v1128, %v2087
    %v2428 = vsub.f32 %v1132, %v2090
    %v2429 = vsub.f32 %v1134, %v2090
    %v2430 = vsub.f32 %v1138, %v2093
    %v2431 = vsub.f32 %v1140, %v2093
    %v2432 = vsub.f32 %v1144, %v2096
    %v2433 = vsub.f32 %v1146, %v2096
    %v2434 = vsub.f32 %v1150, %v2099
    %v2435 = vsub.f32 %v1152, %v2099
    %v2436 = vsub.f32 %v1156, %v2102
    %v2437 = vsub.f32 %v1158, %v2102
    %v2438 = vsub.f32 %v1162, %v2105
    %v2439 = vsub.f32 %v1164, %v2105
    %v2440 = vsub.f32 %v1168, %v2108
    %v2441 = vsub.f32 %v1170, %v2108
    %v2442 = vsub.f32 %v1174, %v2111
    %v2443 = vsub.f32 %v1176, %v2111
    %v2444 = vsub.f32 %v1180, %v2114
    %v2445 = vsub.f32 %v1182, %v2114
    %v2446 = vsub.f32 %v1186, %v2117
    %v2447 = vsub.f32 %v1188, %v2117
    %v2448 = vsub.f32 %v1192, %v2120
    %v2449 = vsub.f32 %v1194, %v2120
    %v2450 = vsub.f32 %v1198, %v2123
    %v2451 = vsub.f32 %v1200, %v2123
    %v2452 = vsub.f32 %v1204, %v2126
    %v2453 = vsub.f32 %v1206, %v2126
    %v2454 = vsub.f32 %v1210, %v2129
    %v2455 = vsub.f32 %v1212, %v2129
    %v2456 = vsub.f32 %v1216, %v2132
    %v2457 = vsub.f32 %v1218, %v2132
    %v2458 = vsub.f32 %v1222, %v2135
    %v2459 = vsub.f32 %v1224, %v2135
    %v2460 = vsub.f32 %v1228, %v2138
    %v2461 = vsub.f32 %v1230, %v2138
    %v2462 = vsub.f32 %v1234, %v2141
    %v2463 = vsub.f32 %v1236, %v2141
    %v2464 = vsub.f32 %v1240, %v2144
    %v2465 = vsub.f32 %v1242, %v2144
    %v2466 = vsub.f32 %v1246, %v2147
    %v2467 = vsub.f32 %v1248, %v2147
    %v2468 = vsub.f32 %v1413, %v2150
    %v2469 = vsub.f32 %v1415, %v2150
    %v2470 = vsub.f32 %v1419, %v2153
    %v2471 = vsub.f32 %v1421, %v2153
    %v2472 = vsub.f32 %v1425, %v2156
    %v2473 = vsub.f32 %v1427, %v2156
    %v2474 = vsub.f32 %v1431, %v2159
    %v2475 = vsub.f32 %v1433, %v2159
    %v2476 = vsub.f32 %v1437, %v2162
    %v2477 = vsub.f32 %v1439, %v2162
    %v2478 = vsub.f32 %v1443, %v2165
    %v2479 = vsub.f32 %v1445, %v2165
    %v2480 = vsub.f32 %v1449, %v2168
    %v2481 = vsub.f32 %v1451, %v2168
    %v2482 = vsub.f32 %v1455, %v2171
    %v2483 = vsub.f32 %v1457, %v2171
    %v2484 = vsub.f32 %v1461, %v2174
    %v2485 = vsub.f32 %v1463, %v2174
    %v2486 = vsub.f32 %v1467, %v2177
    %v2487 = vsub.f32 %v1469, %v2177
    %v2488 = vsub.f32 %v1473, %v2180
    %v2489 = vsub.f32 %v1475, %v2180
    %v2490 = vsub.f32 %v1479, %v2183
    %v2491 = vsub.f32 %v1481, %v2183
    %v2492 = vsub.f32 %v1485, %v2186
    %v2493 = vsub.f32 %v1487, %v2186
    %v2494 = vsub.f32 %v1491, %v2189
    %v2495 = vsub.f32 %v1493, %v2189
    %v2496 = vsub.f32 %v1497, %v2192
    %v2497 = vsub.f32 %v1499, %v2192
    %v2498 = vsub.f32 %v1503, %v2195
    %v2499 = vsub.f32 %v1505, %v2195
    %v2500 = vsub.f32 %v1509, %v2198
    %v2501 = vsub.f32 %v1511, %v2198
    %v2502 = vsub.f32 %v1515, %v2201
    %v2503 = vsub.f32 %v1517, %v2201
    %v2504 = vsub.f32 %v1521, %v2204
    %v2505 = vsub.f32 %v1523, %v2204
    %v2506 = vsub.f32 %v1527, %v2207
    %v2507 = vsub.f32 %v1529, %v2207
    %v2508 = vsub.f32 %v1533, %v2210
    %v2509 = vsub.f32 %v1535, %v2210
    %v2510 = vsub.f32 %v1539, %v2213
    %v2511 = vsub.f32 %v1541, %v2213
    %v2512 = vsub.f32 %v1545, %v2216
    %v2513 = vsub.f32 %v1547, %v2216
    %v2514 = vsub.f32 %v1551, %v2219
    %v2515 = vsub.f32 %v1553, %v2219
    %v2516 = vsub.f32 %v1557, %v2222
    %v2517 = vsub.f32 %v1559, %v2222
    %v2518 = vsub.f32 %v1563, %v2225
    %v2519 = vsub.f32 %v1565, %v2225
    %v2520 = vsub.f32 %v1569, %v2228
    %v2521 = vsub.f32 %v1571, %v2228
    %v2522 = vsub.f32 %v1575, %v2231
    %v2523 = vsub.f32 %v1577, %v2231
    %v2524 = vsub.f32 %v1581, %v2234
    %v2525 = vsub.f32 %v1583, %v2234
    %v2526 = vsub.f32 %v1587, %v2237
    %v2527 = vsub.f32 %v1589, %v2237
    %v2528 = vsub.f32 %v1593, %v2240
    %v2529 = vsub.f32 %v1595, %v2240
    %v2530 = vsub.f32 %v1599, %v2243
    %v2531 = vsub.f32 %v1601, %v2243
    %v2532 = vsub.f32 %v1766, %v2246
    %v2533 = vsub.f32 %v1768, %v2246
    %v2534 = vsub.f32 %v1772, %v2249
    %v2535 = vsub.f32 %v1774, %v2249
    %v2536 = vsub.f32 %v1778, %v2252
    %v2537 = vsub.f32 %v1780, %v2252
    %v2538 = vsub.f32 %v1784, %v2255
    %v2539 = vsub.f32 %v1786, %v2255
    %v2540 = vsub.f32 %v1790, %v2258
    %v2541 = vsub.f32 %v1792, %v2258
    %v2542 = vsub.f32 %v1796, %v2261
    %v2543 = vsub.f32 %v1798, %v2261
    %v2544 = vsub.f32 %v1802, %v2264
    %v2545 = vsub.f32 %v1804, %v2264
    %v2546 = vsub.f32 %v1808, %v2267
    %v2547 = vsub.f32 %v1810, %v2267
    %v2548 = vsub.f32 %v1814, %v2270
    %v2549 = vsub.f32 %v1816, %v2270
    %v2550 = vsub.f32 %v1820, %v2273
    %v2551 = vsub.f32 %v1822, %v2273
    %v2552 = vsub.f32 %v1826, %v2276
    %v2553 = vsub.f32 %v1828, %v2276
    %v2554 = vsub.f32 %v1832, %v2279
    %v2555 = vsub.f32 %v1834, %v2279
    %v2556 = vsub.f32 %v1838, %v2282
    %v2557 = vsub.f32 %v1840, %v2282
    %v2558 = vsub.f32 %v1844, %v2285
    %v2559 = vsub.f32 %v1846, %v2285
    %v2560 = vsub.f32 %v1850, %v2288
    %v2561 = vsub.f32 %v1852, %v2288
    %v2562 = vsub.f32 %v1856, %v2291
    %v2563 = vsub.f32 %v1858, %v2291
    %v2564 = vsub.f32 %v1862, %v2294
    %v2565 = vsub.f32 %v1864, %v2294
    %v2566 = vsub.f32 %v1868, %v2297
    %v2567 = vsub.f32 %v1870, %v2297
    %v2568 = vsub.f32 %v1874, %v2300
    %v2569 = vsub.f32 %v1876, %v2300
    %v2570 = vsub.f32 %v1880, %v2303
    %v2571 = vsub.f32 %v1882, %v2303
    %v2572 = vsub.f32 %v1886, %v2306
    %v2573 = vsub.f32 %v1888, %v2306
    %v2574 = vsub.f32 %v1892, %v2309
    %v2575 = vsub.f32 %v1894, %v2309
    %v2576 = vsub.f32 %v1898, %v2312
    %v2577 = vsub.f32 %v1900, %v2312
    %v2578 = vsub.f32 %v1904, %v2315
    %v2579 = vsub.f32 %v1906, %v2315
    %v2580 = vsub.f32 %v1910, %v2318
    %v2581 = vsub.f32 %v1912, %v2318
    %v2582 = vsub.f32 %v1916, %v2321
    %v2583 = vsub.f32 %v1918, %v2321
    %v2584 = vsub.f32 %v1922, %v2324
    %v2585 = vsub.f32 %v1924, %v2324
    %v2586 = vsub.f32 %v1928, %v2327
    %v2587 = vsub.f32 %v1930, %v2327
    %v2588 = vsub.f32 %v1934, %v2330
    %v2589 = vsub.f32 %v1936, %v2330
    %v2590 = vsub.f32 %v1940, %v2333
    %v2591 = vsub.f32 %v1942, %v2333
    %v2592 = vsub.f32 %v1946, %v2336
    %v2593 = vsub.f32 %v1948, %v2336
    %v2594 = vsub.f32 %v1952, %v2339
    %v2595 = vsub.f32 %v1954, %v2339
    %v2596 = vmul.f32 %v2340, 1.442695
    %v2597 = vpow.pop %v2596
    %v2598 = vmul.f32 %v2341, 1.442695
    %v2599 = vpow.pop %v2598
    %v2600 = vmul.f32 %v2342, 1.442695
    %v2601 = vpow.pop %v2600
    %v2602 = vmul.f32 %v2343, 1.442695
    %v2603 = vpow.pop %v2602
    %v2604 = vmul.f32 %v2344, 1.442695
    %v2605 = vpow.pop %v2604
    %v2606 = vmul.f32 %v2345, 1.442695
    %v2607 = vpow.pop %v2606
    %v2608 = vmul.f32 %v2346, 1.442695
    %v2609 = vpow.pop %v2608
    %v2610 = vmul.f32 %v2347, 1.442695
    %v2611 = vpow.pop %v2610
    %v2612 = vmul.f32 %v2348, 1.442695
    %v2613 = vpow.pop %v2612
    %v2614 = vmul.f32 %v2349, 1.442695
    %v2615 = vpow.pop %v2614
    %v2616 = vmul.f32 %v2350, 1.442695
    %v2617 = vpow.pop %v2616
    %v2618 = vmul.f32 %v2351, 1.442695
    %v2619 = vpow.pop %v2618
    %v2620 = vmul.f32 %v2352, 1.442695
    %v2621 = vpow.pop %v2620
    %v2622 = vmul.f32 %v2353, 1.442695
    %v2623 = vpow.pop %v2622
    %v2624 = vmul.f32 %v2354, 1.442695
    %v2625 = vpow.pop %v2624
    %v2626 = vmul.f32 %v2355, 1.442695
    %v2627 = vpow.pop %v2626
    %v2628 = vmul.f32 %v2356, 1.442695
    %v2629 = vpow.pop %v2628
    %v2630 = vmul.f32 %v2357, 1.442695
    %v2631 = vpow.pop %v2630
    %v2632 = vmul.f32 %v2358, 1.442695
    %v2633 = vpow.pop %v2632
    %v2634 = vmul.f32 %v2359, 1.442695
    %v2635 = vpow.pop %v2634
    %v2636 = vmul.f32 %v2360, 1.442695
    %v2637 = vpow.pop %v2636
    %v2638 = vmul.f32 %v2361, 1.442695
    %v2639 = vpow.pop %v2638
    %v2640 = vmul.f32 %v2362, 1.442695
    %v2641 = vpow.pop %v2640
    %v2642 = vmul.f32 %v2363, 1.442695
    %v2643 = vpow.pop %v2642
    %v2644 = vmul.f32 %v2364, 1.442695
    %v2645 = vpow.pop %v2644
    %v2646 = vmul.f32 %v2365, 1.442695
    %v2647 = vpow.pop %v2646
    %v2648 = vmul.f32 %v2366, 1.442695
    %v2649 = vpow.pop %v2648
    %v2650 = vmul.f32 %v2367, 1.442695
    %v2651 = vpow.pop %v2650
    %v2652 = vmul.f32 %v2368, 1.442695
    %v2653 = vpow.pop %v2652
    %v2654 = vmul.f32 %v2369, 1.442695
    %v2655 = vpow.pop %v2654
    %v2656 = vmul.f32 %v2370, 1.442695
    %v2657 = vpow.pop %v2656
    %v2658 = vmul.f32 %v2371, 1.442695
    %v2659 = vpow.pop %v2658
    %v2660 = vmul.f32 %v2372, 1.442695
    %v2661 = vpow.pop %v2660
    %v2662 = vmul.f32 %v2373, 1.442695
    %v2663 = vpow.pop %v2662
    %v2664 = vmul.f32 %v2374, 1.442695
    %v2665 = vpow.pop %v2664
    %v2666 = vmul.f32 %v2375, 1.442695
    %v2667 = vpow.pop %v2666
    %v2668 = vmul.f32 %v2376, 1.442695
    %v2669 = vpow.pop %v2668
    %v2670 = vmul.f32 %v2377, 1.442695
    %v2671 = vpow.pop %v2670
    %v2672 = vmul.f32 %v2378, 1.442695
    %v2673 = vpow.pop %v2672
    %v2674 = vmul.f32 %v2379, 1.442695
    %v2675 = vpow.pop %v2674
    %v2676 = vmul.f32 %v2380, 1.442695
    %v2677 = vpow.pop %v2676
    %v2678 = vmul.f32 %v2381, 1.442695
    %v2679 = vpow.pop %v2678
    %v2680 = vmul.f32 %v2382, 1.442695
    %v2681 = vpow.pop %v2680
    %v2682 = vmul.f32 %v2383, 1.442695
    %v2683 = vpow.pop %v2682
    %v2684 = vmul.f32 %v2384, 1.442695
    %v2685 = vpow.pop %v2684
    %v2686 = vmul.f32 %v2385, 1.442695
    %v2687 = vpow.pop %v2686
    %v2688 = vmul.f32 %v2386, 1.442695
    %v2689 = vpow.pop %v2688
    %v2690 = vmul.f32 %v2387, 1.442695
    %v2691 = vpow.pop %v2690
    %v2692 = vmul.f32 %v2388, 1.442695
    %v2693 = vpow.pop %v2692
    %v2694 = vmul.f32 %v2389, 1.442695
    %v2695 = vpow.pop %v2694
    %v2696 = vmul.f32 %v2390, 1.442695
    %v2697 = vpow.pop %v2696
    %v2698 = vmul.f32 %v2391, 1.442695
    %v2699 = vpow.pop %v2698
    %v2700 = vmul.f32 %v2392, 1.442695
    %v2701 = vpow.pop %v2700
    %v2702 = vmul.f32 %v2393, 1.442695
    %v2703 = vpow.pop %v2702
    %v2704 = vmul.f32 %v2394, 1.442695
    %v2705 = vpow.pop %v2704
    %v2706 = vmul.f32 %v2395, 1.442695
    %v2707 = vpow.pop %v2706
    %v2708 = vmul.f32 %v2396, 1.442695
    %v2709 = vpow.pop %v2708
    %v2710 = vmul.f32 %v2397, 1.442695
    %v2711 = vpow.pop %v2710
    %v2712 = vmul.f32 %v2398, 1.442695
    %v2713 = vpow.pop %v2712
    %v2714 = vmul.f32 %v2399, 1.442695
    %v2715 = vpow.pop %v2714
    %v2716 = vmul.f32 %v2400, 1.442695
    %v2717 = vpow.pop %v2716
    %v2718 = vmul.f32 %v2401, 1.442695
    %v2719 = vpow.pop %v2718
    %v2720 = vmul.f32 %v2402, 1.442695
    %v2721 = vpow.pop %v2720
    %v2722 = vmul.f32 %v2403, 1.442695
    %v2723 = vpow.pop %v2722
    %v2724 = vmul.f32 %v2404, 1.442695
    %v2725 = vpow.pop %v2724
    %v2726 = vmul.f32 %v2405, 1.442695
    %v2727 = vpow.pop %v2726
    %v2728 = vmul.f32 %v2406, 1.442695
    %v2729 = vpow.pop %v2728
    %v2730 = vmul.f32 %v2407, 1.442695
    %v2731 = vpow.pop %v2730
    %v2732 = vmul.f32 %v2408, 1.442695
    %v2733 = vpow.pop %v2732
    %v2734 = vmul.f32 %v2409, 1.442695
    %v2735 = vpow.pop %v2734
    %v2736 = vmul.f32 %v2410, 1.442695
    %v2737 = vpow.pop %v2736
    %v2738 = vmul.f32 %v2411, 1.442695
    %v2739 = vpow.pop %v2738
    %v2740 = vmul.f32 %v2412, 1.442695
    %v2741 = vpow.pop %v2740
    %v2742 = vmul.f32 %v2413, 1.442695
    %v2743 = vpow.pop %v2742
    %v2744 = vmul.f32 %v2414, 1.442695
    %v2745 = vpow.pop %v2744
    %v2746 = vmul.f32 %v2415, 1.442695
    %v2747 = vpow.pop %v2746
    %v2748 = vmul.f32 %v2416, 1.442695
    %v2749 = vpow.pop %v2748
    %v2750 = vmul.f32 %v2417, 1.442695
    %v2751 = vpow.pop %v2750
    %v2752 = vmul.f32 %v2418, 1.442695
    %v2753 = vpow.pop %v2752
    %v2754 = vmul.f32 %v2419, 1.442695
    %v2755 = vpow.pop %v2754
    %v2756 = vmul.f32 %v2420, 1.442695
    %v2757 = vpow.pop %v2756
    %v2758 = vmul.f32 %v2421, 1.442695
    %v2759 = vpow.pop %v2758
    %v2760 = vmul.f32 %v2422, 1.442695
    %v2761 = vpow.pop %v2760
    %v2762 = vmul.f32 %v2423, 1.442695
    %v2763 = vpow.pop %v2762
    %v2764 = vmul.f32 %v2424, 1.442695
    %v2765 = vpow.pop %v2764
    %v2766 = vmul.f32 %v2425, 1.442695
    %v2767 = vpow.pop %v2766
    %v2768 = vmul.f32 %v2426, 1.442695
    %v2769 = vpow.pop %v2768
    %v2770 = vmul.f32 %v2427, 1.442695
    %v2771 = vpow.pop %v2770
    %v2772 = vmul.f32 %v2428, 1.442695
    %v2773 = vpow.pop %v2772
    %v2774 = vmul.f32 %v2429, 1.442695
    %v2775 = vpow.pop %v2774
    %v2776 = vmul.f32 %v2430, 1.442695
    %v2777 = vpow.pop %v2776
    %v2778 = vmul.f32 %v2431, 1.442695
    %v2779 = vpow.pop %v2778
    %v2780 = vmul.f32 %v2432, 1.442695
    %v2781 = vpow.pop %v2780
    %v2782 = vmul.f32 %v2433, 1.442695
    %v2783 = vpow.pop %v2782
    %v2784 = vmul.f32 %v2434, 1.442695
    %v2785 = vpow.pop %v2784
    %v2786 = vmul.f32 %v2435, 1.442695
    %v2787 = vpow.pop %v2786
    %v2788 = vmul.f32 %v2436, 1.442695
    %v2789 = vpow.pop %v2788
    %v2790 = vmul.f32 %v2437, 1.442695
    %v2791 = vpow.pop %v2790
    %v2792 = vmul.f32 %v2438, 1.442695
    %v2793 = vpow.pop %v2792
    %v2794 = vmul.f32 %v2439, 1.442695
    %v2795 = vpow.pop %v2794
    %v2796 = vmul.f32 %v2440, 1.442695
    %v2797 = vpow.pop %v2796
    %v2798 = vmul.f32 %v2441, 1.442695
    %v2799 = vpow.pop %v2798
    %v2800 = vmul.f32 %v2442, 1.442695
    %v2801 = vpow.pop %v2800
    %v2802 = vmul.f32 %v2443, 1.442695
    %v2803 = vpow.pop %v2802
    %v2804 = vmul.f32 %v2444, 1.442695
    %v2805 = vpow.pop %v2804
    %v2806 = vmul.f32 %v2445, 1.442695
    %v2807 = vpow.pop %v2806
    %v2808 = vmul.f32 %v2446, 1.442695
    %v2809 = vpow.pop %v2808
    %v2810 = vmul.f32 %v2447, 1.442695
    %v2811 = vpow.pop %v2810
    %v2812 = vmul.f32 %v2448, 1.442695
    %v2813 = vpow.pop %v2812
    %v2814 = vmul.f32 %v2449, 1.442695
    %v2815 = vpow.pop %v2814
    %v2816 = vmul.f32 %v2450, 1.442695
    %v2817 = vpow.pop %v2816
    %v2818 = vmul.f32 %v2451, 1.442695
    %v2819 = vpow.pop %v2818
    %v2820 = vmul.f32 %v2452, 1.442695
    %v2821 = vpow.pop %v2820
    %v2822 = vmul.f32 %v2453, 1.442695
    %v2823 = vpow.pop %v2822
    %v2824 = vmul.f32 %v2454, 1.442695
    %v2825 = vpow.pop %v2824
    %v2826 = vmul.f32 %v2455, 1.442695
    %v2827 = vpow.pop %v2826
    %v2828 = vmul.f32 %v2456, 1.442695
    %v2829 = vpow.pop %v2828
    %v2830 = vmul.f32 %v2457, 1.442695
    %v2831 = vpow.pop %v2830
    %v2832 = vmul.f32 %v2458, 1.442695
    %v2833 = vpow.pop %v2832
    %v2834 = vmul.f32 %v2459, 1.442695
    %v2835 = vpow.pop %v2834
    %v2836 = vmul.f32 %v2460, 1.442695
    %v2837 = vpow.pop %v2836
    %v2838 = vmul.f32 %v2461, 1.442695
    %v2839 = vpow.pop %v2838
    %v2840 = vmul.f32 %v2462, 1.442695
    %v2841 = vpow.pop %v2840
    %v2842 = vmul.f32 %v2463, 1.442695
    %v2843 = vpow.pop %v2842
    %v2844 = vmul.f32 %v2464, 1.442695
    %v2845 = vpow.pop %v2844
    %v2846 = vmul.f32 %v2465, 1.442695
    %v2847 = vpow.pop %v2846
    %v2848 = vmul.f32 %v2466, 1.442695
    %v2849 = vpow.pop %v2848
    %v2850 = vmul.f32 %v2467, 1.442695
    %v2851 = vpow.pop %v2850
    %v2852 = vmul.f32 %v2468, 1.442695
    %v2853 = vpow.pop %v2852
    %v2854 = vmul.f32 %v2469, 1.442695
    %v2855 = vpow.pop %v2854
    %v2856 = vmul.f32 %v2470, 1.442695
    %v2857 = vpow.pop %v2856
    %v2858 = vmul.f32 %v2471, 1.442695
    %v2859 = vpow.pop %v2858
    %v2860 = vmul.f32 %v2472, 1.442695
    %v2861 = vpow.pop %v2860
    %v2862 = vmul.f32 %v2473, 1.442695
    %v2863 = vpow.pop %v2862
    %v2864 = vmul.f32 %v2474, 1.442695
    %v2865 = vpow.pop %v2864
    %v2866 = vmul.f32 %v2475, 1.442695
    %v2867 = vpow.pop %v2866
    %v2868 = vmul.f32 %v2476, 1.442695
    %v2869 = vpow.pop %v2868
    %v2870 = vmul.f32 %v2477, 1.442695
    %v2871 = vpow.pop %v2870
    %v2872 = vmul.f32 %v2478, 1.442695
    %v2873 = vpow.pop %v2872
    %v2874 = vmul.f32 %v2479, 1.442695
    %v2875 = vpow.pop %v2874
    %v2876 = vmul.f32 %v2480, 1.442695
    %v2877 = vpow.pop %v2876
    %v2878 = vmul.f32 %v2481, 1.442695
    %v2879 = vpow.pop %v2878
    %v2880 = vmul.f32 %v2482, 1.442695
    %v2881 = vpow.pop %v2880
    %v2882 = vmul.f32 %v2483, 1.442695
    %v2883 = vpow.pop %v2882
    %v2884 = vmul.f32 %v2484, 1.442695
    %v2885 = vpow.pop %v2884
    %v2886 = vmul.f32 %v2485, 1.442695
    %v2887 = vpow.pop %v2886
    %v2888 = vmul.f32 %v2486, 1.442695
    %v2889 = vpow.pop %v2888
    %v2890 = vmul.f32 %v2487, 1.442695
    %v2891 = vpow.pop %v2890
    %v2892 = vmul.f32 %v2488, 1.442695
    %v2893 = vpow.pop %v2892
    %v2894 = vmul.f32 %v2489, 1.442695
    %v2895 = vpow.pop %v2894
    %v2896 = vmul.f32 %v2490, 1.442695
    %v2897 = vpow.pop %v2896
    %v2898 = vmul.f32 %v2491, 1.442695
    %v2899 = vpow.pop %v2898
    %v2900 = vmul.f32 %v2492, 1.442695
    %v2901 = vpow.pop %v2900
    %v2902 = vmul.f32 %v2493, 1.442695
    %v2903 = vpow.pop %v2902
    %v2904 = vmul.f32 %v2494, 1.442695
    %v2905 = vpow.pop %v2904
    %v2906 = vmul.f32 %v2495, 1.442695
    %v2907 = vpow.pop %v2906
    %v2908 = vmul.f32 %v2496, 1.442695
    %v2909 = vpow.pop %v2908
    %v2910 = vmul.f32 %v2497, 1.442695
    %v2911 = vpow.pop %v2910
    %v2912 = vmul.f32 %v2498, 1.442695
    %v2913 = vpow.pop %v2912
    %v2914 = vmul.f32 %v2499, 1.442695
    %v2915 = vpow.pop %v2914
    %v2916 = vmul.f32 %v2500, 1.442695
    %v2917 = vpow.pop %v2916
    %v2918 = vmul.f32 %v2501, 1.442695
    %v2919 = vpow.pop %v2918
    %v2920 = vmul.f32 %v2502, 1.442695
    %v2921 = vpow.pop %v2920
    %v2922 = vmul.f32 %v2503, 1.442695
    %v2923 = vpow.pop %v2922
    %v2924 = vmul.f32 %v2504, 1.442695
    %v2925 = vpow.pop %v2924
    %v2926 = vmul.f32 %v2505, 1.442695
    %v2927 = vpow.pop %v2926
    %v2928 = vmul.f32 %v2506, 1.442695
    %v2929 = vpow.pop %v2928
    %v2930 = vmul.f32 %v2507, 1.442695
    %v2931 = vpow.pop %v2930
    %v2932 = vmul.f32 %v2508, 1.442695
    %v2933 = vpow.pop %v2932
    %v2934 = vmul.f32 %v2509, 1.442695
    %v2935 = vpow.pop %v2934
    %v2936 = vmul.f32 %v2510, 1.442695
    %v2937 = vpow.pop %v2936
    %v2938 = vmul.f32 %v2511, 1.442695
    %v2939 = vpow.pop %v2938
    %v2940 = vmul.f32 %v2512, 1.442695
    %v2941 = vpow.pop %v2940
    %v2942 = vmul.f32 %v2513, 1.442695
    %v2943 = vpow.pop %v2942
    %v2944 = vmul.f32 %v2514, 1.442695
    %v2945 = vpow.pop %v2944
    %v2946 = vmul.f32 %v2515, 1.442695
    %v2947 = vpow.pop %v2946
    %v2948 = vmul.f32 %v2516, 1.442695
    %v2949 = vpow.pop %v2948
    %v2950 = vmul.f32 %v2517, 1.442695
    %v2951 = vpow.pop %v2950
    %v2952 = vmul.f32 %v2518, 1.442695
    %v2953 = vpow.pop %v2952
    %v2954 = vmul.f32 %v2519, 1.442695
    %v2955 = vpow.pop %v2954
    %v2956 = vmul.f32 %v2520, 1.442695
    %v2957 = vpow.pop %v2956
    %v2958 = vmul.f32 %v2521, 1.442695
    %v2959 = vpow.pop %v2958
    %v2960 = vmul.f32 %v2522, 1.442695
    %v2961 = vpow.pop %v2960
    %v2962 = vmul.f32 %v2523, 1.442695
    %v2963 = vpow.pop %v2962
    %v2964 = vmul.f32 %v2524, 1.442695
    %v2965 = vpow.pop %v2964
    %v2966 = vmul.f32 %v2525, 1.442695
    %v2967 = vpow.pop %v2966
    %v2968 = vmul.f32 %v2526, 1.442695
    %v2969 = vpow.pop %v2968
    %v2970 = vmul.f32 %v2527, 1.442695
    %v2971 = vpow.pop %v2970
    %v2972 = vmul.f32 %v2528, 1.442695
    %v2973 = vpow.pop %v2972
    %v2974 = vmul.f32 %v2529, 1.442695
    %v2975 = vpow.pop %v2974
    %v2976 = vmul.f32 %v2530, 1.442695
    %v2977 = vpow.pop %v2976
    %v2978 = vmul.f32 %v2531, 1.442695
    %v2979 = vpow.pop %v2978
    %v2980 = vmul.f32 %v2532, 1.442695
    %v2981 = vpow.pop %v2980
    %v2982 = vmul.f32 %v2533, 1.442695
    %v2983 = vpow.pop %v2982
    %v2984 = vmul.f32 %v2534, 1.442695
    %v2985 = vpow.pop %v2984
    %v2986 = vmul.f32 %v2535, 1.442695
    %v2987 = vpow.pop %v2986
    %v2988 = vmul.f32 %v2536, 1.442695
    %v2989 = vpow.pop %v2988
    %v2990 = vmul.f32 %v2537, 1.442695
    %v2991 = vpow.pop %v2990
    %v2992 = vmul.f32 %v2538, 1.442695
    %v2993 = vpow.pop %v2992
    %v2994 = vmul.f32 %v2539, 1.442695
    %v2995 = vpow.pop %v2994
    %v2996 = vmul.f32 %v2540, 1.442695
    %v2997 = vpow.pop %v2996
    %v2998 = vmul.f32 %v2541, 1.442695
    %v2999 = vpow.pop %v2998
    %v3000 = vmul.f32 %v2542, 1.442695
    %v3001 = vpow.pop %v3000
    %v3002 = vmul.f32 %v2543, 1.442695
    %v3003 = vpow.pop %v3002
    %v3004 = vmul.f32 %v2544, 1.442695
    %v3005 = vpow.pop %v3004
    %v3006 = vmul.f32 %v2545, 1.442695
    %v3007 = vpow.pop %v3006
    %v3008 = vmul.f32 %v2546, 1.442695
    %v3009 = vpow.pop %v3008
    %v3010 = vmul.f32 %v2547, 1.442695
    %v3011 = vpow.pop %v3010
    %v3012 = vmul.f32 %v2548, 1.442695
    %v3013 = vpow.pop %v3012
    %v3014 = vmul.f32 %v2549, 1.442695
    %v3015 = vpow.pop %v3014
    %v3016 = vmul.f32 %v2550, 1.442695
    %v3017 = vpow.pop %v3016
    %v3018 = vmul.f32 %v2551, 1.442695
    %v3019 = vpow.pop %v3018
    %v3020 = vmul.f32 %v2552, 1.442695
    %v3021 = vpow.pop %v3020
    %v3022 = vmul.f32 %v2553, 1.442695
    %v3023 = vpow.pop %v3022
    %v3024 = vmul.f32 %v2554, 1.442695
    %v3025 = vpow.pop %v3024
    %v3026 = vmul.f32 %v2555, 1.442695
    %v3027 = vpow.pop %v3026
    %v3028 = vmul.f32 %v2556, 1.442695
    %v3029 = vpow.pop %v3028
    %v3030 = vmul.f32 %v2557, 1.442695
    %v3031 = vpow.pop %v3030
    %v3032 = vmul.f32 %v2558, 1.442695
    %v3033 = vpow.pop %v3032
    %v3034 = vmul.f32 %v2559, 1.442695
    %v3035 = vpow.pop %v3034
    %v3036 = vmul.f32 %v2560, 1.442695
    %v3037 = vpow.pop %v3036
    %v3038 = vmul.f32 %v2561, 1.442695
    %v3039 = vpow.pop %v3038
    %v3040 = vmul.f32 %v2562, 1.442695
    %v3041 = vpow.pop %v3040
    %v3042 = vmul.f32 %v2563, 1.442695
    %v3043 = vpow.pop %v3042
    %v3044 = vmul.f32 %v2564, 1.442695
    %v3045 = vpow.pop %v3044
    %v3046 = vmul.f32 %v2565, 1.442695
    %v3047 = vpow.pop %v3046
    %v3048 = vmul.f32 %v2566, 1.442695
    %v3049 = vpow.pop %v3048
    %v3050 = vmul.f32 %v2567, 1.442695
    %v3051 = vpow.pop %v3050
    %v3052 = vmul.f32 %v2568, 1.442695
    %v3053 = vpow.pop %v3052
    %v3054 = vmul.f32 %v2569, 1.442695
    %v3055 = vpow.pop %v3054
    %v3056 = vmul.f32 %v2570, 1.442695
    %v3057 = vpow.pop %v3056
    %v3058 = vmul.f32 %v2571, 1.442695
    %v3059 = vpow.pop %v3058
    %v3060 = vmul.f32 %v2572, 1.442695
    %v3061 = vpow.pop %v3060
    %v3062 = vmul.f32 %v2573, 1.442695
    %v3063 = vpow.pop %v3062
    %v3064 = vmul.f32 %v2574, 1.442695
    %v3065 = vpow.pop %v3064
    %v3066 = vmul.f32 %v2575, 1.442695
    %v3067 = vpow.pop %v3066
    %v3068 = vmul.f32 %v2576, 1.442695
    %v3069 = vpow.pop %v3068
    %v3070 = vmul.f32 %v2577, 1.442695
    %v3071 = vpow.pop %v3070
    %v3072 = vmul.f32 %v2578, 1.442695
    %v3073 = vpow.pop %v3072
    %v3074 = vmul.f32 %v2579, 1.442695
    %v3075 = vpow.pop %v3074
    %v3076 = vmul.f32 %v2580, 1.442695
    %v3077 = vpow.pop %v3076
    %v3078 = vmul.f32 %v2581, 1.442695
    %v3079 = vpow.pop %v3078
    %v3080 = vmul.f32 %v2582, 1.442695
    %v3081 = vpow.pop %v3080
    %v3082 = vmul.f32 %v2583, 1.442695
    %v3083 = vpow.pop %v3082
    %v3084 = vmul.f32 %v2584, 1.442695
    %v3085 = vpow.pop %v3084
    %v3086 = vmul.f32 %v2585, 1.442695
    %v3087 = vpow.pop %v3086
    %v3088 = vmul.f32 %v2586, 1.442695
    %v3089 = vpow.pop %v3088
    %v3090 = vmul.f32 %v2587, 1.442695
    %v3091 = vpow.pop %v3090
    %v3092 = vmul.f32 %v2588, 1.442695
    %v3093 = vpow.pop %v3092
    %v3094 = vmul.f32 %v2589, 1.442695
    %v3095 = vpow.pop %v3094
    %v3096 = vmul.f32 %v2590, 1.442695
    %v3097 = vpow.pop %v3096
    %v3098 = vmul.f32 %v2591, 1.442695
    %v3099 = vpow.pop %v3098
    %v3100 = vmul.f32 %v2592, 1.442695
    %v3101 = vpow.pop %v3100
    %v3102 = vmul.f32 %v2593, 1.442695
    %v3103 = vpow.pop %v3102
    %v3104 = vmul.f32 %v2594, 1.442695
    %v3105 = vpow.pop %v3104
    %v3106 = vmul.f32 %v2595, 1.442695
    %v3107 = vpow.pop %v3106
    %v3108 = vadd.f32 %v2597, %v2599
    %3109 = vadd.xlane.f32.xlu0 %v3108
    %v3110 = vpop.xlane.xlu0 %3109
    %v3111 = vadd.f32 %v2601, %v2603
    %3112 = vadd.xlane.f32.xlu0 %v3111
    %v3113 = vpop.xlane.xlu0 %3112
    %v3114 = vadd.f32 %v2605, %v2607
    %3115 = vadd.xlane.f32.xlu0 %v3114
    %v3116 = vpop.xlane.xlu0 %3115
    %v3117 = vadd.f32 %v2609, %v2611
    %3118 = vadd.xlane.f32.xlu0 %v3117
    %v3119 = vpop.xlane.xlu0 %3118
    %v3120 = vadd.f32 %v2613, %v2615
    %3121 = vadd.xlane.f32.xlu0 %v3120
    %v3122 = vpop.xlane.xlu0 %3121
    %v3123 = vadd.f32 %v2617, %v2619
    %3124 = vadd.xlane.f32.xlu0 %v3123
    %v3125 = vpop.xlane.xlu0 %3124
    %v3126 = vadd.f32 %v2621, %v2623
    %3127 = vadd.xlane.f32.xlu0 %v3126
    %v3128 = vpop.xlane.xlu0 %3127
    %v3129 = vadd.f32 %v2625, %v2627
    %3130 = vadd.xlane.f32.xlu0 %v3129
    %v3131 = vpop.xlane.xlu0 %3130
    %v3132 = vadd.f32 %v2629, %v2631
    %3133 = vadd.xlane.f32.xlu0 %v3132
    %v3134 = vpop.xlane.xlu0 %3133
    %v3135 = vadd.f32 %v2633, %v2635
    %3136 = vadd.xlane.f32.xlu0 %v3135
    %v3137 = vpop.xlane.xlu0 %3136
    %v3138 = vadd.f32 %v2637, %v2639
    %3139 = vadd.xlane.f32.xlu0 %v3138
    %v3140 = vpop.xlane.xlu0 %3139
    %v3141 = vadd.f32 %v2641, %v2643
    %3142 = vadd.xlane.f32.xlu0 %v3141
    %v3143 = vpop.xlane.xlu0 %3142
    %v3144 = vadd.f32 %v2645, %v2647
    %3145 = vadd.xlane.f32.xlu0 %v3144
    %v3146 = vpop.xlane.xlu0 %3145
    %v3147 = vadd.f32 %v2649, %v2651
    %3148 = vadd.xlane.f32.xlu0 %v3147
    %v3149 = vpop.xlane.xlu0 %3148
    %v3150 = vadd.f32 %v2653, %v2655
    %3151 = vadd.xlane.f32.xlu0 %v3150
    %v3152 = vpop.xlane.xlu0 %3151
    %v3153 = vadd.f32 %v2657, %v2659
    %3154 = vadd.xlane.f32.xlu0 %v3153
    %v3155 = vpop.xlane.xlu0 %3154
    %v3156 = vadd.f32 %v2661, %v2663
    %3157 = vadd.xlane.f32.xlu0 %v3156
    %v3158 = vpop.xlane.xlu0 %3157
    %v3159 = vadd.f32 %v2665, %v2667
    %3160 = vadd.xlane.f32.xlu0 %v3159
    %v3161 = vpop.xlane.xlu0 %3160
    %v3162 = vadd.f32 %v2669, %v2671
    %3163 = vadd.xlane.f32.xlu0 %v3162
    %v3164 = vpop.xlane.xlu0 %3163
    %v3165 = vadd.f32 %v2673, %v2675
    %3166 = vadd.xlane.f32.xlu0 %v3165
    %v3167 = vpop.xlane.xlu0 %3166
    %v3168 = vadd.f32 %v2677, %v2679
    %3169 = vadd.xlane.f32.xlu0 %v3168
    %v3170 = vpop.xlane.xlu0 %3169
    %v3171 = vadd.f32 %v2681, %v2683
    %3172 = vadd.xlane.f32.xlu0 %v3171
    %v3173 = vpop.xlane.xlu0 %3172
    %v3174 = vadd.f32 %v2685, %v2687
    %3175 = vadd.xlane.f32.xlu0 %v3174
    %v3176 = vpop.xlane.xlu0 %3175
    %v3177 = vadd.f32 %v2689, %v2691
    %3178 = vadd.xlane.f32.xlu0 %v3177
    %v3179 = vpop.xlane.xlu0 %3178
    %v3180 = vadd.f32 %v2693, %v2695
    %3181 = vadd.xlane.f32.xlu0 %v3180
    %v3182 = vpop.xlane.xlu0 %3181
    %v3183 = vadd.f32 %v2697, %v2699
    %3184 = vadd.xlane.f32.xlu0 %v3183
    %v3185 = vpop.xlane.xlu0 %3184
    %v3186 = vadd.f32 %v2701, %v2703
    %3187 = vadd.xlane.f32.xlu0 %v3186
    %v3188 = vpop.xlane.xlu0 %3187
    %v3189 = vadd.f32 %v2705, %v2707
    %3190 = vadd.xlane.f32.xlu0 %v3189
    %v3191 = vpop.xlane.xlu0 %3190
    %v3192 = vadd.f32 %v2709, %v2711
    %3193 = vadd.xlane.f32.xlu0 %v3192
    %v3194 = vpop.xlane.xlu0 %3193
    %v3195 = vadd.f32 %v2713, %v2715
    %3196 = vadd.xlane.f32.xlu0 %v3195
    %v3197 = vpop.xlane.xlu0 %3196
    %v3198 = vadd.f32 %v2717, %v2719
    %3199 = vadd.xlane.f32.xlu0 %v3198
    %v3200 = vpop.xlane.xlu0 %3199
    %v3201 = vadd.f32 %v2721, %v2723
    %3202 = vadd.xlane.f32.xlu0 %v3201
    %v3203 = vpop.xlane.xlu0 %3202
    %v3204 = vadd.f32 %v2725, %v2727
    %3205 = vadd.xlane.f32.xlu0 %v3204
    %v3206 = vpop.xlane.xlu0 %3205
    %v3207 = vadd.f32 %v2729, %v2731
    %3208 = vadd.xlane.f32.xlu0 %v3207
    %v3209 = vpop.xlane.xlu0 %3208
    %v3210 = vadd.f32 %v2733, %v2735
    %3211 = vadd.xlane.f32.xlu0 %v3210
    %v3212 = vpop.xlane.xlu0 %3211
    %v3213 = vadd.f32 %v2737, %v2739
    %3214 = vadd.xlane.f32.xlu0 %v3213
    %v3215 = vpop.xlane.xlu0 %3214
    %v3216 = vadd.f32 %v2741, %v2743
    %3217 = vadd.xlane.f32.xlu0 %v3216
    %v3218 = vpop.xlane.xlu0 %3217
    %v3219 = vadd.f32 %v2745, %v2747
    %3220 = vadd.xlane.f32.xlu0 %v3219
    %v3221 = vpop.xlane.xlu0 %3220
    %v3222 = vadd.f32 %v2749, %v2751
    %3223 = vadd.xlane.f32.xlu0 %v3222
    %v3224 = vpop.xlane.xlu0 %3223
    %v3225 = vadd.f32 %v2753, %v2755
    %3226 = vadd.xlane.f32.xlu0 %v3225
    %v3227 = vpop.xlane.xlu0 %3226
    %v3228 = vadd.f32 %v2757, %v2759
    %3229 = vadd.xlane.f32.xlu0 %v3228
    %v3230 = vpop.xlane.xlu0 %3229
    %v3231 = vadd.f32 %v2761, %v2763
    %3232 = vadd.xlane.f32.xlu0 %v3231
    %v3233 = vpop.xlane.xlu0 %3232
    %v3234 = vadd.f32 %v2765, %v2767
    %3235 = vadd.xlane.f32.xlu0 %v3234
    %v3236 = vpop.xlane.xlu0 %3235
    %v3237 = vadd.f32 %v2769, %v2771
    %3238 = vadd.xlane.f32.xlu0 %v3237
    %v3239 = vpop.xlane.xlu0 %3238
    %v3240 = vadd.f32 %v2773, %v2775
    %3241 = vadd.xlane.f32.xlu0 %v3240
    %v3242 = vpop.xlane.xlu0 %3241
    %v3243 = vadd.f32 %v2777, %v2779
    %3244 = vadd.xlane.f32.xlu0 %v3243
    %v3245 = vpop.xlane.xlu0 %3244
    %v3246 = vadd.f32 %v2781, %v2783
    %3247 = vadd.xlane.f32.xlu0 %v3246
    %v3248 = vpop.xlane.xlu0 %3247
    %v3249 = vadd.f32 %v2785, %v2787
    %3250 = vadd.xlane.f32.xlu0 %v3249
    %v3251 = vpop.xlane.xlu0 %3250
    %v3252 = vadd.f32 %v2789, %v2791
    %3253 = vadd.xlane.f32.xlu0 %v3252
    %v3254 = vpop.xlane.xlu0 %3253
    %v3255 = vadd.f32 %v2793, %v2795
    %3256 = vadd.xlane.f32.xlu0 %v3255
    %v3257 = vpop.xlane.xlu0 %3256
    %v3258 = vadd.f32 %v2797, %v2799
    %3259 = vadd.xlane.f32.xlu0 %v3258
    %v3260 = vpop.xlane.xlu0 %3259
    %v3261 = vadd.f32 %v2801, %v2803
    %3262 = vadd.xlane.f32.xlu0 %v3261
    %v3263 = vpop.xlane.xlu0 %3262
    %v3264 = vadd.f32 %v2805, %v2807
    %3265 = vadd.xlane.f32.xlu0 %v3264
    %v3266 = vpop.xlane.xlu0 %3265
    %v3267 = vadd.f32 %v2809, %v2811
    %3268 = vadd.xlane.f32.xlu0 %v3267
    %v3269 = vpop.xlane.xlu0 %3268
    %v3270 = vadd.f32 %v2813, %v2815
    %3271 = vadd.xlane.f32.xlu0 %v3270
    %v3272 = vpop.xlane.xlu0 %3271
    %v3273 = vadd.f32 %v2817, %v2819
    %3274 = vadd.xlane.f32.xlu0 %v3273
    %v3275 = vpop.xlane.xlu0 %3274
    %v3276 = vadd.f32 %v2821, %v2823
    %3277 = vadd.xlane.f32.xlu0 %v3276
    %v3278 = vpop.xlane.xlu0 %3277
    %v3279 = vadd.f32 %v2825, %v2827
    %3280 = vadd.xlane.f32.xlu0 %v3279
    %v3281 = vpop.xlane.xlu0 %3280
    %v3282 = vadd.f32 %v2829, %v2831
    %3283 = vadd.xlane.f32.xlu0 %v3282
    %v3284 = vpop.xlane.xlu0 %3283
    %v3285 = vadd.f32 %v2833, %v2835
    %3286 = vadd.xlane.f32.xlu0 %v3285
    %v3287 = vpop.xlane.xlu0 %3286
    %v3288 = vadd.f32 %v2837, %v2839
    %3289 = vadd.xlane.f32.xlu0 %v3288
    %v3290 = vpop.xlane.xlu0 %3289
    %v3291 = vadd.f32 %v2841, %v2843
    %3292 = vadd.xlane.f32.xlu0 %v3291
    %v3293 = vpop.xlane.xlu0 %3292
    %v3294 = vadd.f32 %v2845, %v2847
    %3295 = vadd.xlane.f32.xlu0 %v3294
    %v3296 = vpop.xlane.xlu0 %3295
    %v3297 = vadd.f32 %v2849, %v2851
    %3298 = vadd.xlane.f32.xlu0 %v3297
    %v3299 = vpop.xlane.xlu0 %3298
    %v3300 = vadd.f32 %v2853, %v2855
    %3301 = vadd.xlane.f32.xlu0 %v3300
    %v3302 = vpop.xlane.xlu0 %3301
    %v3303 = vadd.f32 %v2857, %v2859
    %3304 = vadd.xlane.f32.xlu0 %v3303
    %v3305 = vpop.xlane.xlu0 %3304
    %v3306 = vadd.f32 %v2861, %v2863
    %3307 = vadd.xlane.f32.xlu0 %v3306
    %v3308 = vpop.xlane.xlu0 %3307
    %v3309 = vadd.f32 %v2865, %v2867
    %3310 = vadd.xlane.f32.xlu0 %v3309
    %v3311 = vpop.xlane.xlu0 %3310
    %v3312 = vadd.f32 %v2869, %v2871
    %3313 = vadd.xlane.f32.xlu0 %v3312
    %v3314 = vpop.xlane.xlu0 %3313
    %v3315 = vadd.f32 %v2873, %v2875
    %3316 = vadd.xlane.f32.xlu0 %v3315
    %v3317 = vpop.xlane.xlu0 %3316
    %v3318 = vadd.f32 %v2877, %v2879
    %3319 = vadd.xlane.f32.xlu0 %v3318
    %v3320 = vpop.xlane.xlu0 %3319
    %v3321 = vadd.f32 %v2881, %v2883
    %3322 = vadd.xlane.f32.xlu0 %v3321
    %v3323 = vpop.xlane.xlu0 %3322
    %v3324 = vadd.f32 %v2885, %v2887
    %3325 = vadd.xlane.f32.xlu0 %v3324
    %v3326 = vpop.xlane.xlu0 %3325
    %v3327 = vadd.f32 %v2889, %v2891
    %3328 = vadd.xlane.f32.xlu0 %v3327
    %v3329 = vpop.xlane.xlu0 %3328
    %v3330 = vadd.f32 %v2893, %v2895
    %3331 = vadd.xlane.f32.xlu0 %v3330
    %v3332 = vpop.xlane.xlu0 %3331
    %v3333 = vadd.f32 %v2897, %v2899
    %3334 = vadd.xlane.f32.xlu0 %v3333
    %v3335 = vpop.xlane.xlu0 %3334
    %v3336 = vadd.f32 %v2901, %v2903
    %3337 = vadd.xlane.f32.xlu0 %v3336
    %v3338 = vpop.xlane.xlu0 %3337
    %v3339 = vadd.f32 %v2905, %v2907
    %3340 = vadd.xlane.f32.xlu0 %v3339
    %v3341 = vpop.xlane.xlu0 %3340
    %v3342 = vadd.f32 %v2909, %v2911
    %3343 = vadd.xlane.f32.xlu0 %v3342
    %v3344 = vpop.xlane.xlu0 %3343
    %v3345 = vadd.f32 %v2913, %v2915
    %3346 = vadd.xlane.f32.xlu0 %v3345
    %v3347 = vpop.xlane.xlu0 %3346
    %v3348 = vadd.f32 %v2917, %v2919
    %3349 = vadd.xlane.f32.xlu0 %v3348
    %v3350 = vpop.xlane.xlu0 %3349
    %v3351 = vadd.f32 %v2921, %v2923
    %3352 = vadd.xlane.f32.xlu0 %v3351
    %v3353 = vpop.xlane.xlu0 %3352
    %v3354 = vadd.f32 %v2925, %v2927
    %3355 = vadd.xlane.f32.xlu0 %v3354
    %v3356 = vpop.xlane.xlu0 %3355
    %v3357 = vadd.f32 %v2929, %v2931
    %3358 = vadd.xlane.f32.xlu0 %v3357
    %v3359 = vpop.xlane.xlu0 %3358
    %v3360 = vadd.f32 %v2933, %v2935
    %3361 = vadd.xlane.f32.xlu0 %v3360
    %v3362 = vpop.xlane.xlu0 %3361
    %v3363 = vadd.f32 %v2937, %v2939
    %3364 = vadd.xlane.f32.xlu0 %v3363
    %v3365 = vpop.xlane.xlu0 %3364
    %v3366 = vadd.f32 %v2941, %v2943
    %3367 = vadd.xlane.f32.xlu0 %v3366
    %v3368 = vpop.xlane.xlu0 %3367
    %v3369 = vadd.f32 %v2945, %v2947
    %3370 = vadd.xlane.f32.xlu0 %v3369
    %v3371 = vpop.xlane.xlu0 %3370
    %v3372 = vadd.f32 %v2949, %v2951
    %3373 = vadd.xlane.f32.xlu0 %v3372
    %v3374 = vpop.xlane.xlu0 %3373
    %v3375 = vadd.f32 %v2953, %v2955
    %3376 = vadd.xlane.f32.xlu0 %v3375
    %v3377 = vpop.xlane.xlu0 %3376
    %v3378 = vadd.f32 %v2957, %v2959
    %3379 = vadd.xlane.f32.xlu0 %v3378
    %v3380 = vpop.xlane.xlu0 %3379
    %v3381 = vadd.f32 %v2961, %v2963
    %3382 = vadd.xlane.f32.xlu0 %v3381
    %v3383 = vpop.xlane.xlu0 %3382
    %v3384 = vadd.f32 %v2965, %v2967
    %3385 = vadd.xlane.f32.xlu0 %v3384
    %v3386 = vpop.xlane.xlu0 %3385
    %v3387 = vadd.f32 %v2969, %v2971
    %3388 = vadd.xlane.f32.xlu0 %v3387
    %v3389 = vpop.xlane.xlu0 %3388
    %v3390 = vadd.f32 %v2973, %v2975
    %3391 = vadd.xlane.f32.xlu0 %v3390
    %v3392 = vpop.xlane.xlu0 %3391
    %v3393 = vadd.f32 %v2977, %v2979
    %3394 = vadd.xlane.f32.xlu0 %v3393
    %v3395 = vpop.xlane.xlu0 %3394
    %v3396 = vadd.f32 %v2981, %v2983
    %3397 = vadd.xlane.f32.xlu0 %v3396
    %v3398 = vpop.xlane.xlu0 %3397
    %v3399 = vadd.f32 %v2985, %v2987
    %3400 = vadd.xlane.f32.xlu0 %v3399
    %v3401 = vpop.xlane.xlu0 %3400
    %v3402 = vadd.f32 %v2989, %v2991
    %3403 = vadd.xlane.f32.xlu0 %v3402
    %v3404 = vpop.xlane.xlu0 %3403
    %v3405 = vadd.f32 %v2993, %v2995
    %3406 = vadd.xlane.f32.xlu0 %v3405
    %v3407 = vpop.xlane.xlu0 %3406
    %v3408 = vadd.f32 %v2997, %v2999
    %3409 = vadd.xlane.f32.xlu0 %v3408
    %v3410 = vpop.xlane.xlu0 %3409
    %v3411 = vadd.f32 %v3001, %v3003
    %3412 = vadd.xlane.f32.xlu0 %v3411
    %v3413 = vpop.xlane.xlu0 %3412
    %v3414 = vadd.f32 %v3005, %v3007
    %3415 = vadd.xlane.f32.xlu0 %v3414
    %v3416 = vpop.xlane.xlu0 %3415
    %v3417 = vadd.f32 %v3009, %v3011
    %3418 = vadd.xlane.f32.xlu0 %v3417
    %v3419 = vpop.xlane.xlu0 %3418
    %v3420 = vadd.f32 %v3013, %v3015
    %3421 = vadd.xlane.f32.xlu0 %v3420
    %v3422 = vpop.xlane.xlu0 %3421
    %v3423 = vadd.f32 %v3017, %v3019
    %3424 = vadd.xlane.f32.xlu0 %v3423
    %v3425 = vpop.xlane.xlu0 %3424
    %v3426 = vadd.f32 %v3021, %v3023
    %3427 = vadd.xlane.f32.xlu0 %v3426
    %v3428 = vpop.xlane.xlu0 %3427
    %v3429 = vadd.f32 %v3025, %v3027
    %3430 = vadd.xlane.f32.xlu0 %v3429
    %v3431 = vpop.xlane.xlu0 %3430
    %v3432 = vadd.f32 %v3029, %v3031
    %3433 = vadd.xlane.f32.xlu0 %v3432
    %v3434 = vpop.xlane.xlu0 %3433
    %v3435 = vadd.f32 %v3033, %v3035
    %3436 = vadd.xlane.f32.xlu0 %v3435
    %v3437 = vpop.xlane.xlu0 %3436
    %v3438 = vadd.f32 %v3037, %v3039
    %3439 = vadd.xlane.f32.xlu0 %v3438
    %v3440 = vpop.xlane.xlu0 %3439
    %v3441 = vadd.f32 %v3041, %v3043
    %3442 = vadd.xlane.f32.xlu0 %v3441
    %v3443 = vpop.xlane.xlu0 %3442
    %v3444 = vadd.f32 %v3045, %v3047
    %3445 = vadd.xlane.f32.xlu0 %v3444
    %v3446 = vpop.xlane.xlu0 %3445
    %v3447 = vadd.f32 %v3049, %v3051
    %3448 = vadd.xlane.f32.xlu0 %v3447
    %v3449 = vpop.xlane.xlu0 %3448
    %v3450 = vadd.f32 %v3053, %v3055
    %3451 = vadd.xlane.f32.xlu0 %v3450
    %v3452 = vpop.xlane.xlu0 %3451
    %v3453 = vadd.f32 %v3057, %v3059
    %3454 = vadd.xlane.f32.xlu0 %v3453
    %v3455 = vpop.xlane.xlu0 %3454
    %v3456 = vadd.f32 %v3061, %v3063
    %3457 = vadd.xlane.f32.xlu0 %v3456
    %v3458 = vpop.xlane.xlu0 %3457
    %v3459 = vadd.f32 %v3065, %v3067
    %3460 = vadd.xlane.f32.xlu0 %v3459
    %v3461 = vpop.xlane.xlu0 %3460
    %v3462 = vadd.f32 %v3069, %v3071
    %3463 = vadd.xlane.f32.xlu0 %v3462
    %v3464 = vpop.xlane.xlu0 %3463
    %v3465 = vadd.f32 %v3073, %v3075
    %3466 = vadd.xlane.f32.xlu0 %v3465
    %v3467 = vpop.xlane.xlu0 %3466
    %v3468 = vadd.f32 %v3077, %v3079
    %3469 = vadd.xlane.f32.xlu0 %v3468
    %v3470 = vpop.xlane.xlu0 %3469
    %v3471 = vadd.f32 %v3081, %v3083
    %3472 = vadd.xlane.f32.xlu0 %v3471
    %v3473 = vpop.xlane.xlu0 %3472
    %v3474 = vadd.f32 %v3085, %v3087
    %3475 = vadd.xlane.f32.xlu0 %v3474
    %v3476 = vpop.xlane.xlu0 %3475
    %v3477 = vadd.f32 %v3089, %v3091
    %3478 = vadd.xlane.f32.xlu0 %v3477
    %v3479 = vpop.xlane.xlu0 %3478
    %v3480 = vadd.f32 %v3093, %v3095
    %3481 = vadd.xlane.f32.xlu0 %v3480
    %v3482 = vpop.xlane.xlu0 %3481
    %v3483 = vadd.f32 %v3097, %v3099
    %3484 = vadd.xlane.f32.xlu0 %v3483
    %v3485 = vpop.xlane.xlu0 %3484
    %v3486 = vadd.f32 %v3101, %v3103
    %3487 = vadd.xlane.f32.xlu0 %v3486
    %v3488 = vpop.xlane.xlu0 %3487
    %v3489 = vadd.f32 %v3105, %v3107
    %3490 = vadd.xlane.f32.xlu0 %v3489
    %v3491 = vpop.xlane.xlu0 %3490
    %3492 = vmatprep.subr.mxu0 %v267
    %3493 = vmatpush1.xpose.msra.mxu0 %v265
    %3494 = vmatprep.subr.mxu0 0.0
    %3495 = vmatpush1.xpose.msra.mxu0 0.0
    %3496 = vmatprep.subr.mxu0 0.0
    %3497 = vmatpush1.xpose.msra.mxu0 0.0
    %3498 = vmatprep.subr.mxu0 0.0
    %3499 = vmatpush1.xpose.msra.mxu0 0.0
    %3500 = vmatprep.subr.mxu0 0.0
    %3501 = vmatpush1.xpose.msra.mxu0 0.0
    %3502 = vmatprep.subr.mxu0 0.0
    %3503 = vmatpush1.xpose.msra.mxu0 0.0
    %3504 = vmatprep.subr.mxu0 0.0
    %3505 = vmatpush1.xpose.msra.mxu0 0.0
    %3506 = vmatprep.subr.mxu0 0.0
    %3507 = vmatpush1.xpose.msra.mxu0 0.0
    %3508 = vmatprep.subr.mxu0 0.0
    %3509 = vmatpush1.xpose.msra.mxu0 0.0
    %3510 = vmatprep.subr.mxu0 0.0
    %3511 = vmatpush1.xpose.msra.mxu0 0.0
    %3512 = vmatprep.subr.mxu0 0.0
    %3513 = vmatpush1.xpose.msra.mxu0 0.0
    %3514 = vmatprep.subr.mxu0 0.0
    %3515 = vmatpush1.xpose.msra.mxu0 0.0
    %3516 = vmatprep.subr.mxu0 0.0
    %3517 = vmatpush1.xpose.msra.mxu0 0.0
    %3518 = vmatprep.subr.mxu0 0.0
    %3519 = vmatpush1.xpose.msra.mxu0 0.0
    %3520 = vmatprep.subr.mxu0 0.0
    %3521 = vmatpush1.xpose.msra.mxu0 0.0
    %3522 = vmatprep.subr.mxu0 0.0
    %3523 = vmatpush1.xpose.msra.mxu0 0.0
    %3524 = vmatprep.subr.mxu0 0.0
    %3525 = vmatpush1.xpose.msra.mxu0 0.0
    %3526 = vmatprep.subr.mxu0 0.0
    %3527 = vmatpush1.xpose.msra.mxu0 0.0
    %3528 = vmatprep.subr.mxu0 0.0
    %3529 = vmatpush1.xpose.msra.mxu0 0.0
    %3530 = vmatprep.subr.mxu0 0.0
    %3531 = vmatpush1.xpose.msra.mxu0 0.0
    %3532 = vmatprep.subr.mxu0 0.0
    %3533 = vmatpush1.xpose.msra.mxu0 0.0
    %3534 = vmatprep.subr.mxu0 0.0
    %3535 = vmatpush1.xpose.msra.mxu0 0.0
    %3536 = vmatprep.subr.mxu0 0.0
    %3537 = vmatpush1.xpose.msra.mxu0 0.0
    %3538 = vmatprep.subr.mxu0 0.0
    %3539 = vmatpush1.xpose.msra.mxu0 0.0
    %3540 = vmatprep.subr.mxu0 0.0
    %3541 = vmatpush1.xpose.msra.mxu0 0.0
    %3542 = vmatprep.subr.mxu0 0.0
    %3543 = vmatpush1.xpose.msra.mxu0 0.0
    %3544 = vmatprep.subr.mxu0 0.0
    %3545 = vmatpush1.xpose.msra.mxu0 0.0
    %3546 = vmatprep.subr.mxu0 0.0
    %3547 = vmatpush1.xpose.msra.mxu0 0.0
    %3548 = vmatprep.subr.mxu0 0.0
    %3549 = vmatpush1.xpose.msra.mxu0 0.0
    %3550 = vmatprep.subr.mxu0 0.0
    %3551 = vmatpush1.xpose.msra.mxu0 0.0
    %3552 = vmatprep.subr.mxu0 0.0
    %3553 = vmatpush1.xpose.msra.mxu0 0.0
    %3554 = vmatprep.subr.mxu0 0.0
    %3555 = vmatpush1.xpose.msra.mxu0 0.0
    %3556 = vmatprep.mubr.f32.mxu0 %v2599
    %3557 = vmatmul.mubr.f32.gmra.mrb[0].mxu0 %v2597
    %v3558 = vpop.f32.mrb[0].mxu0
    %v3559 = vadd.f32 0.0, %v3558
    %v3560 = vpop.f32.mrb[0].mxu0
    %3561 = vmatprep.mubr.f32.mxu0 %v2603
    %3562 = vmatmul.mubr.f32.gmra.mrb[0].mxu0 %v2601
    %v3563 = vpop.f32.mrb[0].mxu0
    %v3564 = vadd.f32 0.0, %v3563
    %v3565 = vpop.f32.mrb[0].mxu0
    %3566 = vmatprep.mubr.f32.mxu0 %v2607
    %3567 = vmatmul.mubr.f32.gmra.mrb[0].mxu0 %v2605
    %v3568 = vpop.f32.mrb[0].mxu0
    %v3569 = vadd.f32 0.0, %v3568
    %v3570 = vpop.f32.mrb[0].mxu0
    %3571 = vmatprep.mubr.f32.mxu0 %v2611
    %3572 = vmatmul.mubr.f32.gmra.mrb[0].mxu0 %v2609
    %v3573 = vpop.f32.mrb[0].mxu0
    %v3574 = vadd.f32 0.0, %v3573
    %v3575 = vpop.f32.mrb[0].mxu0
    %3576 = vmatprep.mubr.f32.mxu0 %v2615
    %3577 = vmatmul.mubr.f32.gmra.mrb[0].mxu0 %v2613
    %v3578 = vpop.f32.mrb[0].mxu0
    %v3579 = vadd.f32 0.0, %v3578
    %v3580 = vpop.f32.mrb[0].mxu0
    %3581 = vmatprep.mubr.f32.mxu0 %v2619
    %3582 = vmatmul.mubr.f32.gmra.mrb[0].mxu0 %v2617
    %v3583 = vpop.f32.mrb[0].mxu0
    %v3584 = vadd.f32 0.0, %v3583
    %v3585 = vpop.f32.mrb[0].mxu0
    %3586 = vmatprep.mubr.f32.mxu0 %v2623
    %3587 = vmatmul.mubr.f32.gmra.mrb[0].mxu0 %v2621
    %v3588 = vpop.f32.mrb[0].mxu0
    %v3589 = vadd.f32 0.0, %v3588
    %v3590 = vpop.f32.mrb[0].mxu0
    %3591 = vmatprep.mubr.f32.mxu0 %v2627
    %3592 = vmatmul.mubr.f32.gmra.mrb[0].mxu0 %v2625
    %v3593 = vpop.f32.mrb[0].mxu0
    %v3594 = vadd.f32 0.0, %v3593
    %v3595 = vpop.f32.mrb[0].mxu0
    %3596 = vmatprep.mubr.f32.mxu0 %v2631
    %3597 = vmatmul.mubr.f32.gmra.mrb[0].mxu0 %v2629
    %v3598 = vpop.f32.mrb[0].mxu0
    %v3599 = vadd.f32 0.0, %v3598
    %v3600 = vpop.f32.mrb[0].mxu0
    %3601 = vmatprep.mubr.f32.mxu0 %v2635
    %3602 = vmatmul.mubr.f32.gmra.mrb[0].mxu0 %v2633
    %v3603 = vpop.f32.mrb[0].mxu0
    %v3604 = vadd.f32 0.0, %v3603
    %v3605 = vpop.f32.mrb[0].mxu0
    %3606 = vmatprep.mubr.f32.mxu0 %v2639
    %3607 = vmatmul.mubr.f32.gmra.mrb[0].mxu0 %v2637
    %v3608 = vpop.f32.mrb[0].mxu0
    %v3609 = vadd.f32 0.0, %v3608
    %v3610 = vpop.f32.mrb[0].mxu0
    %3611 = vmatprep.mubr.f32.mxu0 %v2643
    %3612 = vmatmul.mubr.f32.gmra.mrb[0].mxu0 %v2641
    %v3613 = vpop.f32.mrb[0].mxu0
    %v3614 = vadd.f32 0.0, %v3613
    %v3615 = vpop.f32.mrb[0].mxu0
    %3616 = vmatprep.mubr.f32.mxu0 %v2647
    %3617 = vmatmul.mubr.f32.gmra.mrb[0].mxu0 %v2645
    %v3618 = vpop.f32.mrb[0].mxu0
    %v3619 = vadd.f32 0.0, %v3618
    %v3620 = vpop.f32.mrb[0].mxu0
    %3621 = vmatprep.mubr.f32.mxu0 %v2651
    %3622 = vmatmul.mubr.f32.gmra.mrb[0].mxu0 %v2649
    %v3623 = vpop.f32.mrb[0].mxu0
    %v3624 = vadd.f32 0.0, %v3623
    %v3625 = vpop.f32.mrb[0].mxu0
    %3626 = vmatprep.mubr.f32.mxu0 %v2655
    %3627 = vmatmul.mubr.f32.gmra.mrb[0].mxu0 %v2653
    %v3628 = vpop.f32.mrb[0].mxu0
    %v3629 = vadd.f32 0.0, %v3628
    %v3630 = vpop.f32.mrb[0].mxu0
    %3631 = vmatprep.mubr.f32.mxu0 %v2659
    %3632 = vmatmul.mubr.f32.gmra.mrb[0].mxu0 %v2657
    %v3633 = vpop.f32.mrb[0].mxu0
    %v3634 = vadd.f32 0.0, %v3633
    %v3635 = vpop.f32.mrb[0].mxu0
    %3636 = vmatprep.mubr.f32.mxu0 %v2663
    %3637 = vmatmul.mubr.f32.gmra.mrb[0].mxu0 %v2661
    %v3638 = vpop.f32.mrb[0].mxu0
    %v3639 = vadd.f32 0.0, %v3638
    %v3640 = vpop.f32.mrb[0].mxu0
    %3641 = vmatprep.mubr.f32.mxu0 %v2667
    %3642 = vmatmul.mubr.f32.gmra.mrb[0].mxu0 %v2665
    %v3643 = vpop.f32.mrb[0].mxu0
    %v3644 = vadd.f32 0.0, %v3643
    %v3645 = vpop.f32.mrb[0].mxu0
    %3646 = vmatprep.mubr.f32.mxu0 %v2671
    %3647 = vmatmul.mubr.f32.gmra.mrb[0].mxu0 %v2669
    %v3648 = vpop.f32.mrb[0].mxu0
    %v3649 = vadd.f32 0.0, %v3648
    %v3650 = vpop.f32.mrb[0].mxu0
    %3651 = vmatprep.mubr.f32.mxu0 %v2675
    %3652 = vmatmul.mubr.f32.gmra.mrb[0].mxu0 %v2673
    %v3653 = vpop.f32.mrb[0].mxu0
    %v3654 = vadd.f32 0.0, %v3653
    %v3655 = vpop.f32.mrb[0].mxu0
    %3656 = vmatprep.mubr.f32.mxu0 %v2679
    %3657 = vmatmul.mubr.f32.gmra.mrb[0].mxu0 %v2677
    %v3658 = vpop.f32.mrb[0].mxu0
    %v3659 = vadd.f32 0.0, %v3658
    %v3660 = vpop.f32.mrb[0].mxu0
    %3661 = vmatprep.mubr.f32.mxu0 %v2683
    %3662 = vmatmul.mubr.f32.gmra.mrb[0].mxu0 %v2681
    %v3663 = vpop.f32.mrb[0].mxu0
    %v3664 = vadd.f32 0.0, %v3663
    %v3665 = vpop.f32.mrb[0].mxu0
    %3666 = vmatprep.mubr.f32.mxu0 %v2687
    %3667 = vmatmul.mubr.f32.gmra.mrb[0].mxu0 %v2685
    %v3668 = vpop.f32.mrb[0].mxu0
    %v3669 = vadd.f32 0.0, %v3668
    %v3670 = vpop.f32.mrb[0].mxu0
    %3671 = vmatprep.mubr.f32.mxu0 %v2691
    %3672 = vmatmul.mubr.f32.gmra.mrb[0].mxu0 %v2689
    %v3673 = vpop.f32.mrb[0].mxu0
    %v3674 = vadd.f32 0.0, %v3673
    %v3675 = vpop.f32.mrb[0].mxu0
    %3676 = vmatprep.mubr.f32.mxu0 %v2695
    %3677 = vmatmul.mubr.f32.gmra.mrb[0].mxu0 %v2693
    %v3678 = vpop.f32.mrb[0].mxu0
    %v3679 = vadd.f32 0.0, %v3678
    %v3680 = vpop.f32.mrb[0].mxu0
    %3681 = vmatprep.mubr.f32.mxu0 %v2699
    %3682 = vmatmul.mubr.f32.gmra.mrb[0].mxu0 %v2697
    %v3683 = vpop.f32.mrb[0].mxu0
    %v3684 = vadd.f32 0.0, %v3683
    %v3685 = vpop.f32.mrb[0].mxu0
    %3686 = vmatprep.mubr.f32.mxu0 %v2703
    %3687 = vmatmul.mubr.f32.gmra.mrb[0].mxu0 %v2701
    %v3688 = vpop.f32.mrb[0].mxu0
    %v3689 = vadd.f32 0.0, %v3688
    %v3690 = vpop.f32.mrb[0].mxu0
    %3691 = vmatprep.mubr.f32.mxu0 %v2707
    %3692 = vmatmul.mubr.f32.gmra.mrb[0].mxu0 %v2705
    %v3693 = vpop.f32.mrb[0].mxu0
    %v3694 = vadd.f32 0.0, %v3693
    %v3695 = vpop.f32.mrb[0].mxu0
    %3696 = vmatprep.mubr.f32.mxu0 %v2711
    %3697 = vmatmul.mubr.f32.gmra.mrb[0].mxu0 %v2709
    %v3698 = vpop.f32.mrb[0].mxu0
    %v3699 = vadd.f32 0.0, %v3698
    %v3700 = vpop.f32.mrb[0].mxu0
    %3701 = vmatprep.mubr.f32.mxu0 %v2715
    %3702 = vmatmul.mubr.f32.gmra.mrb[0].mxu0 %v2713
    %v3703 = vpop.f32.mrb[0].mxu0
    %v3704 = vadd.f32 0.0, %v3703
    %v3705 = vpop.f32.mrb[0].mxu0
    %3706 = vmatprep.mubr.f32.mxu0 %v2719
    %3707 = vmatmul.mubr.f32.gmra.mrb[0].mxu0 %v2717
    %v3708 = vpop.f32.mrb[0].mxu0
    %v3709 = vadd.f32 0.0, %v3708
    %v3710 = vpop.f32.mrb[0].mxu0
    %3711 = vmatprep.mubr.f32.mxu0 %v2723
    %3712 = vmatmul.mubr.f32.gmra.mrb[0].mxu0 %v2721
    %v3713 = vpop.f32.mrb[0].mxu0
    %v3714 = vadd.f32 0.0, %v3713
    %v3715 = vpop.f32.mrb[0].mxu0
    %3716 = vdwg.mxu0
    %3717 = vmatprep.subr.mxu0 %v273
    %3718 = vmatpush1.xpose.msra.mxu0 %v271
    %3719 = vmatprep.subr.mxu0 0.0
    %3720 = vmatpush1.xpose.msra.mxu0 0.0
    %3721 = vmatprep.subr.mxu0 0.0
    %3722 = vmatpush1.xpose.msra.mxu0 0.0
    %3723 = vmatprep.subr.mxu0 0.0
    %3724 = vmatpush1.xpose.msra.mxu0 0.0
    %3725 = vmatprep.subr.mxu0 0.0
    %3726 = vmatpush1.xpose.msra.mxu0 0.0
    %3727 = vmatprep.subr.mxu0 0.0
    %3728 = vmatpush1.xpose.msra.mxu0 0.0
    %3729 = vmatprep.subr.mxu0 0.0
    %3730 = vmatpush1.xpose.msra.mxu0 0.0
    %3731 = vmatprep.subr.mxu0 0.0
    %3732 = vmatpush1.xpose.msra.mxu0 0.0
    %3733 = vmatprep.subr.mxu0 0.0
    %3734 = vmatpush1.xpose.msra.mxu0 0.0
    %3735 = vmatprep.subr.mxu0 0.0
    %3736 = vmatpush1.xpose.msra.mxu0 0.0
    %3737 = vmatprep.subr.mxu0 0.0
    %3738 = vmatpush1.xpose.msra.mxu0 0.0
    %3739 = vmatprep.subr.mxu0 0.0
    %3740 = vmatpush1.xpose.msra.mxu0 0.0
    %3741 = vmatprep.subr.mxu0 0.0
    %3742 = vmatpush1.xpose.msra.mxu0 0.0
    %3743 = vmatprep.subr.mxu0 0.0
    %3744 = vmatpush1.xpose.msra.mxu0 0.0
    %3745 = vmatprep.subr.mxu0 0.0
    %3746 = vmatpush1.xpose.msra.mxu0 0.0
    %3747 = vmatprep.subr.mxu0 0.0
    %3748 = vmatpush1.xpose.msra.mxu0 0.0
    %3749 = vmatprep.subr.mxu0 0.0
    %3750 = vmatpush1.xpose.msra.mxu0 0.0
    %3751 = vmatprep.subr.mxu0 0.0
    %3752 = vmatpush1.xpose.msra.mxu0 0.0
    %3753 = vmatprep.subr.mxu0 0.0
    %3754 = vmatpush1.xpose.msra.mxu0 0.0
    %3755 = vmatprep.subr.mxu0 0.0
    %3756 = vmatpush1.xpose.msra.mxu0 0.0
    %3757 = vmatprep.subr.mxu0 0.0
    %3758 = vmatpush1.xpose.msra.mxu0 0.0
    %3759 = vmatprep.subr.mxu0 0.0
    %3760 = vmatpush1.xpose.msra.mxu0 0.0
    %3761 = vmatprep.subr.mxu0 0.0
    %3762 = vmatpush1.xpose.msra.mxu0 0.0
    %3763 = vmatprep.subr.mxu0 0.0
    %3764 = vmatpush1.xpose.msra.mxu0 0.0
    %3765 = vmatprep.subr.mxu0 0.0
    %3766 = vmatpush1.xpose.msra.mxu0 0.0
    %3767 = vmatprep.subr.mxu0 0.0
    %3768 = vmatpush1.xpose.msra.mxu0 0.0
    %3769 = vmatprep.subr.mxu0 0.0
    %3770 = vmatpush1.xpose.msra.mxu0 0.0
    %3771 = vmatprep.subr.mxu0 0.0
    %3772 = vmatpush1.xpose.msra.mxu0 0.0
    %3773 = vmatprep.subr.mxu0 0.0
    %3774 = vmatpush1.xpose.msra.mxu0 0.0
    %3775 = vmatprep.subr.mxu0 0.0
    %3776 = vmatpush1.xpose.msra.mxu0 0.0
    %3777 = vmatprep.subr.mxu0 0.0
    %3778 = vmatpush1.xpose.msra.mxu0 0.0
    %3779 = vmatprep.subr.mxu0 0.0
    %3780 = vmatpush1.xpose.msra.mxu0 0.0
    %3781 = vmatprep.mubr.f32.mxu0 %v2727
    %3782 = vmatmul.mubr.f32.gmra.mrb[0].mxu0 %v2725
    %v3783 = vpop.f32.mrb[0].mxu0
    %v3784 = vadd.f32 0.0, %v3783
    %v3785 = vpop.f32.mrb[0].mxu0
    %3786 = vmatprep.mubr.f32.mxu0 %v2731
    %3787 = vmatmul.mubr.f32.gmra.mrb[0].mxu0 %v2729
    %v3788 = vpop.f32.mrb[0].mxu0
    %v3789 = vadd.f32 0.0, %v3788
    %v3790 = vpop.f32.mrb[0].mxu0
    %3791 = vmatprep.mubr.f32.mxu0 %v2735
    %3792 = vmatmul.mubr.f32.gmra.mrb[0].mxu0 %v2733
    %v3793 = vpop.f32.mrb[0].mxu0
    %v3794 = vadd.f32 0.0, %v3793
    %v3795 = vpop.f32.mrb[0].mxu0
    %3796 = vmatprep.mubr.f32.mxu0 %v2739
    %3797 = vmatmul.mubr.f32.gmra.mrb[0].mxu0 %v2737
    %v3798 = vpop.f32.mrb[0].mxu0
    %v3799 = vadd.f32 0.0, %v3798
    %v3800 = vpop.f32.mrb[0].mxu0
    %3801 = vmatprep.mubr.f32.mxu0 %v2743
    %3802 = vmatmul.mubr.f32.gmra.mrb[0].mxu0 %v2741
    %v3803 = vpop.f32.mrb[0].mxu0
    %v3804 = vadd.f32 0.0, %v3803
    %v3805 = vpop.f32.mrb[0].mxu0
    %3806 = vmatprep.mubr.f32.mxu0 %v2747
    %3807 = vmatmul.mubr.f32.gmra.mrb[0].mxu0 %v2745
    %v3808 = vpop.f32.mrb[0].mxu0
    %v3809 = vadd.f32 0.0, %v3808
    %v3810 = vpop.f32.mrb[0].mxu0
    %3811 = vmatprep.mubr.f32.mxu0 %v2751
    %3812 = vmatmul.mubr.f32.gmra.mrb[0].mxu0 %v2749
    %v3813 = vpop.f32.mrb[0].mxu0
    %v3814 = vadd.f32 0.0, %v3813
    %v3815 = vpop.f32.mrb[0].mxu0
    %3816 = vmatprep.mubr.f32.mxu0 %v2755
    %3817 = vmatmul.mubr.f32.gmra.mrb[0].mxu0 %v2753
    %v3818 = vpop.f32.mrb[0].mxu0
    %v3819 = vadd.f32 0.0, %v3818
    %v3820 = vpop.f32.mrb[0].mxu0
    %3821 = vmatprep.mubr.f32.mxu0 %v2759
    %3822 = vmatmul.mubr.f32.gmra.mrb[0].mxu0 %v2757
    %v3823 = vpop.f32.mrb[0].mxu0
    %v3824 = vadd.f32 0.0, %v3823
    %v3825 = vpop.f32.mrb[0].mxu0
    %3826 = vmatprep.mubr.f32.mxu0 %v2763
    %3827 = vmatmul.mubr.f32.gmra.mrb[0].mxu0 %v2761
    %v3828 = vpop.f32.mrb[0].mxu0
    %v3829 = vadd.f32 0.0, %v3828
    %v3830 = vpop.f32.mrb[0].mxu0
    %3831 = vmatprep.mubr.f32.mxu0 %v2767
    %3832 = vmatmul.mubr.f32.gmra.mrb[0].mxu0 %v2765
    %v3833 = vpop.f32.mrb[0].mxu0
    %v3834 = vadd.f32 0.0, %v3833
    %v3835 = vpop.f32.mrb[0].mxu0
    %3836 = vmatprep.mubr.f32.mxu0 %v2771
    %3837 = vmatmul.mubr.f32.gmra.mrb[0].mxu0 %v2769
    %v3838 = vpop.f32.mrb[0].mxu0
    %v3839 = vadd.f32 0.0, %v3838
    %v3840 = vpop.f32.mrb[0].mxu0
    %3841 = vmatprep.mubr.f32.mxu0 %v2775
    %3842 = vmatmul.mubr.f32.gmra.mrb[0].mxu0 %v2773
    %v3843 = vpop.f32.mrb[0].mxu0
    %v3844 = vadd.f32 0.0, %v3843
    %v3845 = vpop.f32.mrb[0].mxu0
    %3846 = vmatprep.mubr.f32.mxu0 %v2779
    %3847 = vmatmul.mubr.f32.gmra.mrb[0].mxu0 %v2777
    %v3848 = vpop.f32.mrb[0].mxu0
    %v3849 = vadd.f32 0.0, %v3848
    %v3850 = vpop.f32.mrb[0].mxu0
    %3851 = vmatprep.mubr.f32.mxu0 %v2783
    %3852 = vmatmul.mubr.f32.gmra.mrb[0].mxu0 %v2781
    %v3853 = vpop.f32.mrb[0].mxu0
    %v3854 = vadd.f32 0.0, %v3853
    %v3855 = vpop.f32.mrb[0].mxu0
    %3856 = vmatprep.mubr.f32.mxu0 %v2787
    %3857 = vmatmul.mubr.f32.gmra.mrb[0].mxu0 %v2785
    %v3858 = vpop.f32.mrb[0].mxu0
    %v3859 = vadd.f32 0.0, %v3858
    %v3860 = vpop.f32.mrb[0].mxu0
    %3861 = vmatprep.mubr.f32.mxu0 %v2791
    %3862 = vmatmul.mubr.f32.gmra.mrb[0].mxu0 %v2789
    %v3863 = vpop.f32.mrb[0].mxu0
    %v3864 = vadd.f32 0.0, %v3863
    %v3865 = vpop.f32.mrb[0].mxu0
    %3866 = vmatprep.mubr.f32.mxu0 %v2795
    %3867 = vmatmul.mubr.f32.gmra.mrb[0].mxu0 %v2793
    %v3868 = vpop.f32.mrb[0].mxu0
    %v3869 = vadd.f32 0.0, %v3868
    %v3870 = vpop.f32.mrb[0].mxu0
    %3871 = vmatprep.mubr.f32.mxu0 %v2799
    %3872 = vmatmul.mubr.f32.gmra.mrb[0].mxu0 %v2797
    %v3873 = vpop.f32.mrb[0].mxu0
    %v3874 = vadd.f32 0.0, %v3873
    %v3875 = vpop.f32.mrb[0].mxu0
    %3876 = vmatprep.mubr.f32.mxu0 %v2803
    %3877 = vmatmul.mubr.f32.gmra.mrb[0].mxu0 %v2801
    %v3878 = vpop.f32.mrb[0].mxu0
    %v3879 = vadd.f32 0.0, %v3878
    %v3880 = vpop.f32.mrb[0].mxu0
    %3881 = vmatprep.mubr.f32.mxu0 %v2807
    %3882 = vmatmul.mubr.f32.gmra.mrb[0].mxu0 %v2805
    %v3883 = vpop.f32.mrb[0].mxu0
    %v3884 = vadd.f32 0.0, %v3883
    %v3885 = vpop.f32.mrb[0].mxu0
    %3886 = vmatprep.mubr.f32.mxu0 %v2811
    %3887 = vmatmul.mubr.f32.gmra.mrb[0].mxu0 %v2809
    %v3888 = vpop.f32.mrb[0].mxu0
    %v3889 = vadd.f32 0.0, %v3888
    %v3890 = vpop.f32.mrb[0].mxu0
    %3891 = vmatprep.mubr.f32.mxu0 %v2815
    %3892 = vmatmul.mubr.f32.gmra.mrb[0].mxu0 %v2813
    %v3893 = vpop.f32.mrb[0].mxu0
    %v3894 = vadd.f32 0.0, %v3893
    %v3895 = vpop.f32.mrb[0].mxu0
    %3896 = vmatprep.mubr.f32.mxu0 %v2819
    %3897 = vmatmul.mubr.f32.gmra.mrb[0].mxu0 %v2817
    %v3898 = vpop.f32.mrb[0].mxu0
    %v3899 = vadd.f32 0.0, %v3898
    %v3900 = vpop.f32.mrb[0].mxu0
    %3901 = vmatprep.mubr.f32.mxu0 %v2823
    %3902 = vmatmul.mubr.f32.gmra.mrb[0].mxu0 %v2821
    %v3903 = vpop.f32.mrb[0].mxu0
    %v3904 = vadd.f32 0.0, %v3903
    %v3905 = vpop.f32.mrb[0].mxu0
    %3906 = vmatprep.mubr.f32.mxu0 %v2827
    %3907 = vmatmul.mubr.f32.gmra.mrb[0].mxu0 %v2825
    %v3908 = vpop.f32.mrb[0].mxu0
    %v3909 = vadd.f32 0.0, %v3908
    %v3910 = vpop.f32.mrb[0].mxu0
    %3911 = vmatprep.mubr.f32.mxu0 %v2831
    %3912 = vmatmul.mubr.f32.gmra.mrb[0].mxu0 %v2829
    %v3913 = vpop.f32.mrb[0].mxu0
    %v3914 = vadd.f32 0.0, %v3913
    %v3915 = vpop.f32.mrb[0].mxu0
    %3916 = vmatprep.mubr.f32.mxu0 %v2835
    %3917 = vmatmul.mubr.f32.gmra.mrb[0].mxu0 %v2833
    %v3918 = vpop.f32.mrb[0].mxu0
    %v3919 = vadd.f32 0.0, %v3918
    %v3920 = vpop.f32.mrb[0].mxu0
    %3921 = vmatprep.mubr.f32.mxu0 %v2839
    %3922 = vmatmul.mubr.f32.gmra.mrb[0].mxu0 %v2837
    %v3923 = vpop.f32.mrb[0].mxu0
    %v3924 = vadd.f32 0.0, %v3923
    %v3925 = vpop.f32.mrb[0].mxu0
    %3926 = vmatprep.mubr.f32.mxu0 %v2843
    %3927 = vmatmul.mubr.f32.gmra.mrb[0].mxu0 %v2841
    %v3928 = vpop.f32.mrb[0].mxu0
    %v3929 = vadd.f32 0.0, %v3928
    %v3930 = vpop.f32.mrb[0].mxu0
    %3931 = vmatprep.mubr.f32.mxu0 %v2847
    %3932 = vmatmul.mubr.f32.gmra.mrb[0].mxu0 %v2845
    %v3933 = vpop.f32.mrb[0].mxu0
    %v3934 = vadd.f32 0.0, %v3933
    %v3935 = vpop.f32.mrb[0].mxu0
    %3936 = vmatprep.mubr.f32.mxu0 %v2851
    %3937 = vmatmul.mubr.f32.gmra.mrb[0].mxu0 %v2849
    %v3938 = vpop.f32.mrb[0].mxu0
    %v3939 = vadd.f32 0.0, %v3938
    %v3940 = vpop.f32.mrb[0].mxu0
    %3941 = vdwg.mxu0
    %3942 = vmatprep.subr.mxu0 %v279
    %3943 = vmatpush1.xpose.msra.mxu0 %v277
    %3944 = vmatprep.subr.mxu0 0.0
    %3945 = vmatpush1.xpose.msra.mxu0 0.0
    %3946 = vmatprep.subr.mxu0 0.0
    %3947 = vmatpush1.xpose.msra.mxu0 0.0
    %3948 = vmatprep.subr.mxu0 0.0
    %3949 = vmatpush1.xpose.msra.mxu0 0.0
    %3950 = vmatprep.subr.mxu0 0.0
    %3951 = vmatpush1.xpose.msra.mxu0 0.0
    %3952 = vmatprep.subr.mxu0 0.0
    %3953 = vmatpush1.xpose.msra.mxu0 0.0
    %3954 = vmatprep.subr.mxu0 0.0
    %3955 = vmatpush1.xpose.msra.mxu0 0.0
    %3956 = vmatprep.subr.mxu0 0.0
    %3957 = vmatpush1.xpose.msra.mxu0 0.0
    %3958 = vmatprep.subr.mxu0 0.0
    %3959 = vmatpush1.xpose.msra.mxu0 0.0
    %3960 = vmatprep.subr.mxu0 0.0
    %3961 = vmatpush1.xpose.msra.mxu0 0.0
    %3962 = vmatprep.subr.mxu0 0.0
    %3963 = vmatpush1.xpose.msra.mxu0 0.0
    %3964 = vmatprep.subr.mxu0 0.0
    %3965 = vmatpush1.xpose.msra.mxu0 0.0
    %3966 = vmatprep.subr.mxu0 0.0
    %3967 = vmatpush1.xpose.msra.mxu0 0.0
    %3968 = vmatprep.subr.mxu0 0.0
    %3969 = vmatpush1.xpose.msra.mxu0 0.0
    %3970 = vmatprep.subr.mxu0 0.0
    %3971 = vmatpush1.xpose.msra.mxu0 0.0
    %3972 = vmatprep.subr.mxu0 0.0
    %3973 = vmatpush1.xpose.msra.mxu0 0.0
    %3974 = vmatprep.subr.mxu0 0.0
    %3975 = vmatpush1.xpose.msra.mxu0 0.0
    %3976 = vmatprep.subr.mxu0 0.0
    %3977 = vmatpush1.xpose.msra.mxu0 0.0
    %3978 = vmatprep.subr.mxu0 0.0
    %3979 = vmatpush1.xpose.msra.mxu0 0.0
    %3980 = vmatprep.subr.mxu0 0.0
    %3981 = vmatpush1.xpose.msra.mxu0 0.0
    %3982 = vmatprep.subr.mxu0 0.0
    %3983 = vmatpush1.xpose.msra.mxu0 0.0
    %3984 = vmatprep.subr.mxu0 0.0
    %3985 = vmatpush1.xpose.msra.mxu0 0.0
    %3986 = vmatprep.subr.mxu0 0.0
    %3987 = vmatpush1.xpose.msra.mxu0 0.0
    %3988 = vmatprep.subr.mxu0 0.0
    %3989 = vmatpush1.xpose.msra.mxu0 0.0
    %3990 = vmatprep.subr.mxu0 0.0
    %3991 = vmatpush1.xpose.msra.mxu0 0.0
    %3992 = vmatprep.subr.mxu0 0.0
    %3993 = vmatpush1.xpose.msra.mxu0 0.0
    %3994 = vmatprep.subr.mxu0 0.0
    %3995 = vmatpush1.xpose.msra.mxu0 0.0
    %3996 = vmatprep.subr.mxu0 0.0
    %3997 = vmatpush1.xpose.msra.mxu0 0.0
    %3998 = vmatprep.subr.mxu0 0.0
    %3999 = vmatpush1.xpose.msra.mxu0 0.0
    %4000 = vmatprep.subr.mxu0 0.0
    %4001 = vmatpush1.xpose.msra.mxu0 0.0
    %4002 = vmatprep.subr.mxu0 0.0
    %4003 = vmatpush1.xpose.msra.mxu0 0.0
    %4004 = vmatprep.subr.mxu0 0.0
    %4005 = vmatpush1.xpose.msra.mxu0 0.0
    %4006 = vmatprep.mubr.f32.mxu0 %v2855
    %4007 = vmatmul.mubr.f32.gmra.mrb[0].mxu0 %v2853
    %v4008 = vpop.f32.mrb[0].mxu0
    %v4009 = vadd.f32 0.0, %v4008
    %v4010 = vpop.f32.mrb[0].mxu0
    %4011 = vmatprep.mubr.f32.mxu0 %v2859
    %4012 = vmatmul.mubr.f32.gmra.mrb[0].mxu0 %v2857
    %v4013 = vpop.f32.mrb[0].mxu0
    %v4014 = vadd.f32 0.0, %v4013
    %v4015 = vpop.f32.mrb[0].mxu0
    %4016 = vmatprep.mubr.f32.mxu0 %v2863
    %4017 = vmatmul.mubr.f32.gmra.mrb[0].mxu0 %v2861
    %v4018 = vpop.f32.mrb[0].mxu0
    %v4019 = vadd.f32 0.0, %v4018
    %v4020 = vpop.f32.mrb[0].mxu0
    %4021 = vmatprep.mubr.f32.mxu0 %v2867
    %4022 = vmatmul.mubr.f32.gmra.mrb[0].mxu0 %v2865
    %v4023 = vpop.f32.mrb[0].mxu0
    %v4024 = vadd.f32 0.0, %v4023
    %v4025 = vpop.f32.mrb[0].mxu0
    %4026 = vmatprep.mubr.f32.mxu0 %v2871
    %4027 = vmatmul.mubr.f32.gmra.mrb[0].mxu0 %v2869
    %v4028 = vpop.f32.mrb[0].mxu0
    %v4029 = vadd.f32 0.0, %v4028
    %v4030 = vpop.f32.mrb[0].mxu0
    %4031 = vmatprep.mubr.f32.mxu0 %v2875
    %4032 = vmatmul.mubr.f32.gmra.mrb[0].mxu0 %v2873
    %v4033 = vpop.f32.mrb[0].mxu0
    %v4034 = vadd.f32 0.0, %v4033
    %v4035 = vpop.f32.mrb[0].mxu0
    %4036 = vmatprep.mubr.f32.mxu0 %v2879
    %4037 = vmatmul.mubr.f32.gmra.mrb[0].mxu0 %v2877
    %v4038 = vpop.f32.mrb[0].mxu0
    %v4039 = vadd.f32 0.0, %v4038
    %v4040 = vpop.f32.mrb[0].mxu0
    %4041 = vmatprep.mubr.f32.mxu0 %v2883
    %4042 = vmatmul.mubr.f32.gmra.mrb[0].mxu0 %v2881
    %v4043 = vpop.f32.mrb[0].mxu0
    %v4044 = vadd.f32 0.0, %v4043
    %v4045 = vpop.f32.mrb[0].mxu0
    %4046 = vmatprep.mubr.f32.mxu0 %v2887
    %4047 = vmatmul.mubr.f32.gmra.mrb[0].mxu0 %v2885
    %v4048 = vpop.f32.mrb[0].mxu0
    %v4049 = vadd.f32 0.0, %v4048
    %v4050 = vpop.f32.mrb[0].mxu0
    %4051 = vmatprep.mubr.f32.mxu0 %v2891
    %4052 = vmatmul.mubr.f32.gmra.mrb[0].mxu0 %v2889
    %v4053 = vpop.f32.mrb[0].mxu0
    %v4054 = vadd.f32 0.0, %v4053
    %v4055 = vpop.f32.mrb[0].mxu0
    %4056 = vmatprep.mubr.f32.mxu0 %v2895
    %4057 = vmatmul.mubr.f32.gmra.mrb[0].mxu0 %v2893
    %v4058 = vpop.f32.mrb[0].mxu0
    %v4059 = vadd.f32 0.0, %v4058
    %v4060 = vpop.f32.mrb[0].mxu0
    %4061 = vmatprep.mubr.f32.mxu0 %v2899
    %4062 = vmatmul.mubr.f32.gmra.mrb[0].mxu0 %v2897
    %v4063 = vpop.f32.mrb[0].mxu0
    %v4064 = vadd.f32 0.0, %v4063
    %v4065 = vpop.f32.mrb[0].mxu0
    %4066 = vmatprep.mubr.f32.mxu0 %v2903
    %4067 = vmatmul.mubr.f32.gmra.mrb[0].mxu0 %v2901
    %v4068 = vpop.f32.mrb[0].mxu0
    %v4069 = vadd.f32 0.0, %v4068
    %v4070 = vpop.f32.mrb[0].mxu0
    %4071 = vmatprep.mubr.f32.mxu0 %v2907
    %4072 = vmatmul.mubr.f32.gmra.mrb[0].mxu0 %v2905
    %v4073 = vpop.f32.mrb[0].mxu0
    %v4074 = vadd.f32 0.0, %v4073
    %v4075 = vpop.f32.mrb[0].mxu0
    %4076 = vmatprep.mubr.f32.mxu0 %v2911
    %4077 = vmatmul.mubr.f32.gmra.mrb[0].mxu0 %v2909
    %v4078 = vpop.f32.mrb[0].mxu0
    %v4079 = vadd.f32 0.0, %v4078
    %v4080 = vpop.f32.mrb[0].mxu0
    %4081 = vmatprep.mubr.f32.mxu0 %v2915
    %4082 = vmatmul.mubr.f32.gmra.mrb[0].mxu0 %v2913
    %v4083 = vpop.f32.mrb[0].mxu0
    %v4084 = vadd.f32 0.0, %v4083
    %v4085 = vpop.f32.mrb[0].mxu0
    %4086 = vmatprep.mubr.f32.mxu0 %v2919
    %4087 = vmatmul.mubr.f32.gmra.mrb[0].mxu0 %v2917
    %v4088 = vpop.f32.mrb[0].mxu0
    %v4089 = vadd.f32 0.0, %v4088
    %v4090 = vpop.f32.mrb[0].mxu0
    %4091 = vmatprep.mubr.f32.mxu0 %v2923
    %4092 = vmatmul.mubr.f32.gmra.mrb[0].mxu0 %v2921
    %v4093 = vpop.f32.mrb[0].mxu0
    %v4094 = vadd.f32 0.0, %v4093
    %v4095 = vpop.f32.mrb[0].mxu0
    %4096 = vmatprep.mubr.f32.mxu0 %v2927
    %4097 = vmatmul.mubr.f32.gmra.mrb[0].mxu0 %v2925
    %v4098 = vpop.f32.mrb[0].mxu0
    %v4099 = vadd.f32 0.0, %v4098
    %v4100 = vpop.f32.mrb[0].mxu0
    %4101 = vmatprep.mubr.f32.mxu0 %v2931
    %4102 = vmatmul.mubr.f32.gmra.mrb[0].mxu0 %v2929
    %v4103 = vpop.f32.mrb[0].mxu0
    %v4104 = vadd.f32 0.0, %v4103
    %v4105 = vpop.f32.mrb[0].mxu0
    %4106 = vmatprep.mubr.f32.mxu0 %v2935
    %4107 = vmatmul.mubr.f32.gmra.mrb[0].mxu0 %v2933
    %v4108 = vpop.f32.mrb[0].mxu0
    %v4109 = vadd.f32 0.0, %v4108
    %v4110 = vpop.f32.mrb[0].mxu0
    %4111 = vmatprep.mubr.f32.mxu0 %v2939
    %4112 = vmatmul.mubr.f32.gmra.mrb[0].mxu0 %v2937
    %v4113 = vpop.f32.mrb[0].mxu0
    %v4114 = vadd.f32 0.0, %v4113
    %v4115 = vpop.f32.mrb[0].mxu0
    %4116 = vmatprep.mubr.f32.mxu0 %v2943
    %4117 = vmatmul.mubr.f32.gmra.mrb[0].mxu0 %v2941
    %v4118 = vpop.f32.mrb[0].mxu0
    %v4119 = vadd.f32 0.0, %v4118
    %v4120 = vpop.f32.mrb[0].mxu0
    %4121 = vmatprep.mubr.f32.mxu0 %v2947
    %4122 = vmatmul.mubr.f32.gmra.mrb[0].mxu0 %v2945
    %v4123 = vpop.f32.mrb[0].mxu0
    %v4124 = vadd.f32 0.0, %v4123
    %v4125 = vpop.f32.mrb[0].mxu0
    %4126 = vmatprep.mubr.f32.mxu0 %v2951
    %4127 = vmatmul.mubr.f32.gmra.mrb[0].mxu0 %v2949
    %v4128 = vpop.f32.mrb[0].mxu0
    %v4129 = vadd.f32 0.0, %v4128
    %v4130 = vpop.f32.mrb[0].mxu0
    %4131 = vmatprep.mubr.f32.mxu0 %v2955
    %4132 = vmatmul.mubr.f32.gmra.mrb[0].mxu0 %v2953
    %v4133 = vpop.f32.mrb[0].mxu0
    %v4134 = vadd.f32 0.0, %v4133
    %v4135 = vpop.f32.mrb[0].mxu0
    %4136 = vmatprep.mubr.f32.mxu0 %v2959
    %4137 = vmatmul.mubr.f32.gmra.mrb[0].mxu0 %v2957
    %v4138 = vpop.f32.mrb[0].mxu0
    %v4139 = vadd.f32 0.0, %v4138
    %v4140 = vpop.f32.mrb[0].mxu0
    %4141 = vmatprep.mubr.f32.mxu0 %v2963
    %4142 = vmatmul.mubr.f32.gmra.mrb[0].mxu0 %v2961
    %v4143 = vpop.f32.mrb[0].mxu0
    %v4144 = vadd.f32 0.0, %v4143
    %v4145 = vpop.f32.mrb[0].mxu0
    %4146 = vmatprep.mubr.f32.mxu0 %v2967
    %4147 = vmatmul.mubr.f32.gmra.mrb[0].mxu0 %v2965
    %v4148 = vpop.f32.mrb[0].mxu0
    %v4149 = vadd.f32 0.0, %v4148
    %v4150 = vpop.f32.mrb[0].mxu0
    %4151 = vmatprep.mubr.f32.mxu0 %v2971
    %4152 = vmatmul.mubr.f32.gmra.mrb[0].mxu0 %v2969
    %v4153 = vpop.f32.mrb[0].mxu0
    %v4154 = vadd.f32 0.0, %v4153
    %v4155 = vpop.f32.mrb[0].mxu0
    %4156 = vmatprep.mubr.f32.mxu0 %v2975
    %4157 = vmatmul.mubr.f32.gmra.mrb[0].mxu0 %v2973
    %v4158 = vpop.f32.mrb[0].mxu0
    %v4159 = vadd.f32 0.0, %v4158
    %v4160 = vpop.f32.mrb[0].mxu0
    %4161 = vmatprep.mubr.f32.mxu0 %v2979
    %4162 = vmatmul.mubr.f32.gmra.mrb[0].mxu0 %v2977
    %v4163 = vpop.f32.mrb[0].mxu0
    %v4164 = vadd.f32 0.0, %v4163
    %v4165 = vpop.f32.mrb[0].mxu0
    %4166 = vdwg.mxu0
    %4167 = vmatprep.subr.mxu0 %v285
    %4168 = vmatpush1.xpose.msra.mxu0 %v283
    %4169 = vmatprep.subr.mxu0 0.0
    %4170 = vmatpush1.xpose.msra.mxu0 0.0
    %4171 = vmatprep.subr.mxu0 0.0
    %4172 = vmatpush1.xpose.msra.mxu0 0.0
    %4173 = vmatprep.subr.mxu0 0.0
    %4174 = vmatpush1.xpose.msra.mxu0 0.0
    %4175 = vmatprep.subr.mxu0 0.0
    %4176 = vmatpush1.xpose.msra.mxu0 0.0
    %4177 = vmatprep.subr.mxu0 0.0
    %4178 = vmatpush1.xpose.msra.mxu0 0.0
    %4179 = vmatprep.subr.mxu0 0.0
    %4180 = vmatpush1.xpose.msra.mxu0 0.0
    %4181 = vmatprep.subr.mxu0 0.0
    %4182 = vmatpush1.xpose.msra.mxu0 0.0
    %4183 = vmatprep.subr.mxu0 0.0
    %4184 = vmatpush1.xpose.msra.mxu0 0.0
    %4185 = vmatprep.subr.mxu0 0.0
    %4186 = vmatpush1.xpose.msra.mxu0 0.0
    %4187 = vmatprep.subr.mxu0 0.0
    %4188 = vmatpush1.xpose.msra.mxu0 0.0
    %4189 = vmatprep.subr.mxu0 0.0
    %4190 = vmatpush1.xpose.msra.mxu0 0.0
    %4191 = vmatprep.subr.mxu0 0.0
    %4192 = vmatpush1.xpose.msra.mxu0 0.0
    %4193 = vmatprep.subr.mxu0 0.0
    %4194 = vmatpush1.xpose.msra.mxu0 0.0
    %4195 = vmatprep.subr.mxu0 0.0
    %4196 = vmatpush1.xpose.msra.mxu0 0.0
    %4197 = vmatprep.subr.mxu0 0.0
    %4198 = vmatpush1.xpose.msra.mxu0 0.0
    %4199 = vmatprep.subr.mxu0 0.0
    %4200 = vmatpush1.xpose.msra.mxu0 0.0
    %4201 = vmatprep.subr.mxu0 0.0
    %4202 = vmatpush1.xpose.msra.mxu0 0.0
    %4203 = vmatprep.subr.mxu0 0.0
    %4204 = vmatpush1.xpose.msra.mxu0 0.0
    %4205 = vmatprep.subr.mxu0 0.0
    %4206 = vmatpush1.xpose.msra.mxu0 0.0
    %4207 = vmatprep.subr.mxu0 0.0
    %4208 = vmatpush1.xpose.msra.mxu0 0.0
    %4209 = vmatprep.subr.mxu0 0.0
    %4210 = vmatpush1.xpose.msra.mxu0 0.0
    %4211 = vmatprep.subr.mxu0 0.0
    %4212 = vmatpush1.xpose.msra.mxu0 0.0
    %4213 = vmatprep.subr.mxu0 0.0
    %4214 = vmatpush1.xpose.msra.mxu0 0.0
    %4215 = vmatprep.subr.mxu0 0.0
    %4216 = vmatpush1.xpose.msra.mxu0 0.0
    %4217 = vmatprep.subr.mxu0 0.0
    %4218 = vmatpush1.xpose.msra.mxu0 0.0
    %4219 = vmatprep.subr.mxu0 0.0
    %4220 = vmatpush1.xpose.msra.mxu0 0.0
    %4221 = vmatprep.subr.mxu0 0.0
    %4222 = vmatpush1.xpose.msra.mxu0 0.0
    %4223 = vmatprep.subr.mxu0 0.0
    %4224 = vmatpush1.xpose.msra.mxu0 0.0
    %4225 = vmatprep.subr.mxu0 0.0
    %4226 = vmatpush1.xpose.msra.mxu0 0.0
    %4227 = vmatprep.subr.mxu0 0.0
    %4228 = vmatpush1.xpose.msra.mxu0 0.0
    %4229 = vmatprep.subr.mxu0 0.0
    %4230 = vmatpush1.xpose.msra.mxu0 0.0
    %4231 = vmatprep.mubr.f32.mxu0 %v2983
    %4232 = vmatmul.mubr.f32.gmra.mrb[0].mxu0 %v2981
    %v4233 = vpop.f32.mrb[0].mxu0
    %v4234 = vadd.f32 0.0, %v4233
    %v4235 = vpop.f32.mrb[0].mxu0
    %4236 = vmatprep.mubr.f32.mxu0 %v2987
    %4237 = vmatmul.mubr.f32.gmra.mrb[0].mxu0 %v2985
    %v4238 = vpop.f32.mrb[0].mxu0
    %v4239 = vadd.f32 0.0, %v4238
    %v4240 = vpop.f32.mrb[0].mxu0
    %4241 = vmatprep.mubr.f32.mxu0 %v2991
    %4242 = vmatmul.mubr.f32.gmra.mrb[0].mxu0 %v2989
    %v4243 = vpop.f32.mrb[0].mxu0
    %v4244 = vadd.f32 0.0, %v4243
    %v4245 = vpop.f32.mrb[0].mxu0
    %4246 = vmatprep.mubr.f32.mxu0 %v2995
    %4247 = vmatmul.mubr.f32.gmra.mrb[0].mxu0 %v2993
    %v4248 = vpop.f32.mrb[0].mxu0
    %v4249 = vadd.f32 0.0, %v4248
    %v4250 = vpop.f32.mrb[0].mxu0
    %4251 = vmatprep.mubr.f32.mxu0 %v2999
    %4252 = vmatmul.mubr.f32.gmra.mrb[0].mxu0 %v2997
    %v4253 = vpop.f32.mrb[0].mxu0
    %v4254 = vadd.f32 0.0, %v4253
    %v4255 = vpop.f32.mrb[0].mxu0
    %4256 = vmatprep.mubr.f32.mxu0 %v3003
    %4257 = vmatmul.mubr.f32.gmra.mrb[0].mxu0 %v3001
    %v4258 = vpop.f32.mrb[0].mxu0
    %v4259 = vadd.f32 0.0, %v4258
    %v4260 = vpop.f32.mrb[0].mxu0
    %4261 = vmatprep.mubr.f32.mxu0 %v3007
    %4262 = vmatmul.mubr.f32.gmra.mrb[0].mxu0 %v3005
    %v4263 = vpop.f32.mrb[0].mxu0
    %v4264 = vadd.f32 0.0, %v4263
    %v4265 = vpop.f32.mrb[0].mxu0
    %4266 = vmatprep.mubr.f32.mxu0 %v3011
    %4267 = vmatmul.mubr.f32.gmra.mrb[0].mxu0 %v3009
    %v4268 = vpop.f32.mrb[0].mxu0
    %v4269 = vadd.f32 0.0, %v4268
    %v4270 = vpop.f32.mrb[0].mxu0
    %4271 = vmatprep.mubr.f32.mxu0 %v3015
    %4272 = vmatmul.mubr.f32.gmra.mrb[0].mxu0 %v3013
    %v4273 = vpop.f32.mrb[0].mxu0
    %v4274 = vadd.f32 0.0, %v4273
    %v4275 = vpop.f32.mrb[0].mxu0
    %4276 = vmatprep.mubr.f32.mxu0 %v3019
    %4277 = vmatmul.mubr.f32.gmra.mrb[0].mxu0 %v3017
    %v4278 = vpop.f32.mrb[0].mxu0
    %v4279 = vadd.f32 0.0, %v4278
    %v4280 = vpop.f32.mrb[0].mxu0
    %4281 = vmatprep.mubr.f32.mxu0 %v3023
    %4282 = vmatmul.mubr.f32.gmra.mrb[0].mxu0 %v3021
    %v4283 = vpop.f32.mrb[0].mxu0
    %v4284 = vadd.f32 0.0, %v4283
    %v4285 = vpop.f32.mrb[0].mxu0
    %4286 = vmatprep.mubr.f32.mxu0 %v3027
    %4287 = vmatmul.mubr.f32.gmra.mrb[0].mxu0 %v3025
    %v4288 = vpop.f32.mrb[0].mxu0
    %v4289 = vadd.f32 0.0, %v4288
    %v4290 = vpop.f32.mrb[0].mxu0
    %4291 = vmatprep.mubr.f32.mxu0 %v3031
    %4292 = vmatmul.mubr.f32.gmra.mrb[0].mxu0 %v3029
    %v4293 = vpop.f32.mrb[0].mxu0
    %v4294 = vadd.f32 0.0, %v4293
    %v4295 = vpop.f32.mrb[0].mxu0
    %4296 = vmatprep.mubr.f32.mxu0 %v3035
    %4297 = vmatmul.mubr.f32.gmra.mrb[0].mxu0 %v3033
    %v4298 = vpop.f32.mrb[0].mxu0
    %v4299 = vadd.f32 0.0, %v4298
    %v4300 = vpop.f32.mrb[0].mxu0
    %4301 = vmatprep.mubr.f32.mxu0 %v3039
    %4302 = vmatmul.mubr.f32.gmra.mrb[0].mxu0 %v3037
    %v4303 = vpop.f32.mrb[0].mxu0
    %v4304 = vadd.f32 0.0, %v4303
    %v4305 = vpop.f32.mrb[0].mxu0
    %4306 = vmatprep.mubr.f32.mxu0 %v3043
    %4307 = vmatmul.mubr.f32.gmra.mrb[0].mxu0 %v3041
    %v4308 = vpop.f32.mrb[0].mxu0
    %v4309 = vadd.f32 0.0, %v4308
    %v4310 = vpop.f32.mrb[0].mxu0
    %4311 = vmatprep.mubr.f32.mxu0 %v3047
    %4312 = vmatmul.mubr.f32.gmra.mrb[0].mxu0 %v3045
    %v4313 = vpop.f32.mrb[0].mxu0
    %v4314 = vadd.f32 0.0, %v4313
    %v4315 = vpop.f32.mrb[0].mxu0
    %4316 = vmatprep.mubr.f32.mxu0 %v3051
    %4317 = vmatmul.mubr.f32.gmra.mrb[0].mxu0 %v3049
    %v4318 = vpop.f32.mrb[0].mxu0
    %v4319 = vadd.f32 0.0, %v4318
    %v4320 = vpop.f32.mrb[0].mxu0
    %4321 = vmatprep.mubr.f32.mxu0 %v3055
    %4322 = vmatmul.mubr.f32.gmra.mrb[0].mxu0 %v3053
    %v4323 = vpop.f32.mrb[0].mxu0
    %v4324 = vadd.f32 0.0, %v4323
    %v4325 = vpop.f32.mrb[0].mxu0
    %4326 = vmatprep.mubr.f32.mxu0 %v3059
    %4327 = vmatmul.mubr.f32.gmra.mrb[0].mxu0 %v3057
    %v4328 = vpop.f32.mrb[0].mxu0
    %v4329 = vadd.f32 0.0, %v4328
    %v4330 = vpop.f32.mrb[0].mxu0
    %4331 = vmatprep.mubr.f32.mxu0 %v3063
    %4332 = vmatmul.mubr.f32.gmra.mrb[0].mxu0 %v3061
    %v4333 = vpop.f32.mrb[0].mxu0
    %v4334 = vadd.f32 0.0, %v4333
    %v4335 = vpop.f32.mrb[0].mxu0
    %4336 = vmatprep.mubr.f32.mxu0 %v3067
    %4337 = vmatmul.mubr.f32.gmra.mrb[0].mxu0 %v3065
    %v4338 = vpop.f32.mrb[0].mxu0
    %v4339 = vadd.f32 0.0, %v4338
    %v4340 = vpop.f32.mrb[0].mxu0
    %4341 = vmatprep.mubr.f32.mxu0 %v3071
    %4342 = vmatmul.mubr.f32.gmra.mrb[0].mxu0 %v3069
    %v4343 = vpop.f32.mrb[0].mxu0
    %v4344 = vadd.f32 0.0, %v4343
    %v4345 = vpop.f32.mrb[0].mxu0
    %4346 = vmatprep.mubr.f32.mxu0 %v3075
    %4347 = vmatmul.mubr.f32.gmra.mrb[0].mxu0 %v3073
    %v4348 = vpop.f32.mrb[0].mxu0
    %v4349 = vadd.f32 0.0, %v4348
    %v4350 = vpop.f32.mrb[0].mxu0
    %4351 = vmatprep.mubr.f32.mxu0 %v3079
    %4352 = vmatmul.mubr.f32.gmra.mrb[0].mxu0 %v3077
    %v4353 = vpop.f32.mrb[0].mxu0
    %v4354 = vadd.f32 0.0, %v4353
    %v4355 = vpop.f32.mrb[0].mxu0
    %4356 = vmatprep.mubr.f32.mxu0 %v3083
    %4357 = vmatmul.mubr.f32.gmra.mrb[0].mxu0 %v3081
    %v4358 = vpop.f32.mrb[0].mxu0
    %v4359 = vadd.f32 0.0, %v4358
    %v4360 = vpop.f32.mrb[0].mxu0
    %4361 = vmatprep.mubr.f32.mxu0 %v3087
    %4362 = vmatmul.mubr.f32.gmra.mrb[0].mxu0 %v3085
    %v4363 = vpop.f32.mrb[0].mxu0
    %v4364 = vadd.f32 0.0, %v4363
    %v4365 = vpop.f32.mrb[0].mxu0
    %4366 = vmatprep.mubr.f32.mxu0 %v3091
    %4367 = vmatmul.mubr.f32.gmra.mrb[0].mxu0 %v3089
    %v4368 = vpop.f32.mrb[0].mxu0
    %v4369 = vadd.f32 0.0, %v4368
    %v4370 = vpop.f32.mrb[0].mxu0
    %4371 = vmatprep.mubr.f32.mxu0 %v3095
    %4372 = vmatmul.mubr.f32.gmra.mrb[0].mxu0 %v3093
    %v4373 = vpop.f32.mrb[0].mxu0
    %v4374 = vadd.f32 0.0, %v4373
    %v4375 = vpop.f32.mrb[0].mxu0
    %4376 = vmatprep.mubr.f32.mxu0 %v3099
    %4377 = vmatmul.mubr.f32.gmra.mrb[0].mxu0 %v3097
    %v4378 = vpop.f32.mrb[0].mxu0
    %v4379 = vadd.f32 0.0, %v4378
    %v4380 = vpop.f32.mrb[0].mxu0
    %4381 = vmatprep.mubr.f32.mxu0 %v3103
    %4382 = vmatmul.mubr.f32.gmra.mrb[0].mxu0 %v3101
    %v4383 = vpop.f32.mrb[0].mxu0
    %v4384 = vadd.f32 0.0, %v4383
    %v4385 = vpop.f32.mrb[0].mxu0
    %4386 = vmatprep.mubr.f32.mxu0 %v3107
    %4387 = vmatmul.mubr.f32.gmra.mrb[0].mxu0 %v3105
    %v4388 = vpop.f32.mrb[0].mxu0
    %v4389 = vadd.f32 0.0, %v4388
    %v4390 = vpop.f32.mrb[0].mxu0
    %4391 = vdwg.mxu0
    %v4392 = vrcp.pop %v3110
    %v4393 = vrcp.pop %v3113
    %v4394 = vrcp.pop %v3116
    %v4395 = vrcp.pop %v3119
    %v4396 = vrcp.pop %v3122
    %v4397 = vrcp.pop %v3125
    %v4398 = vrcp.pop %v3128
    %v4399 = vrcp.pop %v3131
    %v4400 = vrcp.pop %v3134
    %v4401 = vrcp.pop %v3137
    %v4402 = vrcp.pop %v3140
    %v4403 = vrcp.pop %v3143
    %v4404 = vrcp.pop %v3146
    %v4405 = vrcp.pop %v3149
    %v4406 = vrcp.pop %v3152
    %v4407 = vrcp.pop %v3155
    %v4408 = vrcp.pop %v3158
    %v4409 = vrcp.pop %v3161
    %v4410 = vrcp.pop %v3164
    %v4411 = vrcp.pop %v3167
    %v4412 = vrcp.pop %v3170
    %v4413 = vrcp.pop %v3173
    %v4414 = vrcp.pop %v3176
    %v4415 = vrcp.pop %v3179
    %v4416 = vrcp.pop %v3182
    %v4417 = vrcp.pop %v3185
    %v4418 = vrcp.pop %v3188
    %v4419 = vrcp.pop %v3191
    %v4420 = vrcp.pop %v3194
    %v4421 = vrcp.pop %v3197
    %v4422 = vrcp.pop %v3200
    %v4423 = vrcp.pop %v3203
    %v4424 = vrcp.pop %v3206
    %v4425 = vrcp.pop %v3209
    %v4426 = vrcp.pop %v3212
    %v4427 = vrcp.pop %v3215
    %v4428 = vrcp.pop %v3218
    %v4429 = vrcp.pop %v3221
    %v4430 = vrcp.pop %v3224
    %v4431 = vrcp.pop %v3227
    %v4432 = vrcp.pop %v3230
    %v4433 = vrcp.pop %v3233
    %v4434 = vrcp.pop %v3236
    %v4435 = vrcp.pop %v3239
    %v4436 = vrcp.pop %v3242
    %v4437 = vrcp.pop %v3245
    %v4438 = vrcp.pop %v3248
    %v4439 = vrcp.pop %v3251
    %v4440 = vrcp.pop %v3254
    %v4441 = vrcp.pop %v3257
    %v4442 = vrcp.pop %v3260
    %v4443 = vrcp.pop %v3263
    %v4444 = vrcp.pop %v3266
    %v4445 = vrcp.pop %v3269
    %v4446 = vrcp.pop %v3272
    %v4447 = vrcp.pop %v3275
    %v4448 = vrcp.pop %v3278
    %v4449 = vrcp.pop %v3281
    %v4450 = vrcp.pop %v3284
    %v4451 = vrcp.pop %v3287
    %v4452 = vrcp.pop %v3290
    %v4453 = vrcp.pop %v3293
    %v4454 = vrcp.pop %v3296
    %v4455 = vrcp.pop %v3299
    %v4456 = vrcp.pop %v3302
    %v4457 = vrcp.pop %v3305
    %v4458 = vrcp.pop %v3308
    %v4459 = vrcp.pop %v3311
    %v4460 = vrcp.pop %v3314
    %v4461 = vrcp.pop %v3317
    %v4462 = vrcp.pop %v3320
    %v4463 = vrcp.pop %v3323
    %v4464 = vrcp.pop %v3326
    %v4465 = vrcp.pop %v3329
    %v4466 = vrcp.pop %v3332
    %v4467 = vrcp.pop %v3335
    %v4468 = vrcp.pop %v3338
    %v4469 = vrcp.pop %v3341
    %v4470 = vrcp.pop %v3344
    %v4471 = vrcp.pop %v3347
    %v4472 = vrcp.pop %v3350
    %v4473 = vrcp.pop %v3353
    %v4474 = vrcp.pop %v3356
    %v4475 = vrcp.pop %v3359
    %v4476 = vrcp.pop %v3362
    %v4477 = vrcp.pop %v3365
    %v4478 = vrcp.pop %v3368
    %v4479 = vrcp.pop %v3371
    %v4480 = vrcp.pop %v3374
    %v4481 = vrcp.pop %v3377
    %v4482 = vrcp.pop %v3380
    %v4483 = vrcp.pop %v3383
    %v4484 = vrcp.pop %v3386
    %v4485 = vrcp.pop %v3389
    %v4486 = vrcp.pop %v3392
    %v4487 = vrcp.pop %v3395
    %v4488 = vrcp.pop %v3398
    %v4489 = vrcp.pop %v3401
    %v4490 = vrcp.pop %v3404
    %v4491 = vrcp.pop %v3407
    %v4492 = vrcp.pop %v3410
    %v4493 = vrcp.pop %v3413
    %v4494 = vrcp.pop %v3416
    %v4495 = vrcp.pop %v3419
    %v4496 = vrcp.pop %v3422
    %v4497 = vrcp.pop %v3425
    %v4498 = vrcp.pop %v3428
    %v4499 = vrcp.pop %v3431
    %v4500 = vrcp.pop %v3434
    %v4501 = vrcp.pop %v3437
    %v4502 = vrcp.pop %v3440
    %v4503 = vrcp.pop %v3443
    %v4504 = vrcp.pop %v3446
    %v4505 = vrcp.pop %v3449
    %v4506 = vrcp.pop %v3452
    %v4507 = vrcp.pop %v3455
    %v4508 = vrcp.pop %v3458
    %v4509 = vrcp.pop %v3461
    %v4510 = vrcp.pop %v3464
    %v4511 = vrcp.pop %v3467
    %v4512 = vrcp.pop %v3470
    %v4513 = vrcp.pop %v3473
    %v4514 = vrcp.pop %v3476
    %v4515 = vrcp.pop %v3479
    %v4516 = vrcp.pop %v3482
    %v4517 = vrcp.pop %v3485
    %v4518 = vrcp.pop %v3488
    %v4519 = vrcp.pop %v3491
    %v4520 = vmul.f32 %v3559, %v4392
    %v4521 = vmul.f32 %v3564, %v4393
    %v4522 = vmul.f32 %v3569, %v4394
    %v4523 = vmul.f32 %v3574, %v4395
    %v4524 = vmul.f32 %v3579, %v4396
    %v4525 = vmul.f32 %v3584, %v4397
    %v4526 = vmul.f32 %v3589, %v4398
    %v4527 = vmul.f32 %v3594, %v4399
    %v4528 = vmul.f32 %v3599, %v4400
    %v4529 = vmul.f32 %v3604, %v4401
    %v4530 = vmul.f32 %v3609, %v4402
    %v4531 = vmul.f32 %v3614, %v4403
    %v4532 = vmul.f32 %v3619, %v4404
    %v4533 = vmul.f32 %v3624, %v4405
    %v4534 = vmul.f32 %v3629, %v4406
    %v4535 = vmul.f32 %v3634, %v4407
    %v4536 = vmul.f32 %v3639, %v4408
    %v4537 = vmul.f32 %v3644, %v4409
    %v4538 = vmul.f32 %v3649, %v4410
    %v4539 = vmul.f32 %v3654, %v4411
    %v4540 = vmul.f32 %v3659, %v4412
    %v4541 = vmul.f32 %v3664, %v4413
    %v4542 = vmul.f32 %v3669, %v4414
    %v4543 = vmul.f32 %v3674, %v4415
    %v4544 = vmul.f32 %v3679, %v4416
    %v4545 = vmul.f32 %v3684, %v4417
    %v4546 = vmul.f32 %v3689, %v4418
    %v4547 = vmul.f32 %v3694, %v4419
    %v4548 = vmul.f32 %v3699, %v4420
    %v4549 = vmul.f32 %v3704, %v4421
    %v4550 = vmul.f32 %v3709, %v4422
    %v4551 = vmul.f32 %v3714, %v4423
    %v4552 = vmul.f32 %v3784, %v4424
    %v4553 = vmul.f32 %v3789, %v4425
    %v4554 = vmul.f32 %v3794, %v4426
    %v4555 = vmul.f32 %v3799, %v4427
    %v4556 = vmul.f32 %v3804, %v4428
    %v4557 = vmul.f32 %v3809, %v4429
    %v4558 = vmul.f32 %v3814, %v4430
    %v4559 = vmul.f32 %v3819, %v4431
    %v4560 = vmul.f32 %v3824, %v4432
    %v4561 = vmul.f32 %v3829, %v4433
    %v4562 = vmul.f32 %v3834, %v4434
    %v4563 = vmul.f32 %v3839, %v4435
    %v4564 = vmul.f32 %v3844, %v4436
    %v4565 = vmul.f32 %v3849, %v4437
    %v4566 = vmul.f32 %v3854, %v4438
    %v4567 = vmul.f32 %v3859, %v4439
    %v4568 = vmul.f32 %v3864, %v4440
    %v4569 = vmul.f32 %v3869, %v4441
    %v4570 = vmul.f32 %v3874, %v4442
    %v4571 = vmul.f32 %v3879, %v4443
    %v4572 = vmul.f32 %v3884, %v4444
    %v4573 = vmul.f32 %v3889, %v4445
    %v4574 = vmul.f32 %v3894, %v4446
    %v4575 = vmul.f32 %v3899, %v4447
    %v4576 = vmul.f32 %v3904, %v4448
    %v4577 = vmul.f32 %v3909, %v4449
    %v4578 = vmul.f32 %v3914, %v4450
    %v4579 = vmul.f32 %v3919, %v4451
    %v4580 = vmul.f32 %v3924, %v4452
    %v4581 = vmul.f32 %v3929, %v4453
    %v4582 = vmul.f32 %v3934, %v4454
    %v4583 = vmul.f32 %v3939, %v4455
    %v4584 = vmul.f32 %v4009, %v4456
    %v4585 = vmul.f32 %v4014, %v4457
    %v4586 = vmul.f32 %v4019, %v4458
    %v4587 = vmul.f32 %v4024, %v4459
    %v4588 = vmul.f32 %v4029, %v4460
    %v4589 = vmul.f32 %v4034, %v4461
    %v4590 = vmul.f32 %v4039, %v4462
    %v4591 = vmul.f32 %v4044, %v4463
    %v4592 = vmul.f32 %v4049, %v4464
    %v4593 = vmul.f32 %v4054, %v4465
    %v4594 = vmul.f32 %v4059, %v4466
    %v4595 = vmul.f32 %v4064, %v4467
    %v4596 = vmul.f32 %v4069, %v4468
    %v4597 = vmul.f32 %v4074, %v4469
    %v4598 = vmul.f32 %v4079, %v4470
    %v4599 = vmul.f32 %v4084, %v4471
    %v4600 = vmul.f32 %v4089, %v4472
    %v4601 = vmul.f32 %v4094, %v4473
    %v4602 = vmul.f32 %v4099, %v4474
    %v4603 = vmul.f32 %v4104, %v4475
    %v4604 = vmul.f32 %v4109, %v4476
    %v4605 = vmul.f32 %v4114, %v4477
    %v4606 = vmul.f32 %v4119, %v4478
    %v4607 = vmul.f32 %v4124, %v4479
    %v4608 = vmul.f32 %v4129, %v4480
    %v4609 = vmul.f32 %v4134, %v4481
    %v4610 = vmul.f32 %v4139, %v4482
    %v4611 = vmul.f32 %v4144, %v4483
    %v4612 = vmul.f32 %v4149, %v4484
    %v4613 = vmul.f32 %v4154, %v4485
    %v4614 = vmul.f32 %v4159, %v4486
    %v4615 = vmul.f32 %v4164, %v4487
    %v4616 = vmul.f32 %v4234, %v4488
    %v4617 = vmul.f32 %v4239, %v4489
    %v4618 = vmul.f32 %v4244, %v4490
    %v4619 = vmul.f32 %v4249, %v4491
    %v4620 = vmul.f32 %v4254, %v4492
    %v4621 = vmul.f32 %v4259, %v4493
    %v4622 = vmul.f32 %v4264, %v4494
    %v4623 = vmul.f32 %v4269, %v4495
    %v4624 = vmul.f32 %v4274, %v4496
    %v4625 = vmul.f32 %v4279, %v4497
    %v4626 = vmul.f32 %v4284, %v4498
    %v4627 = vmul.f32 %v4289, %v4499
    %v4628 = vmul.f32 %v4294, %v4500
    %v4629 = vmul.f32 %v4299, %v4501
    %v4630 = vmul.f32 %v4304, %v4502
    %v4631 = vmul.f32 %v4309, %v4503
    %v4632 = vmul.f32 %v4314, %v4504
    %v4633 = vmul.f32 %v4319, %v4505
    %v4634 = vmul.f32 %v4324, %v4506
    %v4635 = vmul.f32 %v4329, %v4507
    %v4636 = vmul.f32 %v4334, %v4508
    %v4637 = vmul.f32 %v4339, %v4509
    %v4638 = vmul.f32 %v4344, %v4510
    %v4639 = vmul.f32 %v4349, %v4511
    %v4640 = vmul.f32 %v4354, %v4512
    %v4641 = vmul.f32 %v4359, %v4513
    %v4642 = vmul.f32 %v4364, %v4514
    %v4643 = vmul.f32 %v4369, %v4515
    %v4644 = vmul.f32 %v4374, %v4516
    %v4645 = vmul.f32 %v4379, %v4517
    %v4646 = vmul.f32 %v4384, %v4518
    %v4647 = vmul.f32 %v4389, %v4519
    %4648 = vxpose.xlu0.b32.start [1/16] %v4520, 128
    %4649 = vxpose.xlu0.b32.cont [2/16] %v4521, 128
    %4650 = vxpose.xlu0.b32.cont [3/16] %v4522, 128
    %4651 = vxpose.xlu0.b32.cont [4/16] %v4523, 128
    %4652 = vxpose.xlu0.b32.cont [5/16] %v4524, 128
    %4653 = vxpose.xlu0.b32.cont [6/16] %v4525, 128
    %4654 = vxpose.xlu0.b32.cont [7/16] %v4526, 128
    %4655 = vxpose.xlu0.b32.cont [8/16] %v4527, 128
    %4656 = vxpose.xlu0.b32.cont [9/16] %v4528, 128
    %4657 = vxpose.xlu0.b32.cont [10/16] %v4529, 128
    %4658 = vxpose.xlu0.b32.cont [11/16] %v4530, 128
    %4659 = vxpose.xlu0.b32.cont [12/16] %v4531, 128
    %4660 = vxpose.xlu0.b32.cont [13/16] %v4532, 128
    %4661 = vxpose.xlu0.b32.cont [14/16] %v4533, 128
    %4662 = vxpose.xlu0.b32.cont [15/16] %v4534, 128
    %4663 = vxpose.xlu0.b32.end [16/16] %v4535, 128
    %v4664 = vpop.trf.xlu0
    %v4665 = vpop.trf.xlu0
    %v4666 = vpop.trf.xlu0
    %v4667 = vpop.trf.xlu0
    %v4668 = vpop.trf.xlu0
    %v4669 = vpop.trf.xlu0
    %v4670 = vpop.trf.xlu0
    %v4671 = vpop.trf.xlu0
    %v4672 = vpop.trf.xlu0
    %v4673 = vpop.trf.xlu0
    %v4674 = vpop.trf.xlu0
    %v4675 = vpop.trf.xlu0
    %v4676 = vpop.trf.xlu0
    %v4677 = vpop.trf.xlu0
    %v4678 = vpop.trf.xlu0
    %v4679 = vpop.trf.xlu0
    %4680 = vxpose.xlu0.b32.start [1/16] %v4536, 128
    %4681 = vxpose.xlu0.b32.cont [2/16] %v4537, 128
    %4682 = vxpose.xlu0.b32.cont [3/16] %v4538, 128
    %4683 = vxpose.xlu0.b32.cont [4/16] %v4539, 128
    %4684 = vxpose.xlu0.b32.cont [5/16] %v4540, 128
    %4685 = vxpose.xlu0.b32.cont [6/16] %v4541, 128
    %4686 = vxpose.xlu0.b32.cont [7/16] %v4542, 128
    %4687 = vxpose.xlu0.b32.cont [8/16] %v4543, 128
    %4688 = vxpose.xlu0.b32.cont [9/16] %v4544, 128
    %4689 = vxpose.xlu0.b32.cont [10/16] %v4545, 128
    %4690 = vxpose.xlu0.b32.cont [11/16] %v4546, 128
    %4691 = vxpose.xlu0.b32.cont [12/16] %v4547, 128
    %4692 = vxpose.xlu0.b32.cont [13/16] %v4548, 128
    %4693 = vxpose.xlu0.b32.cont [14/16] %v4549, 128
    %4694 = vxpose.xlu0.b32.cont [15/16] %v4550, 128
    %4695 = vxpose.xlu0.b32.end [16/16] %v4551, 128
    %v4696 = vpop.trf.xlu0
    %v4697 = vpop.trf.xlu0
    %v4698 = vpop.trf.xlu0
    %v4699 = vpop.trf.xlu0
    %v4700 = vpop.trf.xlu0
    %v4701 = vpop.trf.xlu0
    %v4702 = vpop.trf.xlu0
    %v4703 = vpop.trf.xlu0
    %v4704 = vpop.trf.xlu0
    %v4705 = vpop.trf.xlu0
    %v4706 = vpop.trf.xlu0
    %v4707 = vpop.trf.xlu0
    %v4708 = vpop.trf.xlu0
    %v4709 = vpop.trf.xlu0
    %v4710 = vpop.trf.xlu0
    %v4711 = vpop.trf.xlu0
    %4712 = vxpose.xlu0.b32.start [1/16] %v4552, 128
    %4713 = vxpose.xlu0.b32.cont [2/16] %v4553, 128
    %4714 = vxpose.xlu0.b32.cont [3/16] %v4554, 128
    %4715 = vxpose.xlu0.b32.cont [4/16] %v4555, 128
    %4716 = vxpose.xlu0.b32.cont [5/16] %v4556, 128
    %4717 = vxpose.xlu0.b32.cont [6/16] %v4557, 128
    %4718 = vxpose.xlu0.b32.cont [7/16] %v4558, 128
    %4719 = vxpose.xlu0.b32.cont [8/16] %v4559, 128
    %4720 = vxpose.xlu0.b32.cont [9/16] %v4560, 128
    %4721 = vxpose.xlu0.b32.cont [10/16] %v4561, 128
    %4722 = vxpose.xlu0.b32.cont [11/16] %v4562, 128
    %4723 = vxpose.xlu0.b32.cont [12/16] %v4563, 128
    %4724 = vxpose.xlu0.b32.cont [13/16] %v4564, 128
    %4725 = vxpose.xlu0.b32.cont [14/16] %v4565, 128
    %4726 = vxpose.xlu0.b32.cont [15/16] %v4566, 128
    %4727 = vxpose.xlu0.b32.end [16/16] %v4567, 128
    %v4728 = vpop.trf.xlu0
    %v4729 = vpop.trf.xlu0
    %v4730 = vpop.trf.xlu0
    %v4731 = vpop.trf.xlu0
    %v4732 = vpop.trf.xlu0
    %v4733 = vpop.trf.xlu0
    %v4734 = vpop.trf.xlu0
    %v4735 = vpop.trf.xlu0
    %v4736 = vpop.trf.xlu0
    %v4737 = vpop.trf.xlu0
    %v4738 = vpop.trf.xlu0
    %v4739 = vpop.trf.xlu0
    %v4740 = vpop.trf.xlu0
    %v4741 = vpop.trf.xlu0
    %v4742 = vpop.trf.xlu0
    %v4743 = vpop.trf.xlu0
    %4744 = vxpose.xlu0.b32.start [1/16] %v4568, 128
    %4745 = vxpose.xlu0.b32.cont [2/16] %v4569, 128
    %4746 = vxpose.xlu0.b32.cont [3/16] %v4570, 128
    %4747 = vxpose.xlu0.b32.cont [4/16] %v4571, 128
    %4748 = vxpose.xlu0.b32.cont [5/16] %v4572, 128
    %4749 = vxpose.xlu0.b32.cont [6/16] %v4573, 128
    %4750 = vxpose.xlu0.b32.cont [7/16] %v4574, 128
    %4751 = vxpose.xlu0.b32.cont [8/16] %v4575, 128
    %4752 = vxpose.xlu0.b32.cont [9/16] %v4576, 128
    %4753 = vxpose.xlu0.b32.cont [10/16] %v4577, 128
    %4754 = vxpose.xlu0.b32.cont [11/16] %v4578, 128
    %4755 = vxpose.xlu0.b32.cont [12/16] %v4579, 128
    %4756 = vxpose.xlu0.b32.cont [13/16] %v4580, 128
    %4757 = vxpose.xlu0.b32.cont [14/16] %v4581, 128
    %4758 = vxpose.xlu0.b32.cont [15/16] %v4582, 128
    %4759 = vxpose.xlu0.b32.end [16/16] %v4583, 128
    %v4760 = vpop.trf.xlu0
    %v4761 = vpop.trf.xlu0
    %v4762 = vpop.trf.xlu0
    %v4763 = vpop.trf.xlu0
    %v4764 = vpop.trf.xlu0
    %v4765 = vpop.trf.xlu0
    %v4766 = vpop.trf.xlu0
    %v4767 = vpop.trf.xlu0
    %v4768 = vpop.trf.xlu0
    %v4769 = vpop.trf.xlu0
    %v4770 = vpop.trf.xlu0
    %v4771 = vpop.trf.xlu0
    %v4772 = vpop.trf.xlu0
    %v4773 = vpop.trf.xlu0
    %v4774 = vpop.trf.xlu0
    %v4775 = vpop.trf.xlu0
    %4776 = vxpose.xlu0.b32.start [1/16] %v4584, 128
    %4777 = vxpose.xlu0.b32.cont [2/16] %v4585, 128
    %4778 = vxpose.xlu0.b32.cont [3/16] %v4586, 128
    %4779 = vxpose.xlu0.b32.cont [4/16] %v4587, 128
    %4780 = vxpose.xlu0.b32.cont [5/16] %v4588, 128
    %4781 = vxpose.xlu0.b32.cont [6/16] %v4589, 128
    %4782 = vxpose.xlu0.b32.cont [7/16] %v4590, 128
    %4783 = vxpose.xlu0.b32.cont [8/16] %v4591, 128
    %4784 = vxpose.xlu0.b32.cont [9/16] %v4592, 128
    %4785 = vxpose.xlu0.b32.cont [10/16] %v4593, 128
    %4786 = vxpose.xlu0.b32.cont [11/16] %v4594, 128
    %4787 = vxpose.xlu0.b32.cont [12/16] %v4595, 128
    %4788 = vxpose.xlu0.b32.cont [13/16] %v4596, 128
    %4789 = vxpose.xlu0.b32.cont [14/16] %v4597, 128
    %4790 = vxpose.xlu0.b32.cont [15/16] %v4598, 128
    %4791 = vxpose.xlu0.b32.end [16/16] %v4599, 128
    %v4792 = vpop.trf.xlu0
    %v4793 = vpop.trf.xlu0
    %v4794 = vpop.trf.xlu0
    %v4795 = vpop.trf.xlu0
    %v4796 = vpop.trf.xlu0
    %v4797 = vpop.trf.xlu0
    %v4798 = vpop.trf.xlu0
    %v4799 = vpop.trf.xlu0
    %v4800 = vpop.trf.xlu0
    %v4801 = vpop.trf.xlu0
    %v4802 = vpop.trf.xlu0
    %v4803 = vpop.trf.xlu0
    %v4804 = vpop.trf.xlu0
    %v4805 = vpop.trf.xlu0
    %v4806 = vpop.trf.xlu0
    %v4807 = vpop.trf.xlu0
    %4808 = vxpose.xlu0.b32.start [1/16] %v4600, 128
    %4809 = vxpose.xlu0.b32.cont [2/16] %v4601, 128
    %4810 = vxpose.xlu0.b32.cont [3/16] %v4602, 128
    %4811 = vxpose.xlu0.b32.cont [4/16] %v4603, 128
    %4812 = vxpose.xlu0.b32.cont [5/16] %v4604, 128
    %4813 = vxpose.xlu0.b32.cont [6/16] %v4605, 128
    %4814 = vxpose.xlu0.b32.cont [7/16] %v4606, 128
    %4815 = vxpose.xlu0.b32.cont [8/16] %v4607, 128
    %4816 = vxpose.xlu0.b32.cont [9/16] %v4608, 128
    %4817 = vxpose.xlu0.b32.cont [10/16] %v4609, 128
    %4818 = vxpose.xlu0.b32.cont [11/16] %v4610, 128
    %4819 = vxpose.xlu0.b32.cont [12/16] %v4611, 128
    %4820 = vxpose.xlu0.b32.cont [13/16] %v4612, 128
    %4821 = vxpose.xlu0.b32.cont [14/16] %v4613, 128
    %4822 = vxpose.xlu0.b32.cont [15/16] %v4614, 128
    %4823 = vxpose.xlu0.b32.end [16/16] %v4615, 128
    %v4824 = vpop.trf.xlu0
    %v4825 = vpop.trf.xlu0
    %v4826 = vpop.trf.xlu0
    %v4827 = vpop.trf.xlu0
    %v4828 = vpop.trf.xlu0
    %v4829 = vpop.trf.xlu0
    %v4830 = vpop.trf.xlu0
    %v4831 = vpop.trf.xlu0
    %v4832 = vpop.trf.xlu0
    %v4833 = vpop.trf.xlu0
    %v4834 = vpop.trf.xlu0
    %v4835 = vpop.trf.xlu0
    %v4836 = vpop.trf.xlu0
    %v4837 = vpop.trf.xlu0
    %v4838 = vpop.trf.xlu0
    %v4839 = vpop.trf.xlu0
    %4840 = vxpose.xlu0.b32.start [1/16] %v4616, 128
    %4841 = vxpose.xlu0.b32.cont [2/16] %v4617, 128
    %4842 = vxpose.xlu0.b32.cont [3/16] %v4618, 128
    %4843 = vxpose.xlu0.b32.cont [4/16] %v4619, 128
    %4844 = vxpose.xlu0.b32.cont [5/16] %v4620, 128
    %4845 = vxpose.xlu0.b32.cont [6/16] %v4621, 128
    %4846 = vxpose.xlu0.b32.cont [7/16] %v4622, 128
    %4847 = vxpose.xlu0.b32.cont [8/16] %v4623, 128
    %4848 = vxpose.xlu0.b32.cont [9/16] %v4624, 128
    %4849 = vxpose.xlu0.b32.cont [10/16] %v4625, 128
    %4850 = vxpose.xlu0.b32.cont [11/16] %v4626, 128
    %4851 = vxpose.xlu0.b32.cont [12/16] %v4627, 128
    %4852 = vxpose.xlu0.b32.cont [13/16] %v4628, 128
    %4853 = vxpose.xlu0.b32.cont [14/16] %v4629, 128
    %4854 = vxpose.xlu0.b32.cont [15/16] %v4630, 128
    %4855 = vxpose.xlu0.b32.end [16/16] %v4631, 128
    %v4856 = vpop.trf.xlu0
    %v4857 = vpop.trf.xlu0
    %v4858 = vpop.trf.xlu0
    %v4859 = vpop.trf.xlu0
    %v4860 = vpop.trf.xlu0
    %v4861 = vpop.trf.xlu0
    %v4862 = vpop.trf.xlu0
    %v4863 = vpop.trf.xlu0
    %v4864 = vpop.trf.xlu0
    %v4865 = vpop.trf.xlu0
    %v4866 = vpop.trf.xlu0
    %v4867 = vpop.trf.xlu0
    %v4868 = vpop.trf.xlu0
    %v4869 = vpop.trf.xlu0
    %v4870 = vpop.trf.xlu0
    %v4871 = vpop.trf.xlu0
    %4872 = vxpose.xlu0.b32.start [1/16] %v4632, 128
    %4873 = vxpose.xlu0.b32.cont [2/16] %v4633, 128
    %4874 = vxpose.xlu0.b32.cont [3/16] %v4634, 128
    %4875 = vxpose.xlu0.b32.cont [4/16] %v4635, 128
    %4876 = vxpose.xlu0.b32.cont [5/16] %v4636, 128
    %4877 = vxpose.xlu0.b32.cont [6/16] %v4637, 128
    %4878 = vxpose.xlu0.b32.cont [7/16] %v4638, 128
    %4879 = vxpose.xlu0.b32.cont [8/16] %v4639, 128
    %4880 = vxpose.xlu0.b32.cont [9/16] %v4640, 128
    %4881 = vxpose.xlu0.b32.cont [10/16] %v4641, 128
    %4882 = vxpose.xlu0.b32.cont [11/16] %v4642, 128
    %4883 = vxpose.xlu0.b32.cont [12/16] %v4643, 128
    %4884 = vxpose.xlu0.b32.cont [13/16] %v4644, 128
    %4885 = vxpose.xlu0.b32.cont [14/16] %v4645, 128
    %4886 = vxpose.xlu0.b32.cont [15/16] %v4646, 128
    %4887 = vxpose.xlu0.b32.end [16/16] %v4647, 128
    %v4888 = vpop.trf.xlu0
    %v4889 = vpop.trf.xlu0
    %v4890 = vpop.trf.xlu0
    %v4891 = vpop.trf.xlu0
    %v4892 = vpop.trf.xlu0
    %v4893 = vpop.trf.xlu0
    %v4894 = vpop.trf.xlu0
    %v4895 = vpop.trf.xlu0
    %v4896 = vpop.trf.xlu0
    %v4897 = vpop.trf.xlu0
    %v4898 = vpop.trf.xlu0
    %v4899 = vpop.trf.xlu0
    %v4900 = vpop.trf.xlu0
    %v4901 = vpop.trf.xlu0
    %v4902 = vpop.trf.xlu0
    %v4903 = vpop.trf.xlu0
    %v4904 = vld [vmem:[%s3] sm:$0xff]
    %v4905 = vld [vmem:[%s3 + $0x8] sm:$0xff]
    %v4906 = vld [vmem:[%s3 + $0x10] sm:$0xff]
    %v4907 = vld [vmem:[%s3 + $0x18] sm:$0xff]
    %v4908 = vld [vmem:[%s4] sm:$0xff]
    %v4909 = vld [vmem:[%s4 + $0x8] sm:$0xff]
    %v4910 = vld [vmem:[%s4 + $0x10] sm:$0xff]
    %v4911 = vld [vmem:[%s4 + $0x18] sm:$0xff]
    %4913 = vset.pattern.permute.xlu0 0
    %4914 = vperm.xlu0 %4913, %v4908
    %v4915 = vpop.permute.xlu0 %4914
    %4918 = vset.pattern.permute.xlu0 0
    %4919 = vperm.xlu0 %4918, %v4909
    %v4920 = vpop.permute.xlu0 %4919
    %4923 = vset.pattern.permute.xlu0 0
    %4924 = vperm.xlu0 %4923, %v4910
    %v4925 = vpop.permute.xlu0 %4924
    %4928 = vset.pattern.permute.xlu0 0
    %4929 = vperm.xlu0 %4928, %v4911
    %v4930 = vpop.permute.xlu0 %4929
    %v4933 = vsel %vm113, %v4904, 0
    %v4936 = vsel %vm113, %v4905, 0
    %v4939 = vsel %vm113, %v4906, 0
    %v4942 = vsel %vm113, %v4907, 0
    %4944 = vmatprep.subr.mxu0 %v4696
    %4945 = vmatpush1.msra.mxu0 %v4664
    %4946 = vmatprep.subr.mxu0 %v4760
    %4947 = vmatpush1.msra.mxu0 %v4728
    %4948 = vmatprep.subr.mxu0 %v4824
    %4949 = vmatpush1.msra.mxu0 %v4792
    %4950 = vmatprep.subr.mxu0 %v4888
    %4951 = vmatpush1.msra.mxu0 %v4856
    %4952 = vmatprep.subr.mxu0 0.0
    %4953 = vmatpush1.msra.mxu0 0.0
    %4954 = vmatprep.subr.mxu0 0.0
    %4955 = vmatpush1.msra.mxu0 0.0
    %4956 = vmatprep.subr.mxu0 0.0
    %4957 = vmatpush1.msra.mxu0 0.0
    %4958 = vmatprep.subr.mxu0 0.0
    %4959 = vmatpush1.msra.mxu0 0.0
    %4960 = vmatprep.subr.mxu0 0.0
    %4961 = vmatpush1.msra.mxu0 0.0
    %4962 = vmatprep.subr.mxu0 0.0
    %4963 = vmatpush1.msra.mxu0 0.0
    %4964 = vmatprep.subr.mxu0 0.0
    %4965 = vmatpush1.msra.mxu0 0.0
    %4966 = vmatprep.subr.mxu0 0.0
    %4967 = vmatpush1.msra.mxu0 0.0
    %4968 = vmatprep.subr.mxu0 0.0
    %4969 = vmatpush1.msra.mxu0 0.0
    %4970 = vmatprep.subr.mxu0 0.0
    %4971 = vmatpush1.msra.mxu0 0.0
    %4972 = vmatprep.subr.mxu0 0.0
    %4973 = vmatpush1.msra.mxu0 0.0
    %4974 = vmatprep.subr.mxu0 0.0
    %4975 = vmatpush1.msra.mxu0 0.0
    %4976 = vmatprep.subr.mxu0 0.0
    %4977 = vmatpush1.msra.mxu0 0.0
    %4978 = vmatprep.subr.mxu0 0.0
    %4979 = vmatpush1.msra.mxu0 0.0
    %4980 = vmatprep.subr.mxu0 0.0
    %4981 = vmatpush1.msra.mxu0 0.0
    %4982 = vmatprep.subr.mxu0 0.0
    %4983 = vmatpush1.msra.mxu0 0.0
    %4984 = vmatprep.subr.mxu0 0.0
    %4985 = vmatpush1.msra.mxu0 0.0
    %4986 = vmatprep.subr.mxu0 0.0
    %4987 = vmatpush1.msra.mxu0 0.0
    %4988 = vmatprep.subr.mxu0 0.0
    %4989 = vmatpush1.msra.mxu0 0.0
    %4990 = vmatprep.subr.mxu0 0.0
    %4991 = vmatpush1.msra.mxu0 0.0
    %4992 = vmatprep.subr.mxu0 0.0
    %4993 = vmatpush1.msra.mxu0 0.0
    %4994 = vmatprep.subr.mxu0 0.0
    %4995 = vmatpush1.msra.mxu0 0.0
    %4996 = vmatprep.subr.mxu0 0.0
    %4997 = vmatpush1.msra.mxu0 0.0
    %4998 = vmatprep.subr.mxu0 0.0
    %4999 = vmatpush1.msra.mxu0 0.0
    %5000 = vmatprep.subr.mxu0 0.0
    %5001 = vmatpush1.msra.mxu0 0.0
    %5002 = vmatprep.subr.mxu0 0.0
    %5003 = vmatpush1.msra.mxu0 0.0
    %5004 = vmatprep.subr.mxu0 0.0
    %5005 = vmatpush1.msra.mxu0 0.0
    %5006 = vmatprep.subr.mxu0 0.0
    %5007 = vmatpush1.msra.mxu0 0.0
    %5008 = vmatprep.mubr.f32.mxu0 0.0
    %5009 = vmatmul.mubr.f32.gmra.mrb[0].mxu0 %v4933
    %v5010 = vpop.f32.mrb[0].mxu0
    %v5011 = vadd.f32 %v4915, %v5010
    %v5012 = vpop.f32.mrb[0].mxu0
    %v5013 = vadd.f32 %v4915, %v5012
    %5014 = vmatprep.mubr.f32.mxu0 0.0
    %5015 = vmatmul.mubr.f32.gmra.mrb[0].mxu0 %v4936
    %v5016 = vpop.f32.mrb[0].mxu0
    %v5017 = vadd.f32 %v4920, %v5016
    %v5018 = vpop.f32.mrb[0].mxu0
    %v5019 = vadd.f32 %v4920, %v5018
    %5020 = vmatprep.mubr.f32.mxu0 0.0
    %5021 = vmatmul.mubr.f32.gmra.mrb[0].mxu0 %v4939
    %v5022 = vpop.f32.mrb[0].mxu0
    %v5023 = vadd.f32 %v4925, %v5022
    %v5024 = vpop.f32.mrb[0].mxu0
    %v5025 = vadd.f32 %v4925, %v5024
    %5026 = vmatprep.mubr.f32.mxu0 0.0
    %5027 = vmatmul.mubr.f32.gmra.mrb[0].mxu0 %v4942
    %v5028 = vpop.f32.mrb[0].mxu0
    %v5029 = vadd.f32 %v4930, %v5028
    %v5030 = vpop.f32.mrb[0].mxu0
    %v5031 = vadd.f32 %v4930, %v5030
    %5032 = vdwg.mxu0
    %5033 = vst [vmem:[#allocation2] sm:$0xff] %v5011
    %5034 = vst [vmem:[#allocation2 + $0x8] sm:$0xff] %v5013
    %5035 = vst [vmem:[#allocation2 + $0x10] sm:$0xff] %v5017
    %5036 = vst [vmem:[#allocation2 + $0x18] sm:$0xff] %v5019
    %5037 = vst [vmem:[#allocation2 + $0x20] sm:$0xff] %v5023
    %5038 = vst [vmem:[#allocation2 + $0x28] sm:$0xff] %v5025
    %5039 = vst [vmem:[#allocation2 + $0x30] sm:$0xff] %v5029
    %5040 = vst [vmem:[#allocation2 + $0x38] sm:$0xff] %v5031
    %s5041 = scalar_lea.vmem %s0, 64
    %v5042 = vld [vmem:[%s5041] sm:$0xff]
    %v5043 = vld [vmem:[%s5041 + $0x8] sm:$0xff]
    %v5044 = vld [vmem:[%s5041 + $0x10] sm:$0xff]
    %v5045 = vld [vmem:[%s5041 + $0x18] sm:$0xff]
    %v5046 = vld [vmem:[%s5041 + $0x20] sm:$0xff]
    %v5047 = vld [vmem:[%s5041 + $0x28] sm:$0xff]
    %v5048 = vld [vmem:[%s5041 + $0x30] sm:$0xff]
    %v5049 = vld [vmem:[%s5041 + $0x38] sm:$0xff]
    %v5050 = vld [vmem:[%s1] sm:$0xff]
    %v5051 = vld [vmem:[%s1 + $0x8] sm:$0xff]
    %v5052 = vld [vmem:[%s1 + $0x10] sm:$0xff]
    %v5053 = vld [vmem:[%s1 + $0x18] sm:$0xff]
    %v5054 = vld [vmem:[%s1 + $0x20] sm:$0xff]
    %v5055 = vld [vmem:[%s1 + $0x28] sm:$0xff]
    %v5056 = vld [vmem:[%s1 + $0x30] sm:$0xff]
    %v5057 = vld [vmem:[%s1 + $0x38] sm:$0xff]
    %v5058 = vld [vmem:[%s1 + $0x40] sm:$0xff]
    %v5059 = vld [vmem:[%s1 + $0x48] sm:$0xff]
    %v5060 = vld [vmem:[%s1 + $0x50] sm:$0xff]
    %v5061 = vld [vmem:[%s1 + $0x58] sm:$0xff]
    %v5062 = vld [vmem:[%s2] sm:$0xff]
    %v5063 = vld [vmem:[%s2 + $0x8] sm:$0xff]
    %v5064 = vld [vmem:[%s2 + $0x10] sm:$0xff]
    %v5065 = vld [vmem:[%s2 + $0x18] sm:$0xff]
    %v5066 = vld [vmem:[%s2 + $0x20] sm:$0xff]
    %v5067 = vld [vmem:[%s2 + $0x28] sm:$0xff]
    %v5068 = vld [vmem:[%s2 + $0x30] sm:$0xff]
    %v5069 = vld [vmem:[%s2 + $0x38] sm:$0xff]
    %v5070 = vld [vmem:[%s2 + $0x40] sm:$0xff]
    %v5071 = vld [vmem:[%s2 + $0x48] sm:$0xff]
    %v5072 = vld [vmem:[%s2 + $0x50] sm:$0xff]
    %v5073 = vld [vmem:[%s2 + $0x58] sm:$0xff]
    %5075 = vset.pattern.permute.xlu0 0
    %5076 = vperm.xlu0 %5075, %v5062
    %v5077 = vpop.permute.xlu0 %5076
    %5080 = vset.pattern.permute.xlu0 0
    %5081 = vperm.xlu0 %5080, %v5063
    %v5082 = vpop.permute.xlu0 %5081
    %5085 = vset.pattern.permute.xlu0 0
    %5086 = vperm.xlu0 %5085, %v5064
    %v5087 = vpop.permute.xlu0 %5086
    %5090 = vset.pattern.permute.xlu0 0
    %5091 = vperm.xlu0 %5090, %v5065
    %v5092 = vpop.permute.xlu0 %5091
    %5095 = vset.pattern.permute.xlu0 0
    %5096 = vperm.xlu0 %5095, %v5066
    %v5097 = vpop.permute.xlu0 %5096
    %5100 = vset.pattern.permute.xlu0 0
    %5101 = vperm.xlu0 %5100, %v5067
    %v5102 = vpop.permute.xlu0 %5101
    %5105 = vset.pattern.permute.xlu0 0
    %5106 = vperm.xlu0 %5105, %v5068
    %v5107 = vpop.permute.xlu0 %5106
    %5110 = vset.pattern.permute.xlu0 0
    %5111 = vperm.xlu0 %5110, %v5069
    %v5112 = vpop.permute.xlu0 %5111
    %5115 = vset.pattern.permute.xlu0 0
    %5116 = vperm.xlu0 %5115, %v5070
    %v5117 = vpop.permute.xlu0 %5116
    %5120 = vset.pattern.permute.xlu0 0
    %5121 = vperm.xlu0 %5120, %v5071
    %v5122 = vpop.permute.xlu0 %5121
    %5125 = vset.pattern.permute.xlu0 0
    %5126 = vperm.xlu0 %5125, %v5072
    %v5127 = vpop.permute.xlu0 %5126
    %5130 = vset.pattern.permute.xlu0 0
    %5131 = vperm.xlu0 %5130, %v5073
    %v5132 = vpop.permute.xlu0 %5131
    %v5135 = vsel %vm113, %v5050, 0
    %v5138 = vsel %vm113, %v5051, 0
    %v5141 = vsel %vm113, %v5052, 0
    %v5144 = vsel %vm113, %v5053, 0
    %v5147 = vsel %vm113, %v5054, 0
    %v5150 = vsel %vm113, %v5055, 0
    %v5153 = vsel %vm113, %v5056, 0
    %v5156 = vsel %vm113, %v5057, 0
    %v5159 = vsel %vm113, %v5058, 0
    %v5162 = vsel %vm113, %v5059, 0
    %v5165 = vsel %vm113, %v5060, 0
    %v5168 = vsel %vm113, %v5061, 0
    %5170 = vmatprep.subr.mxu0 %v5043
    %5171 = vmatpush1.msra.mxu0 %v5042
    %5172 = vmatprep.subr.mxu0 %v5045
    %5173 = vmatpush1.msra.mxu0 %v5044
    %5174 = vmatprep.subr.mxu0 %v5047
    %5175 = vmatpush1.msra.mxu0 %v5046
    %5176 = vmatprep.subr.mxu0 %v5049
    %5177 = vmatpush1.msra.mxu0 %v5048
    %5178 = vmatprep.subr.mxu0 0.0
    %5179 = vmatpush1.msra.mxu0 0.0
    %5180 = vmatprep.subr.mxu0 0.0
    %5181 = vmatpush1.msra.mxu0 0.0
    %5182 = vmatprep.subr.mxu0 0.0
    %5183 = vmatpush1.msra.mxu0 0.0
    %5184 = vmatprep.subr.mxu0 0.0
    %5185 = vmatpush1.msra.mxu0 0.0
    %5186 = vmatprep.subr.mxu0 0.0
    %5187 = vmatpush1.msra.mxu0 0.0
    %5188 = vmatprep.subr.mxu0 0.0
    %5189 = vmatpush1.msra.mxu0 0.0
    %5190 = vmatprep.subr.mxu0 0.0
    %5191 = vmatpush1.msra.mxu0 0.0
    %5192 = vmatprep.subr.mxu0 0.0
    %5193 = vmatpush1.msra.mxu0 0.0
    %5194 = vmatprep.subr.mxu0 0.0
    %5195 = vmatpush1.msra.mxu0 0.0
    %5196 = vmatprep.subr.mxu0 0.0
    %5197 = vmatpush1.msra.mxu0 0.0
    %5198 = vmatprep.subr.mxu0 0.0
    %5199 = vmatpush1.msra.mxu0 0.0
    %5200 = vmatprep.subr.mxu0 0.0
    %5201 = vmatpush1.msra.mxu0 0.0
    %5202 = vmatprep.subr.mxu0 0.0
    %5203 = vmatpush1.msra.mxu0 0.0
    %5204 = vmatprep.subr.mxu0 0.0
    %5205 = vmatpush1.msra.mxu0 0.0
    %5206 = vmatprep.subr.mxu0 0.0
    %5207 = vmatpush1.msra.mxu0 0.0
    %5208 = vmatprep.subr.mxu0 0.0
    %5209 = vmatpush1.msra.mxu0 0.0
    %5210 = vmatprep.subr.mxu0 0.0
    %5211 = vmatpush1.msra.mxu0 0.0
    %5212 = vmatprep.subr.mxu0 0.0
    %5213 = vmatpush1.msra.mxu0 0.0
    %5214 = vmatprep.subr.mxu0 0.0
    %5215 = vmatpush1.msra.mxu0 0.0
    %5216 = vmatprep.subr.mxu0 0.0
    %5217 = vmatpush1.msra.mxu0 0.0
    %5218 = vmatprep.subr.mxu0 0.0
    %5219 = vmatpush1.msra.mxu0 0.0
    %5220 = vmatprep.subr.mxu0 0.0
    %5221 = vmatpush1.msra.mxu0 0.0
    %5222 = vmatprep.subr.mxu0 0.0
    %5223 = vmatpush1.msra.mxu0 0.0
    %5224 = vmatprep.subr.mxu0 0.0
    %5225 = vmatpush1.msra.mxu0 0.0
    %5226 = vmatprep.subr.mxu0 0.0
    %5227 = vmatpush1.msra.mxu0 0.0
    %5228 = vmatprep.subr.mxu0 0.0
    %5229 = vmatpush1.msra.mxu0 0.0
    %5230 = vmatprep.subr.mxu0 0.0
    %5231 = vmatpush1.msra.mxu0 0.0
    %5232 = vmatprep.subr.mxu0 0.0
    %5233 = vmatpush1.msra.mxu0 0.0
    %5234 = vmatprep.mubr.f32.mxu0 0.0
    %5235 = vmatmul.mubr.f32.gmra.mrb[0].mxu0 %v5135
    %v5236 = vpop.f32.mrb[0].mxu0
    %v5237 = vadd.f32 %v5077, %v5236
    %v5238 = vpop.f32.mrb[0].mxu0
    %v5239 = vadd.f32 %v5077, %v5238
    %5240 = vmatprep.mubr.f32.mxu0 0.0
    %5241 = vmatmul.mubr.f32.gmra.mrb[0].mxu0 %v5138
    %v5242 = vpop.f32.mrb[0].mxu0
    %v5243 = vadd.f32 %v5082, %v5242
    %v5244 = vpop.f32.mrb[0].mxu0
    %v5245 = vadd.f32 %v5082, %v5244
    %5246 = vmatprep.mubr.f32.mxu0 0.0
    %5247 = vmatmul.mubr.f32.gmra.mrb[0].mxu0 %v5141
    %v5248 = vpop.f32.mrb[0].mxu0
    %v5249 = vadd.f32 %v5087, %v5248
    %v5250 = vpop.f32.mrb[0].mxu0
    %v5251 = vadd.f32 %v5087, %v5250
    %5252 = vmatprep.mubr.f32.mxu0 0.0
    %5253 = vmatmul.mubr.f32.gmra.mrb[0].mxu0 %v5144
    %v5254 = vpop.f32.mrb[0].mxu0
    %v5255 = vadd.f32 %v5092, %v5254
    %v5256 = vpop.f32.mrb[0].mxu0
    %v5257 = vadd.f32 %v5092, %v5256
    %5258 = vmatprep.mubr.f32.mxu0 0.0
    %5259 = vmatmul.mubr.f32.gmra.mrb[0].mxu0 %v5147
    %v5260 = vpop.f32.mrb[0].mxu0
    %v5261 = vadd.f32 %v5097, %v5260
    %v5262 = vpop.f32.mrb[0].mxu0
    %v5263 = vadd.f32 %v5097, %v5262
    %5264 = vmatprep.mubr.f32.mxu0 0.0
    %5265 = vmatmul.mubr.f32.gmra.mrb[0].mxu0 %v5150
    %v5266 = vpop.f32.mrb[0].mxu0
    %v5267 = vadd.f32 %v5102, %v5266
    %v5268 = vpop.f32.mrb[0].mxu0
    %v5269 = vadd.f32 %v5102, %v5268
    %5270 = vmatprep.mubr.f32.mxu0 0.0
    %5271 = vmatmul.mubr.f32.gmra.mrb[0].mxu0 %v5153
    %v5272 = vpop.f32.mrb[0].mxu0
    %v5273 = vadd.f32 %v5107, %v5272
    %v5274 = vpop.f32.mrb[0].mxu0
    %v5275 = vadd.f32 %v5107, %v5274
    %5276 = vmatprep.mubr.f32.mxu0 0.0
    %5277 = vmatmul.mubr.f32.gmra.mrb[0].mxu0 %v5156
    %v5278 = vpop.f32.mrb[0].mxu0
    %v5279 = vadd.f32 %v5112, %v5278
    %v5280 = vpop.f32.mrb[0].mxu0
    %v5281 = vadd.f32 %v5112, %v5280
    %5282 = vmatprep.mubr.f32.mxu0 0.0
    %5283 = vmatmul.mubr.f32.gmra.mrb[0].mxu0 %v5159
    %v5284 = vpop.f32.mrb[0].mxu0
    %v5285 = vadd.f32 %v5117, %v5284
    %v5286 = vpop.f32.mrb[0].mxu0
    %v5287 = vadd.f32 %v5117, %v5286
    %5288 = vmatprep.mubr.f32.mxu0 0.0
    %5289 = vmatmul.mubr.f32.gmra.mrb[0].mxu0 %v5162
    %v5290 = vpop.f32.mrb[0].mxu0
    %v5291 = vadd.f32 %v5122, %v5290
    %v5292 = vpop.f32.mrb[0].mxu0
    %v5293 = vadd.f32 %v5122, %v5292
    %5294 = vmatprep.mubr.f32.mxu0 0.0
    %5295 = vmatmul.mubr.f32.gmra.mrb[0].mxu0 %v5165
    %v5296 = vpop.f32.mrb[0].mxu0
    %v5297 = vadd.f32 %v5127, %v5296
    %v5298 = vpop.f32.mrb[0].mxu0
    %v5299 = vadd.f32 %v5127, %v5298
    %5300 = vmatprep.mubr.f32.mxu0 0.0
    %5301 = vmatmul.mubr.f32.gmra.mrb[0].mxu0 %v5168
    %v5302 = vpop.f32.mrb[0].mxu0
    %v5303 = vadd.f32 %v5132, %v5302
    %v5304 = vpop.f32.mrb[0].mxu0
    %v5305 = vadd.f32 %v5132, %v5304
    %5306 = vdwg.mxu0
    %5307 = vxpose.xlu0.b32.start [1/16] %v5237, 128
    %5308 = vxpose.xlu0.b32.cont [2/16] 0.0, 128
    %5309 = vxpose.xlu0.b32.cont [3/16] 0.0, 128
    %5310 = vxpose.xlu0.b32.cont [4/16] 0.0, 128
    %5311 = vxpose.xlu0.b32.cont [5/16] 0.0, 128
    %5312 = vxpose.xlu0.b32.cont [6/16] 0.0, 128
    %5313 = vxpose.xlu0.b32.cont [7/16] 0.0, 128
    %5314 = vxpose.xlu0.b32.cont [8/16] 0.0, 128
    %5315 = vxpose.xlu0.b32.cont [9/16] 0.0, 128
    %5316 = vxpose.xlu0.b32.cont [10/16] 0.0, 128
    %5317 = vxpose.xlu0.b32.cont [11/16] 0.0, 128
    %5318 = vxpose.xlu0.b32.cont [12/16] 0.0, 128
    %5319 = vxpose.xlu0.b32.cont [13/16] 0.0, 128
    %5320 = vxpose.xlu0.b32.cont [14/16] 0.0, 128
    %5321 = vxpose.xlu0.b32.cont [15/16] 0.0, 128
    %5322 = vxpose.xlu0.b32.end [16/16] 0.0, 128
    %v5323 = vpop.trf.xlu0
    %v5324 = vpop.trf.xlu0
    %v5325 = vpop.trf.xlu0
    %v5326 = vpop.trf.xlu0
    %v5327 = vpop.trf.xlu0
    %v5328 = vpop.trf.xlu0
    %v5329 = vpop.trf.xlu0
    %v5330 = vpop.trf.xlu0
    %v5331 = vpop.trf.xlu0
    %v5332 = vpop.trf.xlu0
    %v5333 = vpop.trf.xlu0
    %v5334 = vpop.trf.xlu0
    %v5335 = vpop.trf.xlu0
    %v5336 = vpop.trf.xlu0
    %v5337 = vpop.trf.xlu0
    %v5338 = vpop.trf.xlu0
    %5339 = vxpose.xlu0.b32.start [1/16] %v5239, 128
    %5340 = vxpose.xlu0.b32.cont [2/16] 0.0, 128
    %5341 = vxpose.xlu0.b32.cont [3/16] 0.0, 128
    %5342 = vxpose.xlu0.b32.cont [4/16] 0.0, 128
    %5343 = vxpose.xlu0.b32.cont [5/16] 0.0, 128
    %5344 = vxpose.xlu0.b32.cont [6/16] 0.0, 128
    %5345 = vxpose.xlu0.b32.cont [7/16] 0.0, 128
    %5346 = vxpose.xlu0.b32.cont [8/16] 0.0, 128
    %5347 = vxpose.xlu0.b32.cont [9/16] 0.0, 128
    %5348 = vxpose.xlu0.b32.cont [10/16] 0.0, 128
    %5349 = vxpose.xlu0.b32.cont [11/16] 0.0, 128
    %5350 = vxpose.xlu0.b32.cont [12/16] 0.0, 128
    %5351 = vxpose.xlu0.b32.cont [13/16] 0.0, 128
    %5352 = vxpose.xlu0.b32.cont [14/16] 0.0, 128
    %5353 = vxpose.xlu0.b32.cont [15/16] 0.0, 128
    %5354 = vxpose.xlu0.b32.end [16/16] 0.0, 128
    %v5355 = vpop.trf.xlu0
    %v5356 = vpop.trf.xlu0
    %v5357 = vpop.trf.xlu0
    %v5358 = vpop.trf.xlu0
    %v5359 = vpop.trf.xlu0
    %v5360 = vpop.trf.xlu0
    %v5361 = vpop.trf.xlu0
    %v5362 = vpop.trf.xlu0
    %v5363 = vpop.trf.xlu0
    %v5364 = vpop.trf.xlu0
    %v5365 = vpop.trf.xlu0
    %v5366 = vpop.trf.xlu0
    %v5367 = vpop.trf.xlu0
    %v5368 = vpop.trf.xlu0
    %v5369 = vpop.trf.xlu0
    %v5370 = vpop.trf.xlu0
    %5371 = vxpose.xlu0.b32.start [1/16] %v5243, 128
    %5372 = vxpose.xlu0.b32.cont [2/16] 0.0, 128
    %5373 = vxpose.xlu0.b32.cont [3/16] 0.0, 128
    %5374 = vxpose.xlu0.b32.cont [4/16] 0.0, 128
    %5375 = vxpose.xlu0.b32.cont [5/16] 0.0, 128
    %5376 = vxpose.xlu0.b32.cont [6/16] 0.0, 128
    %5377 = vxpose.xlu0.b32.cont [7/16] 0.0, 128
    %5378 = vxpose.xlu0.b32.cont [8/16] 0.0, 128
    %5379 = vxpose.xlu0.b32.cont [9/16] 0.0, 128
    %5380 = vxpose.xlu0.b32.cont [10/16] 0.0, 128
    %5381 = vxpose.xlu0.b32.cont [11/16] 0.0, 128
    %5382 = vxpose.xlu0.b32.cont [12/16] 0.0, 128
    %5383 = vxpose.xlu0.b32.cont [13/16] 0.0, 128
    %5384 = vxpose.xlu0.b32.cont [14/16] 0.0, 128
    %5385 = vxpose.xlu0.b32.cont [15/16] 0.0, 128
    %5386 = vxpose.xlu0.b32.end [16/16] 0.0, 128
    %v5387 = vpop.trf.xlu0
    %v5388 = vpop.trf.xlu0
    %v5389 = vpop.trf.xlu0
    %v5390 = vpop.trf.xlu0
    %v5391 = vpop.trf.xlu0
    %v5392 = vpop.trf.xlu0
    %v5393 = vpop.trf.xlu0
    %v5394 = vpop.trf.xlu0
    %v5395 = vpop.trf.xlu0
    %v5396 = vpop.trf.xlu0
    %v5397 = vpop.trf.xlu0
    %v5398 = vpop.trf.xlu0
    %v5399 = vpop.trf.xlu0
    %v5400 = vpop.trf.xlu0
    %v5401 = vpop.trf.xlu0
    %v5402 = vpop.trf.xlu0
    %5403 = vxpose.xlu0.b32.start [1/16] %v5245, 128
    %5404 = vxpose.xlu0.b32.cont [2/16] 0.0, 128
    %5405 = vxpose.xlu0.b32.cont [3/16] 0.0, 128
    %5406 = vxpose.xlu0.b32.cont [4/16] 0.0, 128
    %5407 = vxpose.xlu0.b32.cont [5/16] 0.0, 128
    %5408 = vxpose.xlu0.b32.cont [6/16] 0.0, 128
    %5409 = vxpose.xlu0.b32.cont [7/16] 0.0, 128
    %5410 = vxpose.xlu0.b32.cont [8/16] 0.0, 128
    %5411 = vxpose.xlu0.b32.cont [9/16] 0.0, 128
    %5412 = vxpose.xlu0.b32.cont [10/16] 0.0, 128
    %5413 = vxpose.xlu0.b32.cont [11/16] 0.0, 128
    %5414 = vxpose.xlu0.b32.cont [12/16] 0.0, 128
    %5415 = vxpose.xlu0.b32.cont [13/16] 0.0, 128
    %5416 = vxpose.xlu0.b32.cont [14/16] 0.0, 128
    %5417 = vxpose.xlu0.b32.cont [15/16] 0.0, 128
    %5418 = vxpose.xlu0.b32.end [16/16] 0.0, 128
    %v5419 = vpop.trf.xlu0
    %v5420 = vpop.trf.xlu0
    %v5421 = vpop.trf.xlu0
    %v5422 = vpop.trf.xlu0
    %v5423 = vpop.trf.xlu0
    %v5424 = vpop.trf.xlu0
    %v5425 = vpop.trf.xlu0
    %v5426 = vpop.trf.xlu0
    %v5427 = vpop.trf.xlu0
    %v5428 = vpop.trf.xlu0
    %v5429 = vpop.trf.xlu0
    %v5430 = vpop.trf.xlu0
    %v5431 = vpop.trf.xlu0
    %v5432 = vpop.trf.xlu0
    %v5433 = vpop.trf.xlu0
    %v5434 = vpop.trf.xlu0
    %5435 = vxpose.xlu0.b32.start [1/16] %v5249, 128
    %5436 = vxpose.xlu0.b32.cont [2/16] 0.0, 128
    %5437 = vxpose.xlu0.b32.cont [3/16] 0.0, 128
    %5438 = vxpose.xlu0.b32.cont [4/16] 0.0, 128
    %5439 = vxpose.xlu0.b32.cont [5/16] 0.0, 128
    %5440 = vxpose.xlu0.b32.cont [6/16] 0.0, 128
    %5441 = vxpose.xlu0.b32.cont [7/16] 0.0, 128
    %5442 = vxpose.xlu0.b32.cont [8/16] 0.0, 128
    %5443 = vxpose.xlu0.b32.cont [9/16] 0.0, 128
    %5444 = vxpose.xlu0.b32.cont [10/16] 0.0, 128
    %5445 = vxpose.xlu0.b32.cont [11/16] 0.0, 128
    %5446 = vxpose.xlu0.b32.cont [12/16] 0.0, 128
    %5447 = vxpose.xlu0.b32.cont [13/16] 0.0, 128
    %5448 = vxpose.xlu0.b32.cont [14/16] 0.0, 128
    %5449 = vxpose.xlu0.b32.cont [15/16] 0.0, 128
    %5450 = vxpose.xlu0.b32.end [16/16] 0.0, 128
    %v5451 = vpop.trf.xlu0
    %v5452 = vpop.trf.xlu0
    %v5453 = vpop.trf.xlu0
    %v5454 = vpop.trf.xlu0
    %v5455 = vpop.trf.xlu0
    %v5456 = vpop.trf.xlu0
    %v5457 = vpop.trf.xlu0
    %v5458 = vpop.trf.xlu0
    %v5459 = vpop.trf.xlu0
    %v5460 = vpop.trf.xlu0
    %v5461 = vpop.trf.xlu0
    %v5462 = vpop.trf.xlu0
    %v5463 = vpop.trf.xlu0
    %v5464 = vpop.trf.xlu0
    %v5465 = vpop.trf.xlu0
    %v5466 = vpop.trf.xlu0
    %5467 = vxpose.xlu0.b32.start [1/16] %v5251, 128
    %5468 = vxpose.xlu0.b32.cont [2/16] 0.0, 128
    %5469 = vxpose.xlu0.b32.cont [3/16] 0.0, 128
    %5470 = vxpose.xlu0.b32.cont [4/16] 0.0, 128
    %5471 = vxpose.xlu0.b32.cont [5/16] 0.0, 128
    %5472 = vxpose.xlu0.b32.cont [6/16] 0.0, 128
    %5473 = vxpose.xlu0.b32.cont [7/16] 0.0, 128
    %5474 = vxpose.xlu0.b32.cont [8/16] 0.0, 128
    %5475 = vxpose.xlu0.b32.cont [9/16] 0.0, 128
    %5476 = vxpose.xlu0.b32.cont [10/16] 0.0, 128
    %5477 = vxpose.xlu0.b32.cont [11/16] 0.0, 128
    %5478 = vxpose.xlu0.b32.cont [12/16] 0.0, 128
    %5479 = vxpose.xlu0.b32.cont [13/16] 0.0, 128
    %5480 = vxpose.xlu0.b32.cont [14/16] 0.0, 128
    %5481 = vxpose.xlu0.b32.cont [15/16] 0.0, 128
    %5482 = vxpose.xlu0.b32.end [16/16] 0.0, 128
    %v5483 = vpop.trf.xlu0
    %v5484 = vpop.trf.xlu0
    %v5485 = vpop.trf.xlu0
    %v5486 = vpop.trf.xlu0
    %v5487 = vpop.trf.xlu0
    %v5488 = vpop.trf.xlu0
    %v5489 = vpop.trf.xlu0
    %v5490 = vpop.trf.xlu0
    %v5491 = vpop.trf.xlu0
    %v5492 = vpop.trf.xlu0
    %v5493 = vpop.trf.xlu0
    %v5494 = vpop.trf.xlu0
    %v5495 = vpop.trf.xlu0
    %v5496 = vpop.trf.xlu0
    %v5497 = vpop.trf.xlu0
    %v5498 = vpop.trf.xlu0
    %5499 = vxpose.xlu0.b32.start [1/16] %v5255, 128
    %5500 = vxpose.xlu0.b32.cont [2/16] 0.0, 128
    %5501 = vxpose.xlu0.b32.cont [3/16] 0.0, 128
    %5502 = vxpose.xlu0.b32.cont [4/16] 0.0, 128
    %5503 = vxpose.xlu0.b32.cont [5/16] 0.0, 128
    %5504 = vxpose.xlu0.b32.cont [6/16] 0.0, 128
    %5505 = vxpose.xlu0.b32.cont [7/16] 0.0, 128
    %5506 = vxpose.xlu0.b32.cont [8/16] 0.0, 128
    %5507 = vxpose.xlu0.b32.cont [9/16] 0.0, 128
    %5508 = vxpose.xlu0.b32.cont [10/16] 0.0, 128
    %5509 = vxpose.xlu0.b32.cont [11/16] 0.0, 128
    %5510 = vxpose.xlu0.b32.cont [12/16] 0.0, 128
    %5511 = vxpose.xlu0.b32.cont [13/16] 0.0, 128
    %5512 = vxpose.xlu0.b32.cont [14/16] 0.0, 128
    %5513 = vxpose.xlu0.b32.cont [15/16] 0.0, 128
    %5514 = vxpose.xlu0.b32.end [16/16] 0.0, 128
    %v5515 = vpop.trf.xlu0
    %v5516 = vpop.trf.xlu0
    %v5517 = vpop.trf.xlu0
    %v5518 = vpop.trf.xlu0
    %v5519 = vpop.trf.xlu0
    %v5520 = vpop.trf.xlu0
    %v5521 = vpop.trf.xlu0
    %v5522 = vpop.trf.xlu0
    %v5523 = vpop.trf.xlu0
    %v5524 = vpop.trf.xlu0
    %v5525 = vpop.trf.xlu0
    %v5526 = vpop.trf.xlu0
    %v5527 = vpop.trf.xlu0
    %v5528 = vpop.trf.xlu0
    %v5529 = vpop.trf.xlu0
    %v5530 = vpop.trf.xlu0
    %5531 = vxpose.xlu0.b32.start [1/16] %v5257, 128
    %5532 = vxpose.xlu0.b32.cont [2/16] 0.0, 128
    %5533 = vxpose.xlu0.b32.cont [3/16] 0.0, 128
    %5534 = vxpose.xlu0.b32.cont [4/16] 0.0, 128
    %5535 = vxpose.xlu0.b32.cont [5/16] 0.0, 128
    %5536 = vxpose.xlu0.b32.cont [6/16] 0.0, 128
    %5537 = vxpose.xlu0.b32.cont [7/16] 0.0, 128
    %5538 = vxpose.xlu0.b32.cont [8/16] 0.0, 128
    %5539 = vxpose.xlu0.b32.cont [9/16] 0.0, 128
    %5540 = vxpose.xlu0.b32.cont [10/16] 0.0, 128
    %5541 = vxpose.xlu0.b32.cont [11/16] 0.0, 128
    %5542 = vxpose.xlu0.b32.cont [12/16] 0.0, 128
    %5543 = vxpose.xlu0.b32.cont [13/16] 0.0, 128
    %5544 = vxpose.xlu0.b32.cont [14/16] 0.0, 128
    %5545 = vxpose.xlu0.b32.cont [15/16] 0.0, 128
    %5546 = vxpose.xlu0.b32.end [16/16] 0.0, 128
    %v5547 = vpop.trf.xlu0
    %v5548 = vpop.trf.xlu0
    %v5549 = vpop.trf.xlu0
    %v5550 = vpop.trf.xlu0
    %v5551 = vpop.trf.xlu0
    %v5552 = vpop.trf.xlu0
    %v5553 = vpop.trf.xlu0
    %v5554 = vpop.trf.xlu0
    %v5555 = vpop.trf.xlu0
    %v5556 = vpop.trf.xlu0
    %v5557 = vpop.trf.xlu0
    %v5558 = vpop.trf.xlu0
    %v5559 = vpop.trf.xlu0
    %v5560 = vpop.trf.xlu0
    %v5561 = vpop.trf.xlu0
    %v5562 = vpop.trf.xlu0
    %v5564 = vsel %vm543, %v5323, 0
    %v5567 = vsel %vm543, %v5324, 0
    %v5570 = vsel %vm543, %v5325, 0
    %v5573 = vsel %vm543, %v5326, 0
    %v5576 = vsel %vm543, %v5327, 0
    %v5579 = vsel %vm543, %v5328, 0
    %v5582 = vsel %vm543, %v5329, 0
    %v5585 = vsel %vm543, %v5330, 0
    %v5588 = vsel %vm543, %v5331, 0
    %v5591 = vsel %vm543, %v5332, 0
    %v5594 = vsel %vm543, %v5333, 0
    %v5597 = vsel %vm543, %v5334, 0
    %v5600 = vsel %vm543, %v5335, 0
    %v5603 = vsel %vm543, %v5336, 0
    %v5606 = vsel %vm543, %v5337, 0
    %v5609 = vsel %vm543, %v5338, 0
    %v5612 = vsel %vm543, %v5355, 0
    %v5615 = vsel %vm543, %v5356, 0
    %v5618 = vsel %vm543, %v5357, 0
    %v5621 = vsel %vm543, %v5358, 0
    %v5624 = vsel %vm543, %v5359, 0
    %v5627 = vsel %vm543, %v5360, 0
    %v5630 = vsel %vm543, %v5361, 0
    %v5633 = vsel %vm543, %v5362, 0
    %v5636 = vsel %vm543, %v5363, 0
    %v5639 = vsel %vm543, %v5364, 0
    %v5642 = vsel %vm543, %v5365, 0
    %v5645 = vsel %vm543, %v5366, 0
    %v5648 = vsel %vm543, %v5367, 0
    %v5651 = vsel %vm543, %v5368, 0
    %v5654 = vsel %vm543, %v5369, 0
    %v5657 = vsel %vm543, %v5370, 0
    %5659 = vmatprep.subr.mxu0 %v5263
    %5660 = vmatpush1.msra.mxu0 %v5261
    %5661 = vmatprep.subr.mxu0 0.0
    %5662 = vmatpush1.msra.mxu0 0.0
    %5663 = vmatprep.subr.mxu0 0.0
    %5664 = vmatpush1.msra.mxu0 0.0
    %5665 = vmatprep.subr.mxu0 0.0
    %5666 = vmatpush1.msra.mxu0 0.0
    %5667 = vmatprep.subr.mxu0 0.0
    %5668 = vmatpush1.msra.mxu0 0.0
    %5669 = vmatprep.subr.mxu0 0.0
    %5670 = vmatpush1.msra.mxu0 0.0
    %5671 = vmatprep.subr.mxu0 0.0
    %5672 = vmatpush1.msra.mxu0 0.0
    %5673 = vmatprep.subr.mxu0 0.0
    %5674 = vmatpush1.msra.mxu0 0.0
    %5675 = vmatprep.subr.mxu0 0.0
    %5676 = vmatpush1.msra.mxu0 0.0
    %5677 = vmatprep.subr.mxu0 0.0
    %5678 = vmatpush1.msra.mxu0 0.0
    %5679 = vmatprep.subr.mxu0 0.0
    %5680 = vmatpush1.msra.mxu0 0.0
    %5681 = vmatprep.subr.mxu0 0.0
    %5682 = vmatpush1.msra.mxu0 0.0
    %5683 = vmatprep.subr.mxu0 0.0
    %5684 = vmatpush1.msra.mxu0 0.0
    %5685 = vmatprep.subr.mxu0 0.0
    %5686 = vmatpush1.msra.mxu0 0.0
    %5687 = vmatprep.subr.mxu0 0.0
    %5688 = vmatpush1.msra.mxu0 0.0
    %5689 = vmatprep.subr.mxu0 0.0
    %5690 = vmatpush1.msra.mxu0 0.0
    %5691 = vmatprep.subr.mxu0 0.0
    %5692 = vmatpush1.msra.mxu0 0.0
    %5693 = vmatprep.subr.mxu0 0.0
    %5694 = vmatpush1.msra.mxu0 0.0
    %5695 = vmatprep.subr.mxu0 0.0
    %5696 = vmatpush1.msra.mxu0 0.0
    %5697 = vmatprep.subr.mxu0 0.0
    %5698 = vmatpush1.msra.mxu0 0.0
    %5699 = vmatprep.subr.mxu0 0.0
    %5700 = vmatpush1.msra.mxu0 0.0
    %5701 = vmatprep.subr.mxu0 0.0
    %5702 = vmatpush1.msra.mxu0 0.0
    %5703 = vmatprep.subr.mxu0 0.0
    %5704 = vmatpush1.msra.mxu0 0.0
    %5705 = vmatprep.subr.mxu0 0.0
    %5706 = vmatpush1.msra.mxu0 0.0
    %5707 = vmatprep.subr.mxu0 0.0
    %5708 = vmatpush1.msra.mxu0 0.0
    %5709 = vmatprep.subr.mxu0 0.0
    %5710 = vmatpush1.msra.mxu0 0.0
    %5711 = vmatprep.subr.mxu0 0.0
    %5712 = vmatpush1.msra.mxu0 0.0
    %5713 = vmatprep.subr.mxu0 0.0
    %5714 = vmatpush1.msra.mxu0 0.0
    %5715 = vmatprep.subr.mxu0 0.0
    %5716 = vmatpush1.msra.mxu0 0.0
    %5717 = vmatprep.subr.mxu0 0.0
    %5718 = vmatpush1.msra.mxu0 0.0
    %5719 = vmatprep.subr.mxu0 0.0
    %5720 = vmatpush1.msra.mxu0 0.0
    %5721 = vmatprep.subr.mxu0 0.0
    %5722 = vmatpush1.msra.mxu0 0.0
    %5723 = vmatprep.mubr.f32.mxu0 0.0
    %5724 = vmatmul.mubr.f32.gmra.mrb[0].mxu0 %v5564
    %v5725 = vpop.f32.mrb[0].mxu0
    %v5726 = vadd.f32 0.0, %v5725
    %v5727 = vpop.f32.mrb[0].mxu0
    %v5728 = vadd.f32 0.0, %v5727
    %5729 = vmatprep.mubr.f32.mxu0 0.0
    %5730 = vmatmul.mubr.f32.gmra.mrb[0].mxu0 %v5567
    %v5731 = vpop.f32.mrb[0].mxu0
    %v5732 = vadd.f32 0.0, %v5731
    %v5733 = vpop.f32.mrb[0].mxu0
    %v5734 = vadd.f32 0.0, %v5733
    %5735 = vmatprep.mubr.f32.mxu0 0.0
    %5736 = vmatmul.mubr.f32.gmra.mrb[0].mxu0 %v5570
    %v5737 = vpop.f32.mrb[0].mxu0
    %v5738 = vadd.f32 0.0, %v5737
    %v5739 = vpop.f32.mrb[0].mxu0
    %v5740 = vadd.f32 0.0, %v5739
    %5741 = vmatprep.mubr.f32.mxu0 0.0
    %5742 = vmatmul.mubr.f32.gmra.mrb[0].mxu0 %v5573
    %v5743 = vpop.f32.mrb[0].mxu0
    %v5744 = vadd.f32 0.0, %v5743
    %v5745 = vpop.f32.mrb[0].mxu0
    %v5746 = vadd.f32 0.0, %v5745
    %5747 = vmatprep.mubr.f32.mxu0 0.0
    %5748 = vmatmul.mubr.f32.gmra.mrb[0].mxu0 %v5576
    %v5749 = vpop.f32.mrb[0].mxu0
    %v5750 = vadd.f32 0.0, %v5749
    %v5751 = vpop.f32.mrb[0].mxu0
    %v5752 = vadd.f32 0.0, %v5751
    %5753 = vmatprep.mubr.f32.mxu0 0.0
    %5754 = vmatmul.mubr.f32.gmra.mrb[0].mxu0 %v5579
    %v5755 = vpop.f32.mrb[0].mxu0
    %v5756 = vadd.f32 0.0, %v5755
    %v5757 = vpop.f32.mrb[0].mxu0
    %v5758 = vadd.f32 0.0, %v5757
    %5759 = vmatprep.mubr.f32.mxu0 0.0
    %5760 = vmatmul.mubr.f32.gmra.mrb[0].mxu0 %v5582
    %v5761 = vpop.f32.mrb[0].mxu0
    %v5762 = vadd.f32 0.0, %v5761
    %v5763 = vpop.f32.mrb[0].mxu0
    %v5764 = vadd.f32 0.0, %v5763
    %5765 = vmatprep.mubr.f32.mxu0 0.0
    %5766 = vmatmul.mubr.f32.gmra.mrb[0].mxu0 %v5585
    %v5767 = vpop.f32.mrb[0].mxu0
    %v5768 = vadd.f32 0.0, %v5767
    %v5769 = vpop.f32.mrb[0].mxu0
    %v5770 = vadd.f32 0.0, %v5769
    %5771 = vmatprep.mubr.f32.mxu0 0.0
    %5772 = vmatmul.mubr.f32.gmra.mrb[0].mxu0 %v5588
    %v5773 = vpop.f32.mrb[0].mxu0
    %v5774 = vadd.f32 0.0, %v5773
    %v5775 = vpop.f32.mrb[0].mxu0
    %v5776 = vadd.f32 0.0, %v5775
    %5777 = vmatprep.mubr.f32.mxu0 0.0
    %5778 = vmatmul.mubr.f32.gmra.mrb[0].mxu0 %v5591
    %v5779 = vpop.f32.mrb[0].mxu0
    %v5780 = vadd.f32 0.0, %v5779
    %v5781 = vpop.f32.mrb[0].mxu0
    %v5782 = vadd.f32 0.0, %v5781
    %5783 = vmatprep.mubr.f32.mxu0 0.0
    %5784 = vmatmul.mubr.f32.gmra.mrb[0].mxu0 %v5594
    %v5785 = vpop.f32.mrb[0].mxu0
    %v5786 = vadd.f32 0.0, %v5785
    %v5787 = vpop.f32.mrb[0].mxu0
    %v5788 = vadd.f32 0.0, %v5787
    %5789 = vmatprep.mubr.f32.mxu0 0.0
    %5790 = vmatmul.mubr.f32.gmra.mrb[0].mxu0 %v5597
    %v5791 = vpop.f32.mrb[0].mxu0
    %v5792 = vadd.f32 0.0, %v5791
    %v5793 = vpop.f32.mrb[0].mxu0
    %v5794 = vadd.f32 0.0, %v5793
    %5795 = vmatprep.mubr.f32.mxu0 0.0
    %5796 = vmatmul.mubr.f32.gmra.mrb[0].mxu0 %v5600
    %v5797 = vpop.f32.mrb[0].mxu0
    %v5798 = vadd.f32 0.0, %v5797
    %v5799 = vpop.f32.mrb[0].mxu0
    %v5800 = vadd.f32 0.0, %v5799
    %5801 = vmatprep.mubr.f32.mxu0 0.0
    %5802 = vmatmul.mubr.f32.gmra.mrb[0].mxu0 %v5603
    %v5803 = vpop.f32.mrb[0].mxu0
    %v5804 = vadd.f32 0.0, %v5803
    %v5805 = vpop.f32.mrb[0].mxu0
    %v5806 = vadd.f32 0.0, %v5805
    %5807 = vmatprep.mubr.f32.mxu0 0.0
    %5808 = vmatmul.mubr.f32.gmra.mrb[0].mxu0 %v5606
    %v5809 = vpop.f32.mrb[0].mxu0
    %v5810 = vadd.f32 0.0, %v5809
    %v5811 = vpop.f32.mrb[0].mxu0
    %v5812 = vadd.f32 0.0, %v5811
    %5813 = vmatprep.mubr.f32.mxu0 0.0
    %5814 = vmatmul.mubr.f32.gmra.mrb[0].mxu0 %v5609
    %v5815 = vpop.f32.mrb[0].mxu0
    %v5816 = vadd.f32 0.0, %v5815
    %v5817 = vpop.f32.mrb[0].mxu0
    %v5818 = vadd.f32 0.0, %v5817
    %5819 = vmatprep.mubr.f32.mxu0 0.0
    %5820 = vmatmul.mubr.f32.gmra.mrb[0].mxu0 %v5612
    %v5821 = vpop.f32.mrb[0].mxu0
    %v5822 = vadd.f32 0.0, %v5821
    %v5823 = vpop.f32.mrb[0].mxu0
    %v5824 = vadd.f32 0.0, %v5823
    %5825 = vmatprep.mubr.f32.mxu0 0.0
    %5826 = vmatmul.mubr.f32.gmra.mrb[0].mxu0 %v5615
    %v5827 = vpop.f32.mrb[0].mxu0
    %v5828 = vadd.f32 0.0, %v5827
    %v5829 = vpop.f32.mrb[0].mxu0
    %v5830 = vadd.f32 0.0, %v5829
    %5831 = vmatprep.mubr.f32.mxu0 0.0
    %5832 = vmatmul.mubr.f32.gmra.mrb[0].mxu0 %v5618
    %v5833 = vpop.f32.mrb[0].mxu0
    %v5834 = vadd.f32 0.0, %v5833
    %v5835 = vpop.f32.mrb[0].mxu0
    %v5836 = vadd.f32 0.0, %v5835
    %5837 = vmatprep.mubr.f32.mxu0 0.0
    %5838 = vmatmul.mubr.f32.gmra.mrb[0].mxu0 %v5621
    %v5839 = vpop.f32.mrb[0].mxu0
    %v5840 = vadd.f32 0.0, %v5839
    %v5841 = vpop.f32.mrb[0].mxu0
    %v5842 = vadd.f32 0.0, %v5841
    %5843 = vmatprep.mubr.f32.mxu0 0.0
    %5844 = vmatmul.mubr.f32.gmra.mrb[0].mxu0 %v5624
    %v5845 = vpop.f32.mrb[0].mxu0
    %v5846 = vadd.f32 0.0, %v5845
    %v5847 = vpop.f32.mrb[0].mxu0
    %v5848 = vadd.f32 0.0, %v5847
    %5849 = vmatprep.mubr.f32.mxu0 0.0
    %5850 = vmatmul.mubr.f32.gmra.mrb[0].mxu0 %v5627
    %v5851 = vpop.f32.mrb[0].mxu0
    %v5852 = vadd.f32 0.0, %v5851
    %v5853 = vpop.f32.mrb[0].mxu0
    %v5854 = vadd.f32 0.0, %v5853
    %5855 = vmatprep.mubr.f32.mxu0 0.0
    %5856 = vmatmul.mubr.f32.gmra.mrb[0].mxu0 %v5630
    %v5857 = vpop.f32.mrb[0].mxu0
    %v5858 = vadd.f32 0.0, %v5857
    %v5859 = vpop.f32.mrb[0].mxu0
    %v5860 = vadd.f32 0.0, %v5859
    %5861 = vmatprep.mubr.f32.mxu0 0.0
    %5862 = vmatmul.mubr.f32.gmra.mrb[0].mxu0 %v5633
    %v5863 = vpop.f32.mrb[0].mxu0
    %v5864 = vadd.f32 0.0, %v5863
    %v5865 = vpop.f32.mrb[0].mxu0
    %v5866 = vadd.f32 0.0, %v5865
    %5867 = vmatprep.mubr.f32.mxu0 0.0
    %5868 = vmatmul.mubr.f32.gmra.mrb[0].mxu0 %v5636
    %v5869 = vpop.f32.mrb[0].mxu0
    %v5870 = vadd.f32 0.0, %v5869
    %v5871 = vpop.f32.mrb[0].mxu0
    %v5872 = vadd.f32 0.0, %v5871
    %5873 = vmatprep.mubr.f32.mxu0 0.0
    %5874 = vmatmul.mubr.f32.gmra.mrb[0].mxu0 %v5639
    %v5875 = vpop.f32.mrb[0].mxu0
    %v5876 = vadd.f32 0.0, %v5875
    %v5877 = vpop.f32.mrb[0].mxu0
    %v5878 = vadd.f32 0.0, %v5877
    %5879 = vmatprep.mubr.f32.mxu0 0.0
    %5880 = vmatmul.mubr.f32.gmra.mrb[0].mxu0 %v5642
    %v5881 = vpop.f32.mrb[0].mxu0
    %v5882 = vadd.f32 0.0, %v5881
    %v5883 = vpop.f32.mrb[0].mxu0
    %v5884 = vadd.f32 0.0, %v5883
    %5885 = vmatprep.mubr.f32.mxu0 0.0
    %5886 = vmatmul.mubr.f32.gmra.mrb[0].mxu0 %v5645
    %v5887 = vpop.f32.mrb[0].mxu0
    %v5888 = vadd.f32 0.0, %v5887
    %v5889 = vpop.f32.mrb[0].mxu0
    %v5890 = vadd.f32 0.0, %v5889
    %5891 = vmatprep.mubr.f32.mxu0 0.0
    %5892 = vmatmul.mubr.f32.gmra.mrb[0].mxu0 %v5648
    %v5893 = vpop.f32.mrb[0].mxu0
    %v5894 = vadd.f32 0.0, %v5893
    %v5895 = vpop.f32.mrb[0].mxu0
    %v5896 = vadd.f32 0.0, %v5895
    %5897 = vmatprep.mubr.f32.mxu0 0.0
    %5898 = vmatmul.mubr.f32.gmra.mrb[0].mxu0 %v5651
    %v5899 = vpop.f32.mrb[0].mxu0
    %v5900 = vadd.f32 0.0, %v5899
    %v5901 = vpop.f32.mrb[0].mxu0
    %v5902 = vadd.f32 0.0, %v5901
    %5903 = vmatprep.mubr.f32.mxu0 0.0
    %5904 = vmatmul.mubr.f32.gmra.mrb[0].mxu0 %v5654
    %v5905 = vpop.f32.mrb[0].mxu0
    %v5906 = vadd.f32 0.0, %v5905
    %v5907 = vpop.f32.mrb[0].mxu0
    %v5908 = vadd.f32 0.0, %v5907
    %5909 = vmatprep.mubr.f32.mxu0 0.0
    %5910 = vmatmul.mubr.f32.gmra.mrb[0].mxu0 %v5657
    %v5911 = vpop.f32.mrb[0].mxu0
    %v5912 = vadd.f32 0.0, %v5911
    %v5913 = vpop.f32.mrb[0].mxu0
    %v5914 = vadd.f32 0.0, %v5913
    %5915 = vdwg.mxu0
    %v5917 = vsel %vm543, %v5387, 0
    %v5920 = vsel %vm543, %v5388, 0
    %v5923 = vsel %vm543, %v5389, 0
    %v5926 = vsel %vm543, %v5390, 0
    %v5929 = vsel %vm543, %v5391, 0
    %v5932 = vsel %vm543, %v5392, 0
    %v5935 = vsel %vm543, %v5393, 0
    %v5938 = vsel %vm543, %v5394, 0
    %v5941 = vsel %vm543, %v5395, 0
    %v5944 = vsel %vm543, %v5396, 0
    %v5947 = vsel %vm543, %v5397, 0
    %v5950 = vsel %vm543, %v5398, 0
    %v5953 = vsel %vm543, %v5399, 0
    %v5956 = vsel %vm543, %v5400, 0
    %v5959 = vsel %vm543, %v5401, 0
    %v5962 = vsel %vm543, %v5402, 0
    %v5965 = vsel %vm543, %v5419, 0
    %v5968 = vsel %vm543, %v5420, 0
    %v5971 = vsel %vm543, %v5421, 0
    %v5974 = vsel %vm543, %v5422, 0
    %v5977 = vsel %vm543, %v5423, 0
    %v5980 = vsel %vm543, %v5424, 0
    %v5983 = vsel %vm543, %v5425, 0
    %v5986 = vsel %vm543, %v5426, 0
    %v5989 = vsel %vm543, %v5427, 0
    %v5992 = vsel %vm543, %v5428, 0
    %v5995 = vsel %vm543, %v5429, 0
    %v5998 = vsel %vm543, %v5430, 0
    %v6001 = vsel %vm543, %v5431, 0
    %v6004 = vsel %vm543, %v5432, 0
    %v6007 = vsel %vm543, %v5433, 0
    %v6010 = vsel %vm543, %v5434, 0
    %6012 = vmatprep.subr.mxu0 %v5269
    %6013 = vmatpush1.msra.mxu0 %v5267
    %6014 = vmatprep.subr.mxu0 0.0
    %6015 = vmatpush1.msra.mxu0 0.0
    %6016 = vmatprep.subr.mxu0 0.0
    %6017 = vmatpush1.msra.mxu0 0.0
    %6018 = vmatprep.subr.mxu0 0.0
    %6019 = vmatpush1.msra.mxu0 0.0
    %6020 = vmatprep.subr.mxu0 0.0
    %6021 = vmatpush1.msra.mxu0 0.0
    %6022 = vmatprep.subr.mxu0 0.0
    %6023 = vmatpush1.msra.mxu0 0.0
    %6024 = vmatprep.subr.mxu0 0.0
    %6025 = vmatpush1.msra.mxu0 0.0
    %6026 = vmatprep.subr.mxu0 0.0
    %6027 = vmatpush1.msra.mxu0 0.0
    %6028 = vmatprep.subr.mxu0 0.0
    %6029 = vmatpush1.msra.mxu0 0.0
    %6030 = vmatprep.subr.mxu0 0.0
    %6031 = vmatpush1.msra.mxu0 0.0
    %6032 = vmatprep.subr.mxu0 0.0
    %6033 = vmatpush1.msra.mxu0 0.0
    %6034 = vmatprep.subr.mxu0 0.0
    %6035 = vmatpush1.msra.mxu0 0.0
    %6036 = vmatprep.subr.mxu0 0.0
    %6037 = vmatpush1.msra.mxu0 0.0
    %6038 = vmatprep.subr.mxu0 0.0
    %6039 = vmatpush1.msra.mxu0 0.0
    %6040 = vmatprep.subr.mxu0 0.0
    %6041 = vmatpush1.msra.mxu0 0.0
    %6042 = vmatprep.subr.mxu0 0.0
    %6043 = vmatpush1.msra.mxu0 0.0
    %6044 = vmatprep.subr.mxu0 0.0
    %6045 = vmatpush1.msra.mxu0 0.0
    %6046 = vmatprep.subr.mxu0 0.0
    %6047 = vmatpush1.msra.mxu0 0.0
    %6048 = vmatprep.subr.mxu0 0.0
    %6049 = vmatpush1.msra.mxu0 0.0
    %6050 = vmatprep.subr.mxu0 0.0
    %6051 = vmatpush1.msra.mxu0 0.0
    %6052 = vmatprep.subr.mxu0 0.0
    %6053 = vmatpush1.msra.mxu0 0.0
    %6054 = vmatprep.subr.mxu0 0.0
    %6055 = vmatpush1.msra.mxu0 0.0
    %6056 = vmatprep.subr.mxu0 0.0
    %6057 = vmatpush1.msra.mxu0 0.0
    %6058 = vmatprep.subr.mxu0 0.0
    %6059 = vmatpush1.msra.mxu0 0.0
    %6060 = vmatprep.subr.mxu0 0.0
    %6061 = vmatpush1.msra.mxu0 0.0
    %6062 = vmatprep.subr.mxu0 0.0
    %6063 = vmatpush1.msra.mxu0 0.0
    %6064 = vmatprep.subr.mxu0 0.0
    %6065 = vmatpush1.msra.mxu0 0.0
    %6066 = vmatprep.subr.mxu0 0.0
    %6067 = vmatpush1.msra.mxu0 0.0
    %6068 = vmatprep.subr.mxu0 0.0
    %6069 = vmatpush1.msra.mxu0 0.0
    %6070 = vmatprep.subr.mxu0 0.0
    %6071 = vmatpush1.msra.mxu0 0.0
    %6072 = vmatprep.subr.mxu0 0.0
    %6073 = vmatpush1.msra.mxu0 0.0
    %6074 = vmatprep.subr.mxu0 0.0
    %6075 = vmatpush1.msra.mxu0 0.0
    %6076 = vmatprep.mubr.f32.mxu0 0.0
    %6077 = vmatmul.mubr.f32.gmra.mrb[0].mxu0 %v5917
    %v6078 = vpop.f32.mrb[0].mxu0
    %v6079 = vadd.f32 0.0, %v6078
    %v6080 = vpop.f32.mrb[0].mxu0
    %v6081 = vadd.f32 0.0, %v6080
    %6082 = vmatprep.mubr.f32.mxu0 0.0
    %6083 = vmatmul.mubr.f32.gmra.mrb[0].mxu0 %v5920
    %v6084 = vpop.f32.mrb[0].mxu0
    %v6085 = vadd.f32 0.0, %v6084
    %v6086 = vpop.f32.mrb[0].mxu0
    %v6087 = vadd.f32 0.0, %v6086
    %6088 = vmatprep.mubr.f32.mxu0 0.0
    %6089 = vmatmul.mubr.f32.gmra.mrb[0].mxu0 %v5923
    %v6090 = vpop.f32.mrb[0].mxu0
    %v6091 = vadd.f32 0.0, %v6090
    %v6092 = vpop.f32.mrb[0].mxu0
    %v6093 = vadd.f32 0.0, %v6092
    %6094 = vmatprep.mubr.f32.mxu0 0.0
    %6095 = vmatmul.mubr.f32.gmra.mrb[0].mxu0 %v5926
    %v6096 = vpop.f32.mrb[0].mxu0
    %v6097 = vadd.f32 0.0, %v6096
    %v6098 = vpop.f32.mrb[0].mxu0
    %v6099 = vadd.f32 0.0, %v6098
    %6100 = vmatprep.mubr.f32.mxu0 0.0
    %6101 = vmatmul.mubr.f32.gmra.mrb[0].mxu0 %v5929
    %v6102 = vpop.f32.mrb[0].mxu0
    %v6103 = vadd.f32 0.0, %v6102
    %v6104 = vpop.f32.mrb[0].mxu0
    %v6105 = vadd.f32 0.0, %v6104
    %6106 = vmatprep.mubr.f32.mxu0 0.0
    %6107 = vmatmul.mubr.f32.gmra.mrb[0].mxu0 %v5932
    %v6108 = vpop.f32.mrb[0].mxu0
    %v6109 = vadd.f32 0.0, %v6108
    %v6110 = vpop.f32.mrb[0].mxu0
    %v6111 = vadd.f32 0.0, %v6110
    %6112 = vmatprep.mubr.f32.mxu0 0.0
    %6113 = vmatmul.mubr.f32.gmra.mrb[0].mxu0 %v5935
    %v6114 = vpop.f32.mrb[0].mxu0
    %v6115 = vadd.f32 0.0, %v6114
    %v6116 = vpop.f32.mrb[0].mxu0
    %v6117 = vadd.f32 0.0, %v6116
    %6118 = vmatprep.mubr.f32.mxu0 0.0
    %6119 = vmatmul.mubr.f32.gmra.mrb[0].mxu0 %v5938
    %v6120 = vpop.f32.mrb[0].mxu0
    %v6121 = vadd.f32 0.0, %v6120
    %v6122 = vpop.f32.mrb[0].mxu0
    %v6123 = vadd.f32 0.0, %v6122
    %6124 = vmatprep.mubr.f32.mxu0 0.0
    %6125 = vmatmul.mubr.f32.gmra.mrb[0].mxu0 %v5941
    %v6126 = vpop.f32.mrb[0].mxu0
    %v6127 = vadd.f32 0.0, %v6126
    %v6128 = vpop.f32.mrb[0].mxu0
    %v6129 = vadd.f32 0.0, %v6128
    %6130 = vmatprep.mubr.f32.mxu0 0.0
    %6131 = vmatmul.mubr.f32.gmra.mrb[0].mxu0 %v5944
    %v6132 = vpop.f32.mrb[0].mxu0
    %v6133 = vadd.f32 0.0, %v6132
    %v6134 = vpop.f32.mrb[0].mxu0
    %v6135 = vadd.f32 0.0, %v6134
    %6136 = vmatprep.mubr.f32.mxu0 0.0
    %6137 = vmatmul.mubr.f32.gmra.mrb[0].mxu0 %v5947
    %v6138 = vpop.f32.mrb[0].mxu0
    %v6139 = vadd.f32 0.0, %v6138
    %v6140 = vpop.f32.mrb[0].mxu0
    %v6141 = vadd.f32 0.0, %v6140
    %6142 = vmatprep.mubr.f32.mxu0 0.0
    %6143 = vmatmul.mubr.f32.gmra.mrb[0].mxu0 %v5950
    %v6144 = vpop.f32.mrb[0].mxu0
    %v6145 = vadd.f32 0.0, %v6144
    %v6146 = vpop.f32.mrb[0].mxu0
    %v6147 = vadd.f32 0.0, %v6146
    %6148 = vmatprep.mubr.f32.mxu0 0.0
    %6149 = vmatmul.mubr.f32.gmra.mrb[0].mxu0 %v5953
    %v6150 = vpop.f32.mrb[0].mxu0
    %v6151 = vadd.f32 0.0, %v6150
    %v6152 = vpop.f32.mrb[0].mxu0
    %v6153 = vadd.f32 0.0, %v6152
    %6154 = vmatprep.mubr.f32.mxu0 0.0
    %6155 = vmatmul.mubr.f32.gmra.mrb[0].mxu0 %v5956
    %v6156 = vpop.f32.mrb[0].mxu0
    %v6157 = vadd.f32 0.0, %v6156
    %v6158 = vpop.f32.mrb[0].mxu0
    %v6159 = vadd.f32 0.0, %v6158
    %6160 = vmatprep.mubr.f32.mxu0 0.0
    %6161 = vmatmul.mubr.f32.gmra.mrb[0].mxu0 %v5959
    %v6162 = vpop.f32.mrb[0].mxu0
    %v6163 = vadd.f32 0.0, %v6162
    %v6164 = vpop.f32.mrb[0].mxu0
    %v6165 = vadd.f32 0.0, %v6164
    %6166 = vmatprep.mubr.f32.mxu0 0.0
    %6167 = vmatmul.mubr.f32.gmra.mrb[0].mxu0 %v5962
    %v6168 = vpop.f32.mrb[0].mxu0
    %v6169 = vadd.f32 0.0, %v6168
    %v6170 = vpop.f32.mrb[0].mxu0
    %v6171 = vadd.f32 0.0, %v6170
    %6172 = vmatprep.mubr.f32.mxu0 0.0
    %6173 = vmatmul.mubr.f32.gmra.mrb[0].mxu0 %v5965
    %v6174 = vpop.f32.mrb[0].mxu0
    %v6175 = vadd.f32 0.0, %v6174
    %v6176 = vpop.f32.mrb[0].mxu0
    %v6177 = vadd.f32 0.0, %v6176
    %6178 = vmatprep.mubr.f32.mxu0 0.0
    %6179 = vmatmul.mubr.f32.gmra.mrb[0].mxu0 %v5968
    %v6180 = vpop.f32.mrb[0].mxu0
    %v6181 = vadd.f32 0.0, %v6180
    %v6182 = vpop.f32.mrb[0].mxu0
    %v6183 = vadd.f32 0.0, %v6182
    %6184 = vmatprep.mubr.f32.mxu0 0.0
    %6185 = vmatmul.mubr.f32.gmra.mrb[0].mxu0 %v5971
    %v6186 = vpop.f32.mrb[0].mxu0
    %v6187 = vadd.f32 0.0, %v6186
    %v6188 = vpop.f32.mrb[0].mxu0
    %v6189 = vadd.f32 0.0, %v6188
    %6190 = vmatprep.mubr.f32.mxu0 0.0
    %6191 = vmatmul.mubr.f32.gmra.mrb[0].mxu0 %v5974
    %v6192 = vpop.f32.mrb[0].mxu0
    %v6193 = vadd.f32 0.0, %v6192
    %v6194 = vpop.f32.mrb[0].mxu0
    %v6195 = vadd.f32 0.0, %v6194
    %6196 = vmatprep.mubr.f32.mxu0 0.0
    %6197 = vmatmul.mubr.f32.gmra.mrb[0].mxu0 %v5977
    %v6198 = vpop.f32.mrb[0].mxu0
    %v6199 = vadd.f32 0.0, %v6198
    %v6200 = vpop.f32.mrb[0].mxu0
    %v6201 = vadd.f32 0.0, %v6200
    %6202 = vmatprep.mubr.f32.mxu0 0.0
    %6203 = vmatmul.mubr.f32.gmra.mrb[0].mxu0 %v5980
    %v6204 = vpop.f32.mrb[0].mxu0
    %v6205 = vadd.f32 0.0, %v6204
    %v6206 = vpop.f32.mrb[0].mxu0
    %v6207 = vadd.f32 0.0, %v6206
    %6208 = vmatprep.mubr.f32.mxu0 0.0
    %6209 = vmatmul.mubr.f32.gmra.mrb[0].mxu0 %v5983
    %v6210 = vpop.f32.mrb[0].mxu0
    %v6211 = vadd.f32 0.0, %v6210
    %v6212 = vpop.f32.mrb[0].mxu0
    %v6213 = vadd.f32 0.0, %v6212
    %6214 = vmatprep.mubr.f32.mxu0 0.0
    %6215 = vmatmul.mubr.f32.gmra.mrb[0].mxu0 %v5986
    %v6216 = vpop.f32.mrb[0].mxu0
    %v6217 = vadd.f32 0.0, %v6216
    %v6218 = vpop.f32.mrb[0].mxu0
    %v6219 = vadd.f32 0.0, %v6218
    %6220 = vmatprep.mubr.f32.mxu0 0.0
    %6221 = vmatmul.mubr.f32.gmra.mrb[0].mxu0 %v5989
    %v6222 = vpop.f32.mrb[0].mxu0
    %v6223 = vadd.f32 0.0, %v6222
    %v6224 = vpop.f32.mrb[0].mxu0
    %v6225 = vadd.f32 0.0, %v6224
    %6226 = vmatprep.mubr.f32.mxu0 0.0
    %6227 = vmatmul.mubr.f32.gmra.mrb[0].mxu0 %v5992
    %v6228 = vpop.f32.mrb[0].mxu0
    %v6229 = vadd.f32 0.0, %v6228
    %v6230 = vpop.f32.mrb[0].mxu0
    %v6231 = vadd.f32 0.0, %v6230
    %6232 = vmatprep.mubr.f32.mxu0 0.0
    %6233 = vmatmul.mubr.f32.gmra.mrb[0].mxu0 %v5995
    %v6234 = vpop.f32.mrb[0].mxu0
    %v6235 = vadd.f32 0.0, %v6234
    %v6236 = vpop.f32.mrb[0].mxu0
    %v6237 = vadd.f32 0.0, %v6236
    %6238 = vmatprep.mubr.f32.mxu0 0.0
    %6239 = vmatmul.mubr.f32.gmra.mrb[0].mxu0 %v5998
    %v6240 = vpop.f32.mrb[0].mxu0
    %v6241 = vadd.f32 0.0, %v6240
    %v6242 = vpop.f32.mrb[0].mxu0
    %v6243 = vadd.f32 0.0, %v6242
    %6244 = vmatprep.mubr.f32.mxu0 0.0
    %6245 = vmatmul.mubr.f32.gmra.mrb[0].mxu0 %v6001
    %v6246 = vpop.f32.mrb[0].mxu0
    %v6247 = vadd.f32 0.0, %v6246
    %v6248 = vpop.f32.mrb[0].mxu0
    %v6249 = vadd.f32 0.0, %v6248
    %6250 = vmatprep.mubr.f32.mxu0 0.0
    %6251 = vmatmul.mubr.f32.gmra.mrb[0].mxu0 %v6004
    %v6252 = vpop.f32.mrb[0].mxu0
    %v6253 = vadd.f32 0.0, %v6252
    %v6254 = vpop.f32.mrb[0].mxu0
    %v6255 = vadd.f32 0.0, %v6254
    %6256 = vmatprep.mubr.f32.mxu0 0.0
    %6257 = vmatmul.mubr.f32.gmra.mrb[0].mxu0 %v6007
    %v6258 = vpop.f32.mrb[0].mxu0
    %v6259 = vadd.f32 0.0, %v6258
    %v6260 = vpop.f32.mrb[0].mxu0
    %v6261 = vadd.f32 0.0, %v6260
    %6262 = vmatprep.mubr.f32.mxu0 0.0
    %6263 = vmatmul.mubr.f32.gmra.mrb[0].mxu0 %v6010
    %v6264 = vpop.f32.mrb[0].mxu0
    %v6265 = vadd.f32 0.0, %v6264
    %v6266 = vpop.f32.mrb[0].mxu0
    %v6267 = vadd.f32 0.0, %v6266
    %6268 = vdwg.mxu0
    %v6270 = vsel %vm543, %v5451, 0
    %v6273 = vsel %vm543, %v5452, 0
    %v6276 = vsel %vm543, %v5453, 0
    %v6279 = vsel %vm543, %v5454, 0
    %v6282 = vsel %vm543, %v5455, 0
    %v6285 = vsel %vm543, %v5456, 0
    %v6288 = vsel %vm543, %v5457, 0
    %v6291 = vsel %vm543, %v5458, 0
    %v6294 = vsel %vm543, %v5459, 0
    %v6297 = vsel %vm543, %v5460, 0
    %v6300 = vsel %vm543, %v5461, 0
    %v6303 = vsel %vm543, %v5462, 0
    %v6306 = vsel %vm543, %v5463, 0
    %v6309 = vsel %vm543, %v5464, 0
    %v6312 = vsel %vm543, %v5465, 0
    %v6315 = vsel %vm543, %v5466, 0
    %v6318 = vsel %vm543, %v5483, 0
    %v6321 = vsel %vm543, %v5484, 0
    %v6324 = vsel %vm543, %v5485, 0
    %v6327 = vsel %vm543, %v5486, 0
    %v6330 = vsel %vm543, %v5487, 0
    %v6333 = vsel %vm543, %v5488, 0
    %v6336 = vsel %vm543, %v5489, 0
    %v6339 = vsel %vm543, %v5490, 0
    %v6342 = vsel %vm543, %v5491, 0
    %v6345 = vsel %vm543, %v5492, 0
    %v6348 = vsel %vm543, %v5493, 0
    %v6351 = vsel %vm543, %v5494, 0
    %v6354 = vsel %vm543, %v5495, 0
    %v6357 = vsel %vm543, %v5496, 0
    %v6360 = vsel %vm543, %v5497, 0
    %v6363 = vsel %vm543, %v5498, 0
    %6365 = vmatprep.subr.mxu0 %v5275
    %6366 = vmatpush1.msra.mxu0 %v5273
    %6367 = vmatprep.subr.mxu0 0.0
    %6368 = vmatpush1.msra.mxu0 0.0
    %6369 = vmatprep.subr.mxu0 0.0
    %6370 = vmatpush1.msra.mxu0 0.0
    %6371 = vmatprep.subr.mxu0 0.0
    %6372 = vmatpush1.msra.mxu0 0.0
    %6373 = vmatprep.subr.mxu0 0.0
    %6374 = vmatpush1.msra.mxu0 0.0
    %6375 = vmatprep.subr.mxu0 0.0
    %6376 = vmatpush1.msra.mxu0 0.0
    %6377 = vmatprep.subr.mxu0 0.0
    %6378 = vmatpush1.msra.mxu0 0.0
    %6379 = vmatprep.subr.mxu0 0.0
    %6380 = vmatpush1.msra.mxu0 0.0
    %6381 = vmatprep.subr.mxu0 0.0
    %6382 = vmatpush1.msra.mxu0 0.0
    %6383 = vmatprep.subr.mxu0 0.0
    %6384 = vmatpush1.msra.mxu0 0.0
    %6385 = vmatprep.subr.mxu0 0.0
    %6386 = vmatpush1.msra.mxu0 0.0
    %6387 = vmatprep.subr.mxu0 0.0
    %6388 = vmatpush1.msra.mxu0 0.0
    %6389 = vmatprep.subr.mxu0 0.0
    %6390 = vmatpush1.msra.mxu0 0.0
    %6391 = vmatprep.subr.mxu0 0.0
    %6392 = vmatpush1.msra.mxu0 0.0
    %6393 = vmatprep.subr.mxu0 0.0
    %6394 = vmatpush1.msra.mxu0 0.0
    %6395 = vmatprep.subr.mxu0 0.0
    %6396 = vmatpush1.msra.mxu0 0.0
    %6397 = vmatprep.subr.mxu0 0.0
    %6398 = vmatpush1.msra.mxu0 0.0
    %6399 = vmatprep.subr.mxu0 0.0
    %6400 = vmatpush1.msra.mxu0 0.0
    %6401 = vmatprep.subr.mxu0 0.0
    %6402 = vmatpush1.msra.mxu0 0.0
    %6403 = vmatprep.subr.mxu0 0.0
    %6404 = vmatpush1.msra.mxu0 0.0
    %6405 = vmatprep.subr.mxu0 0.0
    %6406 = vmatpush1.msra.mxu0 0.0
    %6407 = vmatprep.subr.mxu0 0.0
    %6408 = vmatpush1.msra.mxu0 0.0
    %6409 = vmatprep.subr.mxu0 0.0
    %6410 = vmatpush1.msra.mxu0 0.0
    %6411 = vmatprep.subr.mxu0 0.0
    %6412 = vmatpush1.msra.mxu0 0.0
    %6413 = vmatprep.subr.mxu0 0.0
    %6414 = vmatpush1.msra.mxu0 0.0
    %6415 = vmatprep.subr.mxu0 0.0
    %6416 = vmatpush1.msra.mxu0 0.0
    %6417 = vmatprep.subr.mxu0 0.0
    %6418 = vmatpush1.msra.mxu0 0.0
    %6419 = vmatprep.subr.mxu0 0.0
    %6420 = vmatpush1.msra.mxu0 0.0
    %6421 = vmatprep.subr.mxu0 0.0
    %6422 = vmatpush1.msra.mxu0 0.0
    %6423 = vmatprep.subr.mxu0 0.0
    %6424 = vmatpush1.msra.mxu0 0.0
    %6425 = vmatprep.subr.mxu0 0.0
    %6426 = vmatpush1.msra.mxu0 0.0
    %6427 = vmatprep.subr.mxu0 0.0
    %6428 = vmatpush1.msra.mxu0 0.0
    %6429 = vmatprep.mubr.f32.mxu0 0.0
    %6430 = vmatmul.mubr.f32.gmra.mrb[0].mxu0 %v6270
    %v6431 = vpop.f32.mrb[0].mxu0
    %v6432 = vadd.f32 0.0, %v6431
    %v6433 = vpop.f32.mrb[0].mxu0
    %v6434 = vadd.f32 0.0, %v6433
    %6435 = vmatprep.mubr.f32.mxu0 0.0
    %6436 = vmatmul.mubr.f32.gmra.mrb[0].mxu0 %v6273
    %v6437 = vpop.f32.mrb[0].mxu0
    %v6438 = vadd.f32 0.0, %v6437
    %v6439 = vpop.f32.mrb[0].mxu0
    %v6440 = vadd.f32 0.0, %v6439
    %6441 = vmatprep.mubr.f32.mxu0 0.0
    %6442 = vmatmul.mubr.f32.gmra.mrb[0].mxu0 %v6276
    %v6443 = vpop.f32.mrb[0].mxu0
    %v6444 = vadd.f32 0.0, %v6443
    %v6445 = vpop.f32.mrb[0].mxu0
    %v6446 = vadd.f32 0.0, %v6445
    %6447 = vmatprep.mubr.f32.mxu0 0.0
    %6448 = vmatmul.mubr.f32.gmra.mrb[0].mxu0 %v6279
    %v6449 = vpop.f32.mrb[0].mxu0
    %v6450 = vadd.f32 0.0, %v6449
    %v6451 = vpop.f32.mrb[0].mxu0
    %v6452 = vadd.f32 0.0, %v6451
    %6453 = vmatprep.mubr.f32.mxu0 0.0
    %6454 = vmatmul.mubr.f32.gmra.mrb[0].mxu0 %v6282
    %v6455 = vpop.f32.mrb[0].mxu0
    %v6456 = vadd.f32 0.0, %v6455
    %v6457 = vpop.f32.mrb[0].mxu0
    %v6458 = vadd.f32 0.0, %v6457
    %6459 = vmatprep.mubr.f32.mxu0 0.0
    %6460 = vmatmul.mubr.f32.gmra.mrb[0].mxu0 %v6285
    %v6461 = vpop.f32.mrb[0].mxu0
    %v6462 = vadd.f32 0.0, %v6461
    %v6463 = vpop.f32.mrb[0].mxu0
    %v6464 = vadd.f32 0.0, %v6463
    %6465 = vmatprep.mubr.f32.mxu0 0.0
    %6466 = vmatmul.mubr.f32.gmra.mrb[0].mxu0 %v6288
    %v6467 = vpop.f32.mrb[0].mxu0
    %v6468 = vadd.f32 0.0, %v6467
    %v6469 = vpop.f32.mrb[0].mxu0
    %v6470 = vadd.f32 0.0, %v6469
    %6471 = vmatprep.mubr.f32.mxu0 0.0
    %6472 = vmatmul.mubr.f32.gmra.mrb[0].mxu0 %v6291
    %v6473 = vpop.f32.mrb[0].mxu0
    %v6474 = vadd.f32 0.0, %v6473
    %v6475 = vpop.f32.mrb[0].mxu0
    %v6476 = vadd.f32 0.0, %v6475
    %6477 = vmatprep.mubr.f32.mxu0 0.0
    %6478 = vmatmul.mubr.f32.gmra.mrb[0].mxu0 %v6294
    %v6479 = vpop.f32.mrb[0].mxu0
    %v6480 = vadd.f32 0.0, %v6479
    %v6481 = vpop.f32.mrb[0].mxu0
    %v6482 = vadd.f32 0.0, %v6481
    %6483 = vmatprep.mubr.f32.mxu0 0.0
    %6484 = vmatmul.mubr.f32.gmra.mrb[0].mxu0 %v6297
    %v6485 = vpop.f32.mrb[0].mxu0
    %v6486 = vadd.f32 0.0, %v6485
    %v6487 = vpop.f32.mrb[0].mxu0
    %v6488 = vadd.f32 0.0, %v6487
    %6489 = vmatprep.mubr.f32.mxu0 0.0
    %6490 = vmatmul.mubr.f32.gmra.mrb[0].mxu0 %v6300
    %v6491 = vpop.f32.mrb[0].mxu0
    %v6492 = vadd.f32 0.0, %v6491
    %v6493 = vpop.f32.mrb[0].mxu0
    %v6494 = vadd.f32 0.0, %v6493
    %6495 = vmatprep.mubr.f32.mxu0 0.0
    %6496 = vmatmul.mubr.f32.gmra.mrb[0].mxu0 %v6303
    %v6497 = vpop.f32.mrb[0].mxu0
    %v6498 = vadd.f32 0.0, %v6497
    %v6499 = vpop.f32.mrb[0].mxu0
    %v6500 = vadd.f32 0.0, %v6499
    %6501 = vmatprep.mubr.f32.mxu0 0.0
    %6502 = vmatmul.mubr.f32.gmra.mrb[0].mxu0 %v6306
    %v6503 = vpop.f32.mrb[0].mxu0
    %v6504 = vadd.f32 0.0, %v6503
    %v6505 = vpop.f32.mrb[0].mxu0
    %v6506 = vadd.f32 0.0, %v6505
    %6507 = vmatprep.mubr.f32.mxu0 0.0
    %6508 = vmatmul.mubr.f32.gmra.mrb[0].mxu0 %v6309
    %v6509 = vpop.f32.mrb[0].mxu0
    %v6510 = vadd.f32 0.0, %v6509
    %v6511 = vpop.f32.mrb[0].mxu0
    %v6512 = vadd.f32 0.0, %v6511
    %6513 = vmatprep.mubr.f32.mxu0 0.0
    %6514 = vmatmul.mubr.f32.gmra.mrb[0].mxu0 %v6312
    %v6515 = vpop.f32.mrb[0].mxu0
    %v6516 = vadd.f32 0.0, %v6515
    %v6517 = vpop.f32.mrb[0].mxu0
    %v6518 = vadd.f32 0.0, %v6517
    %6519 = vmatprep.mubr.f32.mxu0 0.0
    %6520 = vmatmul.mubr.f32.gmra.mrb[0].mxu0 %v6315
    %v6521 = vpop.f32.mrb[0].mxu0
    %v6522 = vadd.f32 0.0, %v6521
    %v6523 = vpop.f32.mrb[0].mxu0
    %v6524 = vadd.f32 0.0, %v6523
    %6525 = vmatprep.mubr.f32.mxu0 0.0
    %6526 = vmatmul.mubr.f32.gmra.mrb[0].mxu0 %v6318
    %v6527 = vpop.f32.mrb[0].mxu0
    %v6528 = vadd.f32 0.0, %v6527
    %v6529 = vpop.f32.mrb[0].mxu0
    %v6530 = vadd.f32 0.0, %v6529
    %6531 = vmatprep.mubr.f32.mxu0 0.0
    %6532 = vmatmul.mubr.f32.gmra.mrb[0].mxu0 %v6321
    %v6533 = vpop.f32.mrb[0].mxu0
    %v6534 = vadd.f32 0.0, %v6533
    %v6535 = vpop.f32.mrb[0].mxu0
    %v6536 = vadd.f32 0.0, %v6535
    %6537 = vmatprep.mubr.f32.mxu0 0.0
    %6538 = vmatmul.mubr.f32.gmra.mrb[0].mxu0 %v6324
    %v6539 = vpop.f32.mrb[0].mxu0
    %v6540 = vadd.f32 0.0, %v6539
    %v6541 = vpop.f32.mrb[0].mxu0
    %v6542 = vadd.f32 0.0, %v6541
    %6543 = vmatprep.mubr.f32.mxu0 0.0
    %6544 = vmatmul.mubr.f32.gmra.mrb[0].mxu0 %v6327
    %v6545 = vpop.f32.mrb[0].mxu0
    %v6546 = vadd.f32 0.0, %v6545
    %v6547 = vpop.f32.mrb[0].mxu0
    %v6548 = vadd.f32 0.0, %v6547
    %6549 = vmatprep.mubr.f32.mxu0 0.0
    %6550 = vmatmul.mubr.f32.gmra.mrb[0].mxu0 %v6330
    %v6551 = vpop.f32.mrb[0].mxu0
    %v6552 = vadd.f32 0.0, %v6551
    %v6553 = vpop.f32.mrb[0].mxu0
    %v6554 = vadd.f32 0.0, %v6553
    %6555 = vmatprep.mubr.f32.mxu0 0.0
    %6556 = vmatmul.mubr.f32.gmra.mrb[0].mxu0 %v6333
    %v6557 = vpop.f32.mrb[0].mxu0
    %v6558 = vadd.f32 0.0, %v6557
    %v6559 = vpop.f32.mrb[0].mxu0
    %v6560 = vadd.f32 0.0, %v6559
    %6561 = vmatprep.mubr.f32.mxu0 0.0
    %6562 = vmatmul.mubr.f32.gmra.mrb[0].mxu0 %v6336
    %v6563 = vpop.f32.mrb[0].mxu0
    %v6564 = vadd.f32 0.0, %v6563
    %v6565 = vpop.f32.mrb[0].mxu0
    %v6566 = vadd.f32 0.0, %v6565
    %6567 = vmatprep.mubr.f32.mxu0 0.0
    %6568 = vmatmul.mubr.f32.gmra.mrb[0].mxu0 %v6339
    %v6569 = vpop.f32.mrb[0].mxu0
    %v6570 = vadd.f32 0.0, %v6569
    %v6571 = vpop.f32.mrb[0].mxu0
    %v6572 = vadd.f32 0.0, %v6571
    %6573 = vmatprep.mubr.f32.mxu0 0.0
    %6574 = vmatmul.mubr.f32.gmra.mrb[0].mxu0 %v6342
    %v6575 = vpop.f32.mrb[0].mxu0
    %v6576 = vadd.f32 0.0, %v6575
    %v6577 = vpop.f32.mrb[0].mxu0
    %v6578 = vadd.f32 0.0, %v6577
    %6579 = vmatprep.mubr.f32.mxu0 0.0
    %6580 = vmatmul.mubr.f32.gmra.mrb[0].mxu0 %v6345
    %v6581 = vpop.f32.mrb[0].mxu0
    %v6582 = vadd.f32 0.0, %v6581
    %v6583 = vpop.f32.mrb[0].mxu0
    %v6584 = vadd.f32 0.0, %v6583
    %6585 = vmatprep.mubr.f32.mxu0 0.0
    %6586 = vmatmul.mubr.f32.gmra.mrb[0].mxu0 %v6348
    %v6587 = vpop.f32.mrb[0].mxu0
    %v6588 = vadd.f32 0.0, %v6587
    %v6589 = vpop.f32.mrb[0].mxu0
    %v6590 = vadd.f32 0.0, %v6589
    %6591 = vmatprep.mubr.f32.mxu0 0.0
    %6592 = vmatmul.mubr.f32.gmra.mrb[0].mxu0 %v6351
    %v6593 = vpop.f32.mrb[0].mxu0
    %v6594 = vadd.f32 0.0, %v6593
    %v6595 = vpop.f32.mrb[0].mxu0
    %v6596 = vadd.f32 0.0, %v6595
    %6597 = vmatprep.mubr.f32.mxu0 0.0
    %6598 = vmatmul.mubr.f32.gmra.mrb[0].mxu0 %v6354
    %v6599 = vpop.f32.mrb[0].mxu0
    %v6600 = vadd.f32 0.0, %v6599
    %v6601 = vpop.f32.mrb[0].mxu0
    %v6602 = vadd.f32 0.0, %v6601
    %6603 = vmatprep.mubr.f32.mxu0 0.0
    %6604 = vmatmul.mubr.f32.gmra.mrb[0].mxu0 %v6357
    %v6605 = vpop.f32.mrb[0].mxu0
    %v6606 = vadd.f32 0.0, %v6605
    %v6607 = vpop.f32.mrb[0].mxu0
    %v6608 = vadd.f32 0.0, %v6607
    %6609 = vmatprep.mubr.f32.mxu0 0.0
    %6610 = vmatmul.mubr.f32.gmra.mrb[0].mxu0 %v6360
    %v6611 = vpop.f32.mrb[0].mxu0
    %v6612 = vadd.f32 0.0, %v6611
    %v6613 = vpop.f32.mrb[0].mxu0
    %v6614 = vadd.f32 0.0, %v6613
    %6615 = vmatprep.mubr.f32.mxu0 0.0
    %6616 = vmatmul.mubr.f32.gmra.mrb[0].mxu0 %v6363
    %v6617 = vpop.f32.mrb[0].mxu0
    %v6618 = vadd.f32 0.0, %v6617
    %v6619 = vpop.f32.mrb[0].mxu0
    %v6620 = vadd.f32 0.0, %v6619
    %6621 = vdwg.mxu0
    %v6623 = vsel %vm543, %v5515, 0
    %v6626 = vsel %vm543, %v5516, 0
    %v6629 = vsel %vm543, %v5517, 0
    %v6632 = vsel %vm543, %v5518, 0
    %v6635 = vsel %vm543, %v5519, 0
    %v6638 = vsel %vm543, %v5520, 0
    %v6641 = vsel %vm543, %v5521, 0
    %v6644 = vsel %vm543, %v5522, 0
    %v6647 = vsel %vm543, %v5523, 0
    %v6650 = vsel %vm543, %v5524, 0
    %v6653 = vsel %vm543, %v5525, 0
    %v6656 = vsel %vm543, %v5526, 0
    %v6659 = vsel %vm543, %v5527, 0
    %v6662 = vsel %vm543, %v5528, 0
    %v6665 = vsel %vm543, %v5529, 0
    %v6668 = vsel %vm543, %v5530, 0
    %v6671 = vsel %vm543, %v5547, 0
    %v6674 = vsel %vm543, %v5548, 0
    %v6677 = vsel %vm543, %v5549, 0
    %v6680 = vsel %vm543, %v5550, 0
    %v6683 = vsel %vm543, %v5551, 0
    %v6686 = vsel %vm543, %v5552, 0
    %v6689 = vsel %vm543, %v5553, 0
    %v6692 = vsel %vm543, %v5554, 0
    %v6695 = vsel %vm543, %v5555, 0
    %v6698 = vsel %vm543, %v5556, 0
    %v6701 = vsel %vm543, %v5557, 0
    %v6704 = vsel %vm543, %v5558, 0
    %v6707 = vsel %vm543, %v5559, 0
    %v6710 = vsel %vm543, %v5560, 0
    %v6713 = vsel %vm543, %v5561, 0
    %v6716 = vsel %vm543, %v5562, 0
    %6718 = vmatprep.subr.mxu0 %v5281
    %6719 = vmatpush1.msra.mxu0 %v5279
    %6720 = vmatprep.subr.mxu0 0.0
    %6721 = vmatpush1.msra.mxu0 0.0
    %6722 = vmatprep.subr.mxu0 0.0
    %6723 = vmatpush1.msra.mxu0 0.0
    %6724 = vmatprep.subr.mxu0 0.0
    %6725 = vmatpush1.msra.mxu0 0.0
    %6726 = vmatprep.subr.mxu0 0.0
    %6727 = vmatpush1.msra.mxu0 0.0
    %6728 = vmatprep.subr.mxu0 0.0
    %6729 = vmatpush1.msra.mxu0 0.0
    %6730 = vmatprep.subr.mxu0 0.0
    %6731 = vmatpush1.msra.mxu0 0.0
    %6732 = vmatprep.subr.mxu0 0.0
    %6733 = vmatpush1.msra.mxu0 0.0
    %6734 = vmatprep.subr.mxu0 0.0
    %6735 = vmatpush1.msra.mxu0 0.0
    %6736 = vmatprep.subr.mxu0 0.0
    %6737 = vmatpush1.msra.mxu0 0.0
    %6738 = vmatprep.subr.mxu0 0.0
    %6739 = vmatpush1.msra.mxu0 0.0
    %6740 = vmatprep.subr.mxu0 0.0
    %6741 = vmatpush1.msra.mxu0 0.0
    %6742 = vmatprep.subr.mxu0 0.0
    %6743 = vmatpush1.msra.mxu0 0.0
    %6744 = vmatprep.subr.mxu0 0.0
    %6745 = vmatpush1.msra.mxu0 0.0
    %6746 = vmatprep.subr.mxu0 0.0
    %6747 = vmatpush1.msra.mxu0 0.0
    %6748 = vmatprep.subr.mxu0 0.0
    %6749 = vmatpush1.msra.mxu0 0.0
    %6750 = vmatprep.subr.mxu0 0.0
    %6751 = vmatpush1.msra.mxu0 0.0
    %6752 = vmatprep.subr.mxu0 0.0
    %6753 = vmatpush1.msra.mxu0 0.0
    %6754 = vmatprep.subr.mxu0 0.0
    %6755 = vmatpush1.msra.mxu0 0.0
    %6756 = vmatprep.subr.mxu0 0.0
    %6757 = vmatpush1.msra.mxu0 0.0
    %6758 = vmatprep.subr.mxu0 0.0
    %6759 = vmatpush1.msra.mxu0 0.0
    %6760 = vmatprep.subr.mxu0 0.0
    %6761 = vmatpush1.msra.mxu0 0.0
    %6762 = vmatprep.subr.mxu0 0.0
    %6763 = vmatpush1.msra.mxu0 0.0
    %6764 = vmatprep.subr.mxu0 0.0
    %6765 = vmatpush1.msra.mxu0 0.0
    %6766 = vmatprep.subr.mxu0 0.0
    %6767 = vmatpush1.msra.mxu0 0.0
    %6768 = vmatprep.subr.mxu0 0.0
    %6769 = vmatpush1.msra.mxu0 0.0
    %6770 = vmatprep.subr.mxu0 0.0
    %6771 = vmatpush1.msra.mxu0 0.0
    %6772 = vmatprep.subr.mxu0 0.0
    %6773 = vmatpush1.msra.mxu0 0.0
    %6774 = vmatprep.subr.mxu0 0.0
    %6775 = vmatpush1.msra.mxu0 0.0
    %6776 = vmatprep.subr.mxu0 0.0
    %6777 = vmatpush1.msra.mxu0 0.0
    %6778 = vmatprep.subr.mxu0 0.0
    %6779 = vmatpush1.msra.mxu0 0.0
    %6780 = vmatprep.subr.mxu0 0.0
    %6781 = vmatpush1.msra.mxu0 0.0
    %6782 = vmatprep.mubr.f32.mxu0 0.0
    %6783 = vmatmul.mubr.f32.gmra.mrb[0].mxu0 %v6623
    %v6784 = vpop.f32.mrb[0].mxu0
    %v6785 = vadd.f32 0.0, %v6784
    %v6786 = vpop.f32.mrb[0].mxu0
    %v6787 = vadd.f32 0.0, %v6786
    %6788 = vmatprep.mubr.f32.mxu0 0.0
    %6789 = vmatmul.mubr.f32.gmra.mrb[0].mxu0 %v6626
    %v6790 = vpop.f32.mrb[0].mxu0
    %v6791 = vadd.f32 0.0, %v6790
    %v6792 = vpop.f32.mrb[0].mxu0
    %v6793 = vadd.f32 0.0, %v6792
    %6794 = vmatprep.mubr.f32.mxu0 0.0
    %6795 = vmatmul.mubr.f32.gmra.mrb[0].mxu0 %v6629
    %v6796 = vpop.f32.mrb[0].mxu0
    %v6797 = vadd.f32 0.0, %v6796
    %v6798 = vpop.f32.mrb[0].mxu0
    %v6799 = vadd.f32 0.0, %v6798
    %6800 = vmatprep.mubr.f32.mxu0 0.0
    %6801 = vmatmul.mubr.f32.gmra.mrb[0].mxu0 %v6632
    %v6802 = vpop.f32.mrb[0].mxu0
    %v6803 = vadd.f32 0.0, %v6802
    %v6804 = vpop.f32.mrb[0].mxu0
    %v6805 = vadd.f32 0.0, %v6804
    %6806 = vmatprep.mubr.f32.mxu0 0.0
    %6807 = vmatmul.mubr.f32.gmra.mrb[0].mxu0 %v6635
    %v6808 = vpop.f32.mrb[0].mxu0
    %v6809 = vadd.f32 0.0, %v6808
    %v6810 = vpop.f32.mrb[0].mxu0
    %v6811 = vadd.f32 0.0, %v6810
    %6812 = vmatprep.mubr.f32.mxu0 0.0
    %6813 = vmatmul.mubr.f32.gmra.mrb[0].mxu0 %v6638
    %v6814 = vpop.f32.mrb[0].mxu0
    %v6815 = vadd.f32 0.0, %v6814
    %v6816 = vpop.f32.mrb[0].mxu0
    %v6817 = vadd.f32 0.0, %v6816
    %6818 = vmatprep.mubr.f32.mxu0 0.0
    %6819 = vmatmul.mubr.f32.gmra.mrb[0].mxu0 %v6641
    %v6820 = vpop.f32.mrb[0].mxu0
    %v6821 = vadd.f32 0.0, %v6820
    %v6822 = vpop.f32.mrb[0].mxu0
    %v6823 = vadd.f32 0.0, %v6822
    %6824 = vmatprep.mubr.f32.mxu0 0.0
    %6825 = vmatmul.mubr.f32.gmra.mrb[0].mxu0 %v6644
    %v6826 = vpop.f32.mrb[0].mxu0
    %v6827 = vadd.f32 0.0, %v6826
    %v6828 = vpop.f32.mrb[0].mxu0
    %v6829 = vadd.f32 0.0, %v6828
    %6830 = vmatprep.mubr.f32.mxu0 0.0
    %6831 = vmatmul.mubr.f32.gmra.mrb[0].mxu0 %v6647
    %v6832 = vpop.f32.mrb[0].mxu0
    %v6833 = vadd.f32 0.0, %v6832
    %v6834 = vpop.f32.mrb[0].mxu0
    %v6835 = vadd.f32 0.0, %v6834
    %6836 = vmatprep.mubr.f32.mxu0 0.0
    %6837 = vmatmul.mubr.f32.gmra.mrb[0].mxu0 %v6650
    %v6838 = vpop.f32.mrb[0].mxu0
    %v6839 = vadd.f32 0.0, %v6838
    %v6840 = vpop.f32.mrb[0].mxu0
    %v6841 = vadd.f32 0.0, %v6840
    %6842 = vmatprep.mubr.f32.mxu0 0.0
    %6843 = vmatmul.mubr.f32.gmra.mrb[0].mxu0 %v6653
    %v6844 = vpop.f32.mrb[0].mxu0
    %v6845 = vadd.f32 0.0, %v6844
    %v6846 = vpop.f32.mrb[0].mxu0
    %v6847 = vadd.f32 0.0, %v6846
    %6848 = vmatprep.mubr.f32.mxu0 0.0
    %6849 = vmatmul.mubr.f32.gmra.mrb[0].mxu0 %v6656
    %v6850 = vpop.f32.mrb[0].mxu0
    %v6851 = vadd.f32 0.0, %v6850
    %v6852 = vpop.f32.mrb[0].mxu0
    %v6853 = vadd.f32 0.0, %v6852
    %6854 = vmatprep.mubr.f32.mxu0 0.0
    %6855 = vmatmul.mubr.f32.gmra.mrb[0].mxu0 %v6659
    %v6856 = vpop.f32.mrb[0].mxu0
    %v6857 = vadd.f32 0.0, %v6856
    %v6858 = vpop.f32.mrb[0].mxu0
    %v6859 = vadd.f32 0.0, %v6858
    %6860 = vmatprep.mubr.f32.mxu0 0.0
    %6861 = vmatmul.mubr.f32.gmra.mrb[0].mxu0 %v6662
    %v6862 = vpop.f32.mrb[0].mxu0
    %v6863 = vadd.f32 0.0, %v6862
    %v6864 = vpop.f32.mrb[0].mxu0
    %v6865 = vadd.f32 0.0, %v6864
    %6866 = vmatprep.mubr.f32.mxu0 0.0
    %6867 = vmatmul.mubr.f32.gmra.mrb[0].mxu0 %v6665
    %v6868 = vpop.f32.mrb[0].mxu0
    %v6869 = vadd.f32 0.0, %v6868
    %v6870 = vpop.f32.mrb[0].mxu0
    %v6871 = vadd.f32 0.0, %v6870
    %6872 = vmatprep.mubr.f32.mxu0 0.0
    %6873 = vmatmul.mubr.f32.gmra.mrb[0].mxu0 %v6668
    %v6874 = vpop.f32.mrb[0].mxu0
    %v6875 = vadd.f32 0.0, %v6874
    %v6876 = vpop.f32.mrb[0].mxu0
    %v6877 = vadd.f32 0.0, %v6876
    %6878 = vmatprep.mubr.f32.mxu0 0.0
    %6879 = vmatmul.mubr.f32.gmra.mrb[0].mxu0 %v6671
    %v6880 = vpop.f32.mrb[0].mxu0
    %v6881 = vadd.f32 0.0, %v6880
    %v6882 = vpop.f32.mrb[0].mxu0
    %v6883 = vadd.f32 0.0, %v6882
    %6884 = vmatprep.mubr.f32.mxu0 0.0
    %6885 = vmatmul.mubr.f32.gmra.mrb[0].mxu0 %v6674
    %v6886 = vpop.f32.mrb[0].mxu0
    %v6887 = vadd.f32 0.0, %v6886
    %v6888 = vpop.f32.mrb[0].mxu0
    %v6889 = vadd.f32 0.0, %v6888
    %6890 = vmatprep.mubr.f32.mxu0 0.0
    %6891 = vmatmul.mubr.f32.gmra.mrb[0].mxu0 %v6677
    %v6892 = vpop.f32.mrb[0].mxu0
    %v6893 = vadd.f32 0.0, %v6892
    %v6894 = vpop.f32.mrb[0].mxu0
    %v6895 = vadd.f32 0.0, %v6894
    %6896 = vmatprep.mubr.f32.mxu0 0.0
    %6897 = vmatmul.mubr.f32.gmra.mrb[0].mxu0 %v6680
    %v6898 = vpop.f32.mrb[0].mxu0
    %v6899 = vadd.f32 0.0, %v6898
    %v6900 = vpop.f32.mrb[0].mxu0
    %v6901 = vadd.f32 0.0, %v6900
    %6902 = vmatprep.mubr.f32.mxu0 0.0
    %6903 = vmatmul.mubr.f32.gmra.mrb[0].mxu0 %v6683
    %v6904 = vpop.f32.mrb[0].mxu0
    %v6905 = vadd.f32 0.0, %v6904
    %v6906 = vpop.f32.mrb[0].mxu0
    %v6907 = vadd.f32 0.0, %v6906
    %6908 = vmatprep.mubr.f32.mxu0 0.0
    %6909 = vmatmul.mubr.f32.gmra.mrb[0].mxu0 %v6686
    %v6910 = vpop.f32.mrb[0].mxu0
    %v6911 = vadd.f32 0.0, %v6910
    %v6912 = vpop.f32.mrb[0].mxu0
    %v6913 = vadd.f32 0.0, %v6912
    %6914 = vmatprep.mubr.f32.mxu0 0.0
    %6915 = vmatmul.mubr.f32.gmra.mrb[0].mxu0 %v6689
    %v6916 = vpop.f32.mrb[0].mxu0
    %v6917 = vadd.f32 0.0, %v6916
    %v6918 = vpop.f32.mrb[0].mxu0
    %v6919 = vadd.f32 0.0, %v6918
    %6920 = vmatprep.mubr.f32.mxu0 0.0
    %6921 = vmatmul.mubr.f32.gmra.mrb[0].mxu0 %v6692
    %v6922 = vpop.f32.mrb[0].mxu0
    %v6923 = vadd.f32 0.0, %v6922
    %v6924 = vpop.f32.mrb[0].mxu0
    %v6925 = vadd.f32 0.0, %v6924
    %6926 = vmatprep.mubr.f32.mxu0 0.0
    %6927 = vmatmul.mubr.f32.gmra.mrb[0].mxu0 %v6695
    %v6928 = vpop.f32.mrb[0].mxu0
    %v6929 = vadd.f32 0.0, %v6928
    %v6930 = vpop.f32.mrb[0].mxu0
    %v6931 = vadd.f32 0.0, %v6930
    %6932 = vmatprep.mubr.f32.mxu0 0.0
    %6933 = vmatmul.mubr.f32.gmra.mrb[0].mxu0 %v6698
    %v6934 = vpop.f32.mrb[0].mxu0
    %v6935 = vadd.f32 0.0, %v6934
    %v6936 = vpop.f32.mrb[0].mxu0
    %v6937 = vadd.f32 0.0, %v6936
    %6938 = vmatprep.mubr.f32.mxu0 0.0
    %6939 = vmatmul.mubr.f32.gmra.mrb[0].mxu0 %v6701
    %v6940 = vpop.f32.mrb[0].mxu0
    %v6941 = vadd.f32 0.0, %v6940
    %v6942 = vpop.f32.mrb[0].mxu0
    %v6943 = vadd.f32 0.0, %v6942
    %6944 = vmatprep.mubr.f32.mxu0 0.0
    %6945 = vmatmul.mubr.f32.gmra.mrb[0].mxu0 %v6704
    %v6946 = vpop.f32.mrb[0].mxu0
    %v6947 = vadd.f32 0.0, %v6946
    %v6948 = vpop.f32.mrb[0].mxu0
    %v6949 = vadd.f32 0.0, %v6948
    %6950 = vmatprep.mubr.f32.mxu0 0.0
    %6951 = vmatmul.mubr.f32.gmra.mrb[0].mxu0 %v6707
    %v6952 = vpop.f32.mrb[0].mxu0
    %v6953 = vadd.f32 0.0, %v6952
    %v6954 = vpop.f32.mrb[0].mxu0
    %v6955 = vadd.f32 0.0, %v6954
    %6956 = vmatprep.mubr.f32.mxu0 0.0
    %6957 = vmatmul.mubr.f32.gmra.mrb[0].mxu0 %v6710
    %v6958 = vpop.f32.mrb[0].mxu0
    %v6959 = vadd.f32 0.0, %v6958
    %v6960 = vpop.f32.mrb[0].mxu0
    %v6961 = vadd.f32 0.0, %v6960
    %6962 = vmatprep.mubr.f32.mxu0 0.0
    %6963 = vmatmul.mubr.f32.gmra.mrb[0].mxu0 %v6713
    %v6964 = vpop.f32.mrb[0].mxu0
    %v6965 = vadd.f32 0.0, %v6964
    %v6966 = vpop.f32.mrb[0].mxu0
    %v6967 = vadd.f32 0.0, %v6966
    %6968 = vmatprep.mubr.f32.mxu0 0.0
    %6969 = vmatmul.mubr.f32.gmra.mrb[0].mxu0 %v6716
    %v6970 = vpop.f32.mrb[0].mxu0
    %v6971 = vadd.f32 0.0, %v6970
    %v6972 = vpop.f32.mrb[0].mxu0
    %v6973 = vadd.f32 0.0, %v6972
    %6974 = vdwg.mxu0
    %v6975 = vmax.f32 %v5726, %v5728
    %6976 = vmax.xlane.f32.xlu0 %v6975
    %v6977 = vpop.xlane.xlu0 %6976
    %v6978 = vmax.f32 %v5732, %v5734
    %6979 = vmax.xlane.f32.xlu0 %v6978
    %v6980 = vpop.xlane.xlu0 %6979
    %v6981 = vmax.f32 %v5738, %v5740
    %6982 = vmax.xlane.f32.xlu0 %v6981
    %v6983 = vpop.xlane.xlu0 %6982
    %v6984 = vmax.f32 %v5744, %v5746
    %6985 = vmax.xlane.f32.xlu0 %v6984
    %v6986 = vpop.xlane.xlu0 %6985
    %v6987 = vmax.f32 %v5750, %v5752
    %6988 = vmax.xlane.f32.xlu0 %v6987
    %v6989 = vpop.xlane.xlu0 %6988
    %v6990 = vmax.f32 %v5756, %v5758
    %6991 = vmax.xlane.f32.xlu0 %v6990
    %v6992 = vpop.xlane.xlu0 %6991
    %v6993 = vmax.f32 %v5762, %v5764
    %6994 = vmax.xlane.f32.xlu0 %v6993
    %v6995 = vpop.xlane.xlu0 %6994
    %v6996 = vmax.f32 %v5768, %v5770
    %6997 = vmax.xlane.f32.xlu0 %v6996
    %v6998 = vpop.xlane.xlu0 %6997
    %v6999 = vmax.f32 %v5774, %v5776
    %7000 = vmax.xlane.f32.xlu0 %v6999
    %v7001 = vpop.xlane.xlu0 %7000
    %v7002 = vmax.f32 %v5780, %v5782
    %7003 = vmax.xlane.f32.xlu0 %v7002
    %v7004 = vpop.xlane.xlu0 %7003
    %v7005 = vmax.f32 %v5786, %v5788
    %7006 = vmax.xlane.f32.xlu0 %v7005
    %v7007 = vpop.xlane.xlu0 %7006
    %v7008 = vmax.f32 %v5792, %v5794
    %7009 = vmax.xlane.f32.xlu0 %v7008
    %v7010 = vpop.xlane.xlu0 %7009
    %v7011 = vmax.f32 %v5798, %v5800
    %7012 = vmax.xlane.f32.xlu0 %v7011
    %v7013 = vpop.xlane.xlu0 %7012
    %v7014 = vmax.f32 %v5804, %v5806
    %7015 = vmax.xlane.f32.xlu0 %v7014
    %v7016 = vpop.xlane.xlu0 %7015
    %v7017 = vmax.f32 %v5810, %v5812
    %7018 = vmax.xlane.f32.xlu0 %v7017
    %v7019 = vpop.xlane.xlu0 %7018
    %v7020 = vmax.f32 %v5816, %v5818
    %7021 = vmax.xlane.f32.xlu0 %v7020
    %v7022 = vpop.xlane.xlu0 %7021
    %v7023 = vmax.f32 %v5822, %v5824
    %7024 = vmax.xlane.f32.xlu0 %v7023
    %v7025 = vpop.xlane.xlu0 %7024
    %v7026 = vmax.f32 %v5828, %v5830
    %7027 = vmax.xlane.f32.xlu0 %v7026
    %v7028 = vpop.xlane.xlu0 %7027
    %v7029 = vmax.f32 %v5834, %v5836
    %7030 = vmax.xlane.f32.xlu0 %v7029
    %v7031 = vpop.xlane.xlu0 %7030
    %v7032 = vmax.f32 %v5840, %v5842
    %7033 = vmax.xlane.f32.xlu0 %v7032
    %v7034 = vpop.xlane.xlu0 %7033
    %v7035 = vmax.f32 %v5846, %v5848
    %7036 = vmax.xlane.f32.xlu0 %v7035
    %v7037 = vpop.xlane.xlu0 %7036
    %v7038 = vmax.f32 %v5852, %v5854
    %7039 = vmax.xlane.f32.xlu0 %v7038
    %v7040 = vpop.xlane.xlu0 %7039
    %v7041 = vmax.f32 %v5858, %v5860
    %7042 = vmax.xlane.f32.xlu0 %v7041
    %v7043 = vpop.xlane.xlu0 %7042
    %v7044 = vmax.f32 %v5864, %v5866
    %7045 = vmax.xlane.f32.xlu0 %v7044
    %v7046 = vpop.xlane.xlu0 %7045
    %v7047 = vmax.f32 %v5870, %v5872
    %7048 = vmax.xlane.f32.xlu0 %v7047
    %v7049 = vpop.xlane.xlu0 %7048
    %v7050 = vmax.f32 %v5876, %v5878
    %7051 = vmax.xlane.f32.xlu0 %v7050
    %v7052 = vpop.xlane.xlu0 %7051
    %v7053 = vmax.f32 %v5882, %v5884
    %7054 = vmax.xlane.f32.xlu0 %v7053
    %v7055 = vpop.xlane.xlu0 %7054
    %v7056 = vmax.f32 %v5888, %v5890
    %7057 = vmax.xlane.f32.xlu0 %v7056
    %v7058 = vpop.xlane.xlu0 %7057
    %v7059 = vmax.f32 %v5894, %v5896
    %7060 = vmax.xlane.f32.xlu0 %v7059
    %v7061 = vpop.xlane.xlu0 %7060
    %v7062 = vmax.f32 %v5900, %v5902
    %7063 = vmax.xlane.f32.xlu0 %v7062
    %v7064 = vpop.xlane.xlu0 %7063
    %v7065 = vmax.f32 %v5906, %v5908
    %7066 = vmax.xlane.f32.xlu0 %v7065
    %v7067 = vpop.xlane.xlu0 %7066
    %v7068 = vmax.f32 %v5912, %v5914
    %7069 = vmax.xlane.f32.xlu0 %v7068
    %v7070 = vpop.xlane.xlu0 %7069
    %v7071 = vmax.f32 %v6079, %v6081
    %7072 = vmax.xlane.f32.xlu0 %v7071
    %v7073 = vpop.xlane.xlu0 %7072
    %v7074 = vmax.f32 %v6085, %v6087
    %7075 = vmax.xlane.f32.xlu0 %v7074
    %v7076 = vpop.xlane.xlu0 %7075
    %v7077 = vmax.f32 %v6091, %v6093
    %7078 = vmax.xlane.f32.xlu0 %v7077
    %v7079 = vpop.xlane.xlu0 %7078
    %v7080 = vmax.f32 %v6097, %v6099
    %7081 = vmax.xlane.f32.xlu0 %v7080
    %v7082 = vpop.xlane.xlu0 %7081
    %v7083 = vmax.f32 %v6103, %v6105
    %7084 = vmax.xlane.f32.xlu0 %v7083
    %v7085 = vpop.xlane.xlu0 %7084
    %v7086 = vmax.f32 %v6109, %v6111
    %7087 = vmax.xlane.f32.xlu0 %v7086
    %v7088 = vpop.xlane.xlu0 %7087
    %v7089 = vmax.f32 %v6115, %v6117
    %7090 = vmax.xlane.f32.xlu0 %v7089
    %v7091 = vpop.xlane.xlu0 %7090
    %v7092 = vmax.f32 %v6121, %v6123
    %7093 = vmax.xlane.f32.xlu0 %v7092
    %v7094 = vpop.xlane.xlu0 %7093
    %v7095 = vmax.f32 %v6127, %v6129
    %7096 = vmax.xlane.f32.xlu0 %v7095
    %v7097 = vpop.xlane.xlu0 %7096
    %v7098 = vmax.f32 %v6133, %v6135
    %7099 = vmax.xlane.f32.xlu0 %v7098
    %v7100 = vpop.xlane.xlu0 %7099
    %v7101 = vmax.f32 %v6139, %v6141
    %7102 = vmax.xlane.f32.xlu0 %v7101
    %v7103 = vpop.xlane.xlu0 %7102
    %v7104 = vmax.f32 %v6145, %v6147
    %7105 = vmax.xlane.f32.xlu0 %v7104
    %v7106 = vpop.xlane.xlu0 %7105
    %v7107 = vmax.f32 %v6151, %v6153
    %7108 = vmax.xlane.f32.xlu0 %v7107
    %v7109 = vpop.xlane.xlu0 %7108
    %v7110 = vmax.f32 %v6157, %v6159
    %7111 = vmax.xlane.f32.xlu0 %v7110
    %v7112 = vpop.xlane.xlu0 %7111
    %v7113 = vmax.f32 %v6163, %v6165
    %7114 = vmax.xlane.f32.xlu0 %v7113
    %v7115 = vpop.xlane.xlu0 %7114
    %v7116 = vmax.f32 %v6169, %v6171
    %7117 = vmax.xlane.f32.xlu0 %v7116
    %v7118 = vpop.xlane.xlu0 %7117
    %v7119 = vmax.f32 %v6175, %v6177
    %7120 = vmax.xlane.f32.xlu0 %v7119
    %v7121 = vpop.xlane.xlu0 %7120
    %v7122 = vmax.f32 %v6181, %v6183
    %7123 = vmax.xlane.f32.xlu0 %v7122
    %v7124 = vpop.xlane.xlu0 %7123
    %v7125 = vmax.f32 %v6187, %v6189
    %7126 = vmax.xlane.f32.xlu0 %v7125
    %v7127 = vpop.xlane.xlu0 %7126
    %v7128 = vmax.f32 %v6193, %v6195
    %7129 = vmax.xlane.f32.xlu0 %v7128
    %v7130 = vpop.xlane.xlu0 %7129
    %v7131 = vmax.f32 %v6199, %v6201
    %7132 = vmax.xlane.f32.xlu0 %v7131
    %v7133 = vpop.xlane.xlu0 %7132
    %v7134 = vmax.f32 %v6205, %v6207
    %7135 = vmax.xlane.f32.xlu0 %v7134
    %v7136 = vpop.xlane.xlu0 %7135
    %v7137 = vmax.f32 %v6211, %v6213
    %7138 = vmax.xlane.f32.xlu0 %v7137
    %v7139 = vpop.xlane.xlu0 %7138
    %v7140 = vmax.f32 %v6217, %v6219
    %7141 = vmax.xlane.f32.xlu0 %v7140
    %v7142 = vpop.xlane.xlu0 %7141
    %v7143 = vmax.f32 %v6223, %v6225
    %7144 = vmax.xlane.f32.xlu0 %v7143
    %v7145 = vpop.xlane.xlu0 %7144
    %v7146 = vmax.f32 %v6229, %v6231
    %7147 = vmax.xlane.f32.xlu0 %v7146
    %v7148 = vpop.xlane.xlu0 %7147
    %v7149 = vmax.f32 %v6235, %v6237
    %7150 = vmax.xlane.f32.xlu0 %v7149
    %v7151 = vpop.xlane.xlu0 %7150
    %v7152 = vmax.f32 %v6241, %v6243
    %7153 = vmax.xlane.f32.xlu0 %v7152
    %v7154 = vpop.xlane.xlu0 %7153
    %v7155 = vmax.f32 %v6247, %v6249
    %7156 = vmax.xlane.f32.xlu0 %v7155
    %v7157 = vpop.xlane.xlu0 %7156
    %v7158 = vmax.f32 %v6253, %v6255
    %7159 = vmax.xlane.f32.xlu0 %v7158
    %v7160 = vpop.xlane.xlu0 %7159
    %v7161 = vmax.f32 %v6259, %v6261
    %7162 = vmax.xlane.f32.xlu0 %v7161
    %v7163 = vpop.xlane.xlu0 %7162
    %v7164 = vmax.f32 %v6265, %v6267
    %7165 = vmax.xlane.f32.xlu0 %v7164
    %v7166 = vpop.xlane.xlu0 %7165
    %v7167 = vmax.f32 %v6432, %v6434
    %7168 = vmax.xlane.f32.xlu0 %v7167
    %v7169 = vpop.xlane.xlu0 %7168
    %v7170 = vmax.f32 %v6438, %v6440
    %7171 = vmax.xlane.f32.xlu0 %v7170
    %v7172 = vpop.xlane.xlu0 %7171
    %v7173 = vmax.f32 %v6444, %v6446
    %7174 = vmax.xlane.f32.xlu0 %v7173
    %v7175 = vpop.xlane.xlu0 %7174
    %v7176 = vmax.f32 %v6450, %v6452
    %7177 = vmax.xlane.f32.xlu0 %v7176
    %v7178 = vpop.xlane.xlu0 %7177
    %v7179 = vmax.f32 %v6456, %v6458
    %7180 = vmax.xlane.f32.xlu0 %v7179
    %v7181 = vpop.xlane.xlu0 %7180
    %v7182 = vmax.f32 %v6462, %v6464
    %7183 = vmax.xlane.f32.xlu0 %v7182
    %v7184 = vpop.xlane.xlu0 %7183
    %v7185 = vmax.f32 %v6468, %v6470
    %7186 = vmax.xlane.f32.xlu0 %v7185
    %v7187 = vpop.xlane.xlu0 %7186
    %v7188 = vmax.f32 %v6474, %v6476
    %7189 = vmax.xlane.f32.xlu0 %v7188
    %v7190 = vpop.xlane.xlu0 %7189
    %v7191 = vmax.f32 %v6480, %v6482
    %7192 = vmax.xlane.f32.xlu0 %v7191
    %v7193 = vpop.xlane.xlu0 %7192
    %v7194 = vmax.f32 %v6486, %v6488
    %7195 = vmax.xlane.f32.xlu0 %v7194
    %v7196 = vpop.xlane.xlu0 %7195
    %v7197 = vmax.f32 %v6492, %v6494
    %7198 = vmax.xlane.f32.xlu0 %v7197
    %v7199 = vpop.xlane.xlu0 %7198
    %v7200 = vmax.f32 %v6498, %v6500
    %7201 = vmax.xlane.f32.xlu0 %v7200
    %v7202 = vpop.xlane.xlu0 %7201
    %v7203 = vmax.f32 %v6504, %v6506
    %7204 = vmax.xlane.f32.xlu0 %v7203
    %v7205 = vpop.xlane.xlu0 %7204
    %v7206 = vmax.f32 %v6510, %v6512
    %7207 = vmax.xlane.f32.xlu0 %v7206
    %v7208 = vpop.xlane.xlu0 %7207
    %v7209 = vmax.f32 %v6516, %v6518
    %7210 = vmax.xlane.f32.xlu0 %v7209
    %v7211 = vpop.xlane.xlu0 %7210
    %v7212 = vmax.f32 %v6522, %v6524
    %7213 = vmax.xlane.f32.xlu0 %v7212
    %v7214 = vpop.xlane.xlu0 %7213
    %v7215 = vmax.f32 %v6528, %v6530
    %7216 = vmax.xlane.f32.xlu0 %v7215
    %v7217 = vpop.xlane.xlu0 %7216
    %v7218 = vmax.f32 %v6534, %v6536
    %7219 = vmax.xlane.f32.xlu0 %v7218
    %v7220 = vpop.xlane.xlu0 %7219
    %v7221 = vmax.f32 %v6540, %v6542
    %7222 = vmax.xlane.f32.xlu0 %v7221
    %v7223 = vpop.xlane.xlu0 %7222
    %v7224 = vmax.f32 %v6546, %v6548
    %7225 = vmax.xlane.f32.xlu0 %v7224
    %v7226 = vpop.xlane.xlu0 %7225
    %v7227 = vmax.f32 %v6552, %v6554
    %7228 = vmax.xlane.f32.xlu0 %v7227
    %v7229 = vpop.xlane.xlu0 %7228
    %v7230 = vmax.f32 %v6558, %v6560
    %7231 = vmax.xlane.f32.xlu0 %v7230
    %v7232 = vpop.xlane.xlu0 %7231
    %v7233 = vmax.f32 %v6564, %v6566
    %7234 = vmax.xlane.f32.xlu0 %v7233
    %v7235 = vpop.xlane.xlu0 %7234
    %v7236 = vmax.f32 %v6570, %v6572
    %7237 = vmax.xlane.f32.xlu0 %v7236
    %v7238 = vpop.xlane.xlu0 %7237
    %v7239 = vmax.f32 %v6576, %v6578
    %7240 = vmax.xlane.f32.xlu0 %v7239
    %v7241 = vpop.xlane.xlu0 %7240
    %v7242 = vmax.f32 %v6582, %v6584
    %7243 = vmax.xlane.f32.xlu0 %v7242
    %v7244 = vpop.xlane.xlu0 %7243
    %v7245 = vmax.f32 %v6588, %v6590
    %7246 = vmax.xlane.f32.xlu0 %v7245
    %v7247 = vpop.xlane.xlu0 %7246
    %v7248 = vmax.f32 %v6594, %v6596
    %7249 = vmax.xlane.f32.xlu0 %v7248
    %v7250 = vpop.xlane.xlu0 %7249
    %v7251 = vmax.f32 %v6600, %v6602
    %7252 = vmax.xlane.f32.xlu0 %v7251
    %v7253 = vpop.xlane.xlu0 %7252
    %v7254 = vmax.f32 %v6606, %v6608
    %7255 = vmax.xlane.f32.xlu0 %v7254
    %v7256 = vpop.xlane.xlu0 %7255
    %v7257 = vmax.f32 %v6612, %v6614
    %7258 = vmax.xlane.f32.xlu0 %v7257
    %v7259 = vpop.xlane.xlu0 %7258
    %v7260 = vmax.f32 %v6618, %v6620
    %7261 = vmax.xlane.f32.xlu0 %v7260
    %v7262 = vpop.xlane.xlu0 %7261
    %v7263 = vmax.f32 %v6785, %v6787
    %7264 = vmax.xlane.f32.xlu0 %v7263
    %v7265 = vpop.xlane.xlu0 %7264
    %v7266 = vmax.f32 %v6791, %v6793
    %7267 = vmax.xlane.f32.xlu0 %v7266
    %v7268 = vpop.xlane.xlu0 %7267
    %v7269 = vmax.f32 %v6797, %v6799
    %7270 = vmax.xlane.f32.xlu0 %v7269
    %v7271 = vpop.xlane.xlu0 %7270
    %v7272 = vmax.f32 %v6803, %v6805
    %7273 = vmax.xlane.f32.xlu0 %v7272
    %v7274 = vpop.xlane.xlu0 %7273
    %v7275 = vmax.f32 %v6809, %v6811
    %7276 = vmax.xlane.f32.xlu0 %v7275
    %v7277 = vpop.xlane.xlu0 %7276
    %v7278 = vmax.f32 %v6815, %v6817
    %7279 = vmax.xlane.f32.xlu0 %v7278
    %v7280 = vpop.xlane.xlu0 %7279
    %v7281 = vmax.f32 %v6821, %v6823
    %7282 = vmax.xlane.f32.xlu0 %v7281
    %v7283 = vpop.xlane.xlu0 %7282
    %v7284 = vmax.f32 %v6827, %v6829
    %7285 = vmax.xlane.f32.xlu0 %v7284
    %v7286 = vpop.xlane.xlu0 %7285
    %v7287 = vmax.f32 %v6833, %v6835
    %7288 = vmax.xlane.f32.xlu0 %v7287
    %v7289 = vpop.xlane.xlu0 %7288
    %v7290 = vmax.f32 %v6839, %v6841
    %7291 = vmax.xlane.f32.xlu0 %v7290
    %v7292 = vpop.xlane.xlu0 %7291
    %v7293 = vmax.f32 %v6845, %v6847
    %7294 = vmax.xlane.f32.xlu0 %v7293
    %v7295 = vpop.xlane.xlu0 %7294
    %v7296 = vmax.f32 %v6851, %v6853
    %7297 = vmax.xlane.f32.xlu0 %v7296
    %v7298 = vpop.xlane.xlu0 %7297
    %v7299 = vmax.f32 %v6857, %v6859
    %7300 = vmax.xlane.f32.xlu0 %v7299
    %v7301 = vpop.xlane.xlu0 %7300
    %v7302 = vmax.f32 %v6863, %v6865
    %7303 = vmax.xlane.f32.xlu0 %v7302
    %v7304 = vpop.xlane.xlu0 %7303
    %v7305 = vmax.f32 %v6869, %v6871
    %7306 = vmax.xlane.f32.xlu0 %v7305
    %v7307 = vpop.xlane.xlu0 %7306
    %v7308 = vmax.f32 %v6875, %v6877
    %7309 = vmax.xlane.f32.xlu0 %v7308
    %v7310 = vpop.xlane.xlu0 %7309
    %v7311 = vmax.f32 %v6881, %v6883
    %7312 = vmax.xlane.f32.xlu0 %v7311
    %v7313 = vpop.xlane.xlu0 %7312
    %v7314 = vmax.f32 %v6887, %v6889
    %7315 = vmax.xlane.f32.xlu0 %v7314
    %v7316 = vpop.xlane.xlu0 %7315
    %v7317 = vmax.f32 %v6893, %v6895
    %7318 = vmax.xlane.f32.xlu0 %v7317
    %v7319 = vpop.xlane.xlu0 %7318
    %v7320 = vmax.f32 %v6899, %v6901
    %7321 = vmax.xlane.f32.xlu0 %v7320
    %v7322 = vpop.xlane.xlu0 %7321
    %v7323 = vmax.f32 %v6905, %v6907
    %7324 = vmax.xlane.f32.xlu0 %v7323
    %v7325 = vpop.xlane.xlu0 %7324
    %v7326 = vmax.f32 %v6911, %v6913
    %7327 = vmax.xlane.f32.xlu0 %v7326
    %v7328 = vpop.xlane.xlu0 %7327
    %v7329 = vmax.f32 %v6917, %v6919
    %7330 = vmax.xlane.f32.xlu0 %v7329
    %v7331 = vpop.xlane.xlu0 %7330
    %v7332 = vmax.f32 %v6923, %v6925
    %7333 = vmax.xlane.f32.xlu0 %v7332
    %v7334 = vpop.xlane.xlu0 %7333
    %v7335 = vmax.f32 %v6929, %v6931
    %7336 = vmax.xlane.f32.xlu0 %v7335
    %v7337 = vpop.xlane.xlu0 %7336
    %v7338 = vmax.f32 %v6935, %v6937
    %7339 = vmax.xlane.f32.xlu0 %v7338
    %v7340 = vpop.xlane.xlu0 %7339
    %v7341 = vmax.f32 %v6941, %v6943
    %7342 = vmax.xlane.f32.xlu0 %v7341
    %v7343 = vpop.xlane.xlu0 %7342
    %v7344 = vmax.f32 %v6947, %v6949
    %7345 = vmax.xlane.f32.xlu0 %v7344
    %v7346 = vpop.xlane.xlu0 %7345
    %v7347 = vmax.f32 %v6953, %v6955
    %7348 = vmax.xlane.f32.xlu0 %v7347
    %v7349 = vpop.xlane.xlu0 %7348
    %v7350 = vmax.f32 %v6959, %v6961
    %7351 = vmax.xlane.f32.xlu0 %v7350
    %v7352 = vpop.xlane.xlu0 %7351
    %v7353 = vmax.f32 %v6965, %v6967
    %7354 = vmax.xlane.f32.xlu0 %v7353
    %v7355 = vpop.xlane.xlu0 %7354
    %v7356 = vmax.f32 %v6971, %v6973
    %7357 = vmax.xlane.f32.xlu0 %v7356
    %v7358 = vpop.xlane.xlu0 %7357
    %v7359 = vsub.f32 %v5726, %v6977
    %v7360 = vsub.f32 %v5728, %v6977
    %v7361 = vsub.f32 %v5732, %v6980
    %v7362 = vsub.f32 %v5734, %v6980
    %v7363 = vsub.f32 %v5738, %v6983
    %v7364 = vsub.f32 %v5740, %v6983
    %v7365 = vsub.f32 %v5744, %v6986
    %v7366 = vsub.f32 %v5746, %v6986
    %v7367 = vsub.f32 %v5750, %v6989
    %v7368 = vsub.f32 %v5752, %v6989
    %v7369 = vsub.f32 %v5756, %v6992
    %v7370 = vsub.f32 %v5758, %v6992
    %v7371 = vsub.f32 %v5762, %v6995
    %v7372 = vsub.f32 %v5764, %v6995
    %v7373 = vsub.f32 %v5768, %v6998
    %v7374 = vsub.f32 %v5770, %v6998
    %v7375 = vsub.f32 %v5774, %v7001
    %v7376 = vsub.f32 %v5776, %v7001
    %v7377 = vsub.f32 %v5780, %v7004
    %v7378 = vsub.f32 %v5782, %v7004
    %v7379 = vsub.f32 %v5786, %v7007
    %v7380 = vsub.f32 %v5788, %v7007
    %v7381 = vsub.f32 %v5792, %v7010
    %v7382 = vsub.f32 %v5794, %v7010
    %v7383 = vsub.f32 %v5798, %v7013
    %v7384 = vsub.f32 %v5800, %v7013
    %v7385 = vsub.f32 %v5804, %v7016
    %v7386 = vsub.f32 %v5806, %v7016
    %v7387 = vsub.f32 %v5810, %v7019
    %v7388 = vsub.f32 %v5812, %v7019
    %v7389 = vsub.f32 %v5816, %v7022
    %v7390 = vsub.f32 %v5818, %v7022
    %v7391 = vsub.f32 %v5822, %v7025
    %v7392 = vsub.f32 %v5824, %v7025
    %v7393 = vsub.f32 %v5828, %v7028
    %v7394 = vsub.f32 %v5830, %v7028
    %v7395 = vsub.f32 %v5834, %v7031
    %v7396 = vsub.f32 %v5836, %v7031
    %v7397 = vsub.f32 %v5840, %v7034
    %v7398 = vsub.f32 %v5842, %v7034
    %v7399 = vsub.f32 %v5846, %v7037
    %v7400 = vsub.f32 %v5848, %v7037
    %v7401 = vsub.f32 %v5852, %v7040
    %v7402 = vsub.f32 %v5854, %v7040
    %v7403 = vsub.f32 %v5858, %v7043
    %v7404 = vsub.f32 %v5860, %v7043
    %v7405 = vsub.f32 %v5864, %v7046
    %v7406 = vsub.f32 %v5866, %v7046
    %v7407 = vsub.f32 %v5870, %v7049
    %v7408 = vsub.f32 %v5872, %v7049
    %v7409 = vsub.f32 %v5876, %v7052
    %v7410 = vsub.f32 %v5878, %v7052
    %v7411 = vsub.f32 %v5882, %v7055
    %v7412 = vsub.f32 %v5884, %v7055
    %v7413 = vsub.f32 %v5888, %v7058
    %v7414 = vsub.f32 %v5890, %v7058
    %v7415 = vsub.f32 %v5894, %v7061
    %v7416 = vsub.f32 %v5896, %v7061
    %v7417 = vsub.f32 %v5900, %v7064
    %v7418 = vsub.f32 %v5902, %v7064
    %v7419 = vsub.f32 %v5906, %v7067
    %v7420 = vsub.f32 %v5908, %v7067
    %v7421 = vsub.f32 %v5912, %v7070
    %v7422 = vsub.f32 %v5914, %v7070
    %v7423 = vsub.f32 %v6079, %v7073
    %v7424 = vsub.f32 %v6081, %v7073
    %v7425 = vsub.f32 %v6085, %v7076
    %v7426 = vsub.f32 %v6087, %v7076
    %v7427 = vsub.f32 %v6091, %v7079
    %v7428 = vsub.f32 %v6093, %v7079
    %v7429 = vsub.f32 %v6097, %v7082
    %v7430 = vsub.f32 %v6099, %v7082
    %v7431 = vsub.f32 %v6103, %v7085
    %v7432 = vsub.f32 %v6105, %v7085
    %v7433 = vsub.f32 %v6109, %v7088
    %v7434 = vsub.f32 %v6111, %v7088
    %v7435 = vsub.f32 %v6115, %v7091
    %v7436 = vsub.f32 %v6117, %v7091
    %v7437 = vsub.f32 %v6121, %v7094
    %v7438 = vsub.f32 %v6123, %v7094
    %v7439 = vsub.f32 %v6127, %v7097
    %v7440 = vsub.f32 %v6129, %v7097
    %v7441 = vsub.f32 %v6133, %v7100
    %v7442 = vsub.f32 %v6135, %v7100
    %v7443 = vsub.f32 %v6139, %v7103
    %v7444 = vsub.f32 %v6141, %v7103
    %v7445 = vsub.f32 %v6145, %v7106
    %v7446 = vsub.f32 %v6147, %v7106
    %v7447 = vsub.f32 %v6151, %v7109
    %v7448 = vsub.f32 %v6153, %v7109
    %v7449 = vsub.f32 %v6157, %v7112
    %v7450 = vsub.f32 %v6159, %v7112
    %v7451 = vsub.f32 %v6163, %v7115
    %v7452 = vsub.f32 %v6165, %v7115
    %v7453 = vsub.f32 %v6169, %v7118
    %v7454 = vsub.f32 %v6171, %v7118
    %v7455 = vsub.f32 %v6175, %v7121
    %v7456 = vsub.f32 %v6177, %v7121
    %v7457 = vsub.f32 %v6181, %v7124
    %v7458 = vsub.f32 %v6183, %v7124
    %v7459 = vsub.f32 %v6187, %v7127
    %v7460 = vsub.f32 %v6189, %v7127
    %v7461 = vsub.f32 %v6193, %v7130
    %v7462 = vsub.f32 %v6195, %v7130
    %v7463 = vsub.f32 %v6199, %v7133
    %v7464 = vsub.f32 %v6201, %v7133
    %v7465 = vsub.f32 %v6205, %v7136
    %v7466 = vsub.f32 %v6207, %v7136
    %v7467 = vsub.f32 %v6211, %v7139
    %v7468 = vsub.f32 %v6213, %v7139
    %v7469 = vsub.f32 %v6217, %v7142
    %v7470 = vsub.f32 %v6219, %v7142
    %v7471 = vsub.f32 %v6223, %v7145
    %v7472 = vsub.f32 %v6225, %v7145
    %v7473 = vsub.f32 %v6229, %v7148
    %v7474 = vsub.f32 %v6231, %v7148
    %v7475 = vsub.f32 %v6235, %v7151
    %v7476 = vsub.f32 %v6237, %v7151
    %v7477 = vsub.f32 %v6241, %v7154
    %v7478 = vsub.f32 %v6243, %v7154
    %v7479 = vsub.f32 %v6247, %v7157
    %v7480 = vsub.f32 %v6249, %v7157
    %v7481 = vsub.f32 %v6253, %v7160
    %v7482 = vsub.f32 %v6255, %v7160
    %v7483 = vsub.f32 %v6259, %v7163
    %v7484 = vsub.f32 %v6261, %v7163
    %v7485 = vsub.f32 %v6265, %v7166
    %v7486 = vsub.f32 %v6267, %v7166
    %v7487 = vsub.f32 %v6432, %v7169
    %v7488 = vsub.f32 %v6434, %v7169
    %v7489 = vsub.f32 %v6438, %v7172
    %v7490 = vsub.f32 %v6440, %v7172
    %v7491 = vsub.f32 %v6444, %v7175
    %v7492 = vsub.f32 %v6446, %v7175
    %v7493 = vsub.f32 %v6450, %v7178
    %v7494 = vsub.f32 %v6452, %v7178
    %v7495 = vsub.f32 %v6456, %v7181
    %v7496 = vsub.f32 %v6458, %v7181
    %v7497 = vsub.f32 %v6462, %v7184
    %v7498 = vsub.f32 %v6464, %v7184
    %v7499 = vsub.f32 %v6468, %v7187
    %v7500 = vsub.f32 %v6470, %v7187
    %v7501 = vsub.f32 %v6474, %v7190
    %v7502 = vsub.f32 %v6476, %v7190
    %v7503 = vsub.f32 %v6480, %v7193
    %v7504 = vsub.f32 %v6482, %v7193
    %v7505 = vsub.f32 %v6486, %v7196
    %v7506 = vsub.f32 %v6488, %v7196
    %v7507 = vsub.f32 %v6492, %v7199
    %v7508 = vsub.f32 %v6494, %v7199
    %v7509 = vsub.f32 %v6498, %v7202
    %v7510 = vsub.f32 %v6500, %v7202
    %v7511 = vsub.f32 %v6504, %v7205
    %v7512 = vsub.f32 %v6506, %v7205
    %v7513 = vsub.f32 %v6510, %v7208
    %v7514 = vsub.f32 %v6512, %v7208
    %v7515 = vsub.f32 %v6516, %v7211
    %v7516 = vsub.f32 %v6518, %v7211
    %v7517 = vsub.f32 %v6522, %v7214
    %v7518 = vsub.f32 %v6524, %v7214
    %v7519 = vsub.f32 %v6528, %v7217
    %v7520 = vsub.f32 %v6530, %v7217
    %v7521 = vsub.f32 %v6534, %v7220
    %v7522 = vsub.f32 %v6536, %v7220
    %v7523 = vsub.f32 %v6540, %v7223
    %v7524 = vsub.f32 %v6542, %v7223
    %v7525 = vsub.f32 %v6546, %v7226
    %v7526 = vsub.f32 %v6548, %v7226
    %v7527 = vsub.f32 %v6552, %v7229
    %v7528 = vsub.f32 %v6554, %v7229
    %v7529 = vsub.f32 %v6558, %v7232
    %v7530 = vsub.f32 %v6560, %v7232
    %v7531 = vsub.f32 %v6564, %v7235
    %v7532 = vsub.f32 %v6566, %v7235
    %v7533 = vsub.f32 %v6570, %v7238
    %v7534 = vsub.f32 %v6572, %v7238
    %v7535 = vsub.f32 %v6576, %v7241
    %v7536 = vsub.f32 %v6578, %v7241
    %v7537 = vsub.f32 %v6582, %v7244
    %v7538 = vsub.f32 %v6584, %v7244
    %v7539 = vsub.f32 %v6588, %v7247
    %v7540 = vsub.f32 %v6590, %v7247
    %v7541 = vsub.f32 %v6594, %v7250
    %v7542 = vsub.f32 %v6596, %v7250
    %v7543 = vsub.f32 %v6600, %v7253
    %v7544 = vsub.f32 %v6602, %v7253
    %v7545 = vsub.f32 %v6606, %v7256
    %v7546 = vsub.f32 %v6608, %v7256
    %v7547 = vsub.f32 %v6612, %v7259
    %v7548 = vsub.f32 %v6614, %v7259
    %v7549 = vsub.f32 %v6618, %v7262
    %v7550 = vsub.f32 %v6620, %v7262
    %v7551 = vsub.f32 %v6785, %v7265
    %v7552 = vsub.f32 %v6787, %v7265
    %v7553 = vsub.f32 %v6791, %v7268
    %v7554 = vsub.f32 %v6793, %v7268
    %v7555 = vsub.f32 %v6797, %v7271
    %v7556 = vsub.f32 %v6799, %v7271
    %v7557 = vsub.f32 %v6803, %v7274
    %v7558 = vsub.f32 %v6805, %v7274
    %v7559 = vsub.f32 %v6809, %v7277
    %v7560 = vsub.f32 %v6811, %v7277
    %v7561 = vsub.f32 %v6815, %v7280
    %v7562 = vsub.f32 %v6817, %v7280
    %v7563 = vsub.f32 %v6821, %v7283
    %v7564 = vsub.f32 %v6823, %v7283
    %v7565 = vsub.f32 %v6827, %v7286
    %v7566 = vsub.f32 %v6829, %v7286
    %v7567 = vsub.f32 %v6833, %v7289
    %v7568 = vsub.f32 %v6835, %v7289
    %v7569 = vsub.f32 %v6839, %v7292
    %v7570 = vsub.f32 %v6841, %v7292
    %v7571 = vsub.f32 %v6845, %v7295
    %v7572 = vsub.f32 %v6847, %v7295
    %v7573 = vsub.f32 %v6851, %v7298
    %v7574 = vsub.f32 %v6853, %v7298
    %v7575 = vsub.f32 %v6857, %v7301
    %v7576 = vsub.f32 %v6859, %v7301
    %v7577 = vsub.f32 %v6863, %v7304
    %v7578 = vsub.f32 %v6865, %v7304
    %v7579 = vsub.f32 %v6869, %v7307
    %v7580 = vsub.f32 %v6871, %v7307
    %v7581 = vsub.f32 %v6875, %v7310
    %v7582 = vsub.f32 %v6877, %v7310
    %v7583 = vsub.f32 %v6881, %v7313
    %v7584 = vsub.f32 %v6883, %v7313
    %v7585 = vsub.f32 %v6887, %v7316
    %v7586 = vsub.f32 %v6889, %v7316
    %v7587 = vsub.f32 %v6893, %v7319
    %v7588 = vsub.f32 %v6895, %v7319
    %v7589 = vsub.f32 %v6899, %v7322
    %v7590 = vsub.f32 %v6901, %v7322
    %v7591 = vsub.f32 %v6905, %v7325
    %v7592 = vsub.f32 %v6907, %v7325
    %v7593 = vsub.f32 %v6911, %v7328
    %v7594 = vsub.f32 %v6913, %v7328
    %v7595 = vsub.f32 %v6917, %v7331
    %v7596 = vsub.f32 %v6919, %v7331
    %v7597 = vsub.f32 %v6923, %v7334
    %v7598 = vsub.f32 %v6925, %v7334
    %v7599 = vsub.f32 %v6929, %v7337
    %v7600 = vsub.f32 %v6931, %v7337
    %v7601 = vsub.f32 %v6935, %v7340
    %v7602 = vsub.f32 %v6937, %v7340
    %v7603 = vsub.f32 %v6941, %v7343
    %v7604 = vsub.f32 %v6943, %v7343
    %v7605 = vsub.f32 %v6947, %v7346
    %v7606 = vsub.f32 %v6949, %v7346
    %v7607 = vsub.f32 %v6953, %v7349
    %v7608 = vsub.f32 %v6955, %v7349
    %v7609 = vsub.f32 %v6959, %v7352
    %v7610 = vsub.f32 %v6961, %v7352
    %v7611 = vsub.f32 %v6965, %v7355
    %v7612 = vsub.f32 %v6967, %v7355
    %v7613 = vsub.f32 %v6971, %v7358
    %v7614 = vsub.f32 %v6973, %v7358
    %v7615 = vmul.f32 %v7359, 1.442695
    %v7616 = vpow.pop %v7615
    %v7617 = vmul.f32 %v7360, 1.442695
    %v7618 = vpow.pop %v7617
    %v7619 = vmul.f32 %v7361, 1.442695
    %v7620 = vpow.pop %v7619
    %v7621 = vmul.f32 %v7362, 1.442695
    %v7622 = vpow.pop %v7621
    %v7623 = vmul.f32 %v7363, 1.442695
    %v7624 = vpow.pop %v7623
    %v7625 = vmul.f32 %v7364, 1.442695
    %v7626 = vpow.pop %v7625
    %v7627 = vmul.f32 %v7365, 1.442695
    %v7628 = vpow.pop %v7627
    %v7629 = vmul.f32 %v7366, 1.442695
    %v7630 = vpow.pop %v7629
    %v7631 = vmul.f32 %v7367, 1.442695
    %v7632 = vpow.pop %v7631
    %v7633 = vmul.f32 %v7368, 1.442695
    %v7634 = vpow.pop %v7633
    %v7635 = vmul.f32 %v7369, 1.442695
    %v7636 = vpow.pop %v7635
    %v7637 = vmul.f32 %v7370, 1.442695
    %v7638 = vpow.pop %v7637
    %v7639 = vmul.f32 %v7371, 1.442695
    %v7640 = vpow.pop %v7639
    %v7641 = vmul.f32 %v7372, 1.442695
    %v7642 = vpow.pop %v7641
    %v7643 = vmul.f32 %v7373, 1.442695
    %v7644 = vpow.pop %v7643
    %v7645 = vmul.f32 %v7374, 1.442695
    %v7646 = vpow.pop %v7645
    %v7647 = vmul.f32 %v7375, 1.442695
    %v7648 = vpow.pop %v7647
    %v7649 = vmul.f32 %v7376, 1.442695
    %v7650 = vpow.pop %v7649
    %v7651 = vmul.f32 %v7377, 1.442695
    %v7652 = vpow.pop %v7651
    %v7653 = vmul.f32 %v7378, 1.442695
    %v7654 = vpow.pop %v7653
    %v7655 = vmul.f32 %v7379, 1.442695
    %v7656 = vpow.pop %v7655
    %v7657 = vmul.f32 %v7380, 1.442695
    %v7658 = vpow.pop %v7657
    %v7659 = vmul.f32 %v7381, 1.442695
    %v7660 = vpow.pop %v7659
    %v7661 = vmul.f32 %v7382, 1.442695
    %v7662 = vpow.pop %v7661
    %v7663 = vmul.f32 %v7383, 1.442695
    %v7664 = vpow.pop %v7663
    %v7665 = vmul.f32 %v7384, 1.442695
    %v7666 = vpow.pop %v7665
    %v7667 = vmul.f32 %v7385, 1.442695
    %v7668 = vpow.pop %v7667
    %v7669 = vmul.f32 %v7386, 1.442695
    %v7670 = vpow.pop %v7669
    %v7671 = vmul.f32 %v7387, 1.442695
    %v7672 = vpow.pop %v7671
    %v7673 = vmul.f32 %v7388, 1.442695
    %v7674 = vpow.pop %v7673
    %v7675 = vmul.f32 %v7389, 1.442695
    %v7676 = vpow.pop %v7675
    %v7677 = vmul.f32 %v7390, 1.442695
    %v7678 = vpow.pop %v7677
    %v7679 = vmul.f32 %v7391, 1.442695
    %v7680 = vpow.pop %v7679
    %v7681 = vmul.f32 %v7392, 1.442695
    %v7682 = vpow.pop %v7681
    %v7683 = vmul.f32 %v7393, 1.442695
    %v7684 = vpow.pop %v7683
    %v7685 = vmul.f32 %v7394, 1.442695
    %v7686 = vpow.pop %v7685
    %v7687 = vmul.f32 %v7395, 1.442695
    %v7688 = vpow.pop %v7687
    %v7689 = vmul.f32 %v7396, 1.442695
    %v7690 = vpow.pop %v7689
    %v7691 = vmul.f32 %v7397, 1.442695
    %v7692 = vpow.pop %v7691
    %v7693 = vmul.f32 %v7398, 1.442695
    %v7694 = vpow.pop %v7693
    %v7695 = vmul.f32 %v7399, 1.442695
    %v7696 = vpow.pop %v7695
    %v7697 = vmul.f32 %v7400, 1.442695
    %v7698 = vpow.pop %v7697
    %v7699 = vmul.f32 %v7401, 1.442695
    %v7700 = vpow.pop %v7699
    %v7701 = vmul.f32 %v7402, 1.442695
    %v7702 = vpow.pop %v7701
    %v7703 = vmul.f32 %v7403, 1.442695
    %v7704 = vpow.pop %v7703
    %v7705 = vmul.f32 %v7404, 1.442695
    %v7706 = vpow.pop %v7705
    %v7707 = vmul.f32 %v7405, 1.442695
    %v7708 = vpow.pop %v7707
    %v7709 = vmul.f32 %v7406, 1.442695
    %v7710 = vpow.pop %v7709
    %v7711 = vmul.f32 %v7407, 1.442695
    %v7712 = vpow.pop %v7711
    %v7713 = vmul.f32 %v7408, 1.442695
    %v7714 = vpow.pop %v7713
    %v7715 = vmul.f32 %v7409, 1.442695
    %v7716 = vpow.pop %v7715
    %v7717 = vmul.f32 %v7410, 1.442695
    %v7718 = vpow.pop %v7717
    %v7719 = vmul.f32 %v7411, 1.442695
    %v7720 = vpow.pop %v7719
    %v7721 = vmul.f32 %v7412, 1.442695
    %v7722 = vpow.pop %v7721
    %v7723 = vmul.f32 %v7413, 1.442695
    %v7724 = vpow.pop %v7723
    %v7725 = vmul.f32 %v7414, 1.442695
    %v7726 = vpow.pop %v7725
    %v7727 = vmul.f32 %v7415, 1.442695
    %v7728 = vpow.pop %v7727
    %v7729 = vmul.f32 %v7416, 1.442695
    %v7730 = vpow.pop %v7729
    %v7731 = vmul.f32 %v7417, 1.442695
    %v7732 = vpow.pop %v7731
    %v7733 = vmul.f32 %v7418, 1.442695
    %v7734 = vpow.pop %v7733
    %v7735 = vmul.f32 %v7419, 1.442695
    %v7736 = vpow.pop %v7735
    %v7737 = vmul.f32 %v7420, 1.442695
    %v7738 = vpow.pop %v7737
    %v7739 = vmul.f32 %v7421, 1.442695
    %v7740 = vpow.pop %v7739
    %v7741 = vmul.f32 %v7422, 1.442695
    %v7742 = vpow.pop %v7741
    %v7743 = vmul.f32 %v7423, 1.442695
    %v7744 = vpow.pop %v7743
    %v7745 = vmul.f32 %v7424, 1.442695
    %v7746 = vpow.pop %v7745
    %v7747 = vmul.f32 %v7425, 1.442695
    %v7748 = vpow.pop %v7747
    %v7749 = vmul.f32 %v7426, 1.442695
    %v7750 = vpow.pop %v7749
    %v7751 = vmul.f32 %v7427, 1.442695
    %v7752 = vpow.pop %v7751
    %v7753 = vmul.f32 %v7428, 1.442695
    %v7754 = vpow.pop %v7753
    %v7755 = vmul.f32 %v7429, 1.442695
    %v7756 = vpow.pop %v7755
    %v7757 = vmul.f32 %v7430, 1.442695
    %v7758 = vpow.pop %v7757
    %v7759 = vmul.f32 %v7431, 1.442695
    %v7760 = vpow.pop %v7759
    %v7761 = vmul.f32 %v7432, 1.442695
    %v7762 = vpow.pop %v7761
    %v7763 = vmul.f32 %v7433, 1.442695
    %v7764 = vpow.pop %v7763
    %v7765 = vmul.f32 %v7434, 1.442695
    %v7766 = vpow.pop %v7765
    %v7767 = vmul.f32 %v7435, 1.442695
    %v7768 = vpow.pop %v7767
    %v7769 = vmul.f32 %v7436, 1.442695
    %v7770 = vpow.pop %v7769
    %v7771 = vmul.f32 %v7437, 1.442695
    %v7772 = vpow.pop %v7771
    %v7773 = vmul.f32 %v7438, 1.442695
    %v7774 = vpow.pop %v7773
    %v7775 = vmul.f32 %v7439, 1.442695
    %v7776 = vpow.pop %v7775
    %v7777 = vmul.f32 %v7440, 1.442695
    %v7778 = vpow.pop %v7777
    %v7779 = vmul.f32 %v7441, 1.442695
    %v7780 = vpow.pop %v7779
    %v7781 = vmul.f32 %v7442, 1.442695
    %v7782 = vpow.pop %v7781
    %v7783 = vmul.f32 %v7443, 1.442695
    %v7784 = vpow.pop %v7783
    %v7785 = vmul.f32 %v7444, 1.442695
    %v7786 = vpow.pop %v7785
    %v7787 = vmul.f32 %v7445, 1.442695
    %v7788 = vpow.pop %v7787
    %v7789 = vmul.f32 %v7446, 1.442695
    %v7790 = vpow.pop %v7789
    %v7791 = vmul.f32 %v7447, 1.442695
    %v7792 = vpow.pop %v7791
    %v7793 = vmul.f32 %v7448, 1.442695
    %v7794 = vpow.pop %v7793
    %v7795 = vmul.f32 %v7449, 1.442695
    %v7796 = vpow.pop %v7795
    %v7797 = vmul.f32 %v7450, 1.442695
    %v7798 = vpow.pop %v7797
    %v7799 = vmul.f32 %v7451, 1.442695
    %v7800 = vpow.pop %v7799
    %v7801 = vmul.f32 %v7452, 1.442695
    %v7802 = vpow.pop %v7801
    %v7803 = vmul.f32 %v7453, 1.442695
    %v7804 = vpow.pop %v7803
    %v7805 = vmul.f32 %v7454, 1.442695
    %v7806 = vpow.pop %v7805
    %v7807 = vmul.f32 %v7455, 1.442695
    %v7808 = vpow.pop %v7807
    %v7809 = vmul.f32 %v7456, 1.442695
    %v7810 = vpow.pop %v7809
    %v7811 = vmul.f32 %v7457, 1.442695
    %v7812 = vpow.pop %v7811
    %v7813 = vmul.f32 %v7458, 1.442695
    %v7814 = vpow.pop %v7813
    %v7815 = vmul.f32 %v7459, 1.442695
    %v7816 = vpow.pop %v7815
    %v7817 = vmul.f32 %v7460, 1.442695
    %v7818 = vpow.pop %v7817
    %v7819 = vmul.f32 %v7461, 1.442695
    %v7820 = vpow.pop %v7819
    %v7821 = vmul.f32 %v7462, 1.442695
    %v7822 = vpow.pop %v7821
    %v7823 = vmul.f32 %v7463, 1.442695
    %v7824 = vpow.pop %v7823
    %v7825 = vmul.f32 %v7464, 1.442695
    %v7826 = vpow.pop %v7825
    %v7827 = vmul.f32 %v7465, 1.442695
    %v7828 = vpow.pop %v7827
    %v7829 = vmul.f32 %v7466, 1.442695
    %v7830 = vpow.pop %v7829
    %v7831 = vmul.f32 %v7467, 1.442695
    %v7832 = vpow.pop %v7831
    %v7833 = vmul.f32 %v7468, 1.442695
    %v7834 = vpow.pop %v7833
    %v7835 = vmul.f32 %v7469, 1.442695
    %v7836 = vpow.pop %v7835
    %v7837 = vmul.f32 %v7470, 1.442695
    %v7838 = vpow.pop %v7837
    %v7839 = vmul.f32 %v7471, 1.442695
    %v7840 = vpow.pop %v7839
    %v7841 = vmul.f32 %v7472, 1.442695
    %v7842 = vpow.pop %v7841
    %v7843 = vmul.f32 %v7473, 1.442695
    %v7844 = vpow.pop %v7843
    %v7845 = vmul.f32 %v7474, 1.442695
    %v7846 = vpow.pop %v7845
    %v7847 = vmul.f32 %v7475, 1.442695
    %v7848 = vpow.pop %v7847
    %v7849 = vmul.f32 %v7476, 1.442695
    %v7850 = vpow.pop %v7849
    %v7851 = vmul.f32 %v7477, 1.442695
    %v7852 = vpow.pop %v7851
    %v7853 = vmul.f32 %v7478, 1.442695
    %v7854 = vpow.pop %v7853
    %v7855 = vmul.f32 %v7479, 1.442695
    %v7856 = vpow.pop %v7855
    %v7857 = vmul.f32 %v7480, 1.442695
    %v7858 = vpow.pop %v7857
    %v7859 = vmul.f32 %v7481, 1.442695
    %v7860 = vpow.pop %v7859
    %v7861 = vmul.f32 %v7482, 1.442695
    %v7862 = vpow.pop %v7861
    %v7863 = vmul.f32 %v7483, 1.442695
    %v7864 = vpow.pop %v7863
    %v7865 = vmul.f32 %v7484, 1.442695
    %v7866 = vpow.pop %v7865
    %v7867 = vmul.f32 %v7485, 1.442695
    %v7868 = vpow.pop %v7867
    %v7869 = vmul.f32 %v7486, 1.442695
    %v7870 = vpow.pop %v7869
    %v7871 = vmul.f32 %v7487, 1.442695
    %v7872 = vpow.pop %v7871
    %v7873 = vmul.f32 %v7488, 1.442695
    %v7874 = vpow.pop %v7873
    %v7875 = vmul.f32 %v7489, 1.442695
    %v7876 = vpow.pop %v7875
    %v7877 = vmul.f32 %v7490, 1.442695
    %v7878 = vpow.pop %v7877
    %v7879 = vmul.f32 %v7491, 1.442695
    %v7880 = vpow.pop %v7879
    %v7881 = vmul.f32 %v7492, 1.442695
    %v7882 = vpow.pop %v7881
    %v7883 = vmul.f32 %v7493, 1.442695
    %v7884 = vpow.pop %v7883
    %v7885 = vmul.f32 %v7494, 1.442695
    %v7886 = vpow.pop %v7885
    %v7887 = vmul.f32 %v7495, 1.442695
    %v7888 = vpow.pop %v7887
    %v7889 = vmul.f32 %v7496, 1.442695
    %v7890 = vpow.pop %v7889
    %v7891 = vmul.f32 %v7497, 1.442695
    %v7892 = vpow.pop %v7891
    %v7893 = vmul.f32 %v7498, 1.442695
    %v7894 = vpow.pop %v7893
    %v7895 = vmul.f32 %v7499, 1.442695
    %v7896 = vpow.pop %v7895
    %v7897 = vmul.f32 %v7500, 1.442695
    %v7898 = vpow.pop %v7897
    %v7899 = vmul.f32 %v7501, 1.442695
    %v7900 = vpow.pop %v7899
    %v7901 = vmul.f32 %v7502, 1.442695
    %v7902 = vpow.pop %v7901
    %v7903 = vmul.f32 %v7503, 1.442695
    %v7904 = vpow.pop %v7903
    %v7905 = vmul.f32 %v7504, 1.442695
    %v7906 = vpow.pop %v7905
    %v7907 = vmul.f32 %v7505, 1.442695
    %v7908 = vpow.pop %v7907
    %v7909 = vmul.f32 %v7506, 1.442695
    %v7910 = vpow.pop %v7909
    %v7911 = vmul.f32 %v7507, 1.442695
    %v7912 = vpow.pop %v7911
    %v7913 = vmul.f32 %v7508, 1.442695
    %v7914 = vpow.pop %v7913
    %v7915 = vmul.f32 %v7509, 1.442695
    %v7916 = vpow.pop %v7915
    %v7917 = vmul.f32 %v7510, 1.442695
    %v7918 = vpow.pop %v7917
    %v7919 = vmul.f32 %v7511, 1.442695
    %v7920 = vpow.pop %v7919
    %v7921 = vmul.f32 %v7512, 1.442695
    %v7922 = vpow.pop %v7921
    %v7923 = vmul.f32 %v7513, 1.442695
    %v7924 = vpow.pop %v7923
    %v7925 = vmul.f32 %v7514, 1.442695
    %v7926 = vpow.pop %v7925
    %v7927 = vmul.f32 %v7515, 1.442695
    %v7928 = vpow.pop %v7927
    %v7929 = vmul.f32 %v7516, 1.442695
    %v7930 = vpow.pop %v7929
    %v7931 = vmul.f32 %v7517, 1.442695
    %v7932 = vpow.pop %v7931
    %v7933 = vmul.f32 %v7518, 1.442695
    %v7934 = vpow.pop %v7933
    %v7935 = vmul.f32 %v7519, 1.442695
    %v7936 = vpow.pop %v7935
    %v7937 = vmul.f32 %v7520, 1.442695
    %v7938 = vpow.pop %v7937
    %v7939 = vmul.f32 %v7521, 1.442695
    %v7940 = vpow.pop %v7939
    %v7941 = vmul.f32 %v7522, 1.442695
    %v7942 = vpow.pop %v7941
    %v7943 = vmul.f32 %v7523, 1.442695
    %v7944 = vpow.pop %v7943
    %v7945 = vmul.f32 %v7524, 1.442695
    %v7946 = vpow.pop %v7945
    %v7947 = vmul.f32 %v7525, 1.442695
    %v7948 = vpow.pop %v7947
    %v7949 = vmul.f32 %v7526, 1.442695
    %v7950 = vpow.pop %v7949
    %v7951 = vmul.f32 %v7527, 1.442695
    %v7952 = vpow.pop %v7951
    %v7953 = vmul.f32 %v7528, 1.442695
    %v7954 = vpow.pop %v7953
    %v7955 = vmul.f32 %v7529, 1.442695
    %v7956 = vpow.pop %v7955
    %v7957 = vmul.f32 %v7530, 1.442695
    %v7958 = vpow.pop %v7957
    %v7959 = vmul.f32 %v7531, 1.442695
    %v7960 = vpow.pop %v7959
    %v7961 = vmul.f32 %v7532, 1.442695
    %v7962 = vpow.pop %v7961
    %v7963 = vmul.f32 %v7533, 1.442695
    %v7964 = vpow.pop %v7963
    %v7965 = vmul.f32 %v7534, 1.442695
    %v7966 = vpow.pop %v7965
    %v7967 = vmul.f32 %v7535, 1.442695
    %v7968 = vpow.pop %v7967
    %v7969 = vmul.f32 %v7536, 1.442695
    %v7970 = vpow.pop %v7969
    %v7971 = vmul.f32 %v7537, 1.442695
    %v7972 = vpow.pop %v7971
    %v7973 = vmul.f32 %v7538, 1.442695
    %v7974 = vpow.pop %v7973
    %v7975 = vmul.f32 %v7539, 1.442695
    %v7976 = vpow.pop %v7975
    %v7977 = vmul.f32 %v7540, 1.442695
    %v7978 = vpow.pop %v7977
    %v7979 = vmul.f32 %v7541, 1.442695
    %v7980 = vpow.pop %v7979
    %v7981 = vmul.f32 %v7542, 1.442695
    %v7982 = vpow.pop %v7981
    %v7983 = vmul.f32 %v7543, 1.442695
    %v7984 = vpow.pop %v7983
    %v7985 = vmul.f32 %v7544, 1.442695
    %v7986 = vpow.pop %v7985
    %v7987 = vmul.f32 %v7545, 1.442695
    %v7988 = vpow.pop %v7987
    %v7989 = vmul.f32 %v7546, 1.442695
    %v7990 = vpow.pop %v7989
    %v7991 = vmul.f32 %v7547, 1.442695
    %v7992 = vpow.pop %v7991
    %v7993 = vmul.f32 %v7548, 1.442695
    %v7994 = vpow.pop %v7993
    %v7995 = vmul.f32 %v7549, 1.442695
    %v7996 = vpow.pop %v7995
    %v7997 = vmul.f32 %v7550, 1.442695
    %v7998 = vpow.pop %v7997
    %v7999 = vmul.f32 %v7551, 1.442695
    %v8000 = vpow.pop %v7999
    %v8001 = vmul.f32 %v7552, 1.442695
    %v8002 = vpow.pop %v8001
    %v8003 = vmul.f32 %v7553, 1.442695
    %v8004 = vpow.pop %v8003
    %v8005 = vmul.f32 %v7554, 1.442695
    %v8006 = vpow.pop %v8005
    %v8007 = vmul.f32 %v7555, 1.442695
    %v8008 = vpow.pop %v8007
    %v8009 = vmul.f32 %v7556, 1.442695
    %v8010 = vpow.pop %v8009
    %v8011 = vmul.f32 %v7557, 1.442695
    %v8012 = vpow.pop %v8011
    %v8013 = vmul.f32 %v7558, 1.442695
    %v8014 = vpow.pop %v8013
    %v8015 = vmul.f32 %v7559, 1.442695
    %v8016 = vpow.pop %v8015
    %v8017 = vmul.f32 %v7560, 1.442695
    %v8018 = vpow.pop %v8017
    %v8019 = vmul.f32 %v7561, 1.442695
    %v8020 = vpow.pop %v8019
    %v8021 = vmul.f32 %v7562, 1.442695
    %v8022 = vpow.pop %v8021
    %v8023 = vmul.f32 %v7563, 1.442695
    %v8024 = vpow.pop %v8023
    %v8025 = vmul.f32 %v7564, 1.442695
    %v8026 = vpow.pop %v8025
    %v8027 = vmul.f32 %v7565, 1.442695
    %v8028 = vpow.pop %v8027
    %v8029 = vmul.f32 %v7566, 1.442695
    %v8030 = vpow.pop %v8029
    %v8031 = vmul.f32 %v7567, 1.442695
    %v8032 = vpow.pop %v8031
    %v8033 = vmul.f32 %v7568, 1.442695
    %v8034 = vpow.pop %v8033
    %v8035 = vmul.f32 %v7569, 1.442695
    %v8036 = vpow.pop %v8035
    %v8037 = vmul.f32 %v7570, 1.442695
    %v8038 = vpow.pop %v8037
    %v8039 = vmul.f32 %v7571, 1.442695
    %v8040 = vpow.pop %v8039
    %v8041 = vmul.f32 %v7572, 1.442695
    %v8042 = vpow.pop %v8041
    %v8043 = vmul.f32 %v7573, 1.442695
    %v8044 = vpow.pop %v8043
    %v8045 = vmul.f32 %v7574, 1.442695
    %v8046 = vpow.pop %v8045
    %v8047 = vmul.f32 %v7575, 1.442695
    %v8048 = vpow.pop %v8047
    %v8049 = vmul.f32 %v7576, 1.442695
    %v8050 = vpow.pop %v8049
    %v8051 = vmul.f32 %v7577, 1.442695
    %v8052 = vpow.pop %v8051
    %v8053 = vmul.f32 %v7578, 1.442695
    %v8054 = vpow.pop %v8053
    %v8055 = vmul.f32 %v7579, 1.442695
    %v8056 = vpow.pop %v8055
    %v8057 = vmul.f32 %v7580, 1.442695
    %v8058 = vpow.pop %v8057
    %v8059 = vmul.f32 %v7581, 1.442695
    %v8060 = vpow.pop %v8059
    %v8061 = vmul.f32 %v7582, 1.442695
    %v8062 = vpow.pop %v8061
    %v8063 = vmul.f32 %v7583, 1.442695
    %v8064 = vpow.pop %v8063
    %v8065 = vmul.f32 %v7584, 1.442695
    %v8066 = vpow.pop %v8065
    %v8067 = vmul.f32 %v7585, 1.442695
    %v8068 = vpow.pop %v8067
    %v8069 = vmul.f32 %v7586, 1.442695
    %v8070 = vpow.pop %v8069
    %v8071 = vmul.f32 %v7587, 1.442695
    %v8072 = vpow.pop %v8071
    %v8073 = vmul.f32 %v7588, 1.442695
    %v8074 = vpow.pop %v8073
    %v8075 = vmul.f32 %v7589, 1.442695
    %v8076 = vpow.pop %v8075
    %v8077 = vmul.f32 %v7590, 1.442695
    %v8078 = vpow.pop %v8077
    %v8079 = vmul.f32 %v7591, 1.442695
    %v8080 = vpow.pop %v8079
    %v8081 = vmul.f32 %v7592, 1.442695
    %v8082 = vpow.pop %v8081
    %v8083 = vmul.f32 %v7593, 1.442695
    %v8084 = vpow.pop %v8083
    %v8085 = vmul.f32 %v7594, 1.442695
    %v8086 = vpow.pop %v8085
    %v8087 = vmul.f32 %v7595, 1.442695
    %v8088 = vpow.pop %v8087
    %v8089 = vmul.f32 %v7596, 1.442695
    %v8090 = vpow.pop %v8089
    %v8091 = vmul.f32 %v7597, 1.442695
    %v8092 = vpow.pop %v8091
    %v8093 = vmul.f32 %v7598, 1.442695
    %v8094 = vpow.pop %v8093
    %v8095 = vmul.f32 %v7599, 1.442695
    %v8096 = vpow.pop %v8095
    %v8097 = vmul.f32 %v7600, 1.442695
    %v8098 = vpow.pop %v8097
    %v8099 = vmul.f32 %v7601, 1.442695
    %v8100 = vpow.pop %v8099
    %v8101 = vmul.f32 %v7602, 1.442695
    %v8102 = vpow.pop %v8101
    %v8103 = vmul.f32 %v7603, 1.442695
    %v8104 = vpow.pop %v8103
    %v8105 = vmul.f32 %v7604, 1.442695
    %v8106 = vpow.pop %v8105
    %v8107 = vmul.f32 %v7605, 1.442695
    %v8108 = vpow.pop %v8107
    %v8109 = vmul.f32 %v7606, 1.442695
    %v8110 = vpow.pop %v8109
    %v8111 = vmul.f32 %v7607, 1.442695
    %v8112 = vpow.pop %v8111
    %v8113 = vmul.f32 %v7608, 1.442695
    %v8114 = vpow.pop %v8113
    %v8115 = vmul.f32 %v7609, 1.442695
    %v8116 = vpow.pop %v8115
    %v8117 = vmul.f32 %v7610, 1.442695
    %v8118 = vpow.pop %v8117
    %v8119 = vmul.f32 %v7611, 1.442695
    %v8120 = vpow.pop %v8119
    %v8121 = vmul.f32 %v7612, 1.442695
    %v8122 = vpow.pop %v8121
    %v8123 = vmul.f32 %v7613, 1.442695
    %v8124 = vpow.pop %v8123
    %v8125 = vmul.f32 %v7614, 1.442695
    %v8126 = vpow.pop %v8125
    %v8127 = vadd.f32 %v7616, %v7618
    %8128 = vadd.xlane.f32.xlu0 %v8127
    %v8129 = vpop.xlane.xlu0 %8128
    %v8130 = vadd.f32 %v7620, %v7622
    %8131 = vadd.xlane.f32.xlu0 %v8130
    %v8132 = vpop.xlane.xlu0 %8131
    %v8133 = vadd.f32 %v7624, %v7626
    %8134 = vadd.xlane.f32.xlu0 %v8133
    %v8135 = vpop.xlane.xlu0 %8134
    %v8136 = vadd.f32 %v7628, %v7630
    %8137 = vadd.xlane.f32.xlu0 %v8136
    %v8138 = vpop.xlane.xlu0 %8137
    %v8139 = vadd.f32 %v7632, %v7634
    %8140 = vadd.xlane.f32.xlu0 %v8139
    %v8141 = vpop.xlane.xlu0 %8140
    %v8142 = vadd.f32 %v7636, %v7638
    %8143 = vadd.xlane.f32.xlu0 %v8142
    %v8144 = vpop.xlane.xlu0 %8143
    %v8145 = vadd.f32 %v7640, %v7642
    %8146 = vadd.xlane.f32.xlu0 %v8145
    %v8147 = vpop.xlane.xlu0 %8146
    %v8148 = vadd.f32 %v7644, %v7646
    %8149 = vadd.xlane.f32.xlu0 %v8148
    %v8150 = vpop.xlane.xlu0 %8149
    %v8151 = vadd.f32 %v7648, %v7650
    %8152 = vadd.xlane.f32.xlu0 %v8151
    %v8153 = vpop.xlane.xlu0 %8152
    %v8154 = vadd.f32 %v7652, %v7654
    %8155 = vadd.xlane.f32.xlu0 %v8154
    %v8156 = vpop.xlane.xlu0 %8155
    %v8157 = vadd.f32 %v7656, %v7658
    %8158 = vadd.xlane.f32.xlu0 %v8157
    %v8159 = vpop.xlane.xlu0 %8158
    %v8160 = vadd.f32 %v7660, %v7662
    %8161 = vadd.xlane.f32.xlu0 %v8160
    %v8162 = vpop.xlane.xlu0 %8161
    %v8163 = vadd.f32 %v7664, %v7666
    %8164 = vadd.xlane.f32.xlu0 %v8163
    %v8165 = vpop.xlane.xlu0 %8164
    %v8166 = vadd.f32 %v7668, %v7670
    %8167 = vadd.xlane.f32.xlu0 %v8166
    %v8168 = vpop.xlane.xlu0 %8167
    %v8169 = vadd.f32 %v7672, %v7674
    %8170 = vadd.xlane.f32.xlu0 %v8169
    %v8171 = vpop.xlane.xlu0 %8170
    %v8172 = vadd.f32 %v7676, %v7678
    %8173 = vadd.xlane.f32.xlu0 %v8172
    %v8174 = vpop.xlane.xlu0 %8173
    %v8175 = vadd.f32 %v7680, %v7682
    %8176 = vadd.xlane.f32.xlu0 %v8175
    %v8177 = vpop.xlane.xlu0 %8176
    %v8178 = vadd.f32 %v7684, %v7686
    %8179 = vadd.xlane.f32.xlu0 %v8178
    %v8180 = vpop.xlane.xlu0 %8179
    %v8181 = vadd.f32 %v7688, %v7690
    %8182 = vadd.xlane.f32.xlu0 %v8181
    %v8183 = vpop.xlane.xlu0 %8182
    %v8184 = vadd.f32 %v7692, %v7694
    %8185 = vadd.xlane.f32.xlu0 %v8184
    %v8186 = vpop.xlane.xlu0 %8185
    %v8187 = vadd.f32 %v7696, %v7698
    %8188 = vadd.xlane.f32.xlu0 %v8187
    %v8189 = vpop.xlane.xlu0 %8188
    %v8190 = vadd.f32 %v7700, %v7702
    %8191 = vadd.xlane.f32.xlu0 %v8190
    %v8192 = vpop.xlane.xlu0 %8191
    %v8193 = vadd.f32 %v7704, %v7706
    %8194 = vadd.xlane.f32.xlu0 %v8193
    %v8195 = vpop.xlane.xlu0 %8194
    %v8196 = vadd.f32 %v7708, %v7710
    %8197 = vadd.xlane.f32.xlu0 %v8196
    %v8198 = vpop.xlane.xlu0 %8197
    %v8199 = vadd.f32 %v7712, %v7714
    %8200 = vadd.xlane.f32.xlu0 %v8199
    %v8201 = vpop.xlane.xlu0 %8200
    %v8202 = vadd.f32 %v7716, %v7718
    %8203 = vadd.xlane.f32.xlu0 %v8202
    %v8204 = vpop.xlane.xlu0 %8203
    %v8205 = vadd.f32 %v7720, %v7722
    %8206 = vadd.xlane.f32.xlu0 %v8205
    %v8207 = vpop.xlane.xlu0 %8206
    %v8208 = vadd.f32 %v7724, %v7726
    %8209 = vadd.xlane.f32.xlu0 %v8208
    %v8210 = vpop.xlane.xlu0 %8209
    %v8211 = vadd.f32 %v7728, %v7730
    %8212 = vadd.xlane.f32.xlu0 %v8211
    %v8213 = vpop.xlane.xlu0 %8212
    %v8214 = vadd.f32 %v7732, %v7734
    %8215 = vadd.xlane.f32.xlu0 %v8214
    %v8216 = vpop.xlane.xlu0 %8215
    %v8217 = vadd.f32 %v7736, %v7738
    %8218 = vadd.xlane.f32.xlu0 %v8217
    %v8219 = vpop.xlane.xlu0 %8218
    %v8220 = vadd.f32 %v7740, %v7742
    %8221 = vadd.xlane.f32.xlu0 %v8220
    %v8222 = vpop.xlane.xlu0 %8221
    %v8223 = vadd.f32 %v7744, %v7746
    %8224 = vadd.xlane.f32.xlu0 %v8223
    %v8225 = vpop.xlane.xlu0 %8224
    %v8226 = vadd.f32 %v7748, %v7750
    %8227 = vadd.xlane.f32.xlu0 %v8226
    %v8228 = vpop.xlane.xlu0 %8227
    %v8229 = vadd.f32 %v7752, %v7754
    %8230 = vadd.xlane.f32.xlu0 %v8229
    %v8231 = vpop.xlane.xlu0 %8230
    %v8232 = vadd.f32 %v7756, %v7758
    %8233 = vadd.xlane.f32.xlu0 %v8232
    %v8234 = vpop.xlane.xlu0 %8233
    %v8235 = vadd.f32 %v7760, %v7762
    %8236 = vadd.xlane.f32.xlu0 %v8235
    %v8237 = vpop.xlane.xlu0 %8236
    %v8238 = vadd.f32 %v7764, %v7766
    %8239 = vadd.xlane.f32.xlu0 %v8238
    %v8240 = vpop.xlane.xlu0 %8239
    %v8241 = vadd.f32 %v7768, %v7770
    %8242 = vadd.xlane.f32.xlu0 %v8241
    %v8243 = vpop.xlane.xlu0 %8242
    %v8244 = vadd.f32 %v7772, %v7774
    %8245 = vadd.xlane.f32.xlu0 %v8244
    %v8246 = vpop.xlane.xlu0 %8245
    %v8247 = vadd.f32 %v7776, %v7778
    %8248 = vadd.xlane.f32.xlu0 %v8247
    %v8249 = vpop.xlane.xlu0 %8248
    %v8250 = vadd.f32 %v7780, %v7782
    %8251 = vadd.xlane.f32.xlu0 %v8250
    %v8252 = vpop.xlane.xlu0 %8251
    %v8253 = vadd.f32 %v7784, %v7786
    %8254 = vadd.xlane.f32.xlu0 %v8253
    %v8255 = vpop.xlane.xlu0 %8254
    %v8256 = vadd.f32 %v7788, %v7790
    %8257 = vadd.xlane.f32.xlu0 %v8256
    %v8258 = vpop.xlane.xlu0 %8257
    %v8259 = vadd.f32 %v7792, %v7794
    %8260 = vadd.xlane.f32.xlu0 %v8259
    %v8261 = vpop.xlane.xlu0 %8260
    %v8262 = vadd.f32 %v7796, %v7798
    %8263 = vadd.xlane.f32.xlu0 %v8262
    %v8264 = vpop.xlane.xlu0 %8263
    %v8265 = vadd.f32 %v7800, %v7802
    %8266 = vadd.xlane.f32.xlu0 %v8265
    %v8267 = vpop.xlane.xlu0 %8266
    %v8268 = vadd.f32 %v7804, %v7806
    %8269 = vadd.xlane.f32.xlu0 %v8268
    %v8270 = vpop.xlane.xlu0 %8269
    %v8271 = vadd.f32 %v7808, %v7810
    %8272 = vadd.xlane.f32.xlu0 %v8271
    %v8273 = vpop.xlane.xlu0 %8272
    %v8274 = vadd.f32 %v7812, %v7814
    %8275 = vadd.xlane.f32.xlu0 %v8274
    %v8276 = vpop.xlane.xlu0 %8275
    %v8277 = vadd.f32 %v7816, %v7818
    %8278 = vadd.xlane.f32.xlu0 %v8277
    %v8279 = vpop.xlane.xlu0 %8278
    %v8280 = vadd.f32 %v7820, %v7822
    %8281 = vadd.xlane.f32.xlu0 %v8280
    %v8282 = vpop.xlane.xlu0 %8281
    %v8283 = vadd.f32 %v7824, %v7826
    %8284 = vadd.xlane.f32.xlu0 %v8283
    %v8285 = vpop.xlane.xlu0 %8284
    %v8286 = vadd.f32 %v7828, %v7830
    %8287 = vadd.xlane.f32.xlu0 %v8286
    %v8288 = vpop.xlane.xlu0 %8287
    %v8289 = vadd.f32 %v7832, %v7834
    %8290 = vadd.xlane.f32.xlu0 %v8289
    %v8291 = vpop.xlane.xlu0 %8290
    %v8292 = vadd.f32 %v7836, %v7838
    %8293 = vadd.xlane.f32.xlu0 %v8292
    %v8294 = vpop.xlane.xlu0 %8293
    %v8295 = vadd.f32 %v7840, %v7842
    %8296 = vadd.xlane.f32.xlu0 %v8295
    %v8297 = vpop.xlane.xlu0 %8296
    %v8298 = vadd.f32 %v7844, %v7846
    %8299 = vadd.xlane.f32.xlu0 %v8298
    %v8300 = vpop.xlane.xlu0 %8299
    %v8301 = vadd.f32 %v7848, %v7850
    %8302 = vadd.xlane.f32.xlu0 %v8301
    %v8303 = vpop.xlane.xlu0 %8302
    %v8304 = vadd.f32 %v7852, %v7854
    %8305 = vadd.xlane.f32.xlu0 %v8304
    %v8306 = vpop.xlane.xlu0 %8305
    %v8307 = vadd.f32 %v7856, %v7858
    %8308 = vadd.xlane.f32.xlu0 %v8307
    %v8309 = vpop.xlane.xlu0 %8308
    %v8310 = vadd.f32 %v7860, %v7862
    %8311 = vadd.xlane.f32.xlu0 %v8310
    %v8312 = vpop.xlane.xlu0 %8311
    %v8313 = vadd.f32 %v7864, %v7866
    %8314 = vadd.xlane.f32.xlu0 %v8313
    %v8315 = vpop.xlane.xlu0 %8314
    %v8316 = vadd.f32 %v7868, %v7870
    %8317 = vadd.xlane.f32.xlu0 %v8316
    %v8318 = vpop.xlane.xlu0 %8317
    %v8319 = vadd.f32 %v7872, %v7874
    %8320 = vadd.xlane.f32.xlu0 %v8319
    %v8321 = vpop.xlane.xlu0 %8320
    %v8322 = vadd.f32 %v7876, %v7878
    %8323 = vadd.xlane.f32.xlu0 %v8322
    %v8324 = vpop.xlane.xlu0 %8323
    %v8325 = vadd.f32 %v7880, %v7882
    %8326 = vadd.xlane.f32.xlu0 %v8325
    %v8327 = vpop.xlane.xlu0 %8326
    %v8328 = vadd.f32 %v7884, %v7886
    %8329 = vadd.xlane.f32.xlu0 %v8328
    %v8330 = vpop.xlane.xlu0 %8329
    %v8331 = vadd.f32 %v7888, %v7890
    %8332 = vadd.xlane.f32.xlu0 %v8331
    %v8333 = vpop.xlane.xlu0 %8332
    %v8334 = vadd.f32 %v7892, %v7894
    %8335 = vadd.xlane.f32.xlu0 %v8334
    %v8336 = vpop.xlane.xlu0 %8335
    %v8337 = vadd.f32 %v7896, %v7898
    %8338 = vadd.xlane.f32.xlu0 %v8337
    %v8339 = vpop.xlane.xlu0 %8338
    %v8340 = vadd.f32 %v7900, %v7902
    %8341 = vadd.xlane.f32.xlu0 %v8340
    %v8342 = vpop.xlane.xlu0 %8341
    %v8343 = vadd.f32 %v7904, %v7906
    %8344 = vadd.xlane.f32.xlu0 %v8343
    %v8345 = vpop.xlane.xlu0 %8344
    %v8346 = vadd.f32 %v7908, %v7910
    %8347 = vadd.xlane.f32.xlu0 %v8346
    %v8348 = vpop.xlane.xlu0 %8347
    %v8349 = vadd.f32 %v7912, %v7914
    %8350 = vadd.xlane.f32.xlu0 %v8349
    %v8351 = vpop.xlane.xlu0 %8350
    %v8352 = vadd.f32 %v7916, %v7918
    %8353 = vadd.xlane.f32.xlu0 %v8352
    %v8354 = vpop.xlane.xlu0 %8353
    %v8355 = vadd.f32 %v7920, %v7922
    %8356 = vadd.xlane.f32.xlu0 %v8355
    %v8357 = vpop.xlane.xlu0 %8356
    %v8358 = vadd.f32 %v7924, %v7926
    %8359 = vadd.xlane.f32.xlu0 %v8358
    %v8360 = vpop.xlane.xlu0 %8359
    %v8361 = vadd.f32 %v7928, %v7930
    %8362 = vadd.xlane.f32.xlu0 %v8361
    %v8363 = vpop.xlane.xlu0 %8362
    %v8364 = vadd.f32 %v7932, %v7934
    %8365 = vadd.xlane.f32.xlu0 %v8364
    %v8366 = vpop.xlane.xlu0 %8365
    %v8367 = vadd.f32 %v7936, %v7938
    %8368 = vadd.xlane.f32.xlu0 %v8367
    %v8369 = vpop.xlane.xlu0 %8368
    %v8370 = vadd.f32 %v7940, %v7942
    %8371 = vadd.xlane.f32.xlu0 %v8370
    %v8372 = vpop.xlane.xlu0 %8371
    %v8373 = vadd.f32 %v7944, %v7946
    %8374 = vadd.xlane.f32.xlu0 %v8373
    %v8375 = vpop.xlane.xlu0 %8374
    %v8376 = vadd.f32 %v7948, %v7950
    %8377 = vadd.xlane.f32.xlu0 %v8376
    %v8378 = vpop.xlane.xlu0 %8377
    %v8379 = vadd.f32 %v7952, %v7954
    %8380 = vadd.xlane.f32.xlu0 %v8379
    %v8381 = vpop.xlane.xlu0 %8380
    %v8382 = vadd.f32 %v7956, %v7958
    %8383 = vadd.xlane.f32.xlu0 %v8382
    %v8384 = vpop.xlane.xlu0 %8383
    %v8385 = vadd.f32 %v7960, %v7962
    %8386 = vadd.xlane.f32.xlu0 %v8385
    %v8387 = vpop.xlane.xlu0 %8386
    %v8388 = vadd.f32 %v7964, %v7966
    %8389 = vadd.xlane.f32.xlu0 %v8388
    %v8390 = vpop.xlane.xlu0 %8389
    %v8391 = vadd.f32 %v7968, %v7970
    %8392 = vadd.xlane.f32.xlu0 %v8391
    %v8393 = vpop.xlane.xlu0 %8392
    %v8394 = vadd.f32 %v7972, %v7974
    %8395 = vadd.xlane.f32.xlu0 %v8394
    %v8396 = vpop.xlane.xlu0 %8395
    %v8397 = vadd.f32 %v7976, %v7978
    %8398 = vadd.xlane.f32.xlu0 %v8397
    %v8399 = vpop.xlane.xlu0 %8398
    %v8400 = vadd.f32 %v7980, %v7982
    %8401 = vadd.xlane.f32.xlu0 %v8400
    %v8402 = vpop.xlane.xlu0 %8401
    %v8403 = vadd.f32 %v7984, %v7986
    %8404 = vadd.xlane.f32.xlu0 %v8403
    %v8405 = vpop.xlane.xlu0 %8404
    %v8406 = vadd.f32 %v7988, %v7990
    %8407 = vadd.xlane.f32.xlu0 %v8406
    %v8408 = vpop.xlane.xlu0 %8407
    %v8409 = vadd.f32 %v7992, %v7994
    %8410 = vadd.xlane.f32.xlu0 %v8409
    %v8411 = vpop.xlane.xlu0 %8410
    %v8412 = vadd.f32 %v7996, %v7998
    %8413 = vadd.xlane.f32.xlu0 %v8412
    %v8414 = vpop.xlane.xlu0 %8413
    %v8415 = vadd.f32 %v8000, %v8002
    %8416 = vadd.xlane.f32.xlu0 %v8415
    %v8417 = vpop.xlane.xlu0 %8416
    %v8418 = vadd.f32 %v8004, %v8006
    %8419 = vadd.xlane.f32.xlu0 %v8418
    %v8420 = vpop.xlane.xlu0 %8419
    %v8421 = vadd.f32 %v8008, %v8010
    %8422 = vadd.xlane.f32.xlu0 %v8421
    %v8423 = vpop.xlane.xlu0 %8422
    %v8424 = vadd.f32 %v8012, %v8014
    %8425 = vadd.xlane.f32.xlu0 %v8424
    %v8426 = vpop.xlane.xlu0 %8425
    %v8427 = vadd.f32 %v8016, %v8018
    %8428 = vadd.xlane.f32.xlu0 %v8427
    %v8429 = vpop.xlane.xlu0 %8428
    %v8430 = vadd.f32 %v8020, %v8022
    %8431 = vadd.xlane.f32.xlu0 %v8430
    %v8432 = vpop.xlane.xlu0 %8431
    %v8433 = vadd.f32 %v8024, %v8026
    %8434 = vadd.xlane.f32.xlu0 %v8433
    %v8435 = vpop.xlane.xlu0 %8434
    %v8436 = vadd.f32 %v8028, %v8030
    %8437 = vadd.xlane.f32.xlu0 %v8436
    %v8438 = vpop.xlane.xlu0 %8437
    %v8439 = vadd.f32 %v8032, %v8034
    %8440 = vadd.xlane.f32.xlu0 %v8439
    %v8441 = vpop.xlane.xlu0 %8440
    %v8442 = vadd.f32 %v8036, %v8038
    %8443 = vadd.xlane.f32.xlu0 %v8442
    %v8444 = vpop.xlane.xlu0 %8443
    %v8445 = vadd.f32 %v8040, %v8042
    %8446 = vadd.xlane.f32.xlu0 %v8445
    %v8447 = vpop.xlane.xlu0 %8446
    %v8448 = vadd.f32 %v8044, %v8046
    %8449 = vadd.xlane.f32.xlu0 %v8448
    %v8450 = vpop.xlane.xlu0 %8449
    %v8451 = vadd.f32 %v8048, %v8050
    %8452 = vadd.xlane.f32.xlu0 %v8451
    %v8453 = vpop.xlane.xlu0 %8452
    %v8454 = vadd.f32 %v8052, %v8054
    %8455 = vadd.xlane.f32.xlu0 %v8454
    %v8456 = vpop.xlane.xlu0 %8455
    %v8457 = vadd.f32 %v8056, %v8058
    %8458 = vadd.xlane.f32.xlu0 %v8457
    %v8459 = vpop.xlane.xlu0 %8458
    %v8460 = vadd.f32 %v8060, %v8062
    %8461 = vadd.xlane.f32.xlu0 %v8460
    %v8462 = vpop.xlane.xlu0 %8461
    %v8463 = vadd.f32 %v8064, %v8066
    %8464 = vadd.xlane.f32.xlu0 %v8463
    %v8465 = vpop.xlane.xlu0 %8464
    %v8466 = vadd.f32 %v8068, %v8070
    %8467 = vadd.xlane.f32.xlu0 %v8466
    %v8468 = vpop.xlane.xlu0 %8467
    %v8469 = vadd.f32 %v8072, %v8074
    %8470 = vadd.xlane.f32.xlu0 %v8469
    %v8471 = vpop.xlane.xlu0 %8470
    %v8472 = vadd.f32 %v8076, %v8078
    %8473 = vadd.xlane.f32.xlu0 %v8472
    %v8474 = vpop.xlane.xlu0 %8473
    %v8475 = vadd.f32 %v8080, %v8082
    %8476 = vadd.xlane.f32.xlu0 %v8475
    %v8477 = vpop.xlane.xlu0 %8476
    %v8478 = vadd.f32 %v8084, %v8086
    %8479 = vadd.xlane.f32.xlu0 %v8478
    %v8480 = vpop.xlane.xlu0 %8479
    %v8481 = vadd.f32 %v8088, %v8090
    %8482 = vadd.xlane.f32.xlu0 %v8481
    %v8483 = vpop.xlane.xlu0 %8482
    %v8484 = vadd.f32 %v8092, %v8094
    %8485 = vadd.xlane.f32.xlu0 %v8484
    %v8486 = vpop.xlane.xlu0 %8485
    %v8487 = vadd.f32 %v8096, %v8098
    %8488 = vadd.xlane.f32.xlu0 %v8487
    %v8489 = vpop.xlane.xlu0 %8488
    %v8490 = vadd.f32 %v8100, %v8102
    %8491 = vadd.xlane.f32.xlu0 %v8490
    %v8492 = vpop.xlane.xlu0 %8491
    %v8493 = vadd.f32 %v8104, %v8106
    %8494 = vadd.xlane.f32.xlu0 %v8493
    %v8495 = vpop.xlane.xlu0 %8494
    %v8496 = vadd.f32 %v8108, %v8110
    %8497 = vadd.xlane.f32.xlu0 %v8496
    %v8498 = vpop.xlane.xlu0 %8497
    %v8499 = vadd.f32 %v8112, %v8114
    %8500 = vadd.xlane.f32.xlu0 %v8499
    %v8501 = vpop.xlane.xlu0 %8500
    %v8502 = vadd.f32 %v8116, %v8118
    %8503 = vadd.xlane.f32.xlu0 %v8502
    %v8504 = vpop.xlane.xlu0 %8503
    %v8505 = vadd.f32 %v8120, %v8122
    %8506 = vadd.xlane.f32.xlu0 %v8505
    %v8507 = vpop.xlane.xlu0 %8506
    %v8508 = vadd.f32 %v8124, %v8126
    %8509 = vadd.xlane.f32.xlu0 %v8508
    %v8510 = vpop.xlane.xlu0 %8509
    %8511 = vmatprep.subr.mxu0 %v5287
    %8512 = vmatpush1.xpose.msra.mxu0 %v5285
    %8513 = vmatprep.subr.mxu0 0.0
    %8514 = vmatpush1.xpose.msra.mxu0 0.0
    %8515 = vmatprep.subr.mxu0 0.0
    %8516 = vmatpush1.xpose.msra.mxu0 0.0
    %8517 = vmatprep.subr.mxu0 0.0
    %8518 = vmatpush1.xpose.msra.mxu0 0.0
    %8519 = vmatprep.subr.mxu0 0.0
    %8520 = vmatpush1.xpose.msra.mxu0 0.0
    %8521 = vmatprep.subr.mxu0 0.0
    %8522 = vmatpush1.xpose.msra.mxu0 0.0
    %8523 = vmatprep.subr.mxu0 0.0
    %8524 = vmatpush1.xpose.msra.mxu0 0.0
    %8525 = vmatprep.subr.mxu0 0.0
    %8526 = vmatpush1.xpose.msra.mxu0 0.0
    %8527 = vmatprep.subr.mxu0 0.0
    %8528 = vmatpush1.xpose.msra.mxu0 0.0
    %8529 = vmatprep.subr.mxu0 0.0
    %8530 = vmatpush1.xpose.msra.mxu0 0.0
    %8531 = vmatprep.subr.mxu0 0.0
    %8532 = vmatpush1.xpose.msra.mxu0 0.0
    %8533 = vmatprep.subr.mxu0 0.0
    %8534 = vmatpush1.xpose.msra.mxu0 0.0
    %8535 = vmatprep.subr.mxu0 0.0
    %8536 = vmatpush1.xpose.msra.mxu0 0.0
    %8537 = vmatprep.subr.mxu0 0.0
    %8538 = vmatpush1.xpose.msra.mxu0 0.0
    %8539 = vmatprep.subr.mxu0 0.0
    %8540 = vmatpush1.xpose.msra.mxu0 0.0
    %8541 = vmatprep.subr.mxu0 0.0
    %8542 = vmatpush1.xpose.msra.mxu0 0.0
    %8543 = vmatprep.subr.mxu0 0.0
    %8544 = vmatpush1.xpose.msra.mxu0 0.0
    %8545 = vmatprep.subr.mxu0 0.0
    %8546 = vmatpush1.xpose.msra.mxu0 0.0
    %8547 = vmatprep.subr.mxu0 0.0
    %8548 = vmatpush1.xpose.msra.mxu0 0.0
    %8549 = vmatprep.subr.mxu0 0.0
    %8550 = vmatpush1.xpose.msra.mxu0 0.0
    %8551 = vmatprep.subr.mxu0 0.0
    %8552 = vmatpush1.xpose.msra.mxu0 0.0
    %8553 = vmatprep.subr.mxu0 0.0
    %8554 = vmatpush1.xpose.msra.mxu0 0.0
    %8555 = vmatprep.subr.mxu0 0.0
    %8556 = vmatpush1.xpose.msra.mxu0 0.0
    %8557 = vmatprep.subr.mxu0 0.0
    %8558 = vmatpush1.xpose.msra.mxu0 0.0
    %8559 = vmatprep.subr.mxu0 0.0
    %8560 = vmatpush1.xpose.msra.mxu0 0.0
    %8561 = vmatprep.subr.mxu0 0.0
    %8562 = vmatpush1.xpose.msra.mxu0 0.0
    %8563 = vmatprep.subr.mxu0 0.0
    %8564 = vmatpush1.xpose.msra.mxu0 0.0
    %8565 = vmatprep.subr.mxu0 0.0
    %8566 = vmatpush1.xpose.msra.mxu0 0.0
    %8567 = vmatprep.subr.mxu0 0.0
    %8568 = vmatpush1.xpose.msra.mxu0 0.0
    %8569 = vmatprep.subr.mxu0 0.0
    %8570 = vmatpush1.xpose.msra.mxu0 0.0
    %8571 = vmatprep.subr.mxu0 0.0
    %8572 = vmatpush1.xpose.msra.mxu0 0.0
    %8573 = vmatprep.subr.mxu0 0.0
    %8574 = vmatpush1.xpose.msra.mxu0 0.0
    %8575 = vmatprep.mubr.f32.mxu0 %v7618
    %8576 = vmatmul.mubr.f32.gmra.mrb[0].mxu0 %v7616
    %v8577 = vpop.f32.mrb[0].mxu0
    %v8578 = vadd.f32 0.0, %v8577
    %v8579 = vpop.f32.mrb[0].mxu0
    %8580 = vmatprep.mubr.f32.mxu0 %v7622
    %8581 = vmatmul.mubr.f32.gmra.mrb[0].mxu0 %v7620
    %v8582 = vpop.f32.mrb[0].mxu0
    %v8583 = vadd.f32 0.0, %v8582
    %v8584 = vpop.f32.mrb[0].mxu0
    %8585 = vmatprep.mubr.f32.mxu0 %v7626
    %8586 = vmatmul.mubr.f32.gmra.mrb[0].mxu0 %v7624
    %v8587 = vpop.f32.mrb[0].mxu0
    %v8588 = vadd.f32 0.0, %v8587
    %v8589 = vpop.f32.mrb[0].mxu0
    %8590 = vmatprep.mubr.f32.mxu0 %v7630
    %8591 = vmatmul.mubr.f32.gmra.mrb[0].mxu0 %v7628
    %v8592 = vpop.f32.mrb[0].mxu0
    %v8593 = vadd.f32 0.0, %v8592
    %v8594 = vpop.f32.mrb[0].mxu0
    %8595 = vmatprep.mubr.f32.mxu0 %v7634
    %8596 = vmatmul.mubr.f32.gmra.mrb[0].mxu0 %v7632
    %v8597 = vpop.f32.mrb[0].mxu0
    %v8598 = vadd.f32 0.0, %v8597
    %v8599 = vpop.f32.mrb[0].mxu0
    %8600 = vmatprep.mubr.f32.mxu0 %v7638
    %8601 = vmatmul.mubr.f32.gmra.mrb[0].mxu0 %v7636
    %v8602 = vpop.f32.mrb[0].mxu0
    %v8603 = vadd.f32 0.0, %v8602
    %v8604 = vpop.f32.mrb[0].mxu0
    %8605 = vmatprep.mubr.f32.mxu0 %v7642
    %8606 = vmatmul.mubr.f32.gmra.mrb[0].mxu0 %v7640
    %v8607 = vpop.f32.mrb[0].mxu0
    %v8608 = vadd.f32 0.0, %v8607
    %v8609 = vpop.f32.mrb[0].mxu0
    %8610 = vmatprep.mubr.f32.mxu0 %v7646
    %8611 = vmatmul.mubr.f32.gmra.mrb[0].mxu0 %v7644
    %v8612 = vpop.f32.mrb[0].mxu0
    %v8613 = vadd.f32 0.0, %v8612
    %v8614 = vpop.f32.mrb[0].mxu0
    %8615 = vmatprep.mubr.f32.mxu0 %v7650
    %8616 = vmatmul.mubr.f32.gmra.mrb[0].mxu0 %v7648
    %v8617 = vpop.f32.mrb[0].mxu0
    %v8618 = vadd.f32 0.0, %v8617
    %v8619 = vpop.f32.mrb[0].mxu0
    %8620 = vmatprep.mubr.f32.mxu0 %v7654
    %8621 = vmatmul.mubr.f32.gmra.mrb[0].mxu0 %v7652
    %v8622 = vpop.f32.mrb[0].mxu0
    %v8623 = vadd.f32 0.0, %v8622
    %v8624 = vpop.f32.mrb[0].mxu0
    %8625 = vmatprep.mubr.f32.mxu0 %v7658
    %8626 = vmatmul.mubr.f32.gmra.mrb[0].mxu0 %v7656
    %v8627 = vpop.f32.mrb[0].mxu0
    %v8628 = vadd.f32 0.0, %v8627
    %v8629 = vpop.f32.mrb[0].mxu0
    %8630 = vmatprep.mubr.f32.mxu0 %v7662
    %8631 = vmatmul.mubr.f32.gmra.mrb[0].mxu0 %v7660
    %v8632 = vpop.f32.mrb[0].mxu0
    %v8633 = vadd.f32 0.0, %v8632
    %v8634 = vpop.f32.mrb[0].mxu0
    %8635 = vmatprep.mubr.f32.mxu0 %v7666
    %8636 = vmatmul.mubr.f32.gmra.mrb[0].mxu0 %v7664
    %v8637 = vpop.f32.mrb[0].mxu0
    %v8638 = vadd.f32 0.0, %v8637
    %v8639 = vpop.f32.mrb[0].mxu0
    %8640 = vmatprep.mubr.f32.mxu0 %v7670
    %8641 = vmatmul.mubr.f32.gmra.mrb[0].mxu0 %v7668
    %v8642 = vpop.f32.mrb[0].mxu0
    %v8643 = vadd.f32 0.0, %v8642
    %v8644 = vpop.f32.mrb[0].mxu0
    %8645 = vmatprep.mubr.f32.mxu0 %v7674
    %8646 = vmatmul.mubr.f32.gmra.mrb[0].mxu0 %v7672
    %v8647 = vpop.f32.mrb[0].mxu0
    %v8648 = vadd.f32 0.0, %v8647
    %v8649 = vpop.f32.mrb[0].mxu0
    %8650 = vmatprep.mubr.f32.mxu0 %v7678
    %8651 = vmatmul.mubr.f32.gmra.mrb[0].mxu0 %v7676
    %v8652 = vpop.f32.mrb[0].mxu0
    %v8653 = vadd.f32 0.0, %v8652
    %v8654 = vpop.f32.mrb[0].mxu0
    %8655 = vmatprep.mubr.f32.mxu0 %v7682
    %8656 = vmatmul.mubr.f32.gmra.mrb[0].mxu0 %v7680
    %v8657 = vpop.f32.mrb[0].mxu0
    %v8658 = vadd.f32 0.0, %v8657
    %v8659 = vpop.f32.mrb[0].mxu0
    %8660 = vmatprep.mubr.f32.mxu0 %v7686
    %8661 = vmatmul.mubr.f32.gmra.mrb[0].mxu0 %v7684
    %v8662 = vpop.f32.mrb[0].mxu0
    %v8663 = vadd.f32 0.0, %v8662
    %v8664 = vpop.f32.mrb[0].mxu0
    %8665 = vmatprep.mubr.f32.mxu0 %v7690
    %8666 = vmatmul.mubr.f32.gmra.mrb[0].mxu0 %v7688
    %v8667 = vpop.f32.mrb[0].mxu0
    %v8668 = vadd.f32 0.0, %v8667
    %v8669 = vpop.f32.mrb[0].mxu0
    %8670 = vmatprep.mubr.f32.mxu0 %v7694
    %8671 = vmatmul.mubr.f32.gmra.mrb[0].mxu0 %v7692
    %v8672 = vpop.f32.mrb[0].mxu0
    %v8673 = vadd.f32 0.0, %v8672
    %v8674 = vpop.f32.mrb[0].mxu0
    %8675 = vmatprep.mubr.f32.mxu0 %v7698
    %8676 = vmatmul.mubr.f32.gmra.mrb[0].mxu0 %v7696
    %v8677 = vpop.f32.mrb[0].mxu0
    %v8678 = vadd.f32 0.0, %v8677
    %v8679 = vpop.f32.mrb[0].mxu0
    %8680 = vmatprep.mubr.f32.mxu0 %v7702
    %8681 = vmatmul.mubr.f32.gmra.mrb[0].mxu0 %v7700
    %v8682 = vpop.f32.mrb[0].mxu0
    %v8683 = vadd.f32 0.0, %v8682
    %v8684 = vpop.f32.mrb[0].mxu0
    %8685 = vmatprep.mubr.f32.mxu0 %v7706
    %8686 = vmatmul.mubr.f32.gmra.mrb[0].mxu0 %v7704
    %v8687 = vpop.f32.mrb[0].mxu0
    %v8688 = vadd.f32 0.0, %v8687
    %v8689 = vpop.f32.mrb[0].mxu0
    %8690 = vmatprep.mubr.f32.mxu0 %v7710
    %8691 = vmatmul.mubr.f32.gmra.mrb[0].mxu0 %v7708
    %v8692 = vpop.f32.mrb[0].mxu0
    %v8693 = vadd.f32 0.0, %v8692
    %v8694 = vpop.f32.mrb[0].mxu0
    %8695 = vmatprep.mubr.f32.mxu0 %v7714
    %8696 = vmatmul.mubr.f32.gmra.mrb[0].mxu0 %v7712
    %v8697 = vpop.f32.mrb[0].mxu0
    %v8698 = vadd.f32 0.0, %v8697
    %v8699 = vpop.f32.mrb[0].mxu0
    %8700 = vmatprep.mubr.f32.mxu0 %v7718
    %8701 = vmatmul.mubr.f32.gmra.mrb[0].mxu0 %v7716
    %v8702 = vpop.f32.mrb[0].mxu0
    %v8703 = vadd.f32 0.0, %v8702
    %v8704 = vpop.f32.mrb[0].mxu0
    %8705 = vmatprep.mubr.f32.mxu0 %v7722
    %8706 = vmatmul.mubr.f32.gmra.mrb[0].mxu0 %v7720
    %v8707 = vpop.f32.mrb[0].mxu0
    %v8708 = vadd.f32 0.0, %v8707
    %v8709 = vpop.f32.mrb[0].mxu0
    %8710 = vmatprep.mubr.f32.mxu0 %v7726
    %8711 = vmatmul.mubr.f32.gmra.mrb[0].mxu0 %v7724
    %v8712 = vpop.f32.mrb[0].mxu0
    %v8713 = vadd.f32 0.0, %v8712
    %v8714 = vpop.f32.mrb[0].mxu0
    %8715 = vmatprep.mubr.f32.mxu0 %v7730
    %8716 = vmatmul.mubr.f32.gmra.mrb[0].mxu0 %v7728
    %v8717 = vpop.f32.mrb[0].mxu0
    %v8718 = vadd.f32 0.0, %v8717
    %v8719 = vpop.f32.mrb[0].mxu0
    %8720 = vmatprep.mubr.f32.mxu0 %v7734
    %8721 = vmatmul.mubr.f32.gmra.mrb[0].mxu0 %v7732
    %v8722 = vpop.f32.mrb[0].mxu0
    %v8723 = vadd.f32 0.0, %v8722
    %v8724 = vpop.f32.mrb[0].mxu0
    %8725 = vmatprep.mubr.f32.mxu0 %v7738
    %8726 = vmatmul.mubr.f32.gmra.mrb[0].mxu0 %v7736
    %v8727 = vpop.f32.mrb[0].mxu0
    %v8728 = vadd.f32 0.0, %v8727
    %v8729 = vpop.f32.mrb[0].mxu0
    %8730 = vmatprep.mubr.f32.mxu0 %v7742
    %8731 = vmatmul.mubr.f32.gmra.mrb[0].mxu0 %v7740
    %v8732 = vpop.f32.mrb[0].mxu0
    %v8733 = vadd.f32 0.0, %v8732
    %v8734 = vpop.f32.mrb[0].mxu0
    %8735 = vdwg.mxu0
    %8736 = vmatprep.subr.mxu0 %v5293
    %8737 = vmatpush1.xpose.msra.mxu0 %v5291
    %8738 = vmatprep.subr.mxu0 0.0
    %8739 = vmatpush1.xpose.msra.mxu0 0.0
    %8740 = vmatprep.subr.mxu0 0.0
    %8741 = vmatpush1.xpose.msra.mxu0 0.0
    %8742 = vmatprep.subr.mxu0 0.0
    %8743 = vmatpush1.xpose.msra.mxu0 0.0
    %8744 = vmatprep.subr.mxu0 0.0
    %8745 = vmatpush1.xpose.msra.mxu0 0.0
    %8746 = vmatprep.subr.mxu0 0.0
    %8747 = vmatpush1.xpose.msra.mxu0 0.0
    %8748 = vmatprep.subr.mxu0 0.0
    %8749 = vmatpush1.xpose.msra.mxu0 0.0
    %8750 = vmatprep.subr.mxu0 0.0
    %8751 = vmatpush1.xpose.msra.mxu0 0.0
    %8752 = vmatprep.subr.mxu0 0.0
    %8753 = vmatpush1.xpose.msra.mxu0 0.0
    %8754 = vmatprep.subr.mxu0 0.0
    %8755 = vmatpush1.xpose.msra.mxu0 0.0
    %8756 = vmatprep.subr.mxu0 0.0
    %8757 = vmatpush1.xpose.msra.mxu0 0.0
    %8758 = vmatprep.subr.mxu0 0.0
    %8759 = vmatpush1.xpose.msra.mxu0 0.0
    %8760 = vmatprep.subr.mxu0 0.0
    %8761 = vmatpush1.xpose.msra.mxu0 0.0
    %8762 = vmatprep.subr.mxu0 0.0
    %8763 = vmatpush1.xpose.msra.mxu0 0.0
    %8764 = vmatprep.subr.mxu0 0.0
    %8765 = vmatpush1.xpose.msra.mxu0 0.0
    %8766 = vmatprep.subr.mxu0 0.0
    %8767 = vmatpush1.xpose.msra.mxu0 0.0
    %8768 = vmatprep.subr.mxu0 0.0
    %8769 = vmatpush1.xpose.msra.mxu0 0.0
    %8770 = vmatprep.subr.mxu0 0.0
    %8771 = vmatpush1.xpose.msra.mxu0 0.0
    %8772 = vmatprep.subr.mxu0 0.0
    %8773 = vmatpush1.xpose.msra.mxu0 0.0
    %8774 = vmatprep.subr.mxu0 0.0
    %8775 = vmatpush1.xpose.msra.mxu0 0.0
    %8776 = vmatprep.subr.mxu0 0.0
    %8777 = vmatpush1.xpose.msra.mxu0 0.0
    %8778 = vmatprep.subr.mxu0 0.0
    %8779 = vmatpush1.xpose.msra.mxu0 0.0
    %8780 = vmatprep.subr.mxu0 0.0
    %8781 = vmatpush1.xpose.msra.mxu0 0.0
    %8782 = vmatprep.subr.mxu0 0.0
    %8783 = vmatpush1.xpose.msra.mxu0 0.0
    %8784 = vmatprep.subr.mxu0 0.0
    %8785 = vmatpush1.xpose.msra.mxu0 0.0
    %8786 = vmatprep.subr.mxu0 0.0
    %8787 = vmatpush1.xpose.msra.mxu0 0.0
    %8788 = vmatprep.subr.mxu0 0.0
    %8789 = vmatpush1.xpose.msra.mxu0 0.0
    %8790 = vmatprep.subr.mxu0 0.0
    %8791 = vmatpush1.xpose.msra.mxu0 0.0
    %8792 = vmatprep.subr.mxu0 0.0
    %8793 = vmatpush1.xpose.msra.mxu0 0.0
    %8794 = vmatprep.subr.mxu0 0.0
    %8795 = vmatpush1.xpose.msra.mxu0 0.0
    %8796 = vmatprep.subr.mxu0 0.0
    %8797 = vmatpush1.xpose.msra.mxu0 0.0
    %8798 = vmatprep.subr.mxu0 0.0
    %8799 = vmatpush1.xpose.msra.mxu0 0.0
    %8800 = vmatprep.mubr.f32.mxu0 %v7746
    %8801 = vmatmul.mubr.f32.gmra.mrb[0].mxu0 %v7744
    %v8802 = vpop.f32.mrb[0].mxu0
    %v8803 = vadd.f32 0.0, %v8802
    %v8804 = vpop.f32.mrb[0].mxu0
    %8805 = vmatprep.mubr.f32.mxu0 %v7750
    %8806 = vmatmul.mubr.f32.gmra.mrb[0].mxu0 %v7748
    %v8807 = vpop.f32.mrb[0].mxu0
    %v8808 = vadd.f32 0.0, %v8807
    %v8809 = vpop.f32.mrb[0].mxu0
    %8810 = vmatprep.mubr.f32.mxu0 %v7754
    %8811 = vmatmul.mubr.f32.gmra.mrb[0].mxu0 %v7752
    %v8812 = vpop.f32.mrb[0].mxu0
    %v8813 = vadd.f32 0.0, %v8812
    %v8814 = vpop.f32.mrb[0].mxu0
    %8815 = vmatprep.mubr.f32.mxu0 %v7758
    %8816 = vmatmul.mubr.f32.gmra.mrb[0].mxu0 %v7756
    %v8817 = vpop.f32.mrb[0].mxu0
    %v8818 = vadd.f32 0.0, %v8817
    %v8819 = vpop.f32.mrb[0].mxu0
    %8820 = vmatprep.mubr.f32.mxu0 %v7762
    %8821 = vmatmul.mubr.f32.gmra.mrb[0].mxu0 %v7760
    %v8822 = vpop.f32.mrb[0].mxu0
    %v8823 = vadd.f32 0.0, %v8822
    %v8824 = vpop.f32.mrb[0].mxu0
    %8825 = vmatprep.mubr.f32.mxu0 %v7766
    %8826 = vmatmul.mubr.f32.gmra.mrb[0].mxu0 %v7764
    %v8827 = vpop.f32.mrb[0].mxu0
    %v8828 = vadd.f32 0.0, %v8827
    %v8829 = vpop.f32.mrb[0].mxu0
    %8830 = vmatprep.mubr.f32.mxu0 %v7770
    %8831 = vmatmul.mubr.f32.gmra.mrb[0].mxu0 %v7768
    %v8832 = vpop.f32.mrb[0].mxu0
    %v8833 = vadd.f32 0.0, %v8832
    %v8834 = vpop.f32.mrb[0].mxu0
    %8835 = vmatprep.mubr.f32.mxu0 %v7774
    %8836 = vmatmul.mubr.f32.gmra.mrb[0].mxu0 %v7772
    %v8837 = vpop.f32.mrb[0].mxu0
    %v8838 = vadd.f32 0.0, %v8837
    %v8839 = vpop.f32.mrb[0].mxu0
    %8840 = vmatprep.mubr.f32.mxu0 %v7778
    %8841 = vmatmul.mubr.f32.gmra.mrb[0].mxu0 %v7776
    %v8842 = vpop.f32.mrb[0].mxu0
    %v8843 = vadd.f32 0.0, %v8842
    %v8844 = vpop.f32.mrb[0].mxu0
    %8845 = vmatprep.mubr.f32.mxu0 %v7782
    %8846 = vmatmul.mubr.f32.gmra.mrb[0].mxu0 %v7780
    %v8847 = vpop.f32.mrb[0].mxu0
    %v8848 = vadd.f32 0.0, %v8847
    %v8849 = vpop.f32.mrb[0].mxu0
    %8850 = vmatprep.mubr.f32.mxu0 %v7786
    %8851 = vmatmul.mubr.f32.gmra.mrb[0].mxu0 %v7784
    %v8852 = vpop.f32.mrb[0].mxu0
    %v8853 = vadd.f32 0.0, %v8852
    %v8854 = vpop.f32.mrb[0].mxu0
    %8855 = vmatprep.mubr.f32.mxu0 %v7790
    %8856 = vmatmul.mubr.f32.gmra.mrb[0].mxu0 %v7788
    %v8857 = vpop.f32.mrb[0].mxu0
    %v8858 = vadd.f32 0.0, %v8857
    %v8859 = vpop.f32.mrb[0].mxu0
    %8860 = vmatprep.mubr.f32.mxu0 %v7794
    %8861 = vmatmul.mubr.f32.gmra.mrb[0].mxu0 %v7792
    %v8862 = vpop.f32.mrb[0].mxu0
    %v8863 = vadd.f32 0.0, %v8862
    %v8864 = vpop.f32.mrb[0].mxu0
    %8865 = vmatprep.mubr.f32.mxu0 %v7798
    %8866 = vmatmul.mubr.f32.gmra.mrb[0].mxu0 %v7796
    %v8867 = vpop.f32.mrb[0].mxu0
    %v8868 = vadd.f32 0.0, %v8867
    %v8869 = vpop.f32.mrb[0].mxu0
    %8870 = vmatprep.mubr.f32.mxu0 %v7802
    %8871 = vmatmul.mubr.f32.gmra.mrb[0].mxu0 %v7800
    %v8872 = vpop.f32.mrb[0].mxu0
    %v8873 = vadd.f32 0.0, %v8872
    %v8874 = vpop.f32.mrb[0].mxu0
    %8875 = vmatprep.mubr.f32.mxu0 %v7806
    %8876 = vmatmul.mubr.f32.gmra.mrb[0].mxu0 %v7804
    %v8877 = vpop.f32.mrb[0].mxu0
    %v8878 = vadd.f32 0.0, %v8877
    %v8879 = vpop.f32.mrb[0].mxu0
    %8880 = vmatprep.mubr.f32.mxu0 %v7810
    %8881 = vmatmul.mubr.f32.gmra.mrb[0].mxu0 %v7808
    %v8882 = vpop.f32.mrb[0].mxu0
    %v8883 = vadd.f32 0.0, %v8882
    %v8884 = vpop.f32.mrb[0].mxu0
    %8885 = vmatprep.mubr.f32.mxu0 %v7814
    %8886 = vmatmul.mubr.f32.gmra.mrb[0].mxu0 %v7812
    %v8887 = vpop.f32.mrb[0].mxu0
    %v8888 = vadd.f32 0.0, %v8887
    %v8889 = vpop.f32.mrb[0].mxu0
    %8890 = vmatprep.mubr.f32.mxu0 %v7818
    %8891 = vmatmul.mubr.f32.gmra.mrb[0].mxu0 %v7816
    %v8892 = vpop.f32.mrb[0].mxu0
    %v8893 = vadd.f32 0.0, %v8892
    %v8894 = vpop.f32.mrb[0].mxu0
    %8895 = vmatprep.mubr.f32.mxu0 %v7822
    %8896 = vmatmul.mubr.f32.gmra.mrb[0].mxu0 %v7820
    %v8897 = vpop.f32.mrb[0].mxu0
    %v8898 = vadd.f32 0.0, %v8897
    %v8899 = vpop.f32.mrb[0].mxu0
    %8900 = vmatprep.mubr.f32.mxu0 %v7826
    %8901 = vmatmul.mubr.f32.gmra.mrb[0].mxu0 %v7824
    %v8902 = vpop.f32.mrb[0].mxu0
    %v8903 = vadd.f32 0.0, %v8902
    %v8904 = vpop.f32.mrb[0].mxu0
    %8905 = vmatprep.mubr.f32.mxu0 %v7830
    %8906 = vmatmul.mubr.f32.gmra.mrb[0].mxu0 %v7828
    %v8907 = vpop.f32.mrb[0].mxu0
    %v8908 = vadd.f32 0.0, %v8907
    %v8909 = vpop.f32.mrb[0].mxu0
    %8910 = vmatprep.mubr.f32.mxu0 %v7834
    %8911 = vmatmul.mubr.f32.gmra.mrb[0].mxu0 %v7832
    %v8912 = vpop.f32.mrb[0].mxu0
    %v8913 = vadd.f32 0.0, %v8912
    %v8914 = vpop.f32.mrb[0].mxu0
    %8915 = vmatprep.mubr.f32.mxu0 %v7838
    %8916 = vmatmul.mubr.f32.gmra.mrb[0].mxu0 %v7836
    %v8917 = vpop.f32.mrb[0].mxu0
    %v8918 = vadd.f32 0.0, %v8917
    %v8919 = vpop.f32.mrb[0].mxu0
    %8920 = vmatprep.mubr.f32.mxu0 %v7842
    %8921 = vmatmul.mubr.f32.gmra.mrb[0].mxu0 %v7840
    %v8922 = vpop.f32.mrb[0].mxu0
    %v8923 = vadd.f32 0.0, %v8922
    %v8924 = vpop.f32.mrb[0].mxu0
    %8925 = vmatprep.mubr.f32.mxu0 %v7846
    %8926 = vmatmul.mubr.f32.gmra.mrb[0].mxu0 %v7844
    %v8927 = vpop.f32.mrb[0].mxu0
    %v8928 = vadd.f32 0.0, %v8927
    %v8929 = vpop.f32.mrb[0].mxu0
    %8930 = vmatprep.mubr.f32.mxu0 %v7850
    %8931 = vmatmul.mubr.f32.gmra.mrb[0].mxu0 %v7848
    %v8932 = vpop.f32.mrb[0].mxu0
    %v8933 = vadd.f32 0.0, %v8932
    %v8934 = vpop.f32.mrb[0].mxu0
    %8935 = vmatprep.mubr.f32.mxu0 %v7854
    %8936 = vmatmul.mubr.f32.gmra.mrb[0].mxu0 %v7852
    %v8937 = vpop.f32.mrb[0].mxu0
    %v8938 = vadd.f32 0.0, %v8937
    %v8939 = vpop.f32.mrb[0].mxu0
    %8940 = vmatprep.mubr.f32.mxu0 %v7858
    %8941 = vmatmul.mubr.f32.gmra.mrb[0].mxu0 %v7856
    %v8942 = vpop.f32.mrb[0].mxu0
    %v8943 = vadd.f32 0.0, %v8942
    %v8944 = vpop.f32.mrb[0].mxu0
    %8945 = vmatprep.mubr.f32.mxu0 %v7862
    %8946 = vmatmul.mubr.f32.gmra.mrb[0].mxu0 %v7860
    %v8947 = vpop.f32.mrb[0].mxu0
    %v8948 = vadd.f32 0.0, %v8947
    %v8949 = vpop.f32.mrb[0].mxu0
    %8950 = vmatprep.mubr.f32.mxu0 %v7866
    %8951 = vmatmul.mubr.f32.gmra.mrb[0].mxu0 %v7864
    %v8952 = vpop.f32.mrb[0].mxu0
    %v8953 = vadd.f32 0.0, %v8952
    %v8954 = vpop.f32.mrb[0].mxu0
    %8955 = vmatprep.mubr.f32.mxu0 %v7870
    %8956 = vmatmul.mubr.f32.gmra.mrb[0].mxu0 %v7868
    %v8957 = vpop.f32.mrb[0].mxu0
    %v8958 = vadd.f32 0.0, %v8957
    %v8959 = vpop.f32.mrb[0].mxu0
    %8960 = vdwg.mxu0
    %8961 = vmatprep.subr.mxu0 %v5299
    %8962 = vmatpush1.xpose.msra.mxu0 %v5297
    %8963 = vmatprep.subr.mxu0 0.0
    %8964 = vmatpush1.xpose.msra.mxu0 0.0
    %8965 = vmatprep.subr.mxu0 0.0
    %8966 = vmatpush1.xpose.msra.mxu0 0.0
    %8967 = vmatprep.subr.mxu0 0.0
    %8968 = vmatpush1.xpose.msra.mxu0 0.0
    %8969 = vmatprep.subr.mxu0 0.0
    %8970 = vmatpush1.xpose.msra.mxu0 0.0
    %8971 = vmatprep.subr.mxu0 0.0
    %8972 = vmatpush1.xpose.msra.mxu0 0.0
    %8973 = vmatprep.subr.mxu0 0.0
    %8974 = vmatpush1.xpose.msra.mxu0 0.0
    %8975 = vmatprep.subr.mxu0 0.0
    %8976 = vmatpush1.xpose.msra.mxu0 0.0
    %8977 = vmatprep.subr.mxu0 0.0
    %8978 = vmatpush1.xpose.msra.mxu0 0.0
    %8979 = vmatprep.subr.mxu0 0.0
    %8980 = vmatpush1.xpose.msra.mxu0 0.0
    %8981 = vmatprep.subr.mxu0 0.0
    %8982 = vmatpush1.xpose.msra.mxu0 0.0
    %8983 = vmatprep.subr.mxu0 0.0
    %8984 = vmatpush1.xpose.msra.mxu0 0.0
    %8985 = vmatprep.subr.mxu0 0.0
    %8986 = vmatpush1.xpose.msra.mxu0 0.0
    %8987 = vmatprep.subr.mxu0 0.0
    %8988 = vmatpush1.xpose.msra.mxu0 0.0
    %8989 = vmatprep.subr.mxu0 0.0
    %8990 = vmatpush1.xpose.msra.mxu0 0.0
    %8991 = vmatprep.subr.mxu0 0.0
    %8992 = vmatpush1.xpose.msra.mxu0 0.0
    %8993 = vmatprep.subr.mxu0 0.0
    %8994 = vmatpush1.xpose.msra.mxu0 0.0
    %8995 = vmatprep.subr.mxu0 0.0
    %8996 = vmatpush1.xpose.msra.mxu0 0.0
    %8997 = vmatprep.subr.mxu0 0.0
    %8998 = vmatpush1.xpose.msra.mxu0 0.0
    %8999 = vmatprep.subr.mxu0 0.0
    %9000 = vmatpush1.xpose.msra.mxu0 0.0
    %9001 = vmatprep.subr.mxu0 0.0
    %9002 = vmatpush1.xpose.msra.mxu0 0.0
    %9003 = vmatprep.subr.mxu0 0.0
    %9004 = vmatpush1.xpose.msra.mxu0 0.0
    %9005 = vmatprep.subr.mxu0 0.0
    %9006 = vmatpush1.xpose.msra.mxu0 0.0
    %9007 = vmatprep.subr.mxu0 0.0
    %9008 = vmatpush1.xpose.msra.mxu0 0.0
    %9009 = vmatprep.subr.mxu0 0.0
    %9010 = vmatpush1.xpose.msra.mxu0 0.0
    %9011 = vmatprep.subr.mxu0 0.0
    %9012 = vmatpush1.xpose.msra.mxu0 0.0
    %9013 = vmatprep.subr.mxu0 0.0
    %9014 = vmatpush1.xpose.msra.mxu0 0.0
    %9015 = vmatprep.subr.mxu0 0.0
    %9016 = vmatpush1.xpose.msra.mxu0 0.0
    %9017 = vmatprep.subr.mxu0 0.0
    %9018 = vmatpush1.xpose.msra.mxu0 0.0
    %9019 = vmatprep.subr.mxu0 0.0
    %9020 = vmatpush1.xpose.msra.mxu0 0.0
    %9021 = vmatprep.subr.mxu0 0.0
    %9022 = vmatpush1.xpose.msra.mxu0 0.0
    %9023 = vmatprep.subr.mxu0 0.0
    %9024 = vmatpush1.xpose.msra.mxu0 0.0
    %9025 = vmatprep.mubr.f32.mxu0 %v7874
    %9026 = vmatmul.mubr.f32.gmra.mrb[0].mxu0 %v7872
    %v9027 = vpop.f32.mrb[0].mxu0
    %v9028 = vadd.f32 0.0, %v9027
    %v9029 = vpop.f32.mrb[0].mxu0
    %9030 = vmatprep.mubr.f32.mxu0 %v7878
    %9031 = vmatmul.mubr.f32.gmra.mrb[0].mxu0 %v7876
    %v9032 = vpop.f32.mrb[0].mxu0
    %v9033 = vadd.f32 0.0, %v9032
    %v9034 = vpop.f32.mrb[0].mxu0
    %9035 = vmatprep.mubr.f32.mxu0 %v7882
    %9036 = vmatmul.mubr.f32.gmra.mrb[0].mxu0 %v7880
    %v9037 = vpop.f32.mrb[0].mxu0
    %v9038 = vadd.f32 0.0, %v9037
    %v9039 = vpop.f32.mrb[0].mxu0
    %9040 = vmatprep.mubr.f32.mxu0 %v7886
    %9041 = vmatmul.mubr.f32.gmra.mrb[0].mxu0 %v7884
    %v9042 = vpop.f32.mrb[0].mxu0
    %v9043 = vadd.f32 0.0, %v9042
    %v9044 = vpop.f32.mrb[0].mxu0
    %9045 = vmatprep.mubr.f32.mxu0 %v7890
    %9046 = vmatmul.mubr.f32.gmra.mrb[0].mxu0 %v7888
    %v9047 = vpop.f32.mrb[0].mxu0
    %v9048 = vadd.f32 0.0, %v9047
    %v9049 = vpop.f32.mrb[0].mxu0
    %9050 = vmatprep.mubr.f32.mxu0 %v7894
    %9051 = vmatmul.mubr.f32.gmra.mrb[0].mxu0 %v7892
    %v9052 = vpop.f32.mrb[0].mxu0
    %v9053 = vadd.f32 0.0, %v9052
    %v9054 = vpop.f32.mrb[0].mxu0
    %9055 = vmatprep.mubr.f32.mxu0 %v7898
    %9056 = vmatmul.mubr.f32.gmra.mrb[0].mxu0 %v7896
    %v9057 = vpop.f32.mrb[0].mxu0
    %v9058 = vadd.f32 0.0, %v9057
    %v9059 = vpop.f32.mrb[0].mxu0
    %9060 = vmatprep.mubr.f32.mxu0 %v7902
    %9061 = vmatmul.mubr.f32.gmra.mrb[0].mxu0 %v7900
    %v9062 = vpop.f32.mrb[0].mxu0
    %v9063 = vadd.f32 0.0, %v9062
    %v9064 = vpop.f32.mrb[0].mxu0
    %9065 = vmatprep.mubr.f32.mxu0 %v7906
    %9066 = vmatmul.mubr.f32.gmra.mrb[0].mxu0 %v7904
    %v9067 = vpop.f32.mrb[0].mxu0
    %v9068 = vadd.f32 0.0, %v9067
    %v9069 = vpop.f32.mrb[0].mxu0
    %9070 = vmatprep.mubr.f32.mxu0 %v7910
    %9071 = vmatmul.mubr.f32.gmra.mrb[0].mxu0 %v7908
    %v9072 = vpop.f32.mrb[0].mxu0
    %v9073 = vadd.f32 0.0, %v9072
    %v9074 = vpop.f32.mrb[0].mxu0
    %9075 = vmatprep.mubr.f32.mxu0 %v7914
    %9076 = vmatmul.mubr.f32.gmra.mrb[0].mxu0 %v7912
    %v9077 = vpop.f32.mrb[0].mxu0
    %v9078 = vadd.f32 0.0, %v9077
    %v9079 = vpop.f32.mrb[0].mxu0
    %9080 = vmatprep.mubr.f32.mxu0 %v7918
    %9081 = vmatmul.mubr.f32.gmra.mrb[0].mxu0 %v7916
    %v9082 = vpop.f32.mrb[0].mxu0
    %v9083 = vadd.f32 0.0, %v9082
    %v9084 = vpop.f32.mrb[0].mxu0
    %9085 = vmatprep.mubr.f32.mxu0 %v7922
    %9086 = vmatmul.mubr.f32.gmra.mrb[0].mxu0 %v7920
    %v9087 = vpop.f32.mrb[0].mxu0
    %v9088 = vadd.f32 0.0, %v9087
    %v9089 = vpop.f32.mrb[0].mxu0
    %9090 = vmatprep.mubr.f32.mxu0 %v7926
    %9091 = vmatmul.mubr.f32.gmra.mrb[0].mxu0 %v7924
    %v9092 = vpop.f32.mrb[0].mxu0
    %v9093 = vadd.f32 0.0, %v9092
    %v9094 = vpop.f32.mrb[0].mxu0
    %9095 = vmatprep.mubr.f32.mxu0 %v7930
    %9096 = vmatmul.mubr.f32.gmra.mrb[0].mxu0 %v7928
    %v9097 = vpop.f32.mrb[0].mxu0
    %v9098 = vadd.f32 0.0, %v9097
    %v9099 = vpop.f32.mrb[0].mxu0
    %9100 = vmatprep.mubr.f32.mxu0 %v7934
    %9101 = vmatmul.mubr.f32.gmra.mrb[0].mxu0 %v7932
    %v9102 = vpop.f32.mrb[0].mxu0
    %v9103 = vadd.f32 0.0, %v9102
    %v9104 = vpop.f32.mrb[0].mxu0
    %9105 = vmatprep.mubr.f32.mxu0 %v7938
    %9106 = vmatmul.mubr.f32.gmra.mrb[0].mxu0 %v7936
    %v9107 = vpop.f32.mrb[0].mxu0
    %v9108 = vadd.f32 0.0, %v9107
    %v9109 = vpop.f32.mrb[0].mxu0
    %9110 = vmatprep.mubr.f32.mxu0 %v7942
    %9111 = vmatmul.mubr.f32.gmra.mrb[0].mxu0 %v7940
    %v9112 = vpop.f32.mrb[0].mxu0
    %v9113 = vadd.f32 0.0, %v9112
    %v9114 = vpop.f32.mrb[0].mxu0
    %9115 = vmatprep.mubr.f32.mxu0 %v7946
    %9116 = vmatmul.mubr.f32.gmra.mrb[0].mxu0 %v7944
    %v9117 = vpop.f32.mrb[0].mxu0
    %v9118 = vadd.f32 0.0, %v9117
    %v9119 = vpop.f32.mrb[0].mxu0
    %9120 = vmatprep.mubr.f32.mxu0 %v7950
    %9121 = vmatmul.mubr.f32.gmra.mrb[0].mxu0 %v7948
    %v9122 = vpop.f32.mrb[0].mxu0
    %v9123 = vadd.f32 0.0, %v9122
    %v9124 = vpop.f32.mrb[0].mxu0
    %9125 = vmatprep.mubr.f32.mxu0 %v7954
    %9126 = vmatmul.mubr.f32.gmra.mrb[0].mxu0 %v7952
    %v9127 = vpop.f32.mrb[0].mxu0
    %v9128 = vadd.f32 0.0, %v9127
    %v9129 = vpop.f32.mrb[0].mxu0
    %9130 = vmatprep.mubr.f32.mxu0 %v7958
    %9131 = vmatmul.mubr.f32.gmra.mrb[0].mxu0 %v7956
    %v9132 = vpop.f32.mrb[0].mxu0
    %v9133 = vadd.f32 0.0, %v9132
    %v9134 = vpop.f32.mrb[0].mxu0
    %9135 = vmatprep.mubr.f32.mxu0 %v7962
    %9136 = vmatmul.mubr.f32.gmra.mrb[0].mxu0 %v7960
    %v9137 = vpop.f32.mrb[0].mxu0
    %v9138 = vadd.f32 0.0, %v9137
    %v9139 = vpop.f32.mrb[0].mxu0
    %9140 = vmatprep.mubr.f32.mxu0 %v7966
    %9141 = vmatmul.mubr.f32.gmra.mrb[0].mxu0 %v7964
    %v9142 = vpop.f32.mrb[0].mxu0
    %v9143 = vadd.f32 0.0, %v9142
    %v9144 = vpop.f32.mrb[0].mxu0
    %9145 = vmatprep.mubr.f32.mxu0 %v7970
    %9146 = vmatmul.mubr.f32.gmra.mrb[0].mxu0 %v7968
    %v9147 = vpop.f32.mrb[0].mxu0
    %v9148 = vadd.f32 0.0, %v9147
    %v9149 = vpop.f32.mrb[0].mxu0
    %9150 = vmatprep.mubr.f32.mxu0 %v7974
    %9151 = vmatmul.mubr.f32.gmra.mrb[0].mxu0 %v7972
    %v9152 = vpop.f32.mrb[0].mxu0
    %v9153 = vadd.f32 0.0, %v9152
    %v9154 = vpop.f32.mrb[0].mxu0
    %9155 = vmatprep.mubr.f32.mxu0 %v7978
    %9156 = vmatmul.mubr.f32.gmra.mrb[0].mxu0 %v7976
    %v9157 = vpop.f32.mrb[0].mxu0
    %v9158 = vadd.f32 0.0, %v9157
    %v9159 = vpop.f32.mrb[0].mxu0
    %9160 = vmatprep.mubr.f32.mxu0 %v7982
    %9161 = vmatmul.mubr.f32.gmra.mrb[0].mxu0 %v7980
    %v9162 = vpop.f32.mrb[0].mxu0
    %v9163 = vadd.f32 0.0, %v9162
    %v9164 = vpop.f32.mrb[0].mxu0
    %9165 = vmatprep.mubr.f32.mxu0 %v7986
    %9166 = vmatmul.mubr.f32.gmra.mrb[0].mxu0 %v7984
    %v9167 = vpop.f32.mrb[0].mxu0
    %v9168 = vadd.f32 0.0, %v9167
    %v9169 = vpop.f32.mrb[0].mxu0
    %9170 = vmatprep.mubr.f32.mxu0 %v7990
    %9171 = vmatmul.mubr.f32.gmra.mrb[0].mxu0 %v7988
    %v9172 = vpop.f32.mrb[0].mxu0
    %v9173 = vadd.f32 0.0, %v9172
    %v9174 = vpop.f32.mrb[0].mxu0
    %9175 = vmatprep.mubr.f32.mxu0 %v7994
    %9176 = vmatmul.mubr.f32.gmra.mrb[0].mxu0 %v7992
    %v9177 = vpop.f32.mrb[0].mxu0
    %v9178 = vadd.f32 0.0, %v9177
    %v9179 = vpop.f32.mrb[0].mxu0
    %9180 = vmatprep.mubr.f32.mxu0 %v7998
    %9181 = vmatmul.mubr.f32.gmra.mrb[0].mxu0 %v7996
    %v9182 = vpop.f32.mrb[0].mxu0
    %v9183 = vadd.f32 0.0, %v9182
    %v9184 = vpop.f32.mrb[0].mxu0
    %9185 = vdwg.mxu0
    %9186 = vmatprep.subr.mxu0 %v5305
    %9187 = vmatpush1.xpose.msra.mxu0 %v5303
    %9188 = vmatprep.subr.mxu0 0.0
    %9189 = vmatpush1.xpose.msra.mxu0 0.0
    %9190 = vmatprep.subr.mxu0 0.0
    %9191 = vmatpush1.xpose.msra.mxu0 0.0
    %9192 = vmatprep.subr.mxu0 0.0
    %9193 = vmatpush1.xpose.msra.mxu0 0.0
    %9194 = vmatprep.subr.mxu0 0.0
    %9195 = vmatpush1.xpose.msra.mxu0 0.0
    %9196 = vmatprep.subr.mxu0 0.0
    %9197 = vmatpush1.xpose.msra.mxu0 0.0
    %9198 = vmatprep.subr.mxu0 0.0
    %9199 = vmatpush1.xpose.msra.mxu0 0.0
    %9200 = vmatprep.subr.mxu0 0.0
    %9201 = vmatpush1.xpose.msra.mxu0 0.0
    %9202 = vmatprep.subr.mxu0 0.0
    %9203 = vmatpush1.xpose.msra.mxu0 0.0
    %9204 = vmatprep.subr.mxu0 0.0
    %9205 = vmatpush1.xpose.msra.mxu0 0.0
    %9206 = vmatprep.subr.mxu0 0.0
    %9207 = vmatpush1.xpose.msra.mxu0 0.0
    %9208 = vmatprep.subr.mxu0 0.0
    %9209 = vmatpush1.xpose.msra.mxu0 0.0
    %9210 = vmatprep.subr.mxu0 0.0
    %9211 = vmatpush1.xpose.msra.mxu0 0.0
    %9212 = vmatprep.subr.mxu0 0.0
    %9213 = vmatpush1.xpose.msra.mxu0 0.0
    %9214 = vmatprep.subr.mxu0 0.0
    %9215 = vmatpush1.xpose.msra.mxu0 0.0
    %9216 = vmatprep.subr.mxu0 0.0
    %9217 = vmatpush1.xpose.msra.mxu0 0.0
    %9218 = vmatprep.subr.mxu0 0.0
    %9219 = vmatpush1.xpose.msra.mxu0 0.0
    %9220 = vmatprep.subr.mxu0 0.0
    %9221 = vmatpush1.xpose.msra.mxu0 0.0
    %9222 = vmatprep.subr.mxu0 0.0
    %9223 = vmatpush1.xpose.msra.mxu0 0.0
    %9224 = vmatprep.subr.mxu0 0.0
    %9225 = vmatpush1.xpose.msra.mxu0 0.0
    %9226 = vmatprep.subr.mxu0 0.0
    %9227 = vmatpush1.xpose.msra.mxu0 0.0
    %9228 = vmatprep.subr.mxu0 0.0
    %9229 = vmatpush1.xpose.msra.mxu0 0.0
    %9230 = vmatprep.subr.mxu0 0.0
    %9231 = vmatpush1.xpose.msra.mxu0 0.0
    %9232 = vmatprep.subr.mxu0 0.0
    %9233 = vmatpush1.xpose.msra.mxu0 0.0
    %9234 = vmatprep.subr.mxu0 0.0
    %9235 = vmatpush1.xpose.msra.mxu0 0.0
    %9236 = vmatprep.subr.mxu0 0.0
    %9237 = vmatpush1.xpose.msra.mxu0 0.0
    %9238 = vmatprep.subr.mxu0 0.0
    %9239 = vmatpush1.xpose.msra.mxu0 0.0
    %9240 = vmatprep.subr.mxu0 0.0
    %9241 = vmatpush1.xpose.msra.mxu0 0.0
    %9242 = vmatprep.subr.mxu0 0.0
    %9243 = vmatpush1.xpose.msra.mxu0 0.0
    %9244 = vmatprep.subr.mxu0 0.0
    %9245 = vmatpush1.xpose.msra.mxu0 0.0
    %9246 = vmatprep.subr.mxu0 0.0
    %9247 = vmatpush1.xpose.msra.mxu0 0.0
    %9248 = vmatprep.subr.mxu0 0.0
    %9249 = vmatpush1.xpose.msra.mxu0 0.0
    %9250 = vmatprep.mubr.f32.mxu0 %v8002
    %9251 = vmatmul.mubr.f32.gmra.mrb[0].mxu0 %v8000
    %v9252 = vpop.f32.mrb[0].mxu0
    %v9253 = vadd.f32 0.0, %v9252
    %v9254 = vpop.f32.mrb[0].mxu0
    %9255 = vmatprep.mubr.f32.mxu0 %v8006
    %9256 = vmatmul.mubr.f32.gmra.mrb[0].mxu0 %v8004
    %v9257 = vpop.f32.mrb[0].mxu0
    %v9258 = vadd.f32 0.0, %v9257
    %v9259 = vpop.f32.mrb[0].mxu0
    %9260 = vmatprep.mubr.f32.mxu0 %v8010
    %9261 = vmatmul.mubr.f32.gmra.mrb[0].mxu0 %v8008
    %v9262 = vpop.f32.mrb[0].mxu0
    %v9263 = vadd.f32 0.0, %v9262
    %v9264 = vpop.f32.mrb[0].mxu0
    %9265 = vmatprep.mubr.f32.mxu0 %v8014
    %9266 = vmatmul.mubr.f32.gmra.mrb[0].mxu0 %v8012
    %v9267 = vpop.f32.mrb[0].mxu0
    %v9268 = vadd.f32 0.0, %v9267
    %v9269 = vpop.f32.mrb[0].mxu0
    %9270 = vmatprep.mubr.f32.mxu0 %v8018
    %9271 = vmatmul.mubr.f32.gmra.mrb[0].mxu0 %v8016
    %v9272 = vpop.f32.mrb[0].mxu0
    %v9273 = vadd.f32 0.0, %v9272
    %v9274 = vpop.f32.mrb[0].mxu0
    %9275 = vmatprep.mubr.f32.mxu0 %v8022
    %9276 = vmatmul.mubr.f32.gmra.mrb[0].mxu0 %v8020
    %v9277 = vpop.f32.mrb[0].mxu0
    %v9278 = vadd.f32 0.0, %v9277
    %v9279 = vpop.f32.mrb[0].mxu0
    %9280 = vmatprep.mubr.f32.mxu0 %v8026
    %9281 = vmatmul.mubr.f32.gmra.mrb[0].mxu0 %v8024
    %v9282 = vpop.f32.mrb[0].mxu0
    %v9283 = vadd.f32 0.0, %v9282
    %v9284 = vpop.f32.mrb[0].mxu0
    %9285 = vmatprep.mubr.f32.mxu0 %v8030
    %9286 = vmatmul.mubr.f32.gmra.mrb[0].mxu0 %v8028
    %v9287 = vpop.f32.mrb[0].mxu0
    %v9288 = vadd.f32 0.0, %v9287
    %v9289 = vpop.f32.mrb[0].mxu0
    %9290 = vmatprep.mubr.f32.mxu0 %v8034
    %9291 = vmatmul.mubr.f32.gmra.mrb[0].mxu0 %v8032
    %v9292 = vpop.f32.mrb[0].mxu0
    %v9293 = vadd.f32 0.0, %v9292
    %v9294 = vpop.f32.mrb[0].mxu0
    %9295 = vmatprep.mubr.f32.mxu0 %v8038
    %9296 = vmatmul.mubr.f32.gmra.mrb[0].mxu0 %v8036
    %v9297 = vpop.f32.mrb[0].mxu0
    %v9298 = vadd.f32 0.0, %v9297
    %v9299 = vpop.f32.mrb[0].mxu0
    %9300 = vmatprep.mubr.f32.mxu0 %v8042
    %9301 = vmatmul.mubr.f32.gmra.mrb[0].mxu0 %v8040
    %v9302 = vpop.f32.mrb[0].mxu0
    %v9303 = vadd.f32 0.0, %v9302
    %v9304 = vpop.f32.mrb[0].mxu0
    %9305 = vmatprep.mubr.f32.mxu0 %v8046
    %9306 = vmatmul.mubr.f32.gmra.mrb[0].mxu0 %v8044
    %v9307 = vpop.f32.mrb[0].mxu0
    %v9308 = vadd.f32 0.0, %v9307
    %v9309 = vpop.f32.mrb[0].mxu0
    %9310 = vmatprep.mubr.f32.mxu0 %v8050
    %9311 = vmatmul.mubr.f32.gmra.mrb[0].mxu0 %v8048
    %v9312 = vpop.f32.mrb[0].mxu0
    %v9313 = vadd.f32 0.0, %v9312
    %v9314 = vpop.f32.mrb[0].mxu0
    %9315 = vmatprep.mubr.f32.mxu0 %v8054
    %9316 = vmatmul.mubr.f32.gmra.mrb[0].mxu0 %v8052
    %v9317 = vpop.f32.mrb[0].mxu0
    %v9318 = vadd.f32 0.0, %v9317
    %v9319 = vpop.f32.mrb[0].mxu0
    %9320 = vmatprep.mubr.f32.mxu0 %v8058
    %9321 = vmatmul.mubr.f32.gmra.mrb[0].mxu0 %v8056
    %v9322 = vpop.f32.mrb[0].mxu0
    %v9323 = vadd.f32 0.0, %v9322
    %v9324 = vpop.f32.mrb[0].mxu0
    %9325 = vmatprep.mubr.f32.mxu0 %v8062
    %9326 = vmatmul.mubr.f32.gmra.mrb[0].mxu0 %v8060
    %v9327 = vpop.f32.mrb[0].mxu0
    %v9328 = vadd.f32 0.0, %v9327
    %v9329 = vpop.f32.mrb[0].mxu0
    %9330 = vmatprep.mubr.f32.mxu0 %v8066
    %9331 = vmatmul.mubr.f32.gmra.mrb[0].mxu0 %v8064
    %v9332 = vpop.f32.mrb[0].mxu0
    %v9333 = vadd.f32 0.0, %v9332
    %v9334 = vpop.f32.mrb[0].mxu0
    %9335 = vmatprep.mubr.f32.mxu0 %v8070
    %9336 = vmatmul.mubr.f32.gmra.mrb[0].mxu0 %v8068
    %v9337 = vpop.f32.mrb[0].mxu0
    %v9338 = vadd.f32 0.0, %v9337
    %v9339 = vpop.f32.mrb[0].mxu0
    %9340 = vmatprep.mubr.f32.mxu0 %v8074
    %9341 = vmatmul.mubr.f32.gmra.mrb[0].mxu0 %v8072
    %v9342 = vpop.f32.mrb[0].mxu0
    %v9343 = vadd.f32 0.0, %v9342
    %v9344 = vpop.f32.mrb[0].mxu0
    %9345 = vmatprep.mubr.f32.mxu0 %v8078
    %9346 = vmatmul.mubr.f32.gmra.mrb[0].mxu0 %v8076
    %v9347 = vpop.f32.mrb[0].mxu0
    %v9348 = vadd.f32 0.0, %v9347
    %v9349 = vpop.f32.mrb[0].mxu0
    %9350 = vmatprep.mubr.f32.mxu0 %v8082
    %9351 = vmatmul.mubr.f32.gmra.mrb[0].mxu0 %v8080
    %v9352 = vpop.f32.mrb[0].mxu0
    %v9353 = vadd.f32 0.0, %v9352
    %v9354 = vpop.f32.mrb[0].mxu0
    %9355 = vmatprep.mubr.f32.mxu0 %v8086
    %9356 = vmatmul.mubr.f32.gmra.mrb[0].mxu0 %v8084
    %v9357 = vpop.f32.mrb[0].mxu0
    %v9358 = vadd.f32 0.0, %v9357
    %v9359 = vpop.f32.mrb[0].mxu0
    %9360 = vmatprep.mubr.f32.mxu0 %v8090
    %9361 = vmatmul.mubr.f32.gmra.mrb[0].mxu0 %v8088
    %v9362 = vpop.f32.mrb[0].mxu0
    %v9363 = vadd.f32 0.0, %v9362
    %v9364 = vpop.f32.mrb[0].mxu0
    %9365 = vmatprep.mubr.f32.mxu0 %v8094
    %9366 = vmatmul.mubr.f32.gmra.mrb[0].mxu0 %v8092
    %v9367 = vpop.f32.mrb[0].mxu0
    %v9368 = vadd.f32 0.0, %v9367
    %v9369 = vpop.f32.mrb[0].mxu0
    %9370 = vmatprep.mubr.f32.mxu0 %v8098
    %9371 = vmatmul.mubr.f32.gmra.mrb[0].mxu0 %v8096
    %v9372 = vpop.f32.mrb[0].mxu0
    %v9373 = vadd.f32 0.0, %v9372
    %v9374 = vpop.f32.mrb[0].mxu0
    %9375 = vmatprep.mubr.f32.mxu0 %v8102
    %9376 = vmatmul.mubr.f32.gmra.mrb[0].mxu0 %v8100
    %v9377 = vpop.f32.mrb[0].mxu0
    %v9378 = vadd.f32 0.0, %v9377
    %v9379 = vpop.f32.mrb[0].mxu0
    %9380 = vmatprep.mubr.f32.mxu0 %v8106
    %9381 = vmatmul.mubr.f32.gmra.mrb[0].mxu0 %v8104
    %v9382 = vpop.f32.mrb[0].mxu0
    %v9383 = vadd.f32 0.0, %v9382
    %v9384 = vpop.f32.mrb[0].mxu0
    %9385 = vmatprep.mubr.f32.mxu0 %v8110
    %9386 = vmatmul.mubr.f32.gmra.mrb[0].mxu0 %v8108
    %v9387 = vpop.f32.mrb[0].mxu0
    %v9388 = vadd.f32 0.0, %v9387
    %v9389 = vpop.f32.mrb[0].mxu0
    %9390 = vmatprep.mubr.f32.mxu0 %v8114
    %9391 = vmatmul.mubr.f32.gmra.mrb[0].mxu0 %v8112
    %v9392 = vpop.f32.mrb[0].mxu0
    %v9393 = vadd.f32 0.0, %v9392
    %v9394 = vpop.f32.mrb[0].mxu0
    %9395 = vmatprep.mubr.f32.mxu0 %v8118
    %9396 = vmatmul.mubr.f32.gmra.mrb[0].mxu0 %v8116
    %v9397 = vpop.f32.mrb[0].mxu0
    %v9398 = vadd.f32 0.0, %v9397
    %v9399 = vpop.f32.mrb[0].mxu0
    %9400 = vmatprep.mubr.f32.mxu0 %v8122
    %9401 = vmatmul.mubr.f32.gmra.mrb[0].mxu0 %v8120
    %v9402 = vpop.f32.mrb[0].mxu0
    %v9403 = vadd.f32 0.0, %v9402
    %v9404 = vpop.f32.mrb[0].mxu0
    %9405 = vmatprep.mubr.f32.mxu0 %v8126
    %9406 = vmatmul.mubr.f32.gmra.mrb[0].mxu0 %v8124
    %v9407 = vpop.f32.mrb[0].mxu0
    %v9408 = vadd.f32 0.0, %v9407
    %v9409 = vpop.f32.mrb[0].mxu0
    %9410 = vdwg.mxu0
    %v9411 = vrcp.pop %v8129
    %v9412 = vrcp.pop %v8132
    %v9413 = vrcp.pop %v8135
    %v9414 = vrcp.pop %v8138
    %v9415 = vrcp.pop %v8141
    %v9416 = vrcp.pop %v8144
    %v9417 = vrcp.pop %v8147
    %v9418 = vrcp.pop %v8150
    %v9419 = vrcp.pop %v8153
    %v9420 = vrcp.pop %v8156
    %v9421 = vrcp.pop %v8159
    %v9422 = vrcp.pop %v8162
    %v9423 = vrcp.pop %v8165
    %v9424 = vrcp.pop %v8168
    %v9425 = vrcp.pop %v8171
    %v9426 = vrcp.pop %v8174
    %v9427 = vrcp.pop %v8177
    %v9428 = vrcp.pop %v8180
    %v9429 = vrcp.pop %v8183
    %v9430 = vrcp.pop %v8186
    %v9431 = vrcp.pop %v8189
    %v9432 = vrcp.pop %v8192
    %v9433 = vrcp.pop %v8195
    %v9434 = vrcp.pop %v8198
    %v9435 = vrcp.pop %v8201
    %v9436 = vrcp.pop %v8204
    %v9437 = vrcp.pop %v8207
    %v9438 = vrcp.pop %v8210
    %v9439 = vrcp.pop %v8213
    %v9440 = vrcp.pop %v8216
    %v9441 = vrcp.pop %v8219
    %v9442 = vrcp.pop %v8222
    %v9443 = vrcp.pop %v8225
    %v9444 = vrcp.pop %v8228
    %v9445 = vrcp.pop %v8231
    %v9446 = vrcp.pop %v8234
    %v9447 = vrcp.pop %v8237
    %v9448 = vrcp.pop %v8240
    %v9449 = vrcp.pop %v8243
    %v9450 = vrcp.pop %v8246
    %v9451 = vrcp.pop %v8249
    %v9452 = vrcp.pop %v8252
    %v9453 = vrcp.pop %v8255
    %v9454 = vrcp.pop %v8258
    %v9455 = vrcp.pop %v8261
    %v9456 = vrcp.pop %v8264
    %v9457 = vrcp.pop %v8267
    %v9458 = vrcp.pop %v8270
    %v9459 = vrcp.pop %v8273
    %v9460 = vrcp.pop %v8276
    %v9461 = vrcp.pop %v8279
    %v9462 = vrcp.pop %v8282
    %v9463 = vrcp.pop %v8285
    %v9464 = vrcp.pop %v8288
    %v9465 = vrcp.pop %v8291
    %v9466 = vrcp.pop %v8294
    %v9467 = vrcp.pop %v8297
    %v9468 = vrcp.pop %v8300
    %v9469 = vrcp.pop %v8303
    %v9470 = vrcp.pop %v8306
    %v9471 = vrcp.pop %v8309
    %v9472 = vrcp.pop %v8312
    %v9473 = vrcp.pop %v8315
    %v9474 = vrcp.pop %v8318
    %v9475 = vrcp.pop %v8321
    %v9476 = vrcp.pop %v8324
    %v9477 = vrcp.pop %v8327
    %v9478 = vrcp.pop %v8330
    %v9479 = vrcp.pop %v8333
    %v9480 = vrcp.pop %v8336
    %v9481 = vrcp.pop %v8339
    %v9482 = vrcp.pop %v8342
    %v9483 = vrcp.pop %v8345
    %v9484 = vrcp.pop %v8348
    %v9485 = vrcp.pop %v8351
    %v9486 = vrcp.pop %v8354
    %v9487 = vrcp.pop %v8357
    %v9488 = vrcp.pop %v8360
    %v9489 = vrcp.pop %v8363
    %v9490 = vrcp.pop %v8366
    %v9491 = vrcp.pop %v8369
    %v9492 = vrcp.pop %v8372
    %v9493 = vrcp.pop %v8375
    %v9494 = vrcp.pop %v8378
    %v9495 = vrcp.pop %v8381
    %v9496 = vrcp.pop %v8384
    %v9497 = vrcp.pop %v8387
    %v9498 = vrcp.pop %v8390
    %v9499 = vrcp.pop %v8393
    %v9500 = vrcp.pop %v8396
    %v9501 = vrcp.pop %v8399
    %v9502 = vrcp.pop %v8402
    %v9503 = vrcp.pop %v8405
    %v9504 = vrcp.pop %v8408
    %v9505 = vrcp.pop %v8411
    %v9506 = vrcp.pop %v8414
    %v9507 = vrcp.pop %v8417
    %v9508 = vrcp.pop %v8420
    %v9509 = vrcp.pop %v8423
    %v9510 = vrcp.pop %v8426
    %v9511 = vrcp.pop %v8429
    %v9512 = vrcp.pop %v8432
    %v9513 = vrcp.pop %v8435
    %v9514 = vrcp.pop %v8438
    %v9515 = vrcp.pop %v8441
    %v9516 = vrcp.pop %v8444
    %v9517 = vrcp.pop %v8447
    %v9518 = vrcp.pop %v8450
    %v9519 = vrcp.pop %v8453
    %v9520 = vrcp.pop %v8456
    %v9521 = vrcp.pop %v8459
    %v9522 = vrcp.pop %v8462
    %v9523 = vrcp.pop %v8465
    %v9524 = vrcp.pop %v8468
    %v9525 = vrcp.pop %v8471
    %v9526 = vrcp.pop %v8474
    %v9527 = vrcp.pop %v8477
    %v9528 = vrcp.pop %v8480
    %v9529 = vrcp.pop %v8483
    %v9530 = vrcp.pop %v8486
    %v9531 = vrcp.pop %v8489
    %v9532 = vrcp.pop %v8492
    %v9533 = vrcp.pop %v8495
    %v9534 = vrcp.pop %v8498
    %v9535 = vrcp.pop %v8501
    %v9536 = vrcp.pop %v8504
    %v9537 = vrcp.pop %v8507
    %v9538 = vrcp.pop %v8510
    %v9539 = vmul.f32 %v8578, %v9411
    %v9540 = vmul.f32 %v8583, %v9412
    %v9541 = vmul.f32 %v8588, %v9413
    %v9542 = vmul.f32 %v8593, %v9414
    %v9543 = vmul.f32 %v8598, %v9415
    %v9544 = vmul.f32 %v8603, %v9416
    %v9545 = vmul.f32 %v8608, %v9417
    %v9546 = vmul.f32 %v8613, %v9418
    %v9547 = vmul.f32 %v8618, %v9419
    %v9548 = vmul.f32 %v8623, %v9420
    %v9549 = vmul.f32 %v8628, %v9421
    %v9550 = vmul.f32 %v8633, %v9422
    %v9551 = vmul.f32 %v8638, %v9423
    %v9552 = vmul.f32 %v8643, %v9424
    %v9553 = vmul.f32 %v8648, %v9425
    %v9554 = vmul.f32 %v8653, %v9426
    %v9555 = vmul.f32 %v8658, %v9427
    %v9556 = vmul.f32 %v8663, %v9428
    %v9557 = vmul.f32 %v8668, %v9429
    %v9558 = vmul.f32 %v8673, %v9430
    %v9559 = vmul.f32 %v8678, %v9431
    %v9560 = vmul.f32 %v8683, %v9432
    %v9561 = vmul.f32 %v8688, %v9433
    %v9562 = vmul.f32 %v8693, %v9434
    %v9563 = vmul.f32 %v8698, %v9435
    %v9564 = vmul.f32 %v8703, %v9436
    %v9565 = vmul.f32 %v8708, %v9437
    %v9566 = vmul.f32 %v8713, %v9438
    %v9567 = vmul.f32 %v8718, %v9439
    %v9568 = vmul.f32 %v8723, %v9440
    %v9569 = vmul.f32 %v8728, %v9441
    %v9570 = vmul.f32 %v8733, %v9442
    %v9571 = vmul.f32 %v8803, %v9443
    %v9572 = vmul.f32 %v8808, %v9444
    %v9573 = vmul.f32 %v8813, %v9445
    %v9574 = vmul.f32 %v8818, %v9446
    %v9575 = vmul.f32 %v8823, %v9447
    %v9576 = vmul.f32 %v8828, %v9448
    %v9577 = vmul.f32 %v8833, %v9449
    %v9578 = vmul.f32 %v8838, %v9450
    %v9579 = vmul.f32 %v8843, %v9451
    %v9580 = vmul.f32 %v8848, %v9452
    %v9581 = vmul.f32 %v8853, %v9453
    %v9582 = vmul.f32 %v8858, %v9454
    %v9583 = vmul.f32 %v8863, %v9455
    %v9584 = vmul.f32 %v8868, %v9456
    %v9585 = vmul.f32 %v8873, %v9457
    %v9586 = vmul.f32 %v8878, %v9458
    %v9587 = vmul.f32 %v8883, %v9459
    %v9588 = vmul.f32 %v8888, %v9460
    %v9589 = vmul.f32 %v8893, %v9461
    %v9590 = vmul.f32 %v8898, %v9462
    %v9591 = vmul.f32 %v8903, %v9463
    %v9592 = vmul.f32 %v8908, %v9464
    %v9593 = vmul.f32 %v8913, %v9465
    %v9594 = vmul.f32 %v8918, %v9466
    %v9595 = vmul.f32 %v8923, %v9467
    %v9596 = vmul.f32 %v8928, %v9468
    %v9597 = vmul.f32 %v8933, %v9469
    %v9598 = vmul.f32 %v8938, %v9470
    %v9599 = vmul.f32 %v8943, %v9471
    %v9600 = vmul.f32 %v8948, %v9472
    %v9601 = vmul.f32 %v8953, %v9473
    %v9602 = vmul.f32 %v8958, %v9474
    %v9603 = vmul.f32 %v9028, %v9475
    %v9604 = vmul.f32 %v9033, %v9476
    %v9605 = vmul.f32 %v9038, %v9477
    %v9606 = vmul.f32 %v9043, %v9478
    %v9607 = vmul.f32 %v9048, %v9479
    %v9608 = vmul.f32 %v9053, %v9480
    %v9609 = vmul.f32 %v9058, %v9481
    %v9610 = vmul.f32 %v9063, %v9482
    %v9611 = vmul.f32 %v9068, %v9483
    %v9612 = vmul.f32 %v9073, %v9484
    %v9613 = vmul.f32 %v9078, %v9485
    %v9614 = vmul.f32 %v9083, %v9486
    %v9615 = vmul.f32 %v9088, %v9487
    %v9616 = vmul.f32 %v9093, %v9488
    %v9617 = vmul.f32 %v9098, %v9489
    %v9618 = vmul.f32 %v9103, %v9490
    %v9619 = vmul.f32 %v9108, %v9491
    %v9620 = vmul.f32 %v9113, %v9492
    %v9621 = vmul.f32 %v9118, %v9493
    %v9622 = vmul.f32 %v9123, %v9494
    %v9623 = vmul.f32 %v9128, %v9495
    %v9624 = vmul.f32 %v9133, %v9496
    %v9625 = vmul.f32 %v9138, %v9497
    %v9626 = vmul.f32 %v9143, %v9498
    %v9627 = vmul.f32 %v9148, %v9499
    %v9628 = vmul.f32 %v9153, %v9500
    %v9629 = vmul.f32 %v9158, %v9501
    %v9630 = vmul.f32 %v9163, %v9502
    %v9631 = vmul.f32 %v9168, %v9503
    %v9632 = vmul.f32 %v9173, %v9504
    %v9633 = vmul.f32 %v9178, %v9505
    %v9634 = vmul.f32 %v9183, %v9506
    %v9635 = vmul.f32 %v9253, %v9507
    %v9636 = vmul.f32 %v9258, %v9508
    %v9637 = vmul.f32 %v9263, %v9509
    %v9638 = vmul.f32 %v9268, %v9510
    %v9639 = vmul.f32 %v9273, %v9511
    %v9640 = vmul.f32 %v9278, %v9512
    %v9641 = vmul.f32 %v9283, %v9513
    %v9642 = vmul.f32 %v9288, %v9514
    %v9643 = vmul.f32 %v9293, %v9515
    %v9644 = vmul.f32 %v9298, %v9516
    %v9645 = vmul.f32 %v9303, %v9517
    %v9646 = vmul.f32 %v9308, %v9518
    %v9647 = vmul.f32 %v9313, %v9519
    %v9648 = vmul.f32 %v9318, %v9520
    %v9649 = vmul.f32 %v9323, %v9521
    %v9650 = vmul.f32 %v9328, %v9522
    %v9651 = vmul.f32 %v9333, %v9523
    %v9652 = vmul.f32 %v9338, %v9524
    %v9653 = vmul.f32 %v9343, %v9525
    %v9654 = vmul.f32 %v9348, %v9526
    %v9655 = vmul.f32 %v9353, %v9527
    %v9656 = vmul.f32 %v9358, %v9528
    %v9657 = vmul.f32 %v9363, %v9529
    %v9658 = vmul.f32 %v9368, %v9530
    %v9659 = vmul.f32 %v9373, %v9531
    %v9660 = vmul.f32 %v9378, %v9532
    %v9661 = vmul.f32 %v9383, %v9533
    %v9662 = vmul.f32 %v9388, %v9534
    %v9663 = vmul.f32 %v9393, %v9535
    %v9664 = vmul.f32 %v9398, %v9536
    %v9665 = vmul.f32 %v9403, %v9537
    %v9666 = vmul.f32 %v9408, %v9538
    %9667 = vxpose.xlu0.b32.start [1/16] %v9539, 128
    %9668 = vxpose.xlu0.b32.cont [2/16] %v9540, 128
    %9669 = vxpose.xlu0.b32.cont [3/16] %v9541, 128
    %9670 = vxpose.xlu0.b32.cont [4/16] %v9542, 128
    %9671 = vxpose.xlu0.b32.cont [5/16] %v9543, 128
    %9672 = vxpose.xlu0.b32.cont [6/16] %v9544, 128
    %9673 = vxpose.xlu0.b32.cont [7/16] %v9545, 128
    %9674 = vxpose.xlu0.b32.cont [8/16] %v9546, 128
    %9675 = vxpose.xlu0.b32.cont [9/16] %v9547, 128
    %9676 = vxpose.xlu0.b32.cont [10/16] %v9548, 128
    %9677 = vxpose.xlu0.b32.cont [11/16] %v9549, 128
    %9678 = vxpose.xlu0.b32.cont [12/16] %v9550, 128
    %9679 = vxpose.xlu0.b32.cont [13/16] %v9551, 128
    %9680 = vxpose.xlu0.b32.cont [14/16] %v9552, 128
    %9681 = vxpose.xlu0.b32.cont [15/16] %v9553, 128
    %9682 = vxpose.xlu0.b32.end [16/16] %v9554, 128
    %v9683 = vpop.trf.xlu0
    %v9684 = vpop.trf.xlu0
    %v9685 = vpop.trf.xlu0
    %v9686 = vpop.trf.xlu0
    %v9687 = vpop.trf.xlu0
    %v9688 = vpop.trf.xlu0
    %v9689 = vpop.trf.xlu0
    %v9690 = vpop.trf.xlu0
    %v9691 = vpop.trf.xlu0
    %v9692 = vpop.trf.xlu0
    %v9693 = vpop.trf.xlu0
    %v9694 = vpop.trf.xlu0
    %v9695 = vpop.trf.xlu0
    %v9696 = vpop.trf.xlu0
    %v9697 = vpop.trf.xlu0
    %v9698 = vpop.trf.xlu0
    %9699 = vxpose.xlu0.b32.start [1/16] %v9555, 128
    %9700 = vxpose.xlu0.b32.cont [2/16] %v9556, 128
    %9701 = vxpose.xlu0.b32.cont [3/16] %v9557, 128
    %9702 = vxpose.xlu0.b32.cont [4/16] %v9558, 128
    %9703 = vxpose.xlu0.b32.cont [5/16] %v9559, 128
    %9704 = vxpose.xlu0.b32.cont [6/16] %v9560, 128
    %9705 = vxpose.xlu0.b32.cont [7/16] %v9561, 128
    %9706 = vxpose.xlu0.b32.cont [8/16] %v9562, 128
    %9707 = vxpose.xlu0.b32.cont [9/16] %v9563, 128
    %9708 = vxpose.xlu0.b32.cont [10/16] %v9564, 128
    %9709 = vxpose.xlu0.b32.cont [11/16] %v9565, 128
    %9710 = vxpose.xlu0.b32.cont [12/16] %v9566, 128
    %9711 = vxpose.xlu0.b32.cont [13/16] %v9567, 128
    %9712 = vxpose.xlu0.b32.cont [14/16] %v9568, 128
    %9713 = vxpose.xlu0.b32.cont [15/16] %v9569, 128
    %9714 = vxpose.xlu0.b32.end [16/16] %v9570, 128
    %v9715 = vpop.trf.xlu0
    %v9716 = vpop.trf.xlu0
    %v9717 = vpop.trf.xlu0
    %v9718 = vpop.trf.xlu0
    %v9719 = vpop.trf.xlu0
    %v9720 = vpop.trf.xlu0
    %v9721 = vpop.trf.xlu0
    %v9722 = vpop.trf.xlu0
    %v9723 = vpop.trf.xlu0
    %v9724 = vpop.trf.xlu0
    %v9725 = vpop.trf.xlu0
    %v9726 = vpop.trf.xlu0
    %v9727 = vpop.trf.xlu0
    %v9728 = vpop.trf.xlu0
    %v9729 = vpop.trf.xlu0
    %v9730 = vpop.trf.xlu0
    %9731 = vxpose.xlu0.b32.start [1/16] %v9571, 128
    %9732 = vxpose.xlu0.b32.cont [2/16] %v9572, 128
    %9733 = vxpose.xlu0.b32.cont [3/16] %v9573, 128
    %9734 = vxpose.xlu0.b32.cont [4/16] %v9574, 128
    %9735 = vxpose.xlu0.b32.cont [5/16] %v9575, 128
    %9736 = vxpose.xlu0.b32.cont [6/16] %v9576, 128
    %9737 = vxpose.xlu0.b32.cont [7/16] %v9577, 128
    %9738 = vxpose.xlu0.b32.cont [8/16] %v9578, 128
    %9739 = vxpose.xlu0.b32.cont [9/16] %v9579, 128
    %9740 = vxpose.xlu0.b32.cont [10/16] %v9580, 128
    %9741 = vxpose.xlu0.b32.cont [11/16] %v9581, 128
    %9742 = vxpose.xlu0.b32.cont [12/16] %v9582, 128
    %9743 = vxpose.xlu0.b32.cont [13/16] %v9583, 128
    %9744 = vxpose.xlu0.b32.cont [14/16] %v9584, 128
    %9745 = vxpose.xlu0.b32.cont [15/16] %v9585, 128
    %9746 = vxpose.xlu0.b32.end [16/16] %v9586, 128
    %v9747 = vpop.trf.xlu0
    %v9748 = vpop.trf.xlu0
    %v9749 = vpop.trf.xlu0
    %v9750 = vpop.trf.xlu0
    %v9751 = vpop.trf.xlu0
    %v9752 = vpop.trf.xlu0
    %v9753 = vpop.trf.xlu0
    %v9754 = vpop.trf.xlu0
    %v9755 = vpop.trf.xlu0
    %v9756 = vpop.trf.xlu0
    %v9757 = vpop.trf.xlu0
    %v9758 = vpop.trf.xlu0
    %v9759 = vpop.trf.xlu0
    %v9760 = vpop.trf.xlu0
    %v9761 = vpop.trf.xlu0
    %v9762 = vpop.trf.xlu0
    %9763 = vxpose.xlu0.b32.start [1/16] %v9587, 128
    %9764 = vxpose.xlu0.b32.cont [2/16] %v9588, 128
    %9765 = vxpose.xlu0.b32.cont [3/16] %v9589, 128
    %9766 = vxpose.xlu0.b32.cont [4/16] %v9590, 128
    %9767 = vxpose.xlu0.b32.cont [5/16] %v9591, 128
    %9768 = vxpose.xlu0.b32.cont [6/16] %v9592, 128
    %9769 = vxpose.xlu0.b32.cont [7/16] %v9593, 128
    %9770 = vxpose.xlu0.b32.cont [8/16] %v9594, 128
    %9771 = vxpose.xlu0.b32.cont [9/16] %v9595, 128
    %9772 = vxpose.xlu0.b32.cont [10/16] %v9596, 128
    %9773 = vxpose.xlu0.b32.cont [11/16] %v9597, 128
    %9774 = vxpose.xlu0.b32.cont [12/16] %v9598, 128
    %9775 = vxpose.xlu0.b32.cont [13/16] %v9599, 128
    %9776 = vxpose.xlu0.b32.cont [14/16] %v9600, 128
    %9777 = vxpose.xlu0.b32.cont [15/16] %v9601, 128
    %9778 = vxpose.xlu0.b32.end [16/16] %v9602, 128
    %v9779 = vpop.trf.xlu0
    %v9780 = vpop.trf.xlu0
    %v9781 = vpop.trf.xlu0
    %v9782 = vpop.trf.xlu0
    %v9783 = vpop.trf.xlu0
    %v9784 = vpop.trf.xlu0
    %v9785 = vpop.trf.xlu0
    %v9786 = vpop.trf.xlu0
    %v9787 = vpop.trf.xlu0
    %v9788 = vpop.trf.xlu0
    %v9789 = vpop.trf.xlu0
    %v9790 = vpop.trf.xlu0
    %v9791 = vpop.trf.xlu0
    %v9792 = vpop.trf.xlu0
    %v9793 = vpop.trf.xlu0
    %v9794 = vpop.trf.xlu0
    %9795 = vxpose.xlu0.b32.start [1/16] %v9603, 128
    %9796 = vxpose.xlu0.b32.cont [2/16] %v9604, 128
    %9797 = vxpose.xlu0.b32.cont [3/16] %v9605, 128
    %9798 = vxpose.xlu0.b32.cont [4/16] %v9606, 128
    %9799 = vxpose.xlu0.b32.cont [5/16] %v9607, 128
    %9800 = vxpose.xlu0.b32.cont [6/16] %v9608, 128
    %9801 = vxpose.xlu0.b32.cont [7/16] %v9609, 128
    %9802 = vxpose.xlu0.b32.cont [8/16] %v9610, 128
    %9803 = vxpose.xlu0.b32.cont [9/16] %v9611, 128
    %9804 = vxpose.xlu0.b32.cont [10/16] %v9612, 128
    %9805 = vxpose.xlu0.b32.cont [11/16] %v9613, 128
    %9806 = vxpose.xlu0.b32.cont [12/16] %v9614, 128
    %9807 = vxpose.xlu0.b32.cont [13/16] %v9615, 128
    %9808 = vxpose.xlu0.b32.cont [14/16] %v9616, 128
    %9809 = vxpose.xlu0.b32.cont [15/16] %v9617, 128
    %9810 = vxpose.xlu0.b32.end [16/16] %v9618, 128
    %v9811 = vpop.trf.xlu0
    %v9812 = vpop.trf.xlu0
    %v9813 = vpop.trf.xlu0
    %v9814 = vpop.trf.xlu0
    %v9815 = vpop.trf.xlu0
    %v9816 = vpop.trf.xlu0
    %v9817 = vpop.trf.xlu0
    %v9818 = vpop.trf.xlu0
    %v9819 = vpop.trf.xlu0
    %v9820 = vpop.trf.xlu0
    %v9821 = vpop.trf.xlu0
    %v9822 = vpop.trf.xlu0
    %v9823 = vpop.trf.xlu0
    %v9824 = vpop.trf.xlu0
    %v9825 = vpop.trf.xlu0
    %v9826 = vpop.trf.xlu0
    %9827 = vxpose.xlu0.b32.start [1/16] %v9619, 128
    %9828 = vxpose.xlu0.b32.cont [2/16] %v9620, 128
    %9829 = vxpose.xlu0.b32.cont [3/16] %v9621, 128
    %9830 = vxpose.xlu0.b32.cont [4/16] %v9622, 128
    %9831 = vxpose.xlu0.b32.cont [5/16] %v9623, 128
    %9832 = vxpose.xlu0.b32.cont [6/16] %v9624, 128
    %9833 = vxpose.xlu0.b32.cont [7/16] %v9625, 128
    %9834 = vxpose.xlu0.b32.cont [8/16] %v9626, 128
    %9835 = vxpose.xlu0.b32.cont [9/16] %v9627, 128
    %9836 = vxpose.xlu0.b32.cont [10/16] %v9628, 128
    %9837 = vxpose.xlu0.b32.cont [11/16] %v9629, 128
    %9838 = vxpose.xlu0.b32.cont [12/16] %v9630, 128
    %9839 = vxpose.xlu0.b32.cont [13/16] %v9631, 128
    %9840 = vxpose.xlu0.b32.cont [14/16] %v9632, 128
    %9841 = vxpose.xlu0.b32.cont [15/16] %v9633, 128
    %9842 = vxpose.xlu0.b32.end [16/16] %v9634, 128
    %v9843 = vpop.trf.xlu0
    %v9844 = vpop.trf.xlu0
    %v9845 = vpop.trf.xlu0
    %v9846 = vpop.trf.xlu0
    %v9847 = vpop.trf.xlu0
    %v9848 = vpop.trf.xlu0
    %v9849 = vpop.trf.xlu0
    %v9850 = vpop.trf.xlu0
    %v9851 = vpop.trf.xlu0
    %v9852 = vpop.trf.xlu0
    %v9853 = vpop.trf.xlu0
    %v9854 = vpop.trf.xlu0
    %v9855 = vpop.trf.xlu0
    %v9856 = vpop.trf.xlu0
    %v9857 = vpop.trf.xlu0
    %v9858 = vpop.trf.xlu0
    %9859 = vxpose.xlu0.b32.start [1/16] %v9635, 128
    %9860 = vxpose.xlu0.b32.cont [2/16] %v9636, 128
    %9861 = vxpose.xlu0.b32.cont [3/16] %v9637, 128
    %9862 = vxpose.xlu0.b32.cont [4/16] %v9638, 128
    %9863 = vxpose.xlu0.b32.cont [5/16] %v9639, 128
    %9864 = vxpose.xlu0.b32.cont [6/16] %v9640, 128
    %9865 = vxpose.xlu0.b32.cont [7/16] %v9641, 128
    %9866 = vxpose.xlu0.b32.cont [8/16] %v9642, 128
    %9867 = vxpose.xlu0.b32.cont [9/16] %v9643, 128
    %9868 = vxpose.xlu0.b32.cont [10/16] %v9644, 128
    %9869 = vxpose.xlu0.b32.cont [11/16] %v9645, 128
    %9870 = vxpose.xlu0.b32.cont [12/16] %v9646, 128
    %9871 = vxpose.xlu0.b32.cont [13/16] %v9647, 128
    %9872 = vxpose.xlu0.b32.cont [14/16] %v9648, 128
    %9873 = vxpose.xlu0.b32.cont [15/16] %v9649, 128
    %9874 = vxpose.xlu0.b32.end [16/16] %v9650, 128
    %v9875 = vpop.trf.xlu0
    %v9876 = vpop.trf.xlu0
    %v9877 = vpop.trf.xlu0
    %v9878 = vpop.trf.xlu0
    %v9879 = vpop.trf.xlu0
    %v9880 = vpop.trf.xlu0
    %v9881 = vpop.trf.xlu0
    %v9882 = vpop.trf.xlu0
    %v9883 = vpop.trf.xlu0
    %v9884 = vpop.trf.xlu0
    %v9885 = vpop.trf.xlu0
    %v9886 = vpop.trf.xlu0
    %v9887 = vpop.trf.xlu0
    %v9888 = vpop.trf.xlu0
    %v9889 = vpop.trf.xlu0
    %v9890 = vpop.trf.xlu0
    %9891 = vxpose.xlu0.b32.start [1/16] %v9651, 128
    %9892 = vxpose.xlu0.b32.cont [2/16] %v9652, 128
    %9893 = vxpose.xlu0.b32.cont [3/16] %v9653, 128
    %9894 = vxpose.xlu0.b32.cont [4/16] %v9654, 128
    %9895 = vxpose.xlu0.b32.cont [5/16] %v9655, 128
    %9896 = vxpose.xlu0.b32.cont [6/16] %v9656, 128
    %9897 = vxpose.xlu0.b32.cont [7/16] %v9657, 128
    %9898 = vxpose.xlu0.b32.cont [8/16] %v9658, 128
    %9899 = vxpose.xlu0.b32.cont [9/16] %v9659, 128
    %9900 = vxpose.xlu0.b32.cont [10/16] %v9660, 128
    %9901 = vxpose.xlu0.b32.cont [11/16] %v9661, 128
    %9902 = vxpose.xlu0.b32.cont [12/16] %v9662, 128
    %9903 = vxpose.xlu0.b32.cont [13/16] %v9663, 128
    %9904 = vxpose.xlu0.b32.cont [14/16] %v9664, 128
    %9905 = vxpose.xlu0.b32.cont [15/16] %v9665, 128
    %9906 = vxpose.xlu0.b32.end [16/16] %v9666, 128
    %v9907 = vpop.trf.xlu0
    %v9908 = vpop.trf.xlu0
    %v9909 = vpop.trf.xlu0
    %v9910 = vpop.trf.xlu0
    %v9911 = vpop.trf.xlu0
    %v9912 = vpop.trf.xlu0
    %v9913 = vpop.trf.xlu0
    %v9914 = vpop.trf.xlu0
    %v9915 = vpop.trf.xlu0
    %v9916 = vpop.trf.xlu0
    %v9917 = vpop.trf.xlu0
    %v9918 = vpop.trf.xlu0
    %v9919 = vpop.trf.xlu0
    %v9920 = vpop.trf.xlu0
    %v9921 = vpop.trf.xlu0
    %v9922 = vpop.trf.xlu0
    %v9923 = vld [vmem:[%s3] sm:$0xff]
    %v9924 = vld [vmem:[%s3 + $0x8] sm:$0xff]
    %v9925 = vld [vmem:[%s3 + $0x10] sm:$0xff]
    %v9926 = vld [vmem:[%s3 + $0x18] sm:$0xff]
    %v9927 = vld [vmem:[%s4] sm:$0xff]
    %v9928 = vld [vmem:[%s4 + $0x8] sm:$0xff]
    %v9929 = vld [vmem:[%s4 + $0x10] sm:$0xff]
    %v9930 = vld [vmem:[%s4 + $0x18] sm:$0xff]
    %9932 = vset.pattern.permute.xlu0 0
    %9933 = vperm.xlu0 %9932, %v9927
    %v9934 = vpop.permute.xlu0 %9933
    %9937 = vset.pattern.permute.xlu0 0
    %9938 = vperm.xlu0 %9937, %v9928
    %v9939 = vpop.permute.xlu0 %9938
    %9942 = vset.pattern.permute.xlu0 0
    %9943 = vperm.xlu0 %9942, %v9929
    %v9944 = vpop.permute.xlu0 %9943
    %9947 = vset.pattern.permute.xlu0 0
    %9948 = vperm.xlu0 %9947, %v9930
    %v9949 = vpop.permute.xlu0 %9948
    %v9952 = vsel %vm113, %v9923, 0
    %v9955 = vsel %vm113, %v9924, 0
    %v9958 = vsel %vm113, %v9925, 0
    %v9961 = vsel %vm113, %v9926, 0
    %9963 = vmatprep.subr.mxu0 %v9715
    %9964 = vmatpush1.msra.mxu0 %v9683
    %9965 = vmatprep.subr.mxu0 %v9779
    %9966 = vmatpush1.msra.mxu0 %v9747
    %9967 = vmatprep.subr.mxu0 %v9843
    %9968 = vmatpush1.msra.mxu0 %v9811
    %9969 = vmatprep.subr.mxu0 %v9907
    %9970 = vmatpush1.msra.mxu0 %v9875
    %9971 = vmatprep.subr.mxu0 0.0
    %9972 = vmatpush1.msra.mxu0 0.0
    %9973 = vmatprep.subr.mxu0 0.0
    %9974 = vmatpush1.msra.mxu0 0.0
    %9975 = vmatprep.subr.mxu0 0.0
    %9976 = vmatpush1.msra.mxu0 0.0
    %9977 = vmatprep.subr.mxu0 0.0
    %9978 = vmatpush1.msra.mxu0 0.0
    %9979 = vmatprep.subr.mxu0 0.0
    %9980 = vmatpush1.msra.mxu0 0.0
    %9981 = vmatprep.subr.mxu0 0.0
    %9982 = vmatpush1.msra.mxu0 0.0
    %9983 = vmatprep.subr.mxu0 0.0
    %9984 = vmatpush1.msra.mxu0 0.0
    %9985 = vmatprep.subr.mxu0 0.0
    %9986 = vmatpush1.msra.mxu0 0.0
    %9987 = vmatprep.subr.mxu0 0.0
    %9988 = vmatpush1.msra.mxu0 0.0
    %9989 = vmatprep.subr.mxu0 0.0
    %9990 = vmatpush1.msra.mxu0 0.0
    %9991 = vmatprep.subr.mxu0 0.0
    %9992 = vmatpush1.msra.mxu0 0.0
    %9993 = vmatprep.subr.mxu0 0.0
    %9994 = vmatpush1.msra.mxu0 0.0
    %9995 = vmatprep.subr.mxu0 0.0
    %9996 = vmatpush1.msra.mxu0 0.0
    %9997 = vmatprep.subr.mxu0 0.0
    %9998 = vmatpush1.msra.mxu0 0.0
    %9999 = vmatprep.subr.mxu0 0.0
    %10000 = vmatpush1.msra.mxu0 0.0
    %10001 = vmatprep.subr.mxu0 0.0
    %10002 = vmatpush1.msra.mxu0 0.0
    %10003 = vmatprep.subr.mxu0 0.0
    %10004 = vmatpush1.msra.mxu0 0.0
    %10005 = vmatprep.subr.mxu0 0.0
    %10006 = vmatpush1.msra.mxu0 0.0
    %10007 = vmatprep.subr.mxu0 0.0
    %10008 = vmatpush1.msra.mxu0 0.0
    %10009 = vmatprep.subr.mxu0 0.0
    %10010 = vmatpush1.msra.mxu0 0.0
    %10011 = vmatprep.subr.mxu0 0.0
    %10012 = vmatpush1.msra.mxu0 0.0
    %10013 = vmatprep.subr.mxu0 0.0
    %10014 = vmatpush1.msra.mxu0 0.0
    %10015 = vmatprep.subr.mxu0 0.0
    %10016 = vmatpush1.msra.mxu0 0.0
    %10017 = vmatprep.subr.mxu0 0.0
    %10018 = vmatpush1.msra.mxu0 0.0
    %10019 = vmatprep.subr.mxu0 0.0
    %10020 = vmatpush1.msra.mxu0 0.0
    %10021 = vmatprep.subr.mxu0 0.0
    %10022 = vmatpush1.msra.mxu0 0.0
    %10023 = vmatprep.subr.mxu0 0.0
    %10024 = vmatpush1.msra.mxu0 0.0
    %10025 = vmatprep.subr.mxu0 0.0
    %10026 = vmatpush1.msra.mxu0 0.0
    %10027 = vmatprep.mubr.f32.mxu0 0.0
    %10028 = vmatmul.mubr.f32.gmra.mrb[0].mxu0 %v9952
    %v10029 = vpop.f32.mrb[0].mxu0
    %v10030 = vadd.f32 %v9934, %v10029
    %v10031 = vpop.f32.mrb[0].mxu0
    %v10032 = vadd.f32 %v9934, %v10031
    %10033 = vmatprep.mubr.f32.mxu0 0.0
    %10034 = vmatmul.mubr.f32.gmra.mrb[0].mxu0 %v9955
    %v10035 = vpop.f32.mrb[0].mxu0
    %v10036 = vadd.f32 %v9939, %v10035
    %v10037 = vpop.f32.mrb[0].mxu0
    %v10038 = vadd.f32 %v9939, %v10037
    %10039 = vmatprep.mubr.f32.mxu0 0.0
    %10040 = vmatmul.mubr.f32.gmra.mrb[0].mxu0 %v9958
    %v10041 = vpop.f32.mrb[0].mxu0
    %v10042 = vadd.f32 %v9944, %v10041
    %v10043 = vpop.f32.mrb[0].mxu0
    %v10044 = vadd.f32 %v9944, %v10043
    %10045 = vmatprep.mubr.f32.mxu0 0.0
    %10046 = vmatmul.mubr.f32.gmra.mrb[0].mxu0 %v9961
    %v10047 = vpop.f32.mrb[0].mxu0
    %v10048 = vadd.f32 %v9949, %v10047
    %v10049 = vpop.f32.mrb[0].mxu0
    %v10050 = vadd.f32 %v9949, %v10049
    %10051 = vdwg.mxu0
    %s10052 = scalar_lea.vmem [#allocation2], 64
    %10053 = vst [vmem:[%s10052] sm:$0xff] %v10030
    %10054 = vst [vmem:[%s10052 + $0x8] sm:$0xff] %v10032
    %10055 = vst [vmem:[%s10052 + $0x10] sm:$0xff] %v10036
    %10056 = vst [vmem:[%s10052 + $0x18] sm:$0xff] %v10038
    %10057 = vst [vmem:[%s10052 + $0x20] sm:$0xff] %v10042
    %10058 = vst [vmem:[%s10052 + $0x28] sm:$0xff] %v10044
    %10059 = vst [vmem:[%s10052 + $0x30] sm:$0xff] %v10048
    %10060 = vst [vmem:[%s10052 + $0x38] sm:$0xff] %v10050
    // Predicated region
    $region22: #{tpu_custom_call.1} parent=1 // pred_check
      _
    $region23: #{tpu_custom_call.1} parent=1 // pred_check_branch
      %10062 = sbr.rel (0) target = $region25
    $region24: #{tpu_custom_call.1} parent=1 // pred_region
      %s10064 = ssub.s32 2048, 2048
      %10065 = vsyncadd [#allocation3], %s10064
      %s10066 = sshll.u32 [#allocation2], 4
      %s10067 = int_to_ptr.vmem [resolvable:$true] %s10066
      %10072 = dma.vmem_to_hbm [thread:$0]  %s10067, 2048, %s5, [#allocation3], 256, 256, 16
    $region25: #{tpu_custom_call.1} parent=1 // pred_fallthru
      _
    // Predicated region
    $region26: #{tpu_custom_call.1} parent=1 // pred_check
      _
    $region27: #{tpu_custom_call.1} parent=1 // pred_check_branch
      %10074 = sbr.rel (0) target = $region29
    $region28: #{tpu_custom_call.1} parent=1 // pred_region
      %10075 = dma.done [#allocation3], 2048
    $region29: #{tpu_custom_call.1} parent=1 // pred_fallthru
      _
    %10076 = vsyncpa [#allocation3], 1

</llo_original>
